<compile_context>
chip_gen: v6e
topology: v6e:2x2x1
jax: 0.10.0
libtpu: 0.0.40
codegen_flags: <defaults>
</compile_context>

<pallas_src>
import functools

import jax
import jax.numpy as jnp
import numpy as np
from jax.experimental import pallas as pl
from jax.experimental.pallas import tpu as pltpu

LEAKY_SLOPE = 0.1
BN_EPS = 1e-5
CIN_PAD = 8                      # pad 3 input channels to 8 (sublane aligned)
KROW = 3 * CIN_PAD               # 24 merged (dx, ci) rows per input image row


def _lrelu(y):
    return jnp.where(y >= 0.0, y, LEAKY_SLOPE * y)


# ----------------------------------------------------------------------------
# Fused backbone kernel: one grid step = one batch element x one row tile.
# ----------------------------------------------------------------------------
def _backbone_kernel(x_ref, w1_ref, b1_ref, w2_ref, b2_ref, w3_ref, b3_ref,
                     w4_ref, b4_ref, o_ref, *, tpr, w2w, h2, hu, inv_spatial):
    """x_ref: (1, (Hu+2)*24, Wu) bf16, merged index = hp*24 + dx*8 + ci,
    width axis ordered [even output cols | odd output cols]."""
    r = pl.program_id(1)
    base = r * (2 * tpr)                      # first conv row of this tile
    has_tail = (h2 % tpr) != 0                # static python bool

    w1 = w1_ref[...]                          # (64, 72) bf16
    b1 = b1_ref[...]                          # (64, 1)  f32

    slabs = []
    for p in range(tpr):                      # static unroll (tpr <= 16)
        row = base + 2 * p
        if has_tail:                          # keep tail reads in bounds
            row = jnp.minimum(row, hu - 2)
        r24 = pl.multiple_of(row * KROW, 8)
        pa = x_ref[0, pl.ds(r24, 3 * KROW)]           # (72, Wu) conv row 2p
        pb = x_ref[0, pl.ds(r24 + KROW, 3 * KROW)]    # (72, Wu) conv row 2p+1
        c0 = _lrelu(jnp.dot(w1, pa, preferred_element_type=jnp.float32) + b1)
        c1 = _lrelu(jnp.dot(w1, pb, preferred_element_type=jnp.float32) + b1)
        v = jnp.maximum(c0, c1)                       # vertical 2-pool
        # horizontal 2-pool: even-col half vs odd-col half
        slabs.append(jnp.maximum(v[:, :w2w], v[:, w2w:]).astype(jnp.bfloat16))

    a1 = slabs[0] if tpr == 1 else jnp.concatenate(slabs, axis=1)  # (64, P)
    y2 = _lrelu(jnp.dot(w2_ref[...], a1, preferred_element_type=jnp.float32)
                + b2_ref[...]).astype(jnp.bfloat16)                # (128, P)
    y3 = _lrelu(jnp.dot(w3_ref[...], y2, preferred_element_type=jnp.float32)
                + b3_ref[...]).astype(jnp.bfloat16)                # (256, P)
    y4 = _lrelu(jnp.dot(w4_ref[...], y3, preferred_element_type=jnp.float32)
                + b4_ref[...])                                     # (512, P) f32

    if has_tail:                              # mask pixels from invalid rows
        nvalid = jnp.minimum(h2 - r * tpr, tpr) * w2w
        lane = jax.lax.broadcasted_iota(jnp.int32, (1, tpr * w2w), 1)
        y4 = jnp.where(lane < nvalid, y4, 0.0)

    # partial contribution to the global average pool (lane-dense 512 output)
    o_ref[0, 0, :] = jnp.sum(y4, axis=1) * inv_spatial


# ----------------------------------------------------------------------------
# Wrapper
# ----------------------------------------------------------------------------
def _row_tile(h2, w2, target=1024, cap=16):
    """Pooled rows per tile: ~`target` pooled pixels, bounded unroll."""
    return max(1, min(h2, cap, target // max(1, w2)))


def deep_image_forward(x_nchw, kp):
    """DeepImage(pretrained=False, head_layers=None): NCHW in -> (N, 512) out."""
    n, cin, h, w = x_nchw.shape
    h2, w2 = h // 2, w // 2                 # MaxPool2d(2,2) floors odd dims
    hu, wu = 2 * h2, 2 * w2

    # --- layout glue (XLA, one-time): NHWC, +1 halo, cin 3->8, dx-expansion,
    #     even/odd column split, merge (hp, dx, ci) into one sublane axis -----
    x = jnp.transpose(x_nchw, (0, 2, 3, 1)).astype(jnp.float32)     # NHWC
    xpad = jnp.pad(x, ((0, 0), (1, 1), (1, 1), (0, CIN_PAD - cin)))
    xpad = xpad[:, :hu + 2]                                         # (N,Hu+2,W+2,8)
    cols = jnp.concatenate([jnp.arange(0, wu, 2), jnp.arange(1, wu, 2)])
    parts = jnp.stack([xpad[:, :, cols + dx, :] for dx in range(3)], axis=2)
    xe = jnp.transpose(parts, (0, 1, 2, 4, 3))                      # (N,Hu+2,3,8,Wu)
    xe = xe.reshape(n, (hu + 2) * KROW, wu).astype(jnp.bfloat16)

    tpr = _row_tile(h2, w2)
    rsteps = pl.cdiv(h2, tpr)

    kernel = functools.partial(_backbone_kernel, tpr=tpr, w2w=w2, h2=h2, hu=hu,
                               inv_spatial=1.0 / float(h2 * w2))

    def cspec(shape):
        return pl.BlockSpec(shape, lambda i, j: (0,) * len(shape))

    out = pl.pallas_call(
        kernel,
        out_shape=jax.ShapeDtypeStruct((n, rsteps, 512), jnp.float32),
        grid=(n, rsteps),
        in_specs=[
            # whole (expanded) image resident; DMA'd only when the batch index
            # changes (index_map ignores r -> block revisited, not re-fetched)
            pl.BlockSpec((1, (hu + 2) * KROW, wu), lambda i, j: (i, 0, 0)),
            cspec(kp["w1"].shape), cspec(kp["b1"].shape),
            cspec(kp["w2"].shape), cspec(kp["b2"].shape),
            cspec(kp["w3"].shape), cspec(kp["b3"].shape),
            cspec(kp["w4"].shape), cspec(kp["b4"].shape),
        ],
        out_specs=pl.BlockSpec((1, 1, 512), lambda i, j: (i, j, 0)),
        compiler_params=pltpu.CompilerParams(
            dimension_semantics=("parallel", "parallel"),
            vmem_limit_bytes=40 * 1024 * 1024),
    )(xe, kp["w1"], kp["b1"], kp["w2"], kp["b2"],
      kp["w3"], kp["b3"], kp["w4"], kp["b4"])
    return out.sum(axis=1)                   # add per-tile partial sums


# ----------------------------------------------------------------------------
# Deterministic parameter init, kernel-param prep, pure-JAX reference
# ----------------------------------------------------------------------------
def _conv_bn_params(key, cin, cout, ks):
    k1, k2, k3, k4, k5, k6 = jax.random.split(key, 6)
    fan_in = cin * ks * ks
    w_hwio = jax.random.normal(k1, (ks, ks, cin, cout), jnp.float32) / np.sqrt(fan_in)
    conv_b = 0.05 * jax.random.normal(k2, (cout,), jnp.float32)
    gamma = 1.0 + 0.1 * jax.random.normal(k3, (cout,), jnp.float32)
    beta = 0.1 * jax.random.normal(k4, (cout,), jnp.float32)
    rmean = 0.1 * jax.random.normal(k5, (cout,), jnp.float32)
    rvar = 0.5 + jax.random.uniform(k6, (cout,), jnp.float32)
    scale = gamma / jnp.sqrt(rvar + BN_EPS)           # eval-mode BN
    bias = beta + (conv_b - rmean) * scale            # conv bias folded in
    return w_hwio, scale.reshape(1, cout), bias.reshape(1, cout)


def init_params(key):
    """Raw (unfolded) conv + BN parameters, used by the pure-JAX reference."""
    k1, k2, k3, k4 = jax.random.split(key, 4)
    p = {}
    p["w1_hwio"], p["s1"], p["b1"] = _conv_bn_params(k1, 3, 64, 3)
    p["w2_hwio"], p["s2"], p["b2"] = _conv_bn_params(k2, 64, 128, 1)
    p["w3_hwio"], p["s3"], p["b3"] = _conv_bn_params(k3, 128, 256, 1)
    p["w4_hwio"], p["s4"], p["b4"] = _conv_bn_params(k4, 256, 512, 1)
    return p


def prepare_kernel_params(p, cin_pad=CIN_PAD):
    """Fold BN into conv weights, transpose to (Cout, K) bf16, biases (C,1)."""
    kp = {}
    w1 = p["w1_hwio"] * p["s1"].reshape(1, 1, 1, -1)                # (dy,dx,ci,co)
    w1 = jnp.pad(w1, ((0, 0), (0, 0), (0, cin_pad - w1.shape[2]), (0, 0)))
    kp["w1"] = jnp.transpose(w1, (3, 0, 1, 2)).reshape(64, 9 * cin_pad).astype(jnp.bfloat16)
    kp["b1"] = p["b1"].reshape(-1, 1).astype(jnp.float32)
    for i in (2, 3, 4):
        wm = p[f"w{i}_hwio"][0, 0] * p[f"s{i}"]                     # (cin, cout)
        kp[f"w{i}"] = jnp.transpose(wm).astype(jnp.bfloat16)        # (cout, cin)
        kp[f"b{i}"] = p[f"b{i}"].reshape(-1, 1).astype(jnp.float32)
    return kp


def reference_forward(x_nchw, p):
    x = jnp.transpose(x_nchw, (0, 2, 3, 1)).astype(jnp.float32)

    def conv_bn_act(x, wgt, s, b, pad):
        y = jax.lax.conv_general_dilated(
            x, wgt, (1, 1), [(pad, pad), (pad, pad)],
            dimension_numbers=("NHWC", "HWIO", "NHWC"),
            precision=jax.lax.Precision.HIGHEST)
        y = y * s.reshape(1, 1, 1, -1) + b.reshape(1, 1, 1, -1)
        return jnp.where(y >= 0.0, y, LEAKY_SLOPE * y)

    y = conv_bn_act(x, p["w1_hwio"], p["s1"], p["b1"], 1)
    n, h, w, c = y.shape
    y = y.reshape(n, h // 2, 2, w // 2, 2, c).max(axis=(2, 4))
    y = conv_bn_act(y, p["w2_hwio"], p["s2"], p["b2"], 0)
    y = conv_bn_act(y, p["w3_hwio"], p["s3"], p["b3"], 0)
    y = conv_bn_act(y, p["w4_hwio"], p["s4"], p["b4"], 0)
    y = y.mean(axis=(1, 2))
    return y.reshape(y.shape[0], -1)


if __name__ == "__main__":
    key = jax.random.PRNGKey(0)
    kx, kparam = jax.random.split(key)
    x = jax.random.normal(kx, (2, 3, 16, 16), jnp.float32)   # NCHW, PyTorch-style
    raw = init_params(kparam)
    kp = prepare_kernel_params(raw)

    fwd = jax.jit(lambda xin: deep_image_forward(xin, kp))
    out = jax.block_until_ready(fwd(x))

    ref = reference_forward(x, raw)
    assert out.shape == (2, 512), out.shape
    np.testing.assert_allclose(np.asarray(out), np.asarray(ref), rtol=2e-2, atol=2e-2)
    print("KERNEL_OK")
</pallas_src>

<mosaic_0001>
module attributes {stable_mosaic.version = 11 : i64} {
  func.func @_backbone_kernel(%arg0: i32, %arg1: i32, %arg2: memref<1x432x16xbf16, #tpu.memory_space<vmem>>, %arg3: memref<64x72xbf16, #tpu.memory_space<vmem>>, %arg4: memref<64x1xf32, #tpu.memory_space<vmem>>, %arg5: memref<128x64xbf16, #tpu.memory_space<vmem>>, %arg6: memref<128x1xf32, #tpu.memory_space<vmem>>, %arg7: memref<256x128xbf16, #tpu.memory_space<vmem>>, %arg8: memref<256x1xf32, #tpu.memory_space<vmem>>, %arg9: memref<512x256xbf16, #tpu.memory_space<vmem>>, %arg10: memref<512x1xf32, #tpu.memory_space<vmem>>, %arg11: memref<1x1x512xf32, #tpu.memory_space<vmem>>) attributes {dimension_semantics = [#tpu.dimension_semantics<parallel>, #tpu.dimension_semantics<parallel>], iteration_bounds = array<i64: 2, 1>, scalar_prefetch = 0 : i64, scratch_operands = 0 : i64, tpu.core_type = #tpu.core_type<tc>, window_params = [{transform_indices = @transform_0, window_bounds = array<i64: 1, 432, 16>}, {pipeline_mode = #tpu.pipeline_mode<synchronous>, transform_indices = @transform_1, window_bounds = array<i64: 64, 72>}, {pipeline_mode = #tpu.pipeline_mode<synchronous>, transform_indices = @transform_2, window_bounds = array<i64: 64, 1>}, {pipeline_mode = #tpu.pipeline_mode<synchronous>, transform_indices = @transform_3, window_bounds = array<i64: 128, 64>}, {pipeline_mode = #tpu.pipeline_mode<synchronous>, transform_indices = @transform_4, window_bounds = array<i64: 128, 1>}, {pipeline_mode = #tpu.pipeline_mode<synchronous>, transform_indices = @transform_5, window_bounds = array<i64: 256, 128>}, {pipeline_mode = #tpu.pipeline_mode<synchronous>, transform_indices = @transform_6, window_bounds = array<i64: 256, 1>}, {pipeline_mode = #tpu.pipeline_mode<synchronous>, transform_indices = @transform_7, window_bounds = array<i64: 512, 256>}, {pipeline_mode = #tpu.pipeline_mode<synchronous>, transform_indices = @transform_8, window_bounds = array<i64: 512, 1>}, {transform_indices = @transform_9, window_bounds = array<i64: 1, 1, 512>}]} {
    %c16_i32 = arith.constant 16 : i32
    %0 = arith.muli %arg1, %c16_i32 : i32
    %c0 = arith.constant 0 : index
    %c0_0 = arith.constant 0 : index
    %1 = vector.load %arg3[%c0, %c0_0] : memref<64x72xbf16, #tpu.memory_space<vmem>>, vector<64x72xbf16>
    %c0_1 = arith.constant 0 : index
    %c0_2 = arith.constant 0 : index
    %2 = vector.load %arg4[%c0_1, %c0_2] : memref<64x1xf32, #tpu.memory_space<vmem>>, vector<64x1xf32>
    %c0_i32 = arith.constant 0 : i32
    %3 = arith.addi %0, %c0_i32 : i32
    %c24_i32 = arith.constant 24 : i32
    %4 = arith.muli %3, %c24_i32 : i32
    %5 = tpu.assume_multiple %4, 8 : i32
    %c0_3 = arith.constant 0 : index
    %6 = arith.index_cast %5 : i32 to index
    %c0_4 = arith.constant 0 : index
    %7 = vector.load %arg2[%c0_3, %6, %c0_4] : memref<1x432x16xbf16, #tpu.memory_space<vmem>>, vector<1x72x16xbf16>
    %8 = vector.shape_cast %7 : vector<1x72x16xbf16> to vector<72x16xbf16>
    %c24_i32_5 = arith.constant 24 : i32
    %9 = arith.addi %5, %c24_i32_5 : i32
    %c0_6 = arith.constant 0 : index
    %10 = arith.index_cast %9 : i32 to index
    %c0_7 = arith.constant 0 : index
    %11 = vector.load %arg2[%c0_6, %10, %c0_7] : memref<1x432x16xbf16, #tpu.memory_space<vmem>>, vector<1x72x16xbf16>
    %12 = vector.shape_cast %11 : vector<1x72x16xbf16> to vector<72x16xbf16>
    %cst = arith.constant dense<0.000000e+00> : vector<64x16xf32>
    %13 = tpu.matmul %1, %8, %cst {dimension_numbers = #tpu.dot_dimension_numbers<[1], [0], [0], [1], [0, 0, 1, 1], [], []>} : vector<64x72xbf16>, vector<72x16xbf16>, vector<64x16xf32> -> vector<64x16xf32>
    %14 = vector.broadcast %2 : vector<64x1xf32> to vector<64x16xf32>
    %15 = arith.addf %13, %14 : vector<64x16xf32>
    %cst_8 = arith.constant 0.000000e+00 : f32
    %16 = vector.broadcast %cst_8 : f32 to vector<64x16xf32>
    %17 = arith.cmpf oge, %15, %16 : vector<64x16xf32>
    %cst_9 = arith.constant 1.000000e-01 : f32
    %18 = vector.broadcast %cst_9 : f32 to vector<64x16xf32>
    %19 = arith.mulf %18, %15 : vector<64x16xf32>
    %20 = arith.select %17, %15, %19 : vector<64x16xi1>, vector<64x16xf32>
    %cst_10 = arith.constant dense<0.000000e+00> : vector<64x16xf32>
    %21 = tpu.matmul %1, %12, %cst_10 {dimension_numbers = #tpu.dot_dimension_numbers<[1], [0], [0], [1], [0, 0, 1, 1], [], []>} : vector<64x72xbf16>, vector<72x16xbf16>, vector<64x16xf32> -> vector<64x16xf32>
    %22 = vector.broadcast %2 : vector<64x1xf32> to vector<64x16xf32>
    %23 = arith.addf %21, %22 : vector<64x16xf32>
    %cst_11 = arith.constant 0.000000e+00 : f32
    %24 = vector.broadcast %cst_11 : f32 to vector<64x16xf32>
    %25 = arith.cmpf oge, %23, %24 : vector<64x16xf32>
    %cst_12 = arith.constant 1.000000e-01 : f32
    %26 = vector.broadcast %cst_12 : f32 to vector<64x16xf32>
    %27 = arith.mulf %26, %23 : vector<64x16xf32>
    %28 = arith.select %25, %23, %27 : vector<64x16xi1>, vector<64x16xf32>
    %29 = arith.maximumf %20, %28 : vector<64x16xf32>
    %30 = vector.extract_strided_slice %29 {offsets = [0, 0], sizes = [64, 8], strides = [1, 1]} : vector<64x16xf32> to vector<64x8xf32>
    %31 = vector.extract_strided_slice %29 {offsets = [0, 8], sizes = [64, 8], strides = [1, 1]} : vector<64x16xf32> to vector<64x8xf32>
    %32 = arith.maximumf %30, %31 : vector<64x8xf32>
    %33 = arith.truncf %32 : vector<64x8xf32> to vector<64x8xbf16>
    %c2_i32 = arith.constant 2 : i32
    %34 = arith.addi %0, %c2_i32 : i32
    %c24_i32_13 = arith.constant 24 : i32
    %35 = arith.muli %34, %c24_i32_13 : i32
    %36 = tpu.assume_multiple %35, 8 : i32
    %c0_14 = arith.constant 0 : index
    %37 = arith.index_cast %36 : i32 to index
    %c0_15 = arith.constant 0 : index
    %38 = vector.load %arg2[%c0_14, %37, %c0_15] : memref<1x432x16xbf16, #tpu.memory_space<vmem>>, vector<1x72x16xbf16>
    %39 = vector.shape_cast %38 : vector<1x72x16xbf16> to vector<72x16xbf16>
    %c24_i32_16 = arith.constant 24 : i32
    %40 = arith.addi %36, %c24_i32_16 : i32
    %c0_17 = arith.constant 0 : index
    %41 = arith.index_cast %40 : i32 to index
    %c0_18 = arith.constant 0 : index
    %42 = vector.load %arg2[%c0_17, %41, %c0_18] : memref<1x432x16xbf16, #tpu.memory_space<vmem>>, vector<1x72x16xbf16>
    %43 = vector.shape_cast %42 : vector<1x72x16xbf16> to vector<72x16xbf16>
    %cst_19 = arith.constant dense<0.000000e+00> : vector<64x16xf32>
    %44 = tpu.matmul %1, %39, %cst_19 {dimension_numbers = #tpu.dot_dimension_numbers<[1], [0], [0], [1], [0, 0, 1, 1], [], []>} : vector<64x72xbf16>, vector<72x16xbf16>, vector<64x16xf32> -> vector<64x16xf32>
    %45 = vector.broadcast %2 : vector<64x1xf32> to vector<64x16xf32>
    %46 = arith.addf %44, %45 : vector<64x16xf32>
    %cst_20 = arith.constant 0.000000e+00 : f32
    %47 = vector.broadcast %cst_20 : f32 to vector<64x16xf32>
    %48 = arith.cmpf oge, %46, %47 : vector<64x16xf32>
    %cst_21 = arith.constant 1.000000e-01 : f32
    %49 = vector.broadcast %cst_21 : f32 to vector<64x16xf32>
    %50 = arith.mulf %49, %46 : vector<64x16xf32>
    %51 = arith.select %48, %46, %50 : vector<64x16xi1>, vector<64x16xf32>
    %cst_22 = arith.constant dense<0.000000e+00> : vector<64x16xf32>
    %52 = tpu.matmul %1, %43, %cst_22 {dimension_numbers = #tpu.dot_dimension_numbers<[1], [0], [0], [1], [0, 0, 1, 1], [], []>} : vector<64x72xbf16>, vector<72x16xbf16>, vector<64x16xf32> -> vector<64x16xf32>
    %53 = vector.broadcast %2 : vector<64x1xf32> to vector<64x16xf32>
    %54 = arith.addf %52, %53 : vector<64x16xf32>
    %cst_23 = arith.constant 0.000000e+00 : f32
    %55 = vector.broadcast %cst_23 : f32 to vector<64x16xf32>
    %56 = arith.cmpf oge, %54, %55 : vector<64x16xf32>
    %cst_24 = arith.constant 1.000000e-01 : f32
    %57 = vector.broadcast %cst_24 : f32 to vector<64x16xf32>
    %58 = arith.mulf %57, %54 : vector<64x16xf32>
    %59 = arith.select %56, %54, %58 : vector<64x16xi1>, vector<64x16xf32>
    %60 = arith.maximumf %51, %59 : vector<64x16xf32>
    %61 = vector.extract_strided_slice %60 {offsets = [0, 0], sizes = [64, 8], strides = [1, 1]} : vector<64x16xf32> to vector<64x8xf32>
    %62 = vector.extract_strided_slice %60 {offsets = [0, 8], sizes = [64, 8], strides = [1, 1]} : vector<64x16xf32> to vector<64x8xf32>
    %63 = arith.maximumf %61, %62 : vector<64x8xf32>
    %64 = arith.truncf %63 : vector<64x8xf32> to vector<64x8xbf16>
    %c4_i32 = arith.constant 4 : i32
    %65 = arith.addi %0, %c4_i32 : i32
    %c24_i32_25 = arith.constant 24 : i32
    %66 = arith.muli %65, %c24_i32_25 : i32
    %67 = tpu.assume_multiple %66, 8 : i32
    %c0_26 = arith.constant 0 : index
    %68 = arith.index_cast %67 : i32 to index
    %c0_27 = arith.constant 0 : index
    %69 = vector.load %arg2[%c0_26, %68, %c0_27] : memref<1x432x16xbf16, #tpu.memory_space<vmem>>, vector<1x72x16xbf16>
    %70 = vector.shape_cast %69 : vector<1x72x16xbf16> to vector<72x16xbf16>
    %c24_i32_28 = arith.constant 24 : i32
    %71 = arith.addi %67, %c24_i32_28 : i32
    %c0_29 = arith.constant 0 : index
    %72 = arith.index_cast %71 : i32 to index
    %c0_30 = arith.constant 0 : index
    %73 = vector.load %arg2[%c0_29, %72, %c0_30] : memref<1x432x16xbf16, #tpu.memory_space<vmem>>, vector<1x72x16xbf16>
    %74 = vector.shape_cast %73 : vector<1x72x16xbf16> to vector<72x16xbf16>
    %cst_31 = arith.constant dense<0.000000e+00> : vector<64x16xf32>
    %75 = tpu.matmul %1, %70, %cst_31 {dimension_numbers = #tpu.dot_dimension_numbers<[1], [0], [0], [1], [0, 0, 1, 1], [], []>} : vector<64x72xbf16>, vector<72x16xbf16>, vector<64x16xf32> -> vector<64x16xf32>
    %76 = vector.broadcast %2 : vector<64x1xf32> to vector<64x16xf32>
    %77 = arith.addf %75, %76 : vector<64x16xf32>
    %cst_32 = arith.constant 0.000000e+00 : f32
    %78 = vector.broadcast %cst_32 : f32 to vector<64x16xf32>
    %79 = arith.cmpf oge, %77, %78 : vector<64x16xf32>
    %cst_33 = arith.constant 1.000000e-01 : f32
    %80 = vector.broadcast %cst_33 : f32 to vector<64x16xf32>
    %81 = arith.mulf %80, %77 : vector<64x16xf32>
    %82 = arith.select %79, %77, %81 : vector<64x16xi1>, vector<64x16xf32>
    %cst_34 = arith.constant dense<0.000000e+00> : vector<64x16xf32>
    %83 = tpu.matmul %1, %74, %cst_34 {dimension_numbers = #tpu.dot_dimension_numbers<[1], [0], [0], [1], [0, 0, 1, 1], [], []>} : vector<64x72xbf16>, vector<72x16xbf16>, vector<64x16xf32> -> vector<64x16xf32>
    %84 = vector.broadcast %2 : vector<64x1xf32> to vector<64x16xf32>
    %85 = arith.addf %83, %84 : vector<64x16xf32>
    %cst_35 = arith.constant 0.000000e+00 : f32
    %86 = vector.broadcast %cst_35 : f32 to vector<64x16xf32>
    %87 = arith.cmpf oge, %85, %86 : vector<64x16xf32>
    %cst_36 = arith.constant 1.000000e-01 : f32
    %88 = vector.broadcast %cst_36 : f32 to vector<64x16xf32>
    %89 = arith.mulf %88, %85 : vector<64x16xf32>
    %90 = arith.select %87, %85, %89 : vector<64x16xi1>, vector<64x16xf32>
    %91 = arith.maximumf %82, %90 : vector<64x16xf32>
    %92 = vector.extract_strided_slice %91 {offsets = [0, 0], sizes = [64, 8], strides = [1, 1]} : vector<64x16xf32> to vector<64x8xf32>
    %93 = vector.extract_strided_slice %91 {offsets = [0, 8], sizes = [64, 8], strides = [1, 1]} : vector<64x16xf32> to vector<64x8xf32>
    %94 = arith.maximumf %92, %93 : vector<64x8xf32>
    %95 = arith.truncf %94 : vector<64x8xf32> to vector<64x8xbf16>
    %c6_i32 = arith.constant 6 : i32
    %96 = arith.addi %0, %c6_i32 : i32
    %c24_i32_37 = arith.constant 24 : i32
    %97 = arith.muli %96, %c24_i32_37 : i32
    %98 = tpu.assume_multiple %97, 8 : i32
    %c0_38 = arith.constant 0 : index
    %99 = arith.index_cast %98 : i32 to index
    %c0_39 = arith.constant 0 : index
    %100 = vector.load %arg2[%c0_38, %99, %c0_39] : memref<1x432x16xbf16, #tpu.memory_space<vmem>>, vector<1x72x16xbf16>
    %101 = vector.shape_cast %100 : vector<1x72x16xbf16> to vector<72x16xbf16>
    %c24_i32_40 = arith.constant 24 : i32
    %102 = arith.addi %98, %c24_i32_40 : i32
    %c0_41 = arith.constant 0 : index
    %103 = arith.index_cast %102 : i32 to index
    %c0_42 = arith.constant 0 : index
    %104 = vector.load %arg2[%c0_41, %103, %c0_42] : memref<1x432x16xbf16, #tpu.memory_space<vmem>>, vector<1x72x16xbf16>
    %105 = vector.shape_cast %104 : vector<1x72x16xbf16> to vector<72x16xbf16>
    %cst_43 = arith.constant dense<0.000000e+00> : vector<64x16xf32>
    %106 = tpu.matmul %1, %101, %cst_43 {dimension_numbers = #tpu.dot_dimension_numbers<[1], [0], [0], [1], [0, 0, 1, 1], [], []>} : vector<64x72xbf16>, vector<72x16xbf16>, vector<64x16xf32> -> vector<64x16xf32>
    %107 = vector.broadcast %2 : vector<64x1xf32> to vector<64x16xf32>
    %108 = arith.addf %106, %107 : vector<64x16xf32>
    %cst_44 = arith.constant 0.000000e+00 : f32
    %109 = vector.broadcast %cst_44 : f32 to vector<64x16xf32>
    %110 = arith.cmpf oge, %108, %109 : vector<64x16xf32>
    %cst_45 = arith.constant 1.000000e-01 : f32
    %111 = vector.broadcast %cst_45 : f32 to vector<64x16xf32>
    %112 = arith.mulf %111, %108 : vector<64x16xf32>
    %113 = arith.select %110, %108, %112 : vector<64x16xi1>, vector<64x16xf32>
    %cst_46 = arith.constant dense<0.000000e+00> : vector<64x16xf32>
    %114 = tpu.matmul %1, %105, %cst_46 {dimension_numbers = #tpu.dot_dimension_numbers<[1], [0], [0], [1], [0, 0, 1, 1], [], []>} : vector<64x72xbf16>, vector<72x16xbf16>, vector<64x16xf32> -> vector<64x16xf32>
    %115 = vector.broadcast %2 : vector<64x1xf32> to vector<64x16xf32>
    %116 = arith.addf %114, %115 : vector<64x16xf32>
    %cst_47 = arith.constant 0.000000e+00 : f32
    %117 = vector.broadcast %cst_47 : f32 to vector<64x16xf32>
    %118 = arith.cmpf oge, %116, %117 : vector<64x16xf32>
    %cst_48 = arith.constant 1.000000e-01 : f32
    %119 = vector.broadcast %cst_48 : f32 to vector<64x16xf32>
    %120 = arith.mulf %119, %116 : vector<64x16xf32>
    %121 = arith.select %118, %116, %120 : vector<64x16xi1>, vector<64x16xf32>
    %122 = arith.maximumf %113, %121 : vector<64x16xf32>
    %123 = vector.extract_strided_slice %122 {offsets = [0, 0], sizes = [64, 8], strides = [1, 1]} : vector<64x16xf32> to vector<64x8xf32>
    %124 = vector.extract_strided_slice %122 {offsets = [0, 8], sizes = [64, 8], strides = [1, 1]} : vector<64x16xf32> to vector<64x8xf32>
    %125 = arith.maximumf %123, %124 : vector<64x8xf32>
    %126 = arith.truncf %125 : vector<64x8xf32> to vector<64x8xbf16>
    %c8_i32 = arith.constant 8 : i32
    %127 = arith.addi %0, %c8_i32 : i32
    %c24_i32_49 = arith.constant 24 : i32
    %128 = arith.muli %127, %c24_i32_49 : i32
    %129 = tpu.assume_multiple %128, 8 : i32
    %c0_50 = arith.constant 0 : index
    %130 = arith.index_cast %129 : i32 to index
    %c0_51 = arith.constant 0 : index
    %131 = vector.load %arg2[%c0_50, %130, %c0_51] : memref<1x432x16xbf16, #tpu.memory_space<vmem>>, vector<1x72x16xbf16>
    %132 = vector.shape_cast %131 : vector<1x72x16xbf16> to vector<72x16xbf16>
    %c24_i32_52 = arith.constant 24 : i32
    %133 = arith.addi %129, %c24_i32_52 : i32
    %c0_53 = arith.constant 0 : index
    %134 = arith.index_cast %133 : i32 to index
    %c0_54 = arith.constant 0 : index
    %135 = vector.load %arg2[%c0_53, %134, %c0_54] : memref<1x432x16xbf16, #tpu.memory_space<vmem>>, vector<1x72x16xbf16>
    %136 = vector.shape_cast %135 : vector<1x72x16xbf16> to vector<72x16xbf16>
    %cst_55 = arith.constant dense<0.000000e+00> : vector<64x16xf32>
    %137 = tpu.matmul %1, %132, %cst_55 {dimension_numbers = #tpu.dot_dimension_numbers<[1], [0], [0], [1], [0, 0, 1, 1], [], []>} : vector<64x72xbf16>, vector<72x16xbf16>, vector<64x16xf32> -> vector<64x16xf32>
    %138 = vector.broadcast %2 : vector<64x1xf32> to vector<64x16xf32>
    %139 = arith.addf %137, %138 : vector<64x16xf32>
    %cst_56 = arith.constant 0.000000e+00 : f32
    %140 = vector.broadcast %cst_56 : f32 to vector<64x16xf32>
    %141 = arith.cmpf oge, %139, %140 : vector<64x16xf32>
    %cst_57 = arith.constant 1.000000e-01 : f32
    %142 = vector.broadcast %cst_57 : f32 to vector<64x16xf32>
    %143 = arith.mulf %142, %139 : vector<64x16xf32>
    %144 = arith.select %141, %139, %143 : vector<64x16xi1>, vector<64x16xf32>
    %cst_58 = arith.constant dense<0.000000e+00> : vector<64x16xf32>
    %145 = tpu.matmul %1, %136, %cst_58 {dimension_numbers = #tpu.dot_dimension_numbers<[1], [0], [0], [1], [0, 0, 1, 1], [], []>} : vector<64x72xbf16>, vector<72x16xbf16>, vector<64x16xf32> -> vector<64x16xf32>
    %146 = vector.broadcast %2 : vector<64x1xf32> to vector<64x16xf32>
    %147 = arith.addf %145, %146 : vector<64x16xf32>
    %cst_59 = arith.constant 0.000000e+00 : f32
    %148 = vector.broadcast %cst_59 : f32 to vector<64x16xf32>
    %149 = arith.cmpf oge, %147, %148 : vector<64x16xf32>
    %cst_60 = arith.constant 1.000000e-01 : f32
    %150 = vector.broadcast %cst_60 : f32 to vector<64x16xf32>
    %151 = arith.mulf %150, %147 : vector<64x16xf32>
    %152 = arith.select %149, %147, %151 : vector<64x16xi1>, vector<64x16xf32>
    %153 = arith.maximumf %144, %152 : vector<64x16xf32>
    %154 = vector.extract_strided_slice %153 {offsets = [0, 0], sizes = [64, 8], strides = [1, 1]} : vector<64x16xf32> to vector<64x8xf32>
    %155 = vector.extract_strided_slice %153 {offsets = [0, 8], sizes = [64, 8], strides = [1, 1]} : vector<64x16xf32> to vector<64x8xf32>
    %156 = arith.maximumf %154, %155 : vector<64x8xf32>
    %157 = arith.truncf %156 : vector<64x8xf32> to vector<64x8xbf16>
    %c10_i32 = arith.constant 10 : i32
    %158 = arith.addi %0, %c10_i32 : i32
    %c24_i32_61 = arith.constant 24 : i32
    %159 = arith.muli %158, %c24_i32_61 : i32
    %160 = tpu.assume_multiple %159, 8 : i32
    %c0_62 = arith.constant 0 : index
    %161 = arith.index_cast %160 : i32 to index
    %c0_63 = arith.constant 0 : index
    %162 = vector.load %arg2[%c0_62, %161, %c0_63] : memref<1x432x16xbf16, #tpu.memory_space<vmem>>, vector<1x72x16xbf16>
    %163 = vector.shape_cast %162 : vector<1x72x16xbf16> to vector<72x16xbf16>
    %c24_i32_64 = arith.constant 24 : i32
    %164 = arith.addi %160, %c24_i32_64 : i32
    %c0_65 = arith.constant 0 : index
    %165 = arith.index_cast %164 : i32 to index
    %c0_66 = arith.constant 0 : index
    %166 = vector.load %arg2[%c0_65, %165, %c0_66] : memref<1x432x16xbf16, #tpu.memory_space<vmem>>, vector<1x72x16xbf16>
    %167 = vector.shape_cast %166 : vector<1x72x16xbf16> to vector<72x16xbf16>
    %cst_67 = arith.constant dense<0.000000e+00> : vector<64x16xf32>
    %168 = tpu.matmul %1, %163, %cst_67 {dimension_numbers = #tpu.dot_dimension_numbers<[1], [0], [0], [1], [0, 0, 1, 1], [], []>} : vector<64x72xbf16>, vector<72x16xbf16>, vector<64x16xf32> -> vector<64x16xf32>
    %169 = vector.broadcast %2 : vector<64x1xf32> to vector<64x16xf32>
    %170 = arith.addf %168, %169 : vector<64x16xf32>
    %cst_68 = arith.constant 0.000000e+00 : f32
    %171 = vector.broadcast %cst_68 : f32 to vector<64x16xf32>
    %172 = arith.cmpf oge, %170, %171 : vector<64x16xf32>
    %cst_69 = arith.constant 1.000000e-01 : f32
    %173 = vector.broadcast %cst_69 : f32 to vector<64x16xf32>
    %174 = arith.mulf %173, %170 : vector<64x16xf32>
    %175 = arith.select %172, %170, %174 : vector<64x16xi1>, vector<64x16xf32>
    %cst_70 = arith.constant dense<0.000000e+00> : vector<64x16xf32>
    %176 = tpu.matmul %1, %167, %cst_70 {dimension_numbers = #tpu.dot_dimension_numbers<[1], [0], [0], [1], [0, 0, 1, 1], [], []>} : vector<64x72xbf16>, vector<72x16xbf16>, vector<64x16xf32> -> vector<64x16xf32>
    %177 = vector.broadcast %2 : vector<64x1xf32> to vector<64x16xf32>
    %178 = arith.addf %176, %177 : vector<64x16xf32>
    %cst_71 = arith.constant 0.000000e+00 : f32
    %179 = vector.broadcast %cst_71 : f32 to vector<64x16xf32>
    %180 = arith.cmpf oge, %178, %179 : vector<64x16xf32>
    %cst_72 = arith.constant 1.000000e-01 : f32
    %181 = vector.broadcast %cst_72 : f32 to vector<64x16xf32>
    %182 = arith.mulf %181, %178 : vector<64x16xf32>
    %183 = arith.select %180, %178, %182 : vector<64x16xi1>, vector<64x16xf32>
    %184 = arith.maximumf %175, %183 : vector<64x16xf32>
    %185 = vector.extract_strided_slice %184 {offsets = [0, 0], sizes = [64, 8], strides = [1, 1]} : vector<64x16xf32> to vector<64x8xf32>
    %186 = vector.extract_strided_slice %184 {offsets = [0, 8], sizes = [64, 8], strides = [1, 1]} : vector<64x16xf32> to vector<64x8xf32>
    %187 = arith.maximumf %185, %186 : vector<64x8xf32>
    %188 = arith.truncf %187 : vector<64x8xf32> to vector<64x8xbf16>
    %c12_i32 = arith.constant 12 : i32
    %189 = arith.addi %0, %c12_i32 : i32
    %c24_i32_73 = arith.constant 24 : i32
    %190 = arith.muli %189, %c24_i32_73 : i32
    %191 = tpu.assume_multiple %190, 8 : i32
    %c0_74 = arith.constant 0 : index
    %192 = arith.index_cast %191 : i32 to index
    %c0_75 = arith.constant 0 : index
    %193 = vector.load %arg2[%c0_74, %192, %c0_75] : memref<1x432x16xbf16, #tpu.memory_space<vmem>>, vector<1x72x16xbf16>
    %194 = vector.shape_cast %193 : vector<1x72x16xbf16> to vector<72x16xbf16>
    %c24_i32_76 = arith.constant 24 : i32
    %195 = arith.addi %191, %c24_i32_76 : i32
    %c0_77 = arith.constant 0 : index
    %196 = arith.index_cast %195 : i32 to index
    %c0_78 = arith.constant 0 : index
    %197 = vector.load %arg2[%c0_77, %196, %c0_78] : memref<1x432x16xbf16, #tpu.memory_space<vmem>>, vector<1x72x16xbf16>
    %198 = vector.shape_cast %197 : vector<1x72x16xbf16> to vector<72x16xbf16>
    %cst_79 = arith.constant dense<0.000000e+00> : vector<64x16xf32>
    %199 = tpu.matmul %1, %194, %cst_79 {dimension_numbers = #tpu.dot_dimension_numbers<[1], [0], [0], [1], [0, 0, 1, 1], [], []>} : vector<64x72xbf16>, vector<72x16xbf16>, vector<64x16xf32> -> vector<64x16xf32>
    %200 = vector.broadcast %2 : vector<64x1xf32> to vector<64x16xf32>
    %201 = arith.addf %199, %200 : vector<64x16xf32>
    %cst_80 = arith.constant 0.000000e+00 : f32
    %202 = vector.broadcast %cst_80 : f32 to vector<64x16xf32>
    %203 = arith.cmpf oge, %201, %202 : vector<64x16xf32>
    %cst_81 = arith.constant 1.000000e-01 : f32
    %204 = vector.broadcast %cst_81 : f32 to vector<64x16xf32>
    %205 = arith.mulf %204, %201 : vector<64x16xf32>
    %206 = arith.select %203, %201, %205 : vector<64x16xi1>, vector<64x16xf32>
    %cst_82 = arith.constant dense<0.000000e+00> : vector<64x16xf32>
    %207 = tpu.matmul %1, %198, %cst_82 {dimension_numbers = #tpu.dot_dimension_numbers<[1], [0], [0], [1], [0, 0, 1, 1], [], []>} : vector<64x72xbf16>, vector<72x16xbf16>, vector<64x16xf32> -> vector<64x16xf32>
    %208 = vector.broadcast %2 : vector<64x1xf32> to vector<64x16xf32>
    %209 = arith.addf %207, %208 : vector<64x16xf32>
    %cst_83 = arith.constant 0.000000e+00 : f32
    %210 = vector.broadcast %cst_83 : f32 to vector<64x16xf32>
    %211 = arith.cmpf oge, %209, %210 : vector<64x16xf32>
    %cst_84 = arith.constant 1.000000e-01 : f32
    %212 = vector.broadcast %cst_84 : f32 to vector<64x16xf32>
    %213 = arith.mulf %212, %209 : vector<64x16xf32>
    %214 = arith.select %211, %209, %213 : vector<64x16xi1>, vector<64x16xf32>
    %215 = arith.maximumf %206, %214 : vector<64x16xf32>
    %216 = vector.extract_strided_slice %215 {offsets = [0, 0], sizes = [64, 8], strides = [1, 1]} : vector<64x16xf32> to vector<64x8xf32>
    %217 = vector.extract_strided_slice %215 {offsets = [0, 8], sizes = [64, 8], strides = [1, 1]} : vector<64x16xf32> to vector<64x8xf32>
    %218 = arith.maximumf %216, %217 : vector<64x8xf32>
    %219 = arith.truncf %218 : vector<64x8xf32> to vector<64x8xbf16>
    %c14_i32 = arith.constant 14 : i32
    %220 = arith.addi %0, %c14_i32 : i32
    %c24_i32_85 = arith.constant 24 : i32
    %221 = arith.muli %220, %c24_i32_85 : i32
    %222 = tpu.assume_multiple %221, 8 : i32
    %c0_86 = arith.constant 0 : index
    %223 = arith.index_cast %222 : i32 to index
    %c0_87 = arith.constant 0 : index
    %224 = vector.load %arg2[%c0_86, %223, %c0_87] : memref<1x432x16xbf16, #tpu.memory_space<vmem>>, vector<1x72x16xbf16>
    %225 = vector.shape_cast %224 : vector<1x72x16xbf16> to vector<72x16xbf16>
    %c24_i32_88 = arith.constant 24 : i32
    %226 = arith.addi %222, %c24_i32_88 : i32
    %c0_89 = arith.constant 0 : index
    %227 = arith.index_cast %226 : i32 to index
    %c0_90 = arith.constant 0 : index
    %228 = vector.load %arg2[%c0_89, %227, %c0_90] : memref<1x432x16xbf16, #tpu.memory_space<vmem>>, vector<1x72x16xbf16>
    %229 = vector.shape_cast %228 : vector<1x72x16xbf16> to vector<72x16xbf16>
    %cst_91 = arith.constant dense<0.000000e+00> : vector<64x16xf32>
    %230 = tpu.matmul %1, %225, %cst_91 {dimension_numbers = #tpu.dot_dimension_numbers<[1], [0], [0], [1], [0, 0, 1, 1], [], []>} : vector<64x72xbf16>, vector<72x16xbf16>, vector<64x16xf32> -> vector<64x16xf32>
    %231 = vector.broadcast %2 : vector<64x1xf32> to vector<64x16xf32>
    %232 = arith.addf %230, %231 : vector<64x16xf32>
    %cst_92 = arith.constant 0.000000e+00 : f32
    %233 = vector.broadcast %cst_92 : f32 to vector<64x16xf32>
    %234 = arith.cmpf oge, %232, %233 : vector<64x16xf32>
    %cst_93 = arith.constant 1.000000e-01 : f32
    %235 = vector.broadcast %cst_93 : f32 to vector<64x16xf32>
    %236 = arith.mulf %235, %232 : vector<64x16xf32>
    %237 = arith.select %234, %232, %236 : vector<64x16xi1>, vector<64x16xf32>
    %cst_94 = arith.constant dense<0.000000e+00> : vector<64x16xf32>
    %238 = tpu.matmul %1, %229, %cst_94 {dimension_numbers = #tpu.dot_dimension_numbers<[1], [0], [0], [1], [0, 0, 1, 1], [], []>} : vector<64x72xbf16>, vector<72x16xbf16>, vector<64x16xf32> -> vector<64x16xf32>
    %239 = vector.broadcast %2 : vector<64x1xf32> to vector<64x16xf32>
    %240 = arith.addf %238, %239 : vector<64x16xf32>
    %cst_95 = arith.constant 0.000000e+00 : f32
    %241 = vector.broadcast %cst_95 : f32 to vector<64x16xf32>
    %242 = arith.cmpf oge, %240, %241 : vector<64x16xf32>
    %cst_96 = arith.constant 1.000000e-01 : f32
    %243 = vector.broadcast %cst_96 : f32 to vector<64x16xf32>
    %244 = arith.mulf %243, %240 : vector<64x16xf32>
    %245 = arith.select %242, %240, %244 : vector<64x16xi1>, vector<64x16xf32>
    %246 = arith.maximumf %237, %245 : vector<64x16xf32>
    %247 = vector.extract_strided_slice %246 {offsets = [0, 0], sizes = [64, 8], strides = [1, 1]} : vector<64x16xf32> to vector<64x8xf32>
    %248 = vector.extract_strided_slice %246 {offsets = [0, 8], sizes = [64, 8], strides = [1, 1]} : vector<64x16xf32> to vector<64x8xf32>
    %249 = arith.maximumf %247, %248 : vector<64x8xf32>
    %250 = arith.truncf %249 : vector<64x8xf32> to vector<64x8xbf16>
    %251 = tpu.concatenate %33, %64, %95, %126, %157, %188, %219, %250 in 1 : vector<64x8xbf16>, vector<64x8xbf16>, vector<64x8xbf16>, vector<64x8xbf16>, vector<64x8xbf16>, vector<64x8xbf16>, vector<64x8xbf16>, vector<64x8xbf16> -> vector<64x64xbf16>
    %c0_97 = arith.constant 0 : index
    %c0_98 = arith.constant 0 : index
    %252 = vector.load %arg5[%c0_97, %c0_98] : memref<128x64xbf16, #tpu.memory_space<vmem>>, vector<128x64xbf16>
    %cst_99 = arith.constant dense<0.000000e+00> : vector<128x64xf32>
    %253 = tpu.matmul %252, %251, %cst_99 {dimension_numbers = #tpu.dot_dimension_numbers<[1], [0], [0], [1], [0, 0, 1, 1], [], []>} : vector<128x64xbf16>, vector<64x64xbf16>, vector<128x64xf32> -> vector<128x64xf32>
    %c0_100 = arith.constant 0 : index
    %c0_101 = arith.constant 0 : index
    %254 = vector.load %arg6[%c0_100, %c0_101] : memref<128x1xf32, #tpu.memory_space<vmem>>, vector<128x1xf32>
    %255 = vector.broadcast %254 : vector<128x1xf32> to vector<128x64xf32>
    %256 = arith.addf %253, %255 : vector<128x64xf32>
    %cst_102 = arith.constant 0.000000e+00 : f32
    %257 = vector.broadcast %cst_102 : f32 to vector<128x64xf32>
    %258 = arith.cmpf oge, %256, %257 : vector<128x64xf32>
    %cst_103 = arith.constant 1.000000e-01 : f32
    %259 = vector.broadcast %cst_103 : f32 to vector<128x64xf32>
    %260 = arith.mulf %259, %256 : vector<128x64xf32>
    %261 = arith.select %258, %256, %260 : vector<128x64xi1>, vector<128x64xf32>
    %262 = arith.truncf %261 : vector<128x64xf32> to vector<128x64xbf16>
    %c0_104 = arith.constant 0 : index
    %c0_105 = arith.constant 0 : index
    %263 = vector.load %arg7[%c0_104, %c0_105] : memref<256x128xbf16, #tpu.memory_space<vmem>>, vector<256x128xbf16>
    %cst_106 = arith.constant dense<0.000000e+00> : vector<256x64xf32>
    %264 = tpu.matmul %263, %262, %cst_106 {dimension_numbers = #tpu.dot_dimension_numbers<[1], [0], [0], [1], [0, 0, 1, 1], [], []>} : vector<256x128xbf16>, vector<128x64xbf16>, vector<256x64xf32> -> vector<256x64xf32>
    %c0_107 = arith.constant 0 : index
    %c0_108 = arith.constant 0 : index
    %265 = vector.load %arg8[%c0_107, %c0_108] : memref<256x1xf32, #tpu.memory_space<vmem>>, vector<256x1xf32>
    %266 = vector.broadcast %265 : vector<256x1xf32> to vector<256x64xf32>
    %267 = arith.addf %264, %266 : vector<256x64xf32>
    %cst_109 = arith.constant 0.000000e+00 : f32
    %268 = vector.broadcast %cst_109 : f32 to vector<256x64xf32>
    %269 = arith.cmpf oge, %267, %268 : vector<256x64xf32>
    %cst_110 = arith.constant 1.000000e-01 : f32
    %270 = vector.broadcast %cst_110 : f32 to vector<256x64xf32>
    %271 = arith.mulf %270, %267 : vector<256x64xf32>
    %272 = arith.select %269, %267, %271 : vector<256x64xi1>, vector<256x64xf32>
    %273 = arith.truncf %272 : vector<256x64xf32> to vector<256x64xbf16>
    %c0_111 = arith.constant 0 : index
    %c0_112 = arith.constant 0 : index
    %274 = vector.load %arg9[%c0_111, %c0_112] : memref<512x256xbf16, #tpu.memory_space<vmem>>, vector<512x256xbf16>
    %cst_113 = arith.constant dense<0.000000e+00> : vector<512x64xf32>
    %275 = tpu.matmul %274, %273, %cst_113 {dimension_numbers = #tpu.dot_dimension_numbers<[1], [0], [0], [1], [0, 0, 1, 1], [], []>} : vector<512x256xbf16>, vector<256x64xbf16>, vector<512x64xf32> -> vector<512x64xf32>
    %c0_114 = arith.constant 0 : index
    %c0_115 = arith.constant 0 : index
    %276 = vector.load %arg10[%c0_114, %c0_115] : memref<512x1xf32, #tpu.memory_space<vmem>>, vector<512x1xf32>
    %277 = vector.broadcast %276 : vector<512x1xf32> to vector<512x64xf32>
    %278 = arith.addf %275, %277 : vector<512x64xf32>
    %cst_116 = arith.constant 0.000000e+00 : f32
    %279 = vector.broadcast %cst_116 : f32 to vector<512x64xf32>
    %280 = arith.cmpf oge, %278, %279 : vector<512x64xf32>
    %cst_117 = arith.constant 1.000000e-01 : f32
    %281 = vector.broadcast %cst_117 : f32 to vector<512x64xf32>
    %282 = arith.mulf %281, %278 : vector<512x64xf32>
    %283 = arith.select %280, %278, %282 : vector<512x64xi1>, vector<512x64xf32>
    %cst_118 = arith.constant dense<0.000000e+00> : vector<512xf32>
    %284 = vector.multi_reduction <add>, %283, %cst_118 [1] : vector<512x64xf32> to vector<512xf32>
    %cst_119 = arith.constant 1.562500e-02 : f32
    %285 = vector.broadcast %cst_119 : f32 to vector<512xf32>
    %286 = arith.mulf %284, %285 : vector<512xf32>
    %c0_120 = arith.constant 0 : index
    %c0_121 = arith.constant 0 : index
    %c0_122 = arith.constant 0 : index
    %287 = vector.load %arg11[%c0_120, %c0_121, %c0_122] : memref<1x1x512xf32, #tpu.memory_space<vmem>>, vector<1x1x512xf32>
    %288 = vector.shape_cast %287 : vector<1x1x512xf32> to vector<512xf32>
    %289 = vector.shape_cast %286 : vector<512xf32> to vector<1x1x512xf32>
    tpu.vector_store %arg11[%c0_120, %c0_121, %c0_122], %289 {strides = array<i32>} : memref<1x1x512xf32, #tpu.memory_space<vmem>>, vector<1x1x512xf32>,
    return
  }
  func.func @transform_0(%arg0: i32, %arg1: i32) -> (i32, i32, i32) {
    %c0_i32 = arith.constant 0 : i32
    %c0_i32_0 = arith.constant 0 : i32
    %c0_i32_1 = arith.constant 0 : i32
    return %arg0, %c0_i32, %c0_i32_0 : i32, i32, i32
  }
  func.func @transform_1(%arg0: i32, %arg1: i32) -> (i32, i32) {
    %c0_i32 = arith.constant 0 : i32
    %c0_i32_0 = arith.constant 0 : i32
    %c0_i32_1 = arith.constant 0 : i32
    return %c0_i32, %c0_i32_0 : i32, i32
  }
  func.func @transform_2(%arg0: i32, %arg1: i32) -> (i32, i32) {
    %c0_i32 = arith.constant 0 : i32
    %c0_i32_0 = arith.constant 0 : i32
    %c0_i32_1 = arith.constant 0 : i32
    return %c0_i32, %c0_i32_0 : i32, i32
  }
  func.func @transform_3(%arg0: i32, %arg1: i32) -> (i32, i32) {
    %c0_i32 = arith.constant 0 : i32
    %c0_i32_0 = arith.constant 0 : i32
    %c0_i32_1 = arith.constant 0 : i32
    return %c0_i32, %c0_i32_0 : i32, i32
  }
  func.func @transform_4(%arg0: i32, %arg1: i32) -> (i32, i32) {
    %c0_i32 = arith.constant 0 : i32
    %c0_i32_0 = arith.constant 0 : i32
    %c0_i32_1 = arith.constant 0 : i32
    return %c0_i32, %c0_i32_0 : i32, i32
  }
  func.func @transform_5(%arg0: i32, %arg1: i32) -> (i32, i32) {
    %c0_i32 = arith.constant 0 : i32
    %c0_i32_0 = arith.constant 0 : i32
    %c0_i32_1 = arith.constant 0 : i32
    return %c0_i32, %c0_i32_0 : i32, i32
  }
  func.func @transform_6(%arg0: i32, %arg1: i32) -> (i32, i32) {
    %c0_i32 = arith.constant 0 : i32
    %c0_i32_0 = arith.constant 0 : i32
    %c0_i32_1 = arith.constant 0 : i32
    return %c0_i32, %c0_i32_0 : i32, i32
  }
  func.func @transform_7(%arg0: i32, %arg1: i32) -> (i32, i32) {
    %c0_i32 = arith.constant 0 : i32
    %c0_i32_0 = arith.constant 0 : i32
    %c0_i32_1 = arith.constant 0 : i32
    return %c0_i32, %c0_i32_0 : i32, i32
  }
  func.func @transform_8(%arg0: i32, %arg1: i32) -> (i32, i32) {
    %c0_i32 = arith.constant 0 : i32
    %c0_i32_0 = arith.constant 0 : i32
    %c0_i32_1 = arith.constant 0 : i32
    return %c0_i32, %c0_i32_0 : i32, i32
  }
  func.func @transform_9(%arg0: i32, %arg1: i32) -> (i32, i32, i32) {
    %c0_i32 = arith.constant 0 : i32
    %c0_i32_0 = arith.constant 0 : i32
    return %arg0, %arg1, %c0_i32 : i32, i32, i32
  }
}

</mosaic_0001>

<llo_original>
// kernel: _lambda_.1
$region0: #{_lambda_.1}
  #allocation0 [shape = 'u32[]', space=smem, size = 0x4, offset = 0x4, fixed_abs, tag = 'smem constant byte address 0x4 - core index']
  #allocation1 [shape = 'u32[144,128]{1,0:T(1,128)}', space=vmem, size = 0x12000, scoped, tag = 'internal scratch']
  %s0 = inlined_call_operand.vmem [shape: bf16[2,432,16], index: 0, kind: input, shape index: {}]
  %s1 = inlined_call_operand.vmem [shape: bf16[64,72], index: 1, kind: input, shape index: {}]
  %s2 = inlined_call_operand.vmem [shape: f32[64,1], index: 2, kind: input, shape index: {}]
  %s3 = inlined_call_operand.vmem [shape: bf16[128,64], index: 3, kind: input, shape index: {}]
  %s4 = inlined_call_operand.vmem [shape: f32[128,1], index: 4, kind: input, shape index: {}]
  %s5 = inlined_call_operand.vmem [shape: bf16[256,128], index: 5, kind: input, shape index: {}]
  %s6 = inlined_call_operand.vmem [shape: f32[256,1], index: 6, kind: input, shape index: {}]
  %s7 = inlined_call_operand.vmem [shape: bf16[512,256], index: 7, kind: input, shape index: {}]
  %s8 = inlined_call_operand.vmem [shape: f32[512,1], index: 8, kind: input, shape index: {}]
  %s9 = inlined_call_operand.vmem [shape: f32[2,1,512], index: 9, kind: output, shape index: {}]
  %s10 = sld [smem:[#allocation0]]
  $region69: #{_lambda_.1} parent=0
    _
  %s12 = ssub.s32 1, %s10
  %s13 = scalar_select 0, %s12, %s10
  loop: start=0, step=1, limit=4
  $region2: #{_lambda_.1} parent=0 // loop_pre_header
    _
  $region3: #{_lambda_.1} parent=0 // loop_header
    %s15 = sphi 0, %s19
    %p16 = scmp.ge.s32.totalorder %s15, 4
    %s22 = sphi 0, %s34
    %s23 = sphi 0, %s30
    %s24 = sphi 0, %s22
    %s25 = sphi 0, %s23
    %s26 = sphi 0, %s24
    %s27 = sphi 0, %s25
    %s37 = sphi 0, %s39
    %s40 = sphi 0, %s37
    %s41 = sphi 0, %s40
    %s57 = sphi 0, %s41
    %s61 = sphi 0, %s61
    %s63 = sphi 0, %s61
    %s64 = sphi 0, %s63
    %s78 = sphi 0, %s64
    %s82 = sphi 0, %s82
    %s84 = sphi 0, %s82
    %s85 = sphi 0, %s84
    %s99 = sphi 0, %s85
    %s103 = sphi 0, %s103
    %s105 = sphi 0, %s103
    %s106 = sphi 0, %s105
    %s120 = sphi 0, %s106
    %s124 = sphi 0, %s124
    %s126 = sphi 0, %s124
    %s127 = sphi 0, %s126
    %s141 = sphi 0, %s127
    %s145 = sphi 0, %s145
    %s147 = sphi 0, %s145
    %s148 = sphi 0, %s147
    %s162 = sphi 0, %s148
    %s166 = sphi 0, %s166
    %s168 = sphi 0, %s166
    %s169 = sphi 0, %s168
    %s183 = sphi 0, %s169
    %s187 = sphi 0, %s187
    %s189 = sphi 0, %s187
    %s190 = sphi 0, %s189
    %s204 = sphi 0, %s190
    %s208 = sphi 0, %s208
    %s210 = sphi 0, %s208
    %s211 = sphi 0, %s210
    %s225 = sphi 0, %s211
    %s233 = sphi 0, %s235
    %s236 = sphi 0, %s233
    %s237 = sphi 0, %s236
    %s253 = sphi 0, %s237
  $region4: #{_lambda_.1} parent=0 // loop_header_branch
    %18 = sbr.rel (%p16) target = $region8
  $region5: #{_lambda_.1} parent=0 // loop_body
    %s20 = ssub.s32 %s15, 1
    %s21 = ssub.s32 %s15, 2
    %s28 = sadd.s32 1, %s23
    %p29 = scmp.ge.s32.totalorder %s28, 1
    %s30 = scalar_select %p29, 0, %s28
    %s31 = sadd.s32 1, %s22
    %s32 = scalar_select %p29, %s31, %s22
    %p33 = scmp.ge.s32.totalorder %s32, 2
    %s34 = scalar_select %p33, 0, %s32
    %s35 = ssub.s32 %s22, %s34
    %p36 = scmp.eq.s32.totalorder %s35, 0
    %s38 = sadd.s32 %s37, 1
    %s39 = scalar_select %p36, %s37, %s38
    %p42 = pneg %p36
    %p43 = scmp.eq.s32.totalorder %s15, 1
    %p44 = por %p42, %p43
    %p45 = scmp.ne.s32.totalorder %s37, %s40
    %p46 = scmp.eq.s32.totalorder %s15, 0
    %p47 = por %p45, %p46
    %p48 = scmp.ne.s32.totalorder %s37, %s40
    %p49 = scmp.eq.s32.totalorder %s20, 1
    %p50 = por %p48, %p49
    %p51 = scmp.ne.s32.totalorder %s40, %s41
    %p52 = scmp.eq.s32.totalorder %s20, 0
    %p53 = por %p51, %p52
    %p54 = scmp.ne.s32.totalorder %s40, %s41
    %p55 = scmp.eq.s32.totalorder %s21, 1
    %p56 = por %p54, %p55
    %p58 = scmp.ne.s32.totalorder %s41, %s57
    %p59 = scmp.eq.s32.totalorder %s21, 0
    %p60 = por %p58, %p59
    %s62 = sadd.s32 %s61, 1
    %p65 = scmp.eq.s32.totalorder %s15, 1
    %p66 = scmp.ne.s32.totalorder %s61, %s63
    %p67 = scmp.eq.s32.totalorder %s15, 0
    %p68 = por %p66, %p67
    %p69 = scmp.ne.s32.totalorder %s61, %s63
    %p70 = scmp.eq.s32.totalorder %s20, 1
    %p71 = por %p69, %p70
    %p72 = scmp.ne.s32.totalorder %s63, %s64
    %p73 = scmp.eq.s32.totalorder %s20, 0
    %p74 = por %p72, %p73
    %p75 = scmp.ne.s32.totalorder %s63, %s64
    %p76 = scmp.eq.s32.totalorder %s21, 1
    %p77 = por %p75, %p76
    %p79 = scmp.ne.s32.totalorder %s64, %s78
    %p80 = scmp.eq.s32.totalorder %s21, 0
    %p81 = por %p79, %p80
    %s83 = sadd.s32 %s82, 1
    %p86 = scmp.eq.s32.totalorder %s15, 1
    %p87 = scmp.ne.s32.totalorder %s82, %s84
    %p88 = scmp.eq.s32.totalorder %s15, 0
    %p89 = por %p87, %p88
    %p90 = scmp.ne.s32.totalorder %s82, %s84
    %p91 = scmp.eq.s32.totalorder %s20, 1
    %p92 = por %p90, %p91
    %p93 = scmp.ne.s32.totalorder %s84, %s85
    %p94 = scmp.eq.s32.totalorder %s20, 0
    %p95 = por %p93, %p94
    %p96 = scmp.ne.s32.totalorder %s84, %s85
    %p97 = scmp.eq.s32.totalorder %s21, 1
    %p98 = por %p96, %p97
    %p100 = scmp.ne.s32.totalorder %s85, %s99
    %p101 = scmp.eq.s32.totalorder %s21, 0
    %p102 = por %p100, %p101
    %s104 = sadd.s32 %s103, 1
    %p107 = scmp.eq.s32.totalorder %s15, 1
    %p108 = scmp.ne.s32.totalorder %s103, %s105
    %p109 = scmp.eq.s32.totalorder %s15, 0
    %p110 = por %p108, %p109
    %p111 = scmp.ne.s32.totalorder %s103, %s105
    %p112 = scmp.eq.s32.totalorder %s20, 1
    %p113 = por %p111, %p112
    %p114 = scmp.ne.s32.totalorder %s105, %s106
    %p115 = scmp.eq.s32.totalorder %s20, 0
    %p116 = por %p114, %p115
    %p117 = scmp.ne.s32.totalorder %s105, %s106
    %p118 = scmp.eq.s32.totalorder %s21, 1
    %p119 = por %p117, %p118
    %p121 = scmp.ne.s32.totalorder %s106, %s120
    %p122 = scmp.eq.s32.totalorder %s21, 0
    %p123 = por %p121, %p122
    %s125 = sadd.s32 %s124, 1
    %p128 = scmp.eq.s32.totalorder %s15, 1
    %p129 = scmp.ne.s32.totalorder %s124, %s126
    %p130 = scmp.eq.s32.totalorder %s15, 0
    %p131 = por %p129, %p130
    %p132 = scmp.ne.s32.totalorder %s124, %s126
    %p133 = scmp.eq.s32.totalorder %s20, 1
    %p134 = por %p132, %p133
    %p135 = scmp.ne.s32.totalorder %s126, %s127
    %p136 = scmp.eq.s32.totalorder %s20, 0
    %p137 = por %p135, %p136
    %p138 = scmp.ne.s32.totalorder %s126, %s127
    %p139 = scmp.eq.s32.totalorder %s21, 1
    %p140 = por %p138, %p139
    %p142 = scmp.ne.s32.totalorder %s127, %s141
    %p143 = scmp.eq.s32.totalorder %s21, 0
    %p144 = por %p142, %p143
    %s146 = sadd.s32 %s145, 1
    %p149 = scmp.eq.s32.totalorder %s15, 1
    %p150 = scmp.ne.s32.totalorder %s145, %s147
    %p151 = scmp.eq.s32.totalorder %s15, 0
    %p152 = por %p150, %p151
    %p153 = scmp.ne.s32.totalorder %s145, %s147
    %p154 = scmp.eq.s32.totalorder %s20, 1
    %p155 = por %p153, %p154
    %p156 = scmp.ne.s32.totalorder %s147, %s148
    %p157 = scmp.eq.s32.totalorder %s20, 0
    %p158 = por %p156, %p157
    %p159 = scmp.ne.s32.totalorder %s147, %s148
    %p160 = scmp.eq.s32.totalorder %s21, 1
    %p161 = por %p159, %p160
    %p163 = scmp.ne.s32.totalorder %s148, %s162
    %p164 = scmp.eq.s32.totalorder %s21, 0
    %p165 = por %p163, %p164
    %s167 = sadd.s32 %s166, 1
    %p170 = scmp.eq.s32.totalorder %s15, 1
    %p171 = scmp.ne.s32.totalorder %s166, %s168
    %p172 = scmp.eq.s32.totalorder %s15, 0
    %p173 = por %p171, %p172
    %p174 = scmp.ne.s32.totalorder %s166, %s168
    %p175 = scmp.eq.s32.totalorder %s20, 1
    %p176 = por %p174, %p175
    %p177 = scmp.ne.s32.totalorder %s168, %s169
    %p178 = scmp.eq.s32.totalorder %s20, 0
    %p179 = por %p177, %p178
    %p180 = scmp.ne.s32.totalorder %s168, %s169
    %p181 = scmp.eq.s32.totalorder %s21, 1
    %p182 = por %p180, %p181
    %p184 = scmp.ne.s32.totalorder %s169, %s183
    %p185 = scmp.eq.s32.totalorder %s21, 0
    %p186 = por %p184, %p185
    %s188 = sadd.s32 %s187, 1
    %p191 = scmp.eq.s32.totalorder %s15, 1
    %p192 = scmp.ne.s32.totalorder %s187, %s189
    %p193 = scmp.eq.s32.totalorder %s15, 0
    %p194 = por %p192, %p193
    %p195 = scmp.ne.s32.totalorder %s187, %s189
    %p196 = scmp.eq.s32.totalorder %s20, 1
    %p197 = por %p195, %p196
    %p198 = scmp.ne.s32.totalorder %s189, %s190
    %p199 = scmp.eq.s32.totalorder %s20, 0
    %p200 = por %p198, %p199
    %p201 = scmp.ne.s32.totalorder %s189, %s190
    %p202 = scmp.eq.s32.totalorder %s21, 1
    %p203 = por %p201, %p202
    %p205 = scmp.ne.s32.totalorder %s190, %s204
    %p206 = scmp.eq.s32.totalorder %s21, 0
    %p207 = por %p205, %p206
    %s209 = sadd.s32 %s208, 1
    %p212 = scmp.eq.s32.totalorder %s15, 1
    %p213 = scmp.ne.s32.totalorder %s208, %s210
    %p214 = scmp.eq.s32.totalorder %s15, 0
    %p215 = por %p213, %p214
    %p216 = scmp.ne.s32.totalorder %s208, %s210
    %p217 = scmp.eq.s32.totalorder %s20, 1
    %p218 = por %p216, %p217
    %p219 = scmp.ne.s32.totalorder %s210, %s211
    %p220 = scmp.eq.s32.totalorder %s20, 0
    %p221 = por %p219, %p220
    %p222 = scmp.ne.s32.totalorder %s210, %s211
    %p223 = scmp.eq.s32.totalorder %s21, 1
    %p224 = por %p222, %p223
    %p226 = scmp.ne.s32.totalorder %s211, %s225
    %p227 = scmp.eq.s32.totalorder %s21, 0
    %p228 = por %p226, %p227
    %s229 = ssub.s32 %s22, %s34
    %s230 = ssub.s32 %s23, %s30
    %s231 = sor.u32 %s229, %s230
    %p232 = scmp.eq.s32.totalorder %s231, 0
    %s234 = sadd.s32 %s233, 1
    %s235 = scalar_select %p232, %s233, %s234
    %p238 = pneg %p232
    %p239 = scmp.eq.s32.totalorder %s15, 1
    %p240 = por %p238, %p239
    %p241 = scmp.ne.s32.totalorder %s233, %s236
    %p242 = scmp.eq.s32.totalorder %s15, 0
    %p243 = por %p241, %p242
    %p244 = scmp.ne.s32.totalorder %s233, %s236
    %p245 = scmp.eq.s32.totalorder %s20, 1
    %p246 = por %p244, %p245
    %p247 = scmp.ne.s32.totalorder %s236, %s237
    %p248 = scmp.eq.s32.totalorder %s20, 0
    %p249 = por %p247, %p248
    %p250 = scmp.ne.s32.totalorder %s236, %s237
    %p251 = scmp.eq.s32.totalorder %s21, 1
    %p252 = por %p250, %p251
    %p254 = scmp.ne.s32.totalorder %s237, %s253
    %p255 = scmp.eq.s32.totalorder %s21, 0
    %p256 = por %p254, %p255
    %p257 = scmp.le.s32.totalorder 1, %s15
    %p258 = scmp.lt.s32.totalorder %s15, 3
    %p259 = pnand %p257, %p258
    %p260 = pneg %p259
    // Predicated region
    $region9: #{_lambda_.1} parent=5 // pred_check
      _
    $region10: #{_lambda_.1} parent=5 // pred_check_branch
      %262 = sbr.rel (%p259) target = $region12
    $region11: #{_lambda_.1} parent=5 // pred_region
      %s263 = ssub.s32 %s15, 1
      // Predicated region
      $region13: #{_lambda_.1} parent=11 // pred_check
        %p264 = pneg %p74
      $region14: #{_lambda_.1} parent=11 // pred_check_branch
        %266 = sbr.rel (%p264) target = $region16
      $region15: #{_lambda_.1} parent=11 // pred_region
        _
      $region16: #{_lambda_.1} parent=11 // pred_fallthru
        _
      // Predicated region
      $region17: #{_lambda_.1} parent=11 // pred_check
        %p267 = pneg %p95
      $region18: #{_lambda_.1} parent=11 // pred_check_branch
        %269 = sbr.rel (%p267) target = $region20
      $region19: #{_lambda_.1} parent=11 // pred_region
        _
      $region20: #{_lambda_.1} parent=11 // pred_fallthru
        _
      // Predicated region
      $region21: #{_lambda_.1} parent=11 // pred_check
        %p270 = pneg %p116
      $region22: #{_lambda_.1} parent=11 // pred_check_branch
        %272 = sbr.rel (%p270) target = $region24
      $region23: #{_lambda_.1} parent=11 // pred_region
        _
      $region24: #{_lambda_.1} parent=11 // pred_fallthru
        _
      // Predicated region
      $region25: #{_lambda_.1} parent=11 // pred_check
        %p273 = pneg %p137
      $region26: #{_lambda_.1} parent=11 // pred_check_branch
        %275 = sbr.rel (%p273) target = $region28
      $region27: #{_lambda_.1} parent=11 // pred_region
        _
      $region28: #{_lambda_.1} parent=11 // pred_fallthru
        _
      // Predicated region
      $region29: #{_lambda_.1} parent=11 // pred_check
        %p276 = pneg %p158
      $region30: #{_lambda_.1} parent=11 // pred_check_branch
        %278 = sbr.rel (%p276) target = $region32
      $region31: #{_lambda_.1} parent=11 // pred_region
        _
      $region32: #{_lambda_.1} parent=11 // pred_fallthru
        _
      // Predicated region
      $region33: #{_lambda_.1} parent=11 // pred_check
        %p279 = pneg %p179
      $region34: #{_lambda_.1} parent=11 // pred_check_branch
        %281 = sbr.rel (%p279) target = $region36
      $region35: #{_lambda_.1} parent=11 // pred_region
        _
      $region36: #{_lambda_.1} parent=11 // pred_fallthru
        _
      // Predicated region
      $region37: #{_lambda_.1} parent=11 // pred_check
        %p282 = pneg %p200
      $region38: #{_lambda_.1} parent=11 // pred_check_branch
        %284 = sbr.rel (%p282) target = $region40
      $region39: #{_lambda_.1} parent=11 // pred_region
        _
      $region40: #{_lambda_.1} parent=11 // pred_fallthru
        _
      // Predicated region
      $region41: #{_lambda_.1} parent=11 // pred_check
        %p285 = pneg %p221
      $region42: #{_lambda_.1} parent=11 // pred_check_branch
        %287 = sbr.rel (%p285) target = $region44
      $region43: #{_lambda_.1} parent=11 // pred_region
        _
      $region44: #{_lambda_.1} parent=11 // pred_fallthru
        _
    $region12: #{_lambda_.1} parent=5 // pred_fallthru
      _
    %p288 = scmp.lt.s32.totalorder %s15, 2
    // Predicated region
    $region45: #{_lambda_.1} parent=5 // pred_check
      %p289 = pneg %p288
    $region46: #{_lambda_.1} parent=5 // pred_check_branch
      %291 = sbr.rel (%p289) target = $region48
    $region47: #{_lambda_.1} parent=5 // pred_region
      // Predicated region
      $region49: #{_lambda_.1} parent=47 // pred_check
        %p292 = pneg %p47
      $region50: #{_lambda_.1} parent=47 // pred_check_branch
        %294 = sbr.rel (%p292) target = $region52
      $region51: #{_lambda_.1} parent=47 // pred_region
        %p295 = scmp.lt.s32.totalorder %s22, 1
        %s296 = scalar_select %p295, %s22, 1
        %s297 = smul.addr %s296, 54
        %s298 = smul.addr %s297, 4
        %s299 = scalar_lea.vmem %s0, %s298
      $region52: #{_lambda_.1} parent=47 // pred_fallthru
        _
    $region48: #{_lambda_.1} parent=5 // pred_fallthru
      _
    %p300 = scmp.le.s32.totalorder 1, %s15
    %p301 = scmp.lt.s32.totalorder %s15, 3
    %p302 = pnand %p300, %p301
    %p303 = pneg %p302
    // Predicated region
    $region53: #{_lambda_.1} parent=5 // pred_check
      _
    $region54: #{_lambda_.1} parent=5 // pred_check_branch
      %305 = sbr.rel (%p302) target = $region56
    $region55: #{_lambda_.1} parent=5 // pred_region
      %s306 = ssub.s32 %s15, 1
      %p307 = scmp.lt.s32.totalorder %s24, 1
      %s308 = scalar_select %p307, %s24, 1
      %s309 = smul.addr %s308, 54
      %s310 = smul.addr %s309, 4
      %s311 = scalar_lea.vmem %s0, %s310
      %p312 = pneg %p53
      %p313 = pneg %p50
      %p314 = pneg %p74
      %p315 = pneg %p71
      %p316 = pneg %p95
      %p317 = pneg %p92
      %p318 = pneg %p116
      %p319 = pneg %p113
      %p320 = pneg %p137
      %p321 = pneg %p134
      %p322 = pneg %p158
      %p323 = pneg %p155
      %p324 = pneg %p179
      %p325 = pneg %p176
      %p326 = pneg %p200
      %p327 = pneg %p197
      %p328 = pneg %p221
      %p329 = pneg %p218
      %p330 = pneg %p249
      %p331 = pneg %p246
      %p332 = scmp.lt.s32.totalorder %s24, 1
      %s333 = scalar_select %p332, %s24, 1
      %p334 = scmp.lt.s32.totalorder %s25, 0
      %s335 = scalar_select %p334, %s25, 0
      %s336 = smul.addr %s335, 4
      %s337 = smul.addr %s333, 4
      %s338 = sadd.s32 %s336, %s337
      %s339 = scalar_lea.vmem %s9, %s338
      %p340 = scmp.lt.s32.totalorder %s24, 1
      %s341 = scalar_select %p340, %s24, 1
      %s342 = smul.addr %s341, 54
      %s343 = smul.addr %s342, 4
      %s344 = scalar_lea.vmem %s0, %s343
      %p345 = scmp.lt.s32.totalorder %s24, 1
      %s346 = scalar_select %p345, %s24, 1
      %p347 = scmp.lt.s32.totalorder %s25, 0
      %s348 = scalar_select %p347, %s25, 0
      %s349 = smul.addr %s348, 4
      %s350 = smul.addr %s346, 4
      %s351 = sadd.s32 %s349, %s350
      %s352 = scalar_lea.vmem %s9, %s351
      %s354 = smul.u32 %s25, 16
      %v355 = vld [vmem:[%s1] sm:$0xf]
      %v356 = vld [vmem:[%s1 + $0x4] sm:$0xf]
      %v357 = vld [vmem:[%s1 + $0x8] sm:$0xf]
      %v358 = vld [vmem:[%s1 + $0xc] sm:$0xf]
      %v359 = vld [vmem:[%s1 + $0x10] sm:$0xf]
      %v360 = vld [vmem:[%s1 + $0x14] sm:$0xf]
      %v361 = vld [vmem:[%s1 + $0x18] sm:$0xf]
      %v362 = vld [vmem:[%s1 + $0x1c] sm:$0xf]
      %v363 = vld [vmem:[%s2] sm:$0xff]
      %v364 = vld [vmem:[%s2 + $0x8] sm:$0xff]
      %v365 = vld [vmem:[%s2 + $0x10] sm:$0xff]
      %v366 = vld [vmem:[%s2 + $0x18] sm:$0xff]
      %v367 = vld [vmem:[%s2 + $0x20] sm:$0xff]
      %v368 = vld [vmem:[%s2 + $0x28] sm:$0xff]
      %v369 = vld [vmem:[%s2 + $0x30] sm:$0xff]
      %v370 = vld [vmem:[%s2 + $0x38] sm:$0xff]
      %s371 = smul.u32 %s25, 384
      %s372 = sshra.s32 %s371, 3
      %s373 = sand.u32 %s371, 7
      %s374 = smul.addr %s372, 4
      %s375 = scalar_lea.vmem %s344, %s374
      %v376 = vld [vmem:[%s375] sm:$0xf]
      %v377 = vld [vmem:[%s375 + $0x4] sm:$0xf]
      %v378 = vld [vmem:[%s375 + $0x8] sm:$0xf]
      %v379 = vld [vmem:[%s375 + $0xc] sm:$0xf]
      %v380 = vld [vmem:[%s375 + $0x10] sm:$0xf]
      %v381 = vld [vmem:[%s375 + $0x14] sm:$0xf]
      %v382 = vld [vmem:[%s375 + $0x18] sm:$0xf]
      %v383 = vld [vmem:[%s375 + $0x1c] sm:$0xf]
      %v384 = vld [vmem:[%s375 + $0x20] sm:$0xf]
      %s385 = sadd.s32 %s371, 24
      %s386 = sshra.s32 %s385, 3
      %s387 = sand.u32 %s385, 7
      %s388 = smul.addr %s386, 4
      %s389 = scalar_lea.vmem %s344, %s388
      %v390 = vld [vmem:[%s389] sm:$0xf]
      %v391 = vld [vmem:[%s389 + $0x4] sm:$0xf]
      %v392 = vld [vmem:[%s389 + $0x8] sm:$0xf]
      %v393 = vld [vmem:[%s389 + $0xc] sm:$0xf]
      %v394 = vld [vmem:[%s389 + $0x10] sm:$0xf]
      %v395 = vld [vmem:[%s389 + $0x14] sm:$0xf]
      %v396 = vld [vmem:[%s389 + $0x18] sm:$0xf]
      %v397 = vld [vmem:[%s389 + $0x1c] sm:$0xf]
      %v398 = vld [vmem:[%s389 + $0x20] sm:$0xf]
      %400 = vset.pattern.permute.xlu0 0
      %401 = vperm.xlu0 %400, %v363
      %v402 = vpop.permute.xlu0 %401
      %405 = vset.pattern.permute.xlu0 0
      %406 = vperm.xlu0 %405, %v364
      %v407 = vpop.permute.xlu0 %406
      %410 = vset.pattern.permute.xlu0 0
      %411 = vperm.xlu0 %410, %v365
      %v412 = vpop.permute.xlu0 %411
      %415 = vset.pattern.permute.xlu0 0
      %416 = vperm.xlu0 %415, %v366
      %v417 = vpop.permute.xlu0 %416
      %420 = vset.pattern.permute.xlu0 0
      %421 = vperm.xlu0 %420, %v367
      %v422 = vpop.permute.xlu0 %421
      %425 = vset.pattern.permute.xlu0 0
      %426 = vperm.xlu0 %425, %v368
      %v427 = vpop.permute.xlu0 %426
      %430 = vset.pattern.permute.xlu0 0
      %431 = vperm.xlu0 %430, %v369
      %v432 = vpop.permute.xlu0 %431
      %435 = vset.pattern.permute.xlu0 0
      %436 = vperm.xlu0 %435, %v370
      %v437 = vpop.permute.xlu0 %436
      %v447 = vunpack.c.l.b16 %v355
      %v448 = vunpack.c.l.b16 %v356
      %v449 = vunpack.c.l.b16 %v357
      %v450 = vunpack.c.l.b16 %v358
      %v451 = vunpack.c.l.b16 %v359
      %v452 = vunpack.c.l.b16 %v360
      %v453 = vunpack.c.l.b16 %v361
      %v454 = vunpack.c.l.b16 %v362
      %v455 = vpack.c.b16 %v448, %v447
      %v456 = vpack.c.b16 %v450, %v449
      %v457 = vpack.c.b16 %v452, %v451
      %v458 = vpack.c.b16 %v454, %v453
      %v468 = vunpack.c.l.b16 %v376
      %v469 = vunpack.c.l.b16 %v377
      %v470 = vunpack.c.l.b16 %v378
      %v471 = vunpack.c.l.b16 %v379
      %v472 = vunpack.c.l.b16 %v380
      %v473 = vunpack.c.l.b16 %v381
      %v474 = vunpack.c.l.b16 %v382
      %v475 = vunpack.c.l.b16 %v383
      %v476 = vunpack.c.l.b16 %v384
      %v477 = vpack.c.b16 %v469, %v468
      %v478 = vpack.c.b16 %v471, %v470
      %v479 = vpack.c.b16 %v473, %v472
      %v480 = vpack.c.b16 %v475, %v474
      %v481 = vpack.c.b16 %v476, %v476
      %vm486 = vcmask 588800
      %v488 = vsel %vm486, %v455, 0
      %v491 = vsel %vm486, %v456, 0
      %v494 = vsel %vm486, %v457, 0
      %v497 = vsel %vm486, %v458, 0
      %vm499 = vcmask 1043456
      %v501 = vsel %vm499, %v481, 0
      %503 = vmatprep.subr.bf16.mxu0 0
      %504 = vmatpush1.bf16.msra.mxu0 0
      %505 = vmatprep.subr.bf16.mxu0 0
      %506 = vmatpush1.bf16.msra.mxu0 0
      %507 = vmatprep.subr.bf16.mxu0 0
      %508 = vmatpush1.bf16.msra.mxu0 0
      %509 = vmatprep.subr.bf16.mxu0 0
      %510 = vmatpush1.bf16.msra.mxu0 %v501
      %511 = vmatprep.subr.bf16.mxu0 0
      %512 = vmatpush1.bf16.msra.mxu0 %v480
      %513 = vmatprep.subr.bf16.mxu0 0
      %514 = vmatpush1.bf16.msra.mxu0 %v479
      %515 = vmatprep.subr.bf16.mxu0 0
      %516 = vmatpush1.bf16.msra.mxu0 %v478
      %517 = vmatprep.subr.bf16.mxu0 0
      %518 = vmatpush1.bf16.msra.mxu0 %v477
      %519 = vmatprep.subr.bf16.mxu0 0
      %520 = vmatpush2.bf16.msra.mxu0 0
      %521 = vmatprep.subr.bf16.mxu0 0
      %522 = vmatpush2.bf16.msra.mxu0 0
      %523 = vmatprep.subr.bf16.mxu0 0
      %524 = vmatpush2.bf16.msra.mxu0 0
      %525 = vmatprep.subr.bf16.mxu0 0
      %526 = vmatpush2.bf16.msra.mxu0 0
      %527 = vmatprep.subr.bf16.mxu0 0
      %528 = vmatpush2.bf16.msra.mxu0 0
      %529 = vmatprep.subr.bf16.mxu0 0
      %530 = vmatpush2.bf16.msra.mxu0 0
      %531 = vmatprep.subr.bf16.mxu0 0
      %532 = vmatpush2.bf16.msra.mxu0 0
      %533 = vmatprep.subr.bf16.mxu0 0
      %534 = vmatpush2.bf16.msra.mxu0 0
      %535 = vmatprep.mubr.bf16.mxu0 0
      %536 = vmatmul.mubr.bf16.gmra.mxu0 %v488
      %v537 = vpop.f32.mrf.mxu0
      %v538 = vadd.f32 %v402, %v537
      %v539 = vpop.f32.mrf.mxu0
      %v540 = vpop.f32.mrf.mxu0
      %v541 = vadd.f32 %v407, %v540
      %v542 = vpop.f32.mrf.mxu0
      %543 = vmatprep.mubr.bf16.mxu0 0
      %544 = vmatmul.mubr.bf16.gmra.mxu0 %v491
      %v545 = vpop.f32.mrf.mxu0
      %v546 = vadd.f32 %v412, %v545
      %v547 = vpop.f32.mrf.mxu0
      %v548 = vpop.f32.mrf.mxu0
      %v549 = vadd.f32 %v417, %v548
      %v550 = vpop.f32.mrf.mxu0
      %551 = vmatprep.mubr.bf16.mxu0 0
      %552 = vmatmul.mubr.bf16.gmra.mxu0 %v494
      %v553 = vpop.f32.mrf.mxu0
      %v554 = vadd.f32 %v422, %v553
      %v555 = vpop.f32.mrf.mxu0
      %v556 = vpop.f32.mrf.mxu0
      %v557 = vadd.f32 %v427, %v556
      %v558 = vpop.f32.mrf.mxu0
      %559 = vmatprep.mubr.bf16.mxu0 0
      %560 = vmatmul.mubr.bf16.gmra.mxu0 %v497
      %v561 = vpop.f32.mrf.mxu0
      %v562 = vadd.f32 %v432, %v561
      %v563 = vpop.f32.mrf.mxu0
      %v564 = vpop.f32.mrf.mxu0
      %v565 = vadd.f32 %v437, %v564
      %v566 = vpop.f32.mrf.mxu0
      %567 = vdwg.mxu0
      %vm568 = vcmp.ge.f32.partialorder %v538, 0.0
      %vm569 = vcmp.ge.f32.partialorder %v541, 0.0
      %vm570 = vcmp.ge.f32.partialorder %v546, 0.0
      %vm571 = vcmp.ge.f32.partialorder %v549, 0.0
      %vm572 = vcmp.ge.f32.partialorder %v554, 0.0
      %vm573 = vcmp.ge.f32.partialorder %v557, 0.0
      %vm574 = vcmp.ge.f32.partialorder %v562, 0.0
      %vm575 = vcmp.ge.f32.partialorder %v565, 0.0
      %v576 = vmul.f32 %v538, 0.1
      %v577 = vmul.f32 %v541, 0.1
      %v578 = vmul.f32 %v546, 0.1
      %v579 = vmul.f32 %v549, 0.1
      %v580 = vmul.f32 %v554, 0.1
      %v581 = vmul.f32 %v557, 0.1
      %v582 = vmul.f32 %v562, 0.1
      %v583 = vmul.f32 %v565, 0.1
      %v584 = vsel %vm568, %v538, %v576
      %v585 = vsel %vm569, %v541, %v577
      %v586 = vsel %vm570, %v546, %v578
      %v587 = vsel %vm571, %v549, %v579
      %v588 = vsel %vm572, %v554, %v580
      %v589 = vsel %vm573, %v557, %v581
      %v590 = vsel %vm574, %v562, %v582
      %v591 = vsel %vm575, %v565, %v583
      %v601 = vunpack.c.l.b16 %v390
      %v602 = vunpack.c.l.b16 %v391
      %v603 = vunpack.c.l.b16 %v392
      %v604 = vunpack.c.l.b16 %v393
      %v605 = vunpack.c.l.b16 %v394
      %v606 = vunpack.c.l.b16 %v395
      %v607 = vunpack.c.l.b16 %v396
      %v608 = vunpack.c.l.b16 %v397
      %v609 = vunpack.c.l.b16 %v398
      %v610 = vpack.c.b16 %v602, %v601
      %v611 = vpack.c.b16 %v604, %v603
      %v612 = vpack.c.b16 %v606, %v605
      %v613 = vpack.c.b16 %v608, %v607
      %v614 = vpack.c.b16 %v609, %v609
      %v620 = vsel %vm499, %v614, 0
      %622 = vmatprep.subr.bf16.mxu0 0
      %623 = vmatpush1.bf16.msra.mxu0 0
      %624 = vmatprep.subr.bf16.mxu0 0
      %625 = vmatpush1.bf16.msra.mxu0 0
      %626 = vmatprep.subr.bf16.mxu0 0
      %627 = vmatpush1.bf16.msra.mxu0 0
      %628 = vmatprep.subr.bf16.mxu0 0
      %629 = vmatpush1.bf16.msra.mxu0 %v620
      %630 = vmatprep.subr.bf16.mxu0 0
      %631 = vmatpush1.bf16.msra.mxu0 %v613
      %632 = vmatprep.subr.bf16.mxu0 0
      %633 = vmatpush1.bf16.msra.mxu0 %v612
      %634 = vmatprep.subr.bf16.mxu0 0
      %635 = vmatpush1.bf16.msra.mxu0 %v611
      %636 = vmatprep.subr.bf16.mxu0 0
      %637 = vmatpush1.bf16.msra.mxu0 %v610
      %638 = vmatprep.subr.bf16.mxu0 0
      %639 = vmatpush2.bf16.msra.mxu0 0
      %640 = vmatprep.subr.bf16.mxu0 0
      %641 = vmatpush2.bf16.msra.mxu0 0
      %642 = vmatprep.subr.bf16.mxu0 0
      %643 = vmatpush2.bf16.msra.mxu0 0
      %644 = vmatprep.subr.bf16.mxu0 0
      %645 = vmatpush2.bf16.msra.mxu0 0
      %646 = vmatprep.subr.bf16.mxu0 0
      %647 = vmatpush2.bf16.msra.mxu0 0
      %648 = vmatprep.subr.bf16.mxu0 0
      %649 = vmatpush2.bf16.msra.mxu0 0
      %650 = vmatprep.subr.bf16.mxu0 0
      %651 = vmatpush2.bf16.msra.mxu0 0
      %652 = vmatprep.subr.bf16.mxu0 0
      %653 = vmatpush2.bf16.msra.mxu0 0
      %654 = vmatprep.mubr.bf16.mxu0 0
      %655 = vmatmul.mubr.bf16.gmra.mxu0 %v488
      %v656 = vpop.f32.mrf.mxu0
      %v657 = vadd.f32 %v402, %v656
      %v658 = vpop.f32.mrf.mxu0
      %v659 = vpop.f32.mrf.mxu0
      %v660 = vadd.f32 %v407, %v659
      %v661 = vpop.f32.mrf.mxu0
      %662 = vmatprep.mubr.bf16.mxu0 0
      %663 = vmatmul.mubr.bf16.gmra.mxu0 %v491
      %v664 = vpop.f32.mrf.mxu0
      %v665 = vadd.f32 %v412, %v664
      %v666 = vpop.f32.mrf.mxu0
      %v667 = vpop.f32.mrf.mxu0
      %v668 = vadd.f32 %v417, %v667
      %v669 = vpop.f32.mrf.mxu0
      %670 = vmatprep.mubr.bf16.mxu0 0
      %671 = vmatmul.mubr.bf16.gmra.mxu0 %v494
      %v672 = vpop.f32.mrf.mxu0
      %v673 = vadd.f32 %v422, %v672
      %v674 = vpop.f32.mrf.mxu0
      %v675 = vpop.f32.mrf.mxu0
      %v676 = vadd.f32 %v427, %v675
      %v677 = vpop.f32.mrf.mxu0
      %678 = vmatprep.mubr.bf16.mxu0 0
      %679 = vmatmul.mubr.bf16.gmra.mxu0 %v497
      %v680 = vpop.f32.mrf.mxu0
      %v681 = vadd.f32 %v432, %v680
      %v682 = vpop.f32.mrf.mxu0
      %v683 = vpop.f32.mrf.mxu0
      %v684 = vadd.f32 %v437, %v683
      %v685 = vpop.f32.mrf.mxu0
      %686 = vdwg.mxu0
      %vm687 = vcmp.ge.f32.partialorder %v657, 0.0
      %vm688 = vcmp.ge.f32.partialorder %v660, 0.0
      %vm689 = vcmp.ge.f32.partialorder %v665, 0.0
      %vm690 = vcmp.ge.f32.partialorder %v668, 0.0
      %vm691 = vcmp.ge.f32.partialorder %v673, 0.0
      %vm692 = vcmp.ge.f32.partialorder %v676, 0.0
      %vm693 = vcmp.ge.f32.partialorder %v681, 0.0
      %vm694 = vcmp.ge.f32.partialorder %v684, 0.0
      %v695 = vmul.f32 %v657, 0.1
      %v696 = vmul.f32 %v660, 0.1
      %v697 = vmul.f32 %v665, 0.1
      %v698 = vmul.f32 %v668, 0.1
      %v699 = vmul.f32 %v673, 0.1
      %v700 = vmul.f32 %v676, 0.1
      %v701 = vmul.f32 %v681, 0.1
      %v702 = vmul.f32 %v684, 0.1
      %v703 = vsel %vm687, %v657, %v695
      %v704 = vsel %vm688, %v660, %v696
      %v705 = vsel %vm689, %v665, %v697
      %v706 = vsel %vm690, %v668, %v698
      %v707 = vsel %vm691, %v673, %v699
      %v708 = vsel %vm692, %v676, %v700
      %v709 = vsel %vm693, %v681, %v701
      %v710 = vsel %vm694, %v684, %v702
      %v711 = vmax.f32 %v584, %v703
      %v712 = vmax.f32 %v585, %v704
      %v713 = vmax.f32 %v586, %v705
      %v714 = vmax.f32 %v587, %v706
      %v715 = vmax.f32 %v588, %v707
      %v716 = vmax.f32 %v589, %v708
      %v717 = vmax.f32 %v590, %v709
      %v718 = vmax.f32 %v591, %v710
      %727 = vrot.lane.b32.xlu0 %v711, 120
      %v728 = vpop.permute.xlu0 %727
      %729 = vrot.lane.b32.xlu0 %v712, 120
      %v730 = vpop.permute.xlu0 %729
      %731 = vrot.lane.b32.xlu0 %v713, 120
      %v732 = vpop.permute.xlu0 %731
      %733 = vrot.lane.b32.xlu0 %v714, 120
      %v734 = vpop.permute.xlu0 %733
      %735 = vrot.lane.b32.xlu0 %v715, 120
      %v736 = vpop.permute.xlu0 %735
      %737 = vrot.lane.b32.xlu0 %v716, 120
      %v738 = vpop.permute.xlu0 %737
      %739 = vrot.lane.b32.xlu0 %v717, 120
      %v740 = vpop.permute.xlu0 %739
      %741 = vrot.lane.b32.xlu0 %v718, 120
      %v742 = vpop.permute.xlu0 %741
      %v751 = vmax.f32 %v711, %v728
      %v752 = vmax.f32 %v712, %v730
      %v753 = vmax.f32 %v713, %v732
      %v754 = vmax.f32 %v714, %v734
      %v755 = vmax.f32 %v715, %v736
      %v756 = vmax.f32 %v716, %v738
      %v757 = vmax.f32 %v717, %v740
      %v758 = vmax.f32 %v718, %v742
      %v759 = vpack.c.bf16 %v752, %v751
      %v760 = vpack.c.bf16 %v754, %v753
      %v761 = vpack.c.bf16 %v756, %v755
      %v762 = vpack.c.bf16 %v758, %v757
      %s763 = sadd.s32 %s354, 2
      %s764 = smul.u32 %s763, 24
      %s765 = sshra.s32 %s764, 3
      %s766 = sand.u32 %s764, 7
      %s767 = smul.addr %s765, 4
      %s768 = scalar_lea.vmem %s344, %s767
      %v769 = vld [vmem:[%s768] sm:$0xf]
      %v770 = vld [vmem:[%s768 + $0x4] sm:$0xf]
      %v771 = vld [vmem:[%s768 + $0x8] sm:$0xf]
      %v772 = vld [vmem:[%s768 + $0xc] sm:$0xf]
      %v773 = vld [vmem:[%s768 + $0x10] sm:$0xf]
      %v774 = vld [vmem:[%s768 + $0x14] sm:$0xf]
      %v775 = vld [vmem:[%s768 + $0x18] sm:$0xf]
      %v776 = vld [vmem:[%s768 + $0x1c] sm:$0xf]
      %v777 = vld [vmem:[%s768 + $0x20] sm:$0xf]
      %s778 = sadd.s32 %s764, 24
      %s779 = sshra.s32 %s778, 3
      %s780 = sand.u32 %s778, 7
      %s781 = smul.addr %s779, 4
      %s782 = scalar_lea.vmem %s344, %s781
      %v783 = vld [vmem:[%s782] sm:$0xf]
      %v784 = vld [vmem:[%s782 + $0x4] sm:$0xf]
      %v785 = vld [vmem:[%s782 + $0x8] sm:$0xf]
      %v786 = vld [vmem:[%s782 + $0xc] sm:$0xf]
      %v787 = vld [vmem:[%s782 + $0x10] sm:$0xf]
      %v788 = vld [vmem:[%s782 + $0x14] sm:$0xf]
      %v789 = vld [vmem:[%s782 + $0x18] sm:$0xf]
      %v790 = vld [vmem:[%s782 + $0x1c] sm:$0xf]
      %v791 = vld [vmem:[%s782 + $0x20] sm:$0xf]
      %v801 = vunpack.c.l.b16 %v769
      %v802 = vunpack.c.l.b16 %v770
      %v803 = vunpack.c.l.b16 %v771
      %v804 = vunpack.c.l.b16 %v772
      %v805 = vunpack.c.l.b16 %v773
      %v806 = vunpack.c.l.b16 %v774
      %v807 = vunpack.c.l.b16 %v775
      %v808 = vunpack.c.l.b16 %v776
      %v809 = vunpack.c.l.b16 %v777
      %v810 = vpack.c.b16 %v802, %v801
      %v811 = vpack.c.b16 %v804, %v803
      %v812 = vpack.c.b16 %v806, %v805
      %v813 = vpack.c.b16 %v808, %v807
      %v814 = vpack.c.b16 %v809, %v809
      %v820 = vsel %vm499, %v814, 0
      %822 = vmatprep.subr.bf16.mxu0 0
      %823 = vmatpush1.bf16.msra.mxu0 0
      %824 = vmatprep.subr.bf16.mxu0 0
      %825 = vmatpush1.bf16.msra.mxu0 0
      %826 = vmatprep.subr.bf16.mxu0 0
      %827 = vmatpush1.bf16.msra.mxu0 0
      %828 = vmatprep.subr.bf16.mxu0 0
      %829 = vmatpush1.bf16.msra.mxu0 %v820
      %830 = vmatprep.subr.bf16.mxu0 0
      %831 = vmatpush1.bf16.msra.mxu0 %v813
      %832 = vmatprep.subr.bf16.mxu0 0
      %833 = vmatpush1.bf16.msra.mxu0 %v812
      %834 = vmatprep.subr.bf16.mxu0 0
      %835 = vmatpush1.bf16.msra.mxu0 %v811
      %836 = vmatprep.subr.bf16.mxu0 0
      %837 = vmatpush1.bf16.msra.mxu0 %v810
      %838 = vmatprep.subr.bf16.mxu0 0
      %839 = vmatpush2.bf16.msra.mxu0 0
      %840 = vmatprep.subr.bf16.mxu0 0
      %841 = vmatpush2.bf16.msra.mxu0 0
      %842 = vmatprep.subr.bf16.mxu0 0
      %843 = vmatpush2.bf16.msra.mxu0 0
      %844 = vmatprep.subr.bf16.mxu0 0
      %845 = vmatpush2.bf16.msra.mxu0 0
      %846 = vmatprep.subr.bf16.mxu0 0
      %847 = vmatpush2.bf16.msra.mxu0 0
      %848 = vmatprep.subr.bf16.mxu0 0
      %849 = vmatpush2.bf16.msra.mxu0 0
      %850 = vmatprep.subr.bf16.mxu0 0
      %851 = vmatpush2.bf16.msra.mxu0 0
      %852 = vmatprep.subr.bf16.mxu0 0
      %853 = vmatpush2.bf16.msra.mxu0 0
      %854 = vmatprep.mubr.bf16.mxu0 0
      %855 = vmatmul.mubr.bf16.gmra.mxu0 %v488
      %v856 = vpop.f32.mrf.mxu0
      %v857 = vadd.f32 %v402, %v856
      %v858 = vpop.f32.mrf.mxu0
      %v859 = vpop.f32.mrf.mxu0
      %v860 = vadd.f32 %v407, %v859
      %v861 = vpop.f32.mrf.mxu0
      %862 = vmatprep.mubr.bf16.mxu0 0
      %863 = vmatmul.mubr.bf16.gmra.mxu0 %v491
      %v864 = vpop.f32.mrf.mxu0
      %v865 = vadd.f32 %v412, %v864
      %v866 = vpop.f32.mrf.mxu0
      %v867 = vpop.f32.mrf.mxu0
      %v868 = vadd.f32 %v417, %v867
      %v869 = vpop.f32.mrf.mxu0
      %870 = vmatprep.mubr.bf16.mxu0 0
      %871 = vmatmul.mubr.bf16.gmra.mxu0 %v494
      %v872 = vpop.f32.mrf.mxu0
      %v873 = vadd.f32 %v422, %v872
      %v874 = vpop.f32.mrf.mxu0
      %v875 = vpop.f32.mrf.mxu0
      %v876 = vadd.f32 %v427, %v875
      %v877 = vpop.f32.mrf.mxu0
      %878 = vmatprep.mubr.bf16.mxu0 0
      %879 = vmatmul.mubr.bf16.gmra.mxu0 %v497
      %v880 = vpop.f32.mrf.mxu0
      %v881 = vadd.f32 %v432, %v880
      %v882 = vpop.f32.mrf.mxu0
      %v883 = vpop.f32.mrf.mxu0
      %v884 = vadd.f32 %v437, %v883
      %v885 = vpop.f32.mrf.mxu0
      %886 = vdwg.mxu0
      %vm887 = vcmp.ge.f32.partialorder %v857, 0.0
      %vm888 = vcmp.ge.f32.partialorder %v860, 0.0
      %vm889 = vcmp.ge.f32.partialorder %v865, 0.0
      %vm890 = vcmp.ge.f32.partialorder %v868, 0.0
      %vm891 = vcmp.ge.f32.partialorder %v873, 0.0
      %vm892 = vcmp.ge.f32.partialorder %v876, 0.0
      %vm893 = vcmp.ge.f32.partialorder %v881, 0.0
      %vm894 = vcmp.ge.f32.partialorder %v884, 0.0
      %v895 = vmul.f32 %v857, 0.1
      %v896 = vmul.f32 %v860, 0.1
      %v897 = vmul.f32 %v865, 0.1
      %v898 = vmul.f32 %v868, 0.1
      %v899 = vmul.f32 %v873, 0.1
      %v900 = vmul.f32 %v876, 0.1
      %v901 = vmul.f32 %v881, 0.1
      %v902 = vmul.f32 %v884, 0.1
      %v903 = vsel %vm887, %v857, %v895
      %v904 = vsel %vm888, %v860, %v896
      %v905 = vsel %vm889, %v865, %v897
      %v906 = vsel %vm890, %v868, %v898
      %v907 = vsel %vm891, %v873, %v899
      %v908 = vsel %vm892, %v876, %v900
      %v909 = vsel %vm893, %v881, %v901
      %v910 = vsel %vm894, %v884, %v902
      %v920 = vunpack.c.l.b16 %v783
      %v921 = vunpack.c.l.b16 %v784
      %v922 = vunpack.c.l.b16 %v785
      %v923 = vunpack.c.l.b16 %v786
      %v924 = vunpack.c.l.b16 %v787
      %v925 = vunpack.c.l.b16 %v788
      %v926 = vunpack.c.l.b16 %v789
      %v927 = vunpack.c.l.b16 %v790
      %v928 = vunpack.c.l.b16 %v791
      %v929 = vpack.c.b16 %v921, %v920
      %v930 = vpack.c.b16 %v923, %v922
      %v931 = vpack.c.b16 %v925, %v924
      %v932 = vpack.c.b16 %v927, %v926
      %v933 = vpack.c.b16 %v928, %v928
      %v939 = vsel %vm499, %v933, 0
      %941 = vmatprep.subr.bf16.mxu0 0
      %942 = vmatpush1.bf16.msra.mxu0 0
      %943 = vmatprep.subr.bf16.mxu0 0
      %944 = vmatpush1.bf16.msra.mxu0 0
      %945 = vmatprep.subr.bf16.mxu0 0
      %946 = vmatpush1.bf16.msra.mxu0 0
      %947 = vmatprep.subr.bf16.mxu0 0
      %948 = vmatpush1.bf16.msra.mxu0 %v939
      %949 = vmatprep.subr.bf16.mxu0 0
      %950 = vmatpush1.bf16.msra.mxu0 %v932
      %951 = vmatprep.subr.bf16.mxu0 0
      %952 = vmatpush1.bf16.msra.mxu0 %v931
      %953 = vmatprep.subr.bf16.mxu0 0
      %954 = vmatpush1.bf16.msra.mxu0 %v930
      %955 = vmatprep.subr.bf16.mxu0 0
      %956 = vmatpush1.bf16.msra.mxu0 %v929
      %957 = vmatprep.subr.bf16.mxu0 0
      %958 = vmatpush2.bf16.msra.mxu0 0
      %959 = vmatprep.subr.bf16.mxu0 0
      %960 = vmatpush2.bf16.msra.mxu0 0
      %961 = vmatprep.subr.bf16.mxu0 0
      %962 = vmatpush2.bf16.msra.mxu0 0
      %963 = vmatprep.subr.bf16.mxu0 0
      %964 = vmatpush2.bf16.msra.mxu0 0
      %965 = vmatprep.subr.bf16.mxu0 0
      %966 = vmatpush2.bf16.msra.mxu0 0
      %967 = vmatprep.subr.bf16.mxu0 0
      %968 = vmatpush2.bf16.msra.mxu0 0
      %969 = vmatprep.subr.bf16.mxu0 0
      %970 = vmatpush2.bf16.msra.mxu0 0
      %971 = vmatprep.subr.bf16.mxu0 0
      %972 = vmatpush2.bf16.msra.mxu0 0
      %973 = vmatprep.mubr.bf16.mxu0 0
      %974 = vmatmul.mubr.bf16.gmra.mxu0 %v488
      %v975 = vpop.f32.mrf.mxu0
      %v976 = vadd.f32 %v402, %v975
      %v977 = vpop.f32.mrf.mxu0
      %v978 = vpop.f32.mrf.mxu0
      %v979 = vadd.f32 %v407, %v978
      %v980 = vpop.f32.mrf.mxu0
      %981 = vmatprep.mubr.bf16.mxu0 0
      %982 = vmatmul.mubr.bf16.gmra.mxu0 %v491
      %v983 = vpop.f32.mrf.mxu0
      %v984 = vadd.f32 %v412, %v983
      %v985 = vpop.f32.mrf.mxu0
      %v986 = vpop.f32.mrf.mxu0
      %v987 = vadd.f32 %v417, %v986
      %v988 = vpop.f32.mrf.mxu0
      %989 = vmatprep.mubr.bf16.mxu0 0
      %990 = vmatmul.mubr.bf16.gmra.mxu0 %v494
      %v991 = vpop.f32.mrf.mxu0
      %v992 = vadd.f32 %v422, %v991
      %v993 = vpop.f32.mrf.mxu0
      %v994 = vpop.f32.mrf.mxu0
      %v995 = vadd.f32 %v427, %v994
      %v996 = vpop.f32.mrf.mxu0
      %997 = vmatprep.mubr.bf16.mxu0 0
      %998 = vmatmul.mubr.bf16.gmra.mxu0 %v497
      %v999 = vpop.f32.mrf.mxu0
      %v1000 = vadd.f32 %v432, %v999
      %v1001 = vpop.f32.mrf.mxu0
      %v1002 = vpop.f32.mrf.mxu0
      %v1003 = vadd.f32 %v437, %v1002
      %v1004 = vpop.f32.mrf.mxu0
      %1005 = vdwg.mxu0
      %vm1006 = vcmp.ge.f32.partialorder %v976, 0.0
      %vm1007 = vcmp.ge.f32.partialorder %v979, 0.0
      %vm1008 = vcmp.ge.f32.partialorder %v984, 0.0
      %vm1009 = vcmp.ge.f32.partialorder %v987, 0.0
      %vm1010 = vcmp.ge.f32.partialorder %v992, 0.0
      %vm1011 = vcmp.ge.f32.partialorder %v995, 0.0
      %vm1012 = vcmp.ge.f32.partialorder %v1000, 0.0
      %vm1013 = vcmp.ge.f32.partialorder %v1003, 0.0
      %v1014 = vmul.f32 %v976, 0.1
      %v1015 = vmul.f32 %v979, 0.1
      %v1016 = vmul.f32 %v984, 0.1
      %v1017 = vmul.f32 %v987, 0.1
      %v1018 = vmul.f32 %v992, 0.1
      %v1019 = vmul.f32 %v995, 0.1
      %v1020 = vmul.f32 %v1000, 0.1
      %v1021 = vmul.f32 %v1003, 0.1
      %v1022 = vsel %vm1006, %v976, %v1014
      %v1023 = vsel %vm1007, %v979, %v1015
      %v1024 = vsel %vm1008, %v984, %v1016
      %v1025 = vsel %vm1009, %v987, %v1017
      %v1026 = vsel %vm1010, %v992, %v1018
      %v1027 = vsel %vm1011, %v995, %v1019
      %v1028 = vsel %vm1012, %v1000, %v1020
      %v1029 = vsel %vm1013, %v1003, %v1021
      %v1030 = vmax.f32 %v903, %v1022
      %v1031 = vmax.f32 %v904, %v1023
      %v1032 = vmax.f32 %v905, %v1024
      %v1033 = vmax.f32 %v906, %v1025
      %v1034 = vmax.f32 %v907, %v1026
      %v1035 = vmax.f32 %v908, %v1027
      %v1036 = vmax.f32 %v909, %v1028
      %v1037 = vmax.f32 %v910, %v1029
      %1046 = vrot.lane.b32.xlu0 %v1030, 120
      %v1047 = vpop.permute.xlu0 %1046
      %1048 = vrot.lane.b32.xlu0 %v1031, 120
      %v1049 = vpop.permute.xlu0 %1048
      %1050 = vrot.lane.b32.xlu0 %v1032, 120
      %v1051 = vpop.permute.xlu0 %1050
      %1052 = vrot.lane.b32.xlu0 %v1033, 120
      %v1053 = vpop.permute.xlu0 %1052
      %1054 = vrot.lane.b32.xlu0 %v1034, 120
      %v1055 = vpop.permute.xlu0 %1054
      %1056 = vrot.lane.b32.xlu0 %v1035, 120
      %v1057 = vpop.permute.xlu0 %1056
      %1058 = vrot.lane.b32.xlu0 %v1036, 120
      %v1059 = vpop.permute.xlu0 %1058
      %1060 = vrot.lane.b32.xlu0 %v1037, 120
      %v1061 = vpop.permute.xlu0 %1060
      %v1070 = vmax.f32 %v1030, %v1047
      %v1071 = vmax.f32 %v1031, %v1049
      %v1072 = vmax.f32 %v1032, %v1051
      %v1073 = vmax.f32 %v1033, %v1053
      %v1074 = vmax.f32 %v1034, %v1055
      %v1075 = vmax.f32 %v1035, %v1057
      %v1076 = vmax.f32 %v1036, %v1059
      %v1077 = vmax.f32 %v1037, %v1061
      %v1078 = vpack.c.bf16 %v1071, %v1070
      %v1079 = vpack.c.bf16 %v1073, %v1072
      %v1080 = vpack.c.bf16 %v1075, %v1074
      %v1081 = vpack.c.bf16 %v1077, %v1076
      %s1082 = sadd.s32 %s354, 4
      %s1083 = smul.u32 %s1082, 24
      %s1084 = sshra.s32 %s1083, 3
      %s1085 = sand.u32 %s1083, 7
      %s1086 = smul.addr %s1084, 4
      %s1087 = scalar_lea.vmem %s344, %s1086
      %v1088 = vld [vmem:[%s1087] sm:$0xf]
      %v1089 = vld [vmem:[%s1087 + $0x4] sm:$0xf]
      %v1090 = vld [vmem:[%s1087 + $0x8] sm:$0xf]
      %v1091 = vld [vmem:[%s1087 + $0xc] sm:$0xf]
      %v1092 = vld [vmem:[%s1087 + $0x10] sm:$0xf]
      %v1093 = vld [vmem:[%s1087 + $0x14] sm:$0xf]
      %v1094 = vld [vmem:[%s1087 + $0x18] sm:$0xf]
      %v1095 = vld [vmem:[%s1087 + $0x1c] sm:$0xf]
      %v1096 = vld [vmem:[%s1087 + $0x20] sm:$0xf]
      %s1097 = sadd.s32 %s1083, 24
      %s1098 = sshra.s32 %s1097, 3
      %s1099 = sand.u32 %s1097, 7
      %s1100 = smul.addr %s1098, 4
      %s1101 = scalar_lea.vmem %s344, %s1100
      %v1102 = vld [vmem:[%s1101] sm:$0xf]
      %v1103 = vld [vmem:[%s1101 + $0x4] sm:$0xf]
      %v1104 = vld [vmem:[%s1101 + $0x8] sm:$0xf]
      %v1105 = vld [vmem:[%s1101 + $0xc] sm:$0xf]
      %v1106 = vld [vmem:[%s1101 + $0x10] sm:$0xf]
      %v1107 = vld [vmem:[%s1101 + $0x14] sm:$0xf]
      %v1108 = vld [vmem:[%s1101 + $0x18] sm:$0xf]
      %v1109 = vld [vmem:[%s1101 + $0x1c] sm:$0xf]
      %v1110 = vld [vmem:[%s1101 + $0x20] sm:$0xf]
      %v1120 = vunpack.c.l.b16 %v1088
      %v1121 = vunpack.c.l.b16 %v1089
      %v1122 = vunpack.c.l.b16 %v1090
      %v1123 = vunpack.c.l.b16 %v1091
      %v1124 = vunpack.c.l.b16 %v1092
      %v1125 = vunpack.c.l.b16 %v1093
      %v1126 = vunpack.c.l.b16 %v1094
      %v1127 = vunpack.c.l.b16 %v1095
      %v1128 = vunpack.c.l.b16 %v1096
      %v1129 = vpack.c.b16 %v1121, %v1120
      %v1130 = vpack.c.b16 %v1123, %v1122
      %v1131 = vpack.c.b16 %v1125, %v1124
      %v1132 = vpack.c.b16 %v1127, %v1126
      %v1133 = vpack.c.b16 %v1128, %v1128
      %v1139 = vsel %vm499, %v1133, 0
      %1141 = vmatprep.subr.bf16.mxu0 0
      %1142 = vmatpush1.bf16.msra.mxu0 0
      %1143 = vmatprep.subr.bf16.mxu0 0
      %1144 = vmatpush1.bf16.msra.mxu0 0
      %1145 = vmatprep.subr.bf16.mxu0 0
      %1146 = vmatpush1.bf16.msra.mxu0 0
      %1147 = vmatprep.subr.bf16.mxu0 0
      %1148 = vmatpush1.bf16.msra.mxu0 %v1139
      %1149 = vmatprep.subr.bf16.mxu0 0
      %1150 = vmatpush1.bf16.msra.mxu0 %v1132
      %1151 = vmatprep.subr.bf16.mxu0 0
      %1152 = vmatpush1.bf16.msra.mxu0 %v1131
      %1153 = vmatprep.subr.bf16.mxu0 0
      %1154 = vmatpush1.bf16.msra.mxu0 %v1130
      %1155 = vmatprep.subr.bf16.mxu0 0
      %1156 = vmatpush1.bf16.msra.mxu0 %v1129
      %1157 = vmatprep.subr.bf16.mxu0 0
      %1158 = vmatpush2.bf16.msra.mxu0 0
      %1159 = vmatprep.subr.bf16.mxu0 0
      %1160 = vmatpush2.bf16.msra.mxu0 0
      %1161 = vmatprep.subr.bf16.mxu0 0
      %1162 = vmatpush2.bf16.msra.mxu0 0
      %1163 = vmatprep.subr.bf16.mxu0 0
      %1164 = vmatpush2.bf16.msra.mxu0 0
      %1165 = vmatprep.subr.bf16.mxu0 0
      %1166 = vmatpush2.bf16.msra.mxu0 0
      %1167 = vmatprep.subr.bf16.mxu0 0
      %1168 = vmatpush2.bf16.msra.mxu0 0
      %1169 = vmatprep.subr.bf16.mxu0 0
      %1170 = vmatpush2.bf16.msra.mxu0 0
      %1171 = vmatprep.subr.bf16.mxu0 0
      %1172 = vmatpush2.bf16.msra.mxu0 0
      %1173 = vmatprep.mubr.bf16.mxu0 0
      %1174 = vmatmul.mubr.bf16.gmra.mxu0 %v488
      %v1175 = vpop.f32.mrf.mxu0
      %v1176 = vadd.f32 %v402, %v1175
      %v1177 = vpop.f32.mrf.mxu0
      %v1178 = vpop.f32.mrf.mxu0
      %v1179 = vadd.f32 %v407, %v1178
      %v1180 = vpop.f32.mrf.mxu0
      %1181 = vmatprep.mubr.bf16.mxu0 0
      %1182 = vmatmul.mubr.bf16.gmra.mxu0 %v491
      %v1183 = vpop.f32.mrf.mxu0
      %v1184 = vadd.f32 %v412, %v1183
      %v1185 = vpop.f32.mrf.mxu0
      %v1186 = vpop.f32.mrf.mxu0
      %v1187 = vadd.f32 %v417, %v1186
      %v1188 = vpop.f32.mrf.mxu0
      %1189 = vmatprep.mubr.bf16.mxu0 0
      %1190 = vmatmul.mubr.bf16.gmra.mxu0 %v494
      %v1191 = vpop.f32.mrf.mxu0
      %v1192 = vadd.f32 %v422, %v1191
      %v1193 = vpop.f32.mrf.mxu0
      %v1194 = vpop.f32.mrf.mxu0
      %v1195 = vadd.f32 %v427, %v1194
      %v1196 = vpop.f32.mrf.mxu0
      %1197 = vmatprep.mubr.bf16.mxu0 0
      %1198 = vmatmul.mubr.bf16.gmra.mxu0 %v497
      %v1199 = vpop.f32.mrf.mxu0
      %v1200 = vadd.f32 %v432, %v1199
      %v1201 = vpop.f32.mrf.mxu0
      %v1202 = vpop.f32.mrf.mxu0
      %v1203 = vadd.f32 %v437, %v1202
      %v1204 = vpop.f32.mrf.mxu0
      %1205 = vdwg.mxu0
      %vm1206 = vcmp.ge.f32.partialorder %v1176, 0.0
      %vm1207 = vcmp.ge.f32.partialorder %v1179, 0.0
      %vm1208 = vcmp.ge.f32.partialorder %v1184, 0.0
      %vm1209 = vcmp.ge.f32.partialorder %v1187, 0.0
      %vm1210 = vcmp.ge.f32.partialorder %v1192, 0.0
      %vm1211 = vcmp.ge.f32.partialorder %v1195, 0.0
      %vm1212 = vcmp.ge.f32.partialorder %v1200, 0.0
      %vm1213 = vcmp.ge.f32.partialorder %v1203, 0.0
      %v1214 = vmul.f32 %v1176, 0.1
      %v1215 = vmul.f32 %v1179, 0.1
      %v1216 = vmul.f32 %v1184, 0.1
      %v1217 = vmul.f32 %v1187, 0.1
      %v1218 = vmul.f32 %v1192, 0.1
      %v1219 = vmul.f32 %v1195, 0.1
      %v1220 = vmul.f32 %v1200, 0.1
      %v1221 = vmul.f32 %v1203, 0.1
      %v1222 = vsel %vm1206, %v1176, %v1214
      %v1223 = vsel %vm1207, %v1179, %v1215
      %v1224 = vsel %vm1208, %v1184, %v1216
      %v1225 = vsel %vm1209, %v1187, %v1217
      %v1226 = vsel %vm1210, %v1192, %v1218
      %v1227 = vsel %vm1211, %v1195, %v1219
      %v1228 = vsel %vm1212, %v1200, %v1220
      %v1229 = vsel %vm1213, %v1203, %v1221
      %v1239 = vunpack.c.l.b16 %v1102
      %v1240 = vunpack.c.l.b16 %v1103
      %v1241 = vunpack.c.l.b16 %v1104
      %v1242 = vunpack.c.l.b16 %v1105
      %v1243 = vunpack.c.l.b16 %v1106
      %v1244 = vunpack.c.l.b16 %v1107
      %v1245 = vunpack.c.l.b16 %v1108
      %v1246 = vunpack.c.l.b16 %v1109
      %v1247 = vunpack.c.l.b16 %v1110
      %v1248 = vpack.c.b16 %v1240, %v1239
      %v1249 = vpack.c.b16 %v1242, %v1241
      %v1250 = vpack.c.b16 %v1244, %v1243
      %v1251 = vpack.c.b16 %v1246, %v1245
      %v1252 = vpack.c.b16 %v1247, %v1247
      %v1258 = vsel %vm499, %v1252, 0
      %1260 = vmatprep.subr.bf16.mxu0 0
      %1261 = vmatpush1.bf16.msra.mxu0 0
      %1262 = vmatprep.subr.bf16.mxu0 0
      %1263 = vmatpush1.bf16.msra.mxu0 0
      %1264 = vmatprep.subr.bf16.mxu0 0
      %1265 = vmatpush1.bf16.msra.mxu0 0
      %1266 = vmatprep.subr.bf16.mxu0 0
      %1267 = vmatpush1.bf16.msra.mxu0 %v1258
      %1268 = vmatprep.subr.bf16.mxu0 0
      %1269 = vmatpush1.bf16.msra.mxu0 %v1251
      %1270 = vmatprep.subr.bf16.mxu0 0
      %1271 = vmatpush1.bf16.msra.mxu0 %v1250
      %1272 = vmatprep.subr.bf16.mxu0 0
      %1273 = vmatpush1.bf16.msra.mxu0 %v1249
      %1274 = vmatprep.subr.bf16.mxu0 0
      %1275 = vmatpush1.bf16.msra.mxu0 %v1248
      %1276 = vmatprep.subr.bf16.mxu0 0
      %1277 = vmatpush2.bf16.msra.mxu0 0
      %1278 = vmatprep.subr.bf16.mxu0 0
      %1279 = vmatpush2.bf16.msra.mxu0 0
      %1280 = vmatprep.subr.bf16.mxu0 0
      %1281 = vmatpush2.bf16.msra.mxu0 0
      %1282 = vmatprep.subr.bf16.mxu0 0
      %1283 = vmatpush2.bf16.msra.mxu0 0
      %1284 = vmatprep.subr.bf16.mxu0 0
      %1285 = vmatpush2.bf16.msra.mxu0 0
      %1286 = vmatprep.subr.bf16.mxu0 0
      %1287 = vmatpush2.bf16.msra.mxu0 0
      %1288 = vmatprep.subr.bf16.mxu0 0
      %1289 = vmatpush2.bf16.msra.mxu0 0
      %1290 = vmatprep.subr.bf16.mxu0 0
      %1291 = vmatpush2.bf16.msra.mxu0 0
      %1292 = vmatprep.mubr.bf16.mxu0 0
      %1293 = vmatmul.mubr.bf16.gmra.mxu0 %v488
      %v1294 = vpop.f32.mrf.mxu0
      %v1295 = vadd.f32 %v402, %v1294
      %v1296 = vpop.f32.mrf.mxu0
      %v1297 = vpop.f32.mrf.mxu0
      %v1298 = vadd.f32 %v407, %v1297
      %v1299 = vpop.f32.mrf.mxu0
      %1300 = vmatprep.mubr.bf16.mxu0 0
      %1301 = vmatmul.mubr.bf16.gmra.mxu0 %v491
      %v1302 = vpop.f32.mrf.mxu0
      %v1303 = vadd.f32 %v412, %v1302
      %v1304 = vpop.f32.mrf.mxu0
      %v1305 = vpop.f32.mrf.mxu0
      %v1306 = vadd.f32 %v417, %v1305
      %v1307 = vpop.f32.mrf.mxu0
      %1308 = vmatprep.mubr.bf16.mxu0 0
      %1309 = vmatmul.mubr.bf16.gmra.mxu0 %v494
      %v1310 = vpop.f32.mrf.mxu0
      %v1311 = vadd.f32 %v422, %v1310
      %v1312 = vpop.f32.mrf.mxu0
      %v1313 = vpop.f32.mrf.mxu0
      %v1314 = vadd.f32 %v427, %v1313
      %v1315 = vpop.f32.mrf.mxu0
      %1316 = vmatprep.mubr.bf16.mxu0 0
      %1317 = vmatmul.mubr.bf16.gmra.mxu0 %v497
      %v1318 = vpop.f32.mrf.mxu0
      %v1319 = vadd.f32 %v432, %v1318
      %v1320 = vpop.f32.mrf.mxu0
      %v1321 = vpop.f32.mrf.mxu0
      %v1322 = vadd.f32 %v437, %v1321
      %v1323 = vpop.f32.mrf.mxu0
      %1324 = vdwg.mxu0
      %vm1325 = vcmp.ge.f32.partialorder %v1295, 0.0
      %vm1326 = vcmp.ge.f32.partialorder %v1298, 0.0
      %vm1327 = vcmp.ge.f32.partialorder %v1303, 0.0
      %vm1328 = vcmp.ge.f32.partialorder %v1306, 0.0
      %vm1329 = vcmp.ge.f32.partialorder %v1311, 0.0
      %vm1330 = vcmp.ge.f32.partialorder %v1314, 0.0
      %vm1331 = vcmp.ge.f32.partialorder %v1319, 0.0
      %vm1332 = vcmp.ge.f32.partialorder %v1322, 0.0
      %v1333 = vmul.f32 %v1295, 0.1
      %v1334 = vmul.f32 %v1298, 0.1
      %v1335 = vmul.f32 %v1303, 0.1
      %v1336 = vmul.f32 %v1306, 0.1
      %v1337 = vmul.f32 %v1311, 0.1
      %v1338 = vmul.f32 %v1314, 0.1
      %v1339 = vmul.f32 %v1319, 0.1
      %v1340 = vmul.f32 %v1322, 0.1
      %v1341 = vsel %vm1325, %v1295, %v1333
      %v1342 = vsel %vm1326, %v1298, %v1334
      %v1343 = vsel %vm1327, %v1303, %v1335
      %v1344 = vsel %vm1328, %v1306, %v1336
      %v1345 = vsel %vm1329, %v1311, %v1337
      %v1346 = vsel %vm1330, %v1314, %v1338
      %v1347 = vsel %vm1331, %v1319, %v1339
      %v1348 = vsel %vm1332, %v1322, %v1340
      %v1349 = vmax.f32 %v1222, %v1341
      %v1350 = vmax.f32 %v1223, %v1342
      %v1351 = vmax.f32 %v1224, %v1343
      %v1352 = vmax.f32 %v1225, %v1344
      %v1353 = vmax.f32 %v1226, %v1345
      %v1354 = vmax.f32 %v1227, %v1346
      %v1355 = vmax.f32 %v1228, %v1347
      %v1356 = vmax.f32 %v1229, %v1348
      %1365 = vrot.lane.b32.xlu0 %v1349, 120
      %v1366 = vpop.permute.xlu0 %1365
      %1367 = vrot.lane.b32.xlu0 %v1350, 120
      %v1368 = vpop.permute.xlu0 %1367
      %1369 = vrot.lane.b32.xlu0 %v1351, 120
      %v1370 = vpop.permute.xlu0 %1369
      %1371 = vrot.lane.b32.xlu0 %v1352, 120
      %v1372 = vpop.permute.xlu0 %1371
      %1373 = vrot.lane.b32.xlu0 %v1353, 120
      %v1374 = vpop.permute.xlu0 %1373
      %1375 = vrot.lane.b32.xlu0 %v1354, 120
      %v1376 = vpop.permute.xlu0 %1375
      %1377 = vrot.lane.b32.xlu0 %v1355, 120
      %v1378 = vpop.permute.xlu0 %1377
      %1379 = vrot.lane.b32.xlu0 %v1356, 120
      %v1380 = vpop.permute.xlu0 %1379
      %v1389 = vmax.f32 %v1349, %v1366
      %v1390 = vmax.f32 %v1350, %v1368
      %v1391 = vmax.f32 %v1351, %v1370
      %v1392 = vmax.f32 %v1352, %v1372
      %v1393 = vmax.f32 %v1353, %v1374
      %v1394 = vmax.f32 %v1354, %v1376
      %v1395 = vmax.f32 %v1355, %v1378
      %v1396 = vmax.f32 %v1356, %v1380
      %v1397 = vpack.c.bf16 %v1390, %v1389
      %v1398 = vpack.c.bf16 %v1392, %v1391
      %v1399 = vpack.c.bf16 %v1394, %v1393
      %v1400 = vpack.c.bf16 %v1396, %v1395
      %s1401 = sadd.s32 %s354, 6
      %s1402 = smul.u32 %s1401, 24
      %s1403 = sshra.s32 %s1402, 3
      %s1404 = sand.u32 %s1402, 7
      %s1405 = smul.addr %s1403, 4
      %s1406 = scalar_lea.vmem %s344, %s1405
      %v1407 = vld [vmem:[%s1406] sm:$0xf]
      %v1408 = vld [vmem:[%s1406 + $0x4] sm:$0xf]
      %v1409 = vld [vmem:[%s1406 + $0x8] sm:$0xf]
      %v1410 = vld [vmem:[%s1406 + $0xc] sm:$0xf]
      %v1411 = vld [vmem:[%s1406 + $0x10] sm:$0xf]
      %v1412 = vld [vmem:[%s1406 + $0x14] sm:$0xf]
      %v1413 = vld [vmem:[%s1406 + $0x18] sm:$0xf]
      %v1414 = vld [vmem:[%s1406 + $0x1c] sm:$0xf]
      %v1415 = vld [vmem:[%s1406 + $0x20] sm:$0xf]
      %s1416 = sadd.s32 %s1402, 24
      %s1417 = sshra.s32 %s1416, 3
      %s1418 = sand.u32 %s1416, 7
      %s1419 = smul.addr %s1417, 4
      %s1420 = scalar_lea.vmem %s344, %s1419
      %v1421 = vld [vmem:[%s1420] sm:$0xf]
      %v1422 = vld [vmem:[%s1420 + $0x4] sm:$0xf]
      %v1423 = vld [vmem:[%s1420 + $0x8] sm:$0xf]
      %v1424 = vld [vmem:[%s1420 + $0xc] sm:$0xf]
      %v1425 = vld [vmem:[%s1420 + $0x10] sm:$0xf]
      %v1426 = vld [vmem:[%s1420 + $0x14] sm:$0xf]
      %v1427 = vld [vmem:[%s1420 + $0x18] sm:$0xf]
      %v1428 = vld [vmem:[%s1420 + $0x1c] sm:$0xf]
      %v1429 = vld [vmem:[%s1420 + $0x20] sm:$0xf]
      %v1439 = vunpack.c.l.b16 %v1407
      %v1440 = vunpack.c.l.b16 %v1408
      %v1441 = vunpack.c.l.b16 %v1409
      %v1442 = vunpack.c.l.b16 %v1410
      %v1443 = vunpack.c.l.b16 %v1411
      %v1444 = vunpack.c.l.b16 %v1412
      %v1445 = vunpack.c.l.b16 %v1413
      %v1446 = vunpack.c.l.b16 %v1414
      %v1447 = vunpack.c.l.b16 %v1415
      %v1448 = vpack.c.b16 %v1440, %v1439
      %v1449 = vpack.c.b16 %v1442, %v1441
      %v1450 = vpack.c.b16 %v1444, %v1443
      %v1451 = vpack.c.b16 %v1446, %v1445
      %v1452 = vpack.c.b16 %v1447, %v1447
      %v1458 = vsel %vm499, %v1452, 0
      %1460 = vmatprep.subr.bf16.mxu0 0
      %1461 = vmatpush1.bf16.msra.mxu0 0
      %1462 = vmatprep.subr.bf16.mxu0 0
      %1463 = vmatpush1.bf16.msra.mxu0 0
      %1464 = vmatprep.subr.bf16.mxu0 0
      %1465 = vmatpush1.bf16.msra.mxu0 0
      %1466 = vmatprep.subr.bf16.mxu0 0
      %1467 = vmatpush1.bf16.msra.mxu0 %v1458
      %1468 = vmatprep.subr.bf16.mxu0 0
      %1469 = vmatpush1.bf16.msra.mxu0 %v1451
      %1470 = vmatprep.subr.bf16.mxu0 0
      %1471 = vmatpush1.bf16.msra.mxu0 %v1450
      %1472 = vmatprep.subr.bf16.mxu0 0
      %1473 = vmatpush1.bf16.msra.mxu0 %v1449
      %1474 = vmatprep.subr.bf16.mxu0 0
      %1475 = vmatpush1.bf16.msra.mxu0 %v1448
      %1476 = vmatprep.subr.bf16.mxu0 0
      %1477 = vmatpush2.bf16.msra.mxu0 0
      %1478 = vmatprep.subr.bf16.mxu0 0
      %1479 = vmatpush2.bf16.msra.mxu0 0
      %1480 = vmatprep.subr.bf16.mxu0 0
      %1481 = vmatpush2.bf16.msra.mxu0 0
      %1482 = vmatprep.subr.bf16.mxu0 0
      %1483 = vmatpush2.bf16.msra.mxu0 0
      %1484 = vmatprep.subr.bf16.mxu0 0
      %1485 = vmatpush2.bf16.msra.mxu0 0
      %1486 = vmatprep.subr.bf16.mxu0 0
      %1487 = vmatpush2.bf16.msra.mxu0 0
      %1488 = vmatprep.subr.bf16.mxu0 0
      %1489 = vmatpush2.bf16.msra.mxu0 0
      %1490 = vmatprep.subr.bf16.mxu0 0
      %1491 = vmatpush2.bf16.msra.mxu0 0
      %1492 = vmatprep.mubr.bf16.mxu0 0
      %1493 = vmatmul.mubr.bf16.gmra.mxu0 %v488
      %v1494 = vpop.f32.mrf.mxu0
      %v1495 = vadd.f32 %v402, %v1494
      %v1496 = vpop.f32.mrf.mxu0
      %v1497 = vpop.f32.mrf.mxu0
      %v1498 = vadd.f32 %v407, %v1497
      %v1499 = vpop.f32.mrf.mxu0
      %1500 = vmatprep.mubr.bf16.mxu0 0
      %1501 = vmatmul.mubr.bf16.gmra.mxu0 %v491
      %v1502 = vpop.f32.mrf.mxu0
      %v1503 = vadd.f32 %v412, %v1502
      %v1504 = vpop.f32.mrf.mxu0
      %v1505 = vpop.f32.mrf.mxu0
      %v1506 = vadd.f32 %v417, %v1505
      %v1507 = vpop.f32.mrf.mxu0
      %1508 = vmatprep.mubr.bf16.mxu0 0
      %1509 = vmatmul.mubr.bf16.gmra.mxu0 %v494
      %v1510 = vpop.f32.mrf.mxu0
      %v1511 = vadd.f32 %v422, %v1510
      %v1512 = vpop.f32.mrf.mxu0
      %v1513 = vpop.f32.mrf.mxu0
      %v1514 = vadd.f32 %v427, %v1513
      %v1515 = vpop.f32.mrf.mxu0
      %1516 = vmatprep.mubr.bf16.mxu0 0
      %1517 = vmatmul.mubr.bf16.gmra.mxu0 %v497
      %v1518 = vpop.f32.mrf.mxu0
      %v1519 = vadd.f32 %v432, %v1518
      %v1520 = vpop.f32.mrf.mxu0
      %v1521 = vpop.f32.mrf.mxu0
      %v1522 = vadd.f32 %v437, %v1521
      %v1523 = vpop.f32.mrf.mxu0
      %1524 = vdwg.mxu0
      %vm1525 = vcmp.ge.f32.partialorder %v1495, 0.0
      %vm1526 = vcmp.ge.f32.partialorder %v1498, 0.0
      %vm1527 = vcmp.ge.f32.partialorder %v1503, 0.0
      %vm1528 = vcmp.ge.f32.partialorder %v1506, 0.0
      %vm1529 = vcmp.ge.f32.partialorder %v1511, 0.0
      %vm1530 = vcmp.ge.f32.partialorder %v1514, 0.0
      %vm1531 = vcmp.ge.f32.partialorder %v1519, 0.0
      %vm1532 = vcmp.ge.f32.partialorder %v1522, 0.0
      %v1533 = vmul.f32 %v1495, 0.1
      %v1534 = vmul.f32 %v1498, 0.1
      %v1535 = vmul.f32 %v1503, 0.1
      %v1536 = vmul.f32 %v1506, 0.1
      %v1537 = vmul.f32 %v1511, 0.1
      %v1538 = vmul.f32 %v1514, 0.1
      %v1539 = vmul.f32 %v1519, 0.1
      %v1540 = vmul.f32 %v1522, 0.1
      %v1541 = vsel %vm1525, %v1495, %v1533
      %v1542 = vsel %vm1526, %v1498, %v1534
      %v1543 = vsel %vm1527, %v1503, %v1535
      %v1544 = vsel %vm1528, %v1506, %v1536
      %v1545 = vsel %vm1529, %v1511, %v1537
      %v1546 = vsel %vm1530, %v1514, %v1538
      %v1547 = vsel %vm1531, %v1519, %v1539
      %v1548 = vsel %vm1532, %v1522, %v1540
      %v1558 = vunpack.c.l.b16 %v1421
      %v1559 = vunpack.c.l.b16 %v1422
      %v1560 = vunpack.c.l.b16 %v1423
      %v1561 = vunpack.c.l.b16 %v1424
      %v1562 = vunpack.c.l.b16 %v1425
      %v1563 = vunpack.c.l.b16 %v1426
      %v1564 = vunpack.c.l.b16 %v1427
      %v1565 = vunpack.c.l.b16 %v1428
      %v1566 = vunpack.c.l.b16 %v1429
      %v1567 = vpack.c.b16 %v1559, %v1558
      %v1568 = vpack.c.b16 %v1561, %v1560
      %v1569 = vpack.c.b16 %v1563, %v1562
      %v1570 = vpack.c.b16 %v1565, %v1564
      %v1571 = vpack.c.b16 %v1566, %v1566
      %v1577 = vsel %vm499, %v1571, 0
      %1579 = vmatprep.subr.bf16.mxu0 0
      %1580 = vmatpush1.bf16.msra.mxu0 0
      %1581 = vmatprep.subr.bf16.mxu0 0
      %1582 = vmatpush1.bf16.msra.mxu0 0
      %1583 = vmatprep.subr.bf16.mxu0 0
      %1584 = vmatpush1.bf16.msra.mxu0 0
      %1585 = vmatprep.subr.bf16.mxu0 0
      %1586 = vmatpush1.bf16.msra.mxu0 %v1577
      %1587 = vmatprep.subr.bf16.mxu0 0
      %1588 = vmatpush1.bf16.msra.mxu0 %v1570
      %1589 = vmatprep.subr.bf16.mxu0 0
      %1590 = vmatpush1.bf16.msra.mxu0 %v1569
      %1591 = vmatprep.subr.bf16.mxu0 0
      %1592 = vmatpush1.bf16.msra.mxu0 %v1568
      %1593 = vmatprep.subr.bf16.mxu0 0
      %1594 = vmatpush1.bf16.msra.mxu0 %v1567
      %1595 = vmatprep.subr.bf16.mxu0 0
      %1596 = vmatpush2.bf16.msra.mxu0 0
      %1597 = vmatprep.subr.bf16.mxu0 0
      %1598 = vmatpush2.bf16.msra.mxu0 0
      %1599 = vmatprep.subr.bf16.mxu0 0
      %1600 = vmatpush2.bf16.msra.mxu0 0
      %1601 = vmatprep.subr.bf16.mxu0 0
      %1602 = vmatpush2.bf16.msra.mxu0 0
      %1603 = vmatprep.subr.bf16.mxu0 0
      %1604 = vmatpush2.bf16.msra.mxu0 0
      %1605 = vmatprep.subr.bf16.mxu0 0
      %1606 = vmatpush2.bf16.msra.mxu0 0
      %1607 = vmatprep.subr.bf16.mxu0 0
      %1608 = vmatpush2.bf16.msra.mxu0 0
      %1609 = vmatprep.subr.bf16.mxu0 0
      %1610 = vmatpush2.bf16.msra.mxu0 0
      %1611 = vmatprep.mubr.bf16.mxu0 0
      %1612 = vmatmul.mubr.bf16.gmra.mxu0 %v488
      %v1613 = vpop.f32.mrf.mxu0
      %v1614 = vadd.f32 %v402, %v1613
      %v1615 = vpop.f32.mrf.mxu0
      %v1616 = vpop.f32.mrf.mxu0
      %v1617 = vadd.f32 %v407, %v1616
      %v1618 = vpop.f32.mrf.mxu0
      %1619 = vmatprep.mubr.bf16.mxu0 0
      %1620 = vmatmul.mubr.bf16.gmra.mxu0 %v491
      %v1621 = vpop.f32.mrf.mxu0
      %v1622 = vadd.f32 %v412, %v1621
      %v1623 = vpop.f32.mrf.mxu0
      %v1624 = vpop.f32.mrf.mxu0
      %v1625 = vadd.f32 %v417, %v1624
      %v1626 = vpop.f32.mrf.mxu0
      %1627 = vmatprep.mubr.bf16.mxu0 0
      %1628 = vmatmul.mubr.bf16.gmra.mxu0 %v494
      %v1629 = vpop.f32.mrf.mxu0
      %v1630 = vadd.f32 %v422, %v1629
      %v1631 = vpop.f32.mrf.mxu0
      %v1632 = vpop.f32.mrf.mxu0
      %v1633 = vadd.f32 %v427, %v1632
      %v1634 = vpop.f32.mrf.mxu0
      %1635 = vmatprep.mubr.bf16.mxu0 0
      %1636 = vmatmul.mubr.bf16.gmra.mxu0 %v497
      %v1637 = vpop.f32.mrf.mxu0
      %v1638 = vadd.f32 %v432, %v1637
      %v1639 = vpop.f32.mrf.mxu0
      %v1640 = vpop.f32.mrf.mxu0
      %v1641 = vadd.f32 %v437, %v1640
      %v1642 = vpop.f32.mrf.mxu0
      %1643 = vdwg.mxu0
      %vm1644 = vcmp.ge.f32.partialorder %v1614, 0.0
      %vm1645 = vcmp.ge.f32.partialorder %v1617, 0.0
      %vm1646 = vcmp.ge.f32.partialorder %v1622, 0.0
      %vm1647 = vcmp.ge.f32.partialorder %v1625, 0.0
      %vm1648 = vcmp.ge.f32.partialorder %v1630, 0.0
      %vm1649 = vcmp.ge.f32.partialorder %v1633, 0.0
      %vm1650 = vcmp.ge.f32.partialorder %v1638, 0.0
      %vm1651 = vcmp.ge.f32.partialorder %v1641, 0.0
      %v1652 = vmul.f32 %v1614, 0.1
      %v1653 = vmul.f32 %v1617, 0.1
      %v1654 = vmul.f32 %v1622, 0.1
      %v1655 = vmul.f32 %v1625, 0.1
      %v1656 = vmul.f32 %v1630, 0.1
      %v1657 = vmul.f32 %v1633, 0.1
      %v1658 = vmul.f32 %v1638, 0.1
      %v1659 = vmul.f32 %v1641, 0.1
      %v1660 = vsel %vm1644, %v1614, %v1652
      %v1661 = vsel %vm1645, %v1617, %v1653
      %v1662 = vsel %vm1646, %v1622, %v1654
      %v1663 = vsel %vm1647, %v1625, %v1655
      %v1664 = vsel %vm1648, %v1630, %v1656
      %v1665 = vsel %vm1649, %v1633, %v1657
      %v1666 = vsel %vm1650, %v1638, %v1658
      %v1667 = vsel %vm1651, %v1641, %v1659
      %v1668 = vmax.f32 %v1541, %v1660
      %v1669 = vmax.f32 %v1542, %v1661
      %v1670 = vmax.f32 %v1543, %v1662
      %v1671 = vmax.f32 %v1544, %v1663
      %v1672 = vmax.f32 %v1545, %v1664
      %v1673 = vmax.f32 %v1546, %v1665
      %v1674 = vmax.f32 %v1547, %v1666
      %v1675 = vmax.f32 %v1548, %v1667
      %1684 = vrot.lane.b32.xlu0 %v1668, 120
      %v1685 = vpop.permute.xlu0 %1684
      %1686 = vrot.lane.b32.xlu0 %v1669, 120
      %v1687 = vpop.permute.xlu0 %1686
      %1688 = vrot.lane.b32.xlu0 %v1670, 120
      %v1689 = vpop.permute.xlu0 %1688
      %1690 = vrot.lane.b32.xlu0 %v1671, 120
      %v1691 = vpop.permute.xlu0 %1690
      %1692 = vrot.lane.b32.xlu0 %v1672, 120
      %v1693 = vpop.permute.xlu0 %1692
      %1694 = vrot.lane.b32.xlu0 %v1673, 120
      %v1695 = vpop.permute.xlu0 %1694
      %1696 = vrot.lane.b32.xlu0 %v1674, 120
      %v1697 = vpop.permute.xlu0 %1696
      %1698 = vrot.lane.b32.xlu0 %v1675, 120
      %v1699 = vpop.permute.xlu0 %1698
      %v1708 = vmax.f32 %v1668, %v1685
      %v1709 = vmax.f32 %v1669, %v1687
      %v1710 = vmax.f32 %v1670, %v1689
      %v1711 = vmax.f32 %v1671, %v1691
      %v1712 = vmax.f32 %v1672, %v1693
      %v1713 = vmax.f32 %v1673, %v1695
      %v1714 = vmax.f32 %v1674, %v1697
      %v1715 = vmax.f32 %v1675, %v1699
      %v1716 = vpack.c.bf16 %v1709, %v1708
      %v1717 = vpack.c.bf16 %v1711, %v1710
      %v1718 = vpack.c.bf16 %v1713, %v1712
      %v1719 = vpack.c.bf16 %v1715, %v1714
      %s1720 = sadd.s32 %s354, 8
      %s1721 = smul.u32 %s1720, 24
      %s1722 = sshra.s32 %s1721, 3
      %s1723 = sand.u32 %s1721, 7
      %s1724 = smul.addr %s1722, 4
      %s1725 = scalar_lea.vmem %s344, %s1724
      %v1726 = vld [vmem:[%s1725] sm:$0xf]
      %v1727 = vld [vmem:[%s1725 + $0x4] sm:$0xf]
      %v1728 = vld [vmem:[%s1725 + $0x8] sm:$0xf]
      %v1729 = vld [vmem:[%s1725 + $0xc] sm:$0xf]
      %v1730 = vld [vmem:[%s1725 + $0x10] sm:$0xf]
      %v1731 = vld [vmem:[%s1725 + $0x14] sm:$0xf]
      %v1732 = vld [vmem:[%s1725 + $0x18] sm:$0xf]
      %v1733 = vld [vmem:[%s1725 + $0x1c] sm:$0xf]
      %v1734 = vld [vmem:[%s1725 + $0x20] sm:$0xf]
      %s1735 = sadd.s32 %s1721, 24
      %s1736 = sshra.s32 %s1735, 3
      %s1737 = sand.u32 %s1735, 7
      %s1738 = smul.addr %s1736, 4
      %s1739 = scalar_lea.vmem %s344, %s1738
      %v1740 = vld [vmem:[%s1739] sm:$0xf]
      %v1741 = vld [vmem:[%s1739 + $0x4] sm:$0xf]
      %v1742 = vld [vmem:[%s1739 + $0x8] sm:$0xf]
      %v1743 = vld [vmem:[%s1739 + $0xc] sm:$0xf]
      %v1744 = vld [vmem:[%s1739 + $0x10] sm:$0xf]
      %v1745 = vld [vmem:[%s1739 + $0x14] sm:$0xf]
      %v1746 = vld [vmem:[%s1739 + $0x18] sm:$0xf]
      %v1747 = vld [vmem:[%s1739 + $0x1c] sm:$0xf]
      %v1748 = vld [vmem:[%s1739 + $0x20] sm:$0xf]
      %v1758 = vunpack.c.l.b16 %v1726
      %v1759 = vunpack.c.l.b16 %v1727
      %v1760 = vunpack.c.l.b16 %v1728
      %v1761 = vunpack.c.l.b16 %v1729
      %v1762 = vunpack.c.l.b16 %v1730
      %v1763 = vunpack.c.l.b16 %v1731
      %v1764 = vunpack.c.l.b16 %v1732
      %v1765 = vunpack.c.l.b16 %v1733
      %v1766 = vunpack.c.l.b16 %v1734
      %v1767 = vpack.c.b16 %v1759, %v1758
      %v1768 = vpack.c.b16 %v1761, %v1760
      %v1769 = vpack.c.b16 %v1763, %v1762
      %v1770 = vpack.c.b16 %v1765, %v1764
      %v1771 = vpack.c.b16 %v1766, %v1766
      %v1777 = vsel %vm499, %v1771, 0
      %1779 = vmatprep.subr.bf16.mxu0 0
      %1780 = vmatpush1.bf16.msra.mxu0 0
      %1781 = vmatprep.subr.bf16.mxu0 0
      %1782 = vmatpush1.bf16.msra.mxu0 0
      %1783 = vmatprep.subr.bf16.mxu0 0
      %1784 = vmatpush1.bf16.msra.mxu0 0
      %1785 = vmatprep.subr.bf16.mxu0 0
      %1786 = vmatpush1.bf16.msra.mxu0 %v1777
      %1787 = vmatprep.subr.bf16.mxu0 0
      %1788 = vmatpush1.bf16.msra.mxu0 %v1770
      %1789 = vmatprep.subr.bf16.mxu0 0
      %1790 = vmatpush1.bf16.msra.mxu0 %v1769
      %1791 = vmatprep.subr.bf16.mxu0 0
      %1792 = vmatpush1.bf16.msra.mxu0 %v1768
      %1793 = vmatprep.subr.bf16.mxu0 0
      %1794 = vmatpush1.bf16.msra.mxu0 %v1767
      %1795 = vmatprep.subr.bf16.mxu0 0
      %1796 = vmatpush2.bf16.msra.mxu0 0
      %1797 = vmatprep.subr.bf16.mxu0 0
      %1798 = vmatpush2.bf16.msra.mxu0 0
      %1799 = vmatprep.subr.bf16.mxu0 0
      %1800 = vmatpush2.bf16.msra.mxu0 0
      %1801 = vmatprep.subr.bf16.mxu0 0
      %1802 = vmatpush2.bf16.msra.mxu0 0
      %1803 = vmatprep.subr.bf16.mxu0 0
      %1804 = vmatpush2.bf16.msra.mxu0 0
      %1805 = vmatprep.subr.bf16.mxu0 0
      %1806 = vmatpush2.bf16.msra.mxu0 0
      %1807 = vmatprep.subr.bf16.mxu0 0
      %1808 = vmatpush2.bf16.msra.mxu0 0
      %1809 = vmatprep.subr.bf16.mxu0 0
      %1810 = vmatpush2.bf16.msra.mxu0 0
      %1811 = vmatprep.mubr.bf16.mxu0 0
      %1812 = vmatmul.mubr.bf16.gmra.mxu0 %v488
      %v1813 = vpop.f32.mrf.mxu0
      %v1814 = vadd.f32 %v402, %v1813
      %v1815 = vpop.f32.mrf.mxu0
      %v1816 = vpop.f32.mrf.mxu0
      %v1817 = vadd.f32 %v407, %v1816
      %v1818 = vpop.f32.mrf.mxu0
      %1819 = vmatprep.mubr.bf16.mxu0 0
      %1820 = vmatmul.mubr.bf16.gmra.mxu0 %v491
      %v1821 = vpop.f32.mrf.mxu0
      %v1822 = vadd.f32 %v412, %v1821
      %v1823 = vpop.f32.mrf.mxu0
      %v1824 = vpop.f32.mrf.mxu0
      %v1825 = vadd.f32 %v417, %v1824
      %v1826 = vpop.f32.mrf.mxu0
      %1827 = vmatprep.mubr.bf16.mxu0 0
      %1828 = vmatmul.mubr.bf16.gmra.mxu0 %v494
      %v1829 = vpop.f32.mrf.mxu0
      %v1830 = vadd.f32 %v422, %v1829
      %v1831 = vpop.f32.mrf.mxu0
      %v1832 = vpop.f32.mrf.mxu0
      %v1833 = vadd.f32 %v427, %v1832
      %v1834 = vpop.f32.mrf.mxu0
      %1835 = vmatprep.mubr.bf16.mxu0 0
      %1836 = vmatmul.mubr.bf16.gmra.mxu0 %v497
      %v1837 = vpop.f32.mrf.mxu0
      %v1838 = vadd.f32 %v432, %v1837
      %v1839 = vpop.f32.mrf.mxu0
      %v1840 = vpop.f32.mrf.mxu0
      %v1841 = vadd.f32 %v437, %v1840
      %v1842 = vpop.f32.mrf.mxu0
      %1843 = vdwg.mxu0
      %vm1844 = vcmp.ge.f32.partialorder %v1814, 0.0
      %vm1845 = vcmp.ge.f32.partialorder %v1817, 0.0
      %vm1846 = vcmp.ge.f32.partialorder %v1822, 0.0
      %vm1847 = vcmp.ge.f32.partialorder %v1825, 0.0
      %vm1848 = vcmp.ge.f32.partialorder %v1830, 0.0
      %vm1849 = vcmp.ge.f32.partialorder %v1833, 0.0
      %vm1850 = vcmp.ge.f32.partialorder %v1838, 0.0
      %vm1851 = vcmp.ge.f32.partialorder %v1841, 0.0
      %v1852 = vmul.f32 %v1814, 0.1
      %v1853 = vmul.f32 %v1817, 0.1
      %v1854 = vmul.f32 %v1822, 0.1
      %v1855 = vmul.f32 %v1825, 0.1
      %v1856 = vmul.f32 %v1830, 0.1
      %v1857 = vmul.f32 %v1833, 0.1
      %v1858 = vmul.f32 %v1838, 0.1
      %v1859 = vmul.f32 %v1841, 0.1
      %v1860 = vsel %vm1844, %v1814, %v1852
      %v1861 = vsel %vm1845, %v1817, %v1853
      %v1862 = vsel %vm1846, %v1822, %v1854
      %v1863 = vsel %vm1847, %v1825, %v1855
      %v1864 = vsel %vm1848, %v1830, %v1856
      %v1865 = vsel %vm1849, %v1833, %v1857
      %v1866 = vsel %vm1850, %v1838, %v1858
      %v1867 = vsel %vm1851, %v1841, %v1859
      %v1877 = vunpack.c.l.b16 %v1740
      %v1878 = vunpack.c.l.b16 %v1741
      %v1879 = vunpack.c.l.b16 %v1742
      %v1880 = vunpack.c.l.b16 %v1743
      %v1881 = vunpack.c.l.b16 %v1744
      %v1882 = vunpack.c.l.b16 %v1745
      %v1883 = vunpack.c.l.b16 %v1746
      %v1884 = vunpack.c.l.b16 %v1747
      %v1885 = vunpack.c.l.b16 %v1748
      %v1886 = vpack.c.b16 %v1878, %v1877
      %v1887 = vpack.c.b16 %v1880, %v1879
      %v1888 = vpack.c.b16 %v1882, %v1881
      %v1889 = vpack.c.b16 %v1884, %v1883
      %v1890 = vpack.c.b16 %v1885, %v1885
      %v1896 = vsel %vm499, %v1890, 0
      %1898 = vmatprep.subr.bf16.mxu0 0
      %1899 = vmatpush1.bf16.msra.mxu0 0
      %1900 = vmatprep.subr.bf16.mxu0 0
      %1901 = vmatpush1.bf16.msra.mxu0 0
      %1902 = vmatprep.subr.bf16.mxu0 0
      %1903 = vmatpush1.bf16.msra.mxu0 0
      %1904 = vmatprep.subr.bf16.mxu0 0
      %1905 = vmatpush1.bf16.msra.mxu0 %v1896
      %1906 = vmatprep.subr.bf16.mxu0 0
      %1907 = vmatpush1.bf16.msra.mxu0 %v1889
      %1908 = vmatprep.subr.bf16.mxu0 0
      %1909 = vmatpush1.bf16.msra.mxu0 %v1888
      %1910 = vmatprep.subr.bf16.mxu0 0
      %1911 = vmatpush1.bf16.msra.mxu0 %v1887
      %1912 = vmatprep.subr.bf16.mxu0 0
      %1913 = vmatpush1.bf16.msra.mxu0 %v1886
      %1914 = vmatprep.subr.bf16.mxu0 0
      %1915 = vmatpush2.bf16.msra.mxu0 0
      %1916 = vmatprep.subr.bf16.mxu0 0
      %1917 = vmatpush2.bf16.msra.mxu0 0
      %1918 = vmatprep.subr.bf16.mxu0 0
      %1919 = vmatpush2.bf16.msra.mxu0 0
      %1920 = vmatprep.subr.bf16.mxu0 0
      %1921 = vmatpush2.bf16.msra.mxu0 0
      %1922 = vmatprep.subr.bf16.mxu0 0
      %1923 = vmatpush2.bf16.msra.mxu0 0
      %1924 = vmatprep.subr.bf16.mxu0 0
      %1925 = vmatpush2.bf16.msra.mxu0 0
      %1926 = vmatprep.subr.bf16.mxu0 0
      %1927 = vmatpush2.bf16.msra.mxu0 0
      %1928 = vmatprep.subr.bf16.mxu0 0
      %1929 = vmatpush2.bf16.msra.mxu0 0
      %1930 = vmatprep.mubr.bf16.mxu0 0
      %1931 = vmatmul.mubr.bf16.gmra.mxu0 %v488
      %v1932 = vpop.f32.mrf.mxu0
      %v1933 = vadd.f32 %v402, %v1932
      %v1934 = vpop.f32.mrf.mxu0
      %v1935 = vpop.f32.mrf.mxu0
      %v1936 = vadd.f32 %v407, %v1935
      %v1937 = vpop.f32.mrf.mxu0
      %1938 = vmatprep.mubr.bf16.mxu0 0
      %1939 = vmatmul.mubr.bf16.gmra.mxu0 %v491
      %v1940 = vpop.f32.mrf.mxu0
      %v1941 = vadd.f32 %v412, %v1940
      %v1942 = vpop.f32.mrf.mxu0
      %v1943 = vpop.f32.mrf.mxu0
      %v1944 = vadd.f32 %v417, %v1943
      %v1945 = vpop.f32.mrf.mxu0
      %1946 = vmatprep.mubr.bf16.mxu0 0
      %1947 = vmatmul.mubr.bf16.gmra.mxu0 %v494
      %v1948 = vpop.f32.mrf.mxu0
      %v1949 = vadd.f32 %v422, %v1948
      %v1950 = vpop.f32.mrf.mxu0
      %v1951 = vpop.f32.mrf.mxu0
      %v1952 = vadd.f32 %v427, %v1951
      %v1953 = vpop.f32.mrf.mxu0
      %1954 = vmatprep.mubr.bf16.mxu0 0
      %1955 = vmatmul.mubr.bf16.gmra.mxu0 %v497
      %v1956 = vpop.f32.mrf.mxu0
      %v1957 = vadd.f32 %v432, %v1956
      %v1958 = vpop.f32.mrf.mxu0
      %v1959 = vpop.f32.mrf.mxu0
      %v1960 = vadd.f32 %v437, %v1959
      %v1961 = vpop.f32.mrf.mxu0
      %1962 = vdwg.mxu0
      %vm1963 = vcmp.ge.f32.partialorder %v1933, 0.0
      %vm1964 = vcmp.ge.f32.partialorder %v1936, 0.0
      %vm1965 = vcmp.ge.f32.partialorder %v1941, 0.0
      %vm1966 = vcmp.ge.f32.partialorder %v1944, 0.0
      %vm1967 = vcmp.ge.f32.partialorder %v1949, 0.0
      %vm1968 = vcmp.ge.f32.partialorder %v1952, 0.0
      %vm1969 = vcmp.ge.f32.partialorder %v1957, 0.0
      %vm1970 = vcmp.ge.f32.partialorder %v1960, 0.0
      %v1971 = vmul.f32 %v1933, 0.1
      %v1972 = vmul.f32 %v1936, 0.1
      %v1973 = vmul.f32 %v1941, 0.1
      %v1974 = vmul.f32 %v1944, 0.1
      %v1975 = vmul.f32 %v1949, 0.1
      %v1976 = vmul.f32 %v1952, 0.1
      %v1977 = vmul.f32 %v1957, 0.1
      %v1978 = vmul.f32 %v1960, 0.1
      %v1979 = vsel %vm1963, %v1933, %v1971
      %v1980 = vsel %vm1964, %v1936, %v1972
      %v1981 = vsel %vm1965, %v1941, %v1973
      %v1982 = vsel %vm1966, %v1944, %v1974
      %v1983 = vsel %vm1967, %v1949, %v1975
      %v1984 = vsel %vm1968, %v1952, %v1976
      %v1985 = vsel %vm1969, %v1957, %v1977
      %v1986 = vsel %vm1970, %v1960, %v1978
      %v1987 = vmax.f32 %v1860, %v1979
      %v1988 = vmax.f32 %v1861, %v1980
      %v1989 = vmax.f32 %v1862, %v1981
      %v1990 = vmax.f32 %v1863, %v1982
      %v1991 = vmax.f32 %v1864, %v1983
      %v1992 = vmax.f32 %v1865, %v1984
      %v1993 = vmax.f32 %v1866, %v1985
      %v1994 = vmax.f32 %v1867, %v1986
      %2003 = vrot.lane.b32.xlu0 %v1987, 120
      %v2004 = vpop.permute.xlu0 %2003
      %2005 = vrot.lane.b32.xlu0 %v1988, 120
      %v2006 = vpop.permute.xlu0 %2005
      %2007 = vrot.lane.b32.xlu0 %v1989, 120
      %v2008 = vpop.permute.xlu0 %2007
      %2009 = vrot.lane.b32.xlu0 %v1990, 120
      %v2010 = vpop.permute.xlu0 %2009
      %2011 = vrot.lane.b32.xlu0 %v1991, 120
      %v2012 = vpop.permute.xlu0 %2011
      %2013 = vrot.lane.b32.xlu0 %v1992, 120
      %v2014 = vpop.permute.xlu0 %2013
      %2015 = vrot.lane.b32.xlu0 %v1993, 120
      %v2016 = vpop.permute.xlu0 %2015
      %2017 = vrot.lane.b32.xlu0 %v1994, 120
      %v2018 = vpop.permute.xlu0 %2017
      %v2027 = vmax.f32 %v1987, %v2004
      %v2028 = vmax.f32 %v1988, %v2006
      %v2029 = vmax.f32 %v1989, %v2008
      %v2030 = vmax.f32 %v1990, %v2010
      %v2031 = vmax.f32 %v1991, %v2012
      %v2032 = vmax.f32 %v1992, %v2014
      %v2033 = vmax.f32 %v1993, %v2016
      %v2034 = vmax.f32 %v1994, %v2018
      %v2035 = vpack.c.bf16 %v2028, %v2027
      %v2036 = vpack.c.bf16 %v2030, %v2029
      %v2037 = vpack.c.bf16 %v2032, %v2031
      %v2038 = vpack.c.bf16 %v2034, %v2033
      %s2039 = sadd.s32 %s354, 10
      %s2040 = smul.u32 %s2039, 24
      %s2041 = sshra.s32 %s2040, 3
      %s2042 = sand.u32 %s2040, 7
      %s2043 = smul.addr %s2041, 4
      %s2044 = scalar_lea.vmem %s344, %s2043
      %v2045 = vld [vmem:[%s2044] sm:$0xf]
      %v2046 = vld [vmem:[%s2044 + $0x4] sm:$0xf]
      %v2047 = vld [vmem:[%s2044 + $0x8] sm:$0xf]
      %v2048 = vld [vmem:[%s2044 + $0xc] sm:$0xf]
      %v2049 = vld [vmem:[%s2044 + $0x10] sm:$0xf]
      %v2050 = vld [vmem:[%s2044 + $0x14] sm:$0xf]
      %v2051 = vld [vmem:[%s2044 + $0x18] sm:$0xf]
      %v2052 = vld [vmem:[%s2044 + $0x1c] sm:$0xf]
      %v2053 = vld [vmem:[%s2044 + $0x20] sm:$0xf]
      %s2054 = sadd.s32 %s2040, 24
      %s2055 = sshra.s32 %s2054, 3
      %s2056 = sand.u32 %s2054, 7
      %s2057 = smul.addr %s2055, 4
      %s2058 = scalar_lea.vmem %s344, %s2057
      %v2059 = vld [vmem:[%s2058] sm:$0xf]
      %v2060 = vld [vmem:[%s2058 + $0x4] sm:$0xf]
      %v2061 = vld [vmem:[%s2058 + $0x8] sm:$0xf]
      %v2062 = vld [vmem:[%s2058 + $0xc] sm:$0xf]
      %v2063 = vld [vmem:[%s2058 + $0x10] sm:$0xf]
      %v2064 = vld [vmem:[%s2058 + $0x14] sm:$0xf]
      %v2065 = vld [vmem:[%s2058 + $0x18] sm:$0xf]
      %v2066 = vld [vmem:[%s2058 + $0x1c] sm:$0xf]
      %v2067 = vld [vmem:[%s2058 + $0x20] sm:$0xf]
      %v2077 = vunpack.c.l.b16 %v2045
      %v2078 = vunpack.c.l.b16 %v2046
      %v2079 = vunpack.c.l.b16 %v2047
      %v2080 = vunpack.c.l.b16 %v2048
      %v2081 = vunpack.c.l.b16 %v2049
      %v2082 = vunpack.c.l.b16 %v2050
      %v2083 = vunpack.c.l.b16 %v2051
      %v2084 = vunpack.c.l.b16 %v2052
      %v2085 = vunpack.c.l.b16 %v2053
      %v2086 = vpack.c.b16 %v2078, %v2077
      %v2087 = vpack.c.b16 %v2080, %v2079
      %v2088 = vpack.c.b16 %v2082, %v2081
      %v2089 = vpack.c.b16 %v2084, %v2083
      %v2090 = vpack.c.b16 %v2085, %v2085
      %v2096 = vsel %vm499, %v2090, 0
      %2098 = vmatprep.subr.bf16.mxu0 0
      %2099 = vmatpush1.bf16.msra.mxu0 0
      %2100 = vmatprep.subr.bf16.mxu0 0
      %2101 = vmatpush1.bf16.msra.mxu0 0
      %2102 = vmatprep.subr.bf16.mxu0 0
      %2103 = vmatpush1.bf16.msra.mxu0 0
      %2104 = vmatprep.subr.bf16.mxu0 0
      %2105 = vmatpush1.bf16.msra.mxu0 %v2096
      %2106 = vmatprep.subr.bf16.mxu0 0
      %2107 = vmatpush1.bf16.msra.mxu0 %v2089
      %2108 = vmatprep.subr.bf16.mxu0 0
      %2109 = vmatpush1.bf16.msra.mxu0 %v2088
      %2110 = vmatprep.subr.bf16.mxu0 0
      %2111 = vmatpush1.bf16.msra.mxu0 %v2087
      %2112 = vmatprep.subr.bf16.mxu0 0
      %2113 = vmatpush1.bf16.msra.mxu0 %v2086
      %2114 = vmatprep.subr.bf16.mxu0 0
      %2115 = vmatpush2.bf16.msra.mxu0 0
      %2116 = vmatprep.subr.bf16.mxu0 0
      %2117 = vmatpush2.bf16.msra.mxu0 0
      %2118 = vmatprep.subr.bf16.mxu0 0
      %2119 = vmatpush2.bf16.msra.mxu0 0
      %2120 = vmatprep.subr.bf16.mxu0 0
      %2121 = vmatpush2.bf16.msra.mxu0 0
      %2122 = vmatprep.subr.bf16.mxu0 0
      %2123 = vmatpush2.bf16.msra.mxu0 0
      %2124 = vmatprep.subr.bf16.mxu0 0
      %2125 = vmatpush2.bf16.msra.mxu0 0
      %2126 = vmatprep.subr.bf16.mxu0 0
      %2127 = vmatpush2.bf16.msra.mxu0 0
      %2128 = vmatprep.subr.bf16.mxu0 0
      %2129 = vmatpush2.bf16.msra.mxu0 0
      %2130 = vmatprep.mubr.bf16.mxu0 0
      %2131 = vmatmul.mubr.bf16.gmra.mxu0 %v488
      %v2132 = vpop.f32.mrf.mxu0
      %v2133 = vadd.f32 %v402, %v2132
      %v2134 = vpop.f32.mrf.mxu0
      %v2135 = vpop.f32.mrf.mxu0
      %v2136 = vadd.f32 %v407, %v2135
      %v2137 = vpop.f32.mrf.mxu0
      %2138 = vmatprep.mubr.bf16.mxu0 0
      %2139 = vmatmul.mubr.bf16.gmra.mxu0 %v491
      %v2140 = vpop.f32.mrf.mxu0
      %v2141 = vadd.f32 %v412, %v2140
      %v2142 = vpop.f32.mrf.mxu0
      %v2143 = vpop.f32.mrf.mxu0
      %v2144 = vadd.f32 %v417, %v2143
      %v2145 = vpop.f32.mrf.mxu0
      %2146 = vmatprep.mubr.bf16.mxu0 0
      %2147 = vmatmul.mubr.bf16.gmra.mxu0 %v494
      %v2148 = vpop.f32.mrf.mxu0
      %v2149 = vadd.f32 %v422, %v2148
      %v2150 = vpop.f32.mrf.mxu0
      %v2151 = vpop.f32.mrf.mxu0
      %v2152 = vadd.f32 %v427, %v2151
      %v2153 = vpop.f32.mrf.mxu0
      %2154 = vmatprep.mubr.bf16.mxu0 0
      %2155 = vmatmul.mubr.bf16.gmra.mxu0 %v497
      %v2156 = vpop.f32.mrf.mxu0
      %v2157 = vadd.f32 %v432, %v2156
      %v2158 = vpop.f32.mrf.mxu0
      %v2159 = vpop.f32.mrf.mxu0
      %v2160 = vadd.f32 %v437, %v2159
      %v2161 = vpop.f32.mrf.mxu0
      %2162 = vdwg.mxu0
      %vm2163 = vcmp.ge.f32.partialorder %v2133, 0.0
      %vm2164 = vcmp.ge.f32.partialorder %v2136, 0.0
      %vm2165 = vcmp.ge.f32.partialorder %v2141, 0.0
      %vm2166 = vcmp.ge.f32.partialorder %v2144, 0.0
      %vm2167 = vcmp.ge.f32.partialorder %v2149, 0.0
      %vm2168 = vcmp.ge.f32.partialorder %v2152, 0.0
      %vm2169 = vcmp.ge.f32.partialorder %v2157, 0.0
      %vm2170 = vcmp.ge.f32.partialorder %v2160, 0.0
      %v2171 = vmul.f32 %v2133, 0.1
      %v2172 = vmul.f32 %v2136, 0.1
      %v2173 = vmul.f32 %v2141, 0.1
      %v2174 = vmul.f32 %v2144, 0.1
      %v2175 = vmul.f32 %v2149, 0.1
      %v2176 = vmul.f32 %v2152, 0.1
      %v2177 = vmul.f32 %v2157, 0.1
      %v2178 = vmul.f32 %v2160, 0.1
      %v2179 = vsel %vm2163, %v2133, %v2171
      %v2180 = vsel %vm2164, %v2136, %v2172
      %v2181 = vsel %vm2165, %v2141, %v2173
      %v2182 = vsel %vm2166, %v2144, %v2174
      %v2183 = vsel %vm2167, %v2149, %v2175
      %v2184 = vsel %vm2168, %v2152, %v2176
      %v2185 = vsel %vm2169, %v2157, %v2177
      %v2186 = vsel %vm2170, %v2160, %v2178
      %v2196 = vunpack.c.l.b16 %v2059
      %v2197 = vunpack.c.l.b16 %v2060
      %v2198 = vunpack.c.l.b16 %v2061
      %v2199 = vunpack.c.l.b16 %v2062
      %v2200 = vunpack.c.l.b16 %v2063
      %v2201 = vunpack.c.l.b16 %v2064
      %v2202 = vunpack.c.l.b16 %v2065
      %v2203 = vunpack.c.l.b16 %v2066
      %v2204 = vunpack.c.l.b16 %v2067
      %v2205 = vpack.c.b16 %v2197, %v2196
      %v2206 = vpack.c.b16 %v2199, %v2198
      %v2207 = vpack.c.b16 %v2201, %v2200
      %v2208 = vpack.c.b16 %v2203, %v2202
      %v2209 = vpack.c.b16 %v2204, %v2204
      %v2215 = vsel %vm499, %v2209, 0
      %2217 = vmatprep.subr.bf16.mxu0 0
      %2218 = vmatpush1.bf16.msra.mxu0 0
      %2219 = vmatprep.subr.bf16.mxu0 0
      %2220 = vmatpush1.bf16.msra.mxu0 0
      %2221 = vmatprep.subr.bf16.mxu0 0
      %2222 = vmatpush1.bf16.msra.mxu0 0
      %2223 = vmatprep.subr.bf16.mxu0 0
      %2224 = vmatpush1.bf16.msra.mxu0 %v2215
      %2225 = vmatprep.subr.bf16.mxu0 0
      %2226 = vmatpush1.bf16.msra.mxu0 %v2208
      %2227 = vmatprep.subr.bf16.mxu0 0
      %2228 = vmatpush1.bf16.msra.mxu0 %v2207
      %2229 = vmatprep.subr.bf16.mxu0 0
      %2230 = vmatpush1.bf16.msra.mxu0 %v2206
      %2231 = vmatprep.subr.bf16.mxu0 0
      %2232 = vmatpush1.bf16.msra.mxu0 %v2205
      %2233 = vmatprep.subr.bf16.mxu0 0
      %2234 = vmatpush2.bf16.msra.mxu0 0
      %2235 = vmatprep.subr.bf16.mxu0 0
      %2236 = vmatpush2.bf16.msra.mxu0 0
      %2237 = vmatprep.subr.bf16.mxu0 0
      %2238 = vmatpush2.bf16.msra.mxu0 0
      %2239 = vmatprep.subr.bf16.mxu0 0
      %2240 = vmatpush2.bf16.msra.mxu0 0
      %2241 = vmatprep.subr.bf16.mxu0 0
      %2242 = vmatpush2.bf16.msra.mxu0 0
      %2243 = vmatprep.subr.bf16.mxu0 0
      %2244 = vmatpush2.bf16.msra.mxu0 0
      %2245 = vmatprep.subr.bf16.mxu0 0
      %2246 = vmatpush2.bf16.msra.mxu0 0
      %2247 = vmatprep.subr.bf16.mxu0 0
      %2248 = vmatpush2.bf16.msra.mxu0 0
      %2249 = vmatprep.mubr.bf16.mxu0 0
      %2250 = vmatmul.mubr.bf16.gmra.mxu0 %v488
      %v2251 = vpop.f32.mrf.mxu0
      %v2252 = vadd.f32 %v402, %v2251
      %v2253 = vpop.f32.mrf.mxu0
      %v2254 = vpop.f32.mrf.mxu0
      %v2255 = vadd.f32 %v407, %v2254
      %v2256 = vpop.f32.mrf.mxu0
      %2257 = vmatprep.mubr.bf16.mxu0 0
      %2258 = vmatmul.mubr.bf16.gmra.mxu0 %v491
      %v2259 = vpop.f32.mrf.mxu0
      %v2260 = vadd.f32 %v412, %v2259
      %v2261 = vpop.f32.mrf.mxu0
      %v2262 = vpop.f32.mrf.mxu0
      %v2263 = vadd.f32 %v417, %v2262
      %v2264 = vpop.f32.mrf.mxu0
      %2265 = vmatprep.mubr.bf16.mxu0 0
      %2266 = vmatmul.mubr.bf16.gmra.mxu0 %v494
      %v2267 = vpop.f32.mrf.mxu0
      %v2268 = vadd.f32 %v422, %v2267
      %v2269 = vpop.f32.mrf.mxu0
      %v2270 = vpop.f32.mrf.mxu0
      %v2271 = vadd.f32 %v427, %v2270
      %v2272 = vpop.f32.mrf.mxu0
      %2273 = vmatprep.mubr.bf16.mxu0 0
      %2274 = vmatmul.mubr.bf16.gmra.mxu0 %v497
      %v2275 = vpop.f32.mrf.mxu0
      %v2276 = vadd.f32 %v432, %v2275
      %v2277 = vpop.f32.mrf.mxu0
      %v2278 = vpop.f32.mrf.mxu0
      %v2279 = vadd.f32 %v437, %v2278
      %v2280 = vpop.f32.mrf.mxu0
      %2281 = vdwg.mxu0
      %vm2282 = vcmp.ge.f32.partialorder %v2252, 0.0
      %vm2283 = vcmp.ge.f32.partialorder %v2255, 0.0
      %vm2284 = vcmp.ge.f32.partialorder %v2260, 0.0
      %vm2285 = vcmp.ge.f32.partialorder %v2263, 0.0
      %vm2286 = vcmp.ge.f32.partialorder %v2268, 0.0
      %vm2287 = vcmp.ge.f32.partialorder %v2271, 0.0
      %vm2288 = vcmp.ge.f32.partialorder %v2276, 0.0
      %vm2289 = vcmp.ge.f32.partialorder %v2279, 0.0
      %v2290 = vmul.f32 %v2252, 0.1
      %v2291 = vmul.f32 %v2255, 0.1
      %v2292 = vmul.f32 %v2260, 0.1
      %v2293 = vmul.f32 %v2263, 0.1
      %v2294 = vmul.f32 %v2268, 0.1
      %v2295 = vmul.f32 %v2271, 0.1
      %v2296 = vmul.f32 %v2276, 0.1
      %v2297 = vmul.f32 %v2279, 0.1
      %v2298 = vsel %vm2282, %v2252, %v2290
      %v2299 = vsel %vm2283, %v2255, %v2291
      %v2300 = vsel %vm2284, %v2260, %v2292
      %v2301 = vsel %vm2285, %v2263, %v2293
      %v2302 = vsel %vm2286, %v2268, %v2294
      %v2303 = vsel %vm2287, %v2271, %v2295
      %v2304 = vsel %vm2288, %v2276, %v2296
      %v2305 = vsel %vm2289, %v2279, %v2297
      %v2306 = vmax.f32 %v2179, %v2298
      %v2307 = vmax.f32 %v2180, %v2299
      %v2308 = vmax.f32 %v2181, %v2300
      %v2309 = vmax.f32 %v2182, %v2301
      %v2310 = vmax.f32 %v2183, %v2302
      %v2311 = vmax.f32 %v2184, %v2303
      %v2312 = vmax.f32 %v2185, %v2304
      %v2313 = vmax.f32 %v2186, %v2305
      %2322 = vrot.lane.b32.xlu0 %v2306, 120
      %v2323 = vpop.permute.xlu0 %2322
      %2324 = vrot.lane.b32.xlu0 %v2307, 120
      %v2325 = vpop.permute.xlu0 %2324
      %2326 = vrot.lane.b32.xlu0 %v2308, 120
      %v2327 = vpop.permute.xlu0 %2326
      %2328 = vrot.lane.b32.xlu0 %v2309, 120
      %v2329 = vpop.permute.xlu0 %2328
      %2330 = vrot.lane.b32.xlu0 %v2310, 120
      %v2331 = vpop.permute.xlu0 %2330
      %2332 = vrot.lane.b32.xlu0 %v2311, 120
      %v2333 = vpop.permute.xlu0 %2332
      %2334 = vrot.lane.b32.xlu0 %v2312, 120
      %v2335 = vpop.permute.xlu0 %2334
      %2336 = vrot.lane.b32.xlu0 %v2313, 120
      %v2337 = vpop.permute.xlu0 %2336
      %v2346 = vmax.f32 %v2306, %v2323
      %v2347 = vmax.f32 %v2307, %v2325
      %v2348 = vmax.f32 %v2308, %v2327
      %v2349 = vmax.f32 %v2309, %v2329
      %v2350 = vmax.f32 %v2310, %v2331
      %v2351 = vmax.f32 %v2311, %v2333
      %v2352 = vmax.f32 %v2312, %v2335
      %v2353 = vmax.f32 %v2313, %v2337
      %v2354 = vpack.c.bf16 %v2347, %v2346
      %v2355 = vpack.c.bf16 %v2349, %v2348
      %v2356 = vpack.c.bf16 %v2351, %v2350
      %v2357 = vpack.c.bf16 %v2353, %v2352
      %s2358 = sadd.s32 %s354, 12
      %s2359 = smul.u32 %s2358, 24
      %s2360 = sshra.s32 %s2359, 3
      %s2361 = sand.u32 %s2359, 7
      %s2362 = smul.addr %s2360, 4
      %s2363 = scalar_lea.vmem %s344, %s2362
      %v2364 = vld [vmem:[%s2363] sm:$0xf]
      %v2365 = vld [vmem:[%s2363 + $0x4] sm:$0xf]
      %v2366 = vld [vmem:[%s2363 + $0x8] sm:$0xf]
      %v2367 = vld [vmem:[%s2363 + $0xc] sm:$0xf]
      %v2368 = vld [vmem:[%s2363 + $0x10] sm:$0xf]
      %v2369 = vld [vmem:[%s2363 + $0x14] sm:$0xf]
      %v2370 = vld [vmem:[%s2363 + $0x18] sm:$0xf]
      %v2371 = vld [vmem:[%s2363 + $0x1c] sm:$0xf]
      %v2372 = vld [vmem:[%s2363 + $0x20] sm:$0xf]
      %s2373 = sadd.s32 %s2359, 24
      %s2374 = sshra.s32 %s2373, 3
      %s2375 = sand.u32 %s2373, 7
      %s2376 = smul.addr %s2374, 4
      %s2377 = scalar_lea.vmem %s344, %s2376
      %v2378 = vld [vmem:[%s2377] sm:$0xf]
      %v2379 = vld [vmem:[%s2377 + $0x4] sm:$0xf]
      %v2380 = vld [vmem:[%s2377 + $0x8] sm:$0xf]
      %v2381 = vld [vmem:[%s2377 + $0xc] sm:$0xf]
      %v2382 = vld [vmem:[%s2377 + $0x10] sm:$0xf]
      %v2383 = vld [vmem:[%s2377 + $0x14] sm:$0xf]
      %v2384 = vld [vmem:[%s2377 + $0x18] sm:$0xf]
      %v2385 = vld [vmem:[%s2377 + $0x1c] sm:$0xf]
      %v2386 = vld [vmem:[%s2377 + $0x20] sm:$0xf]
      %v2396 = vunpack.c.l.b16 %v2364
      %v2397 = vunpack.c.l.b16 %v2365
      %v2398 = vunpack.c.l.b16 %v2366
      %v2399 = vunpack.c.l.b16 %v2367
      %v2400 = vunpack.c.l.b16 %v2368
      %v2401 = vunpack.c.l.b16 %v2369
      %v2402 = vunpack.c.l.b16 %v2370
      %v2403 = vunpack.c.l.b16 %v2371
      %v2404 = vunpack.c.l.b16 %v2372
      %v2405 = vpack.c.b16 %v2397, %v2396
      %v2406 = vpack.c.b16 %v2399, %v2398
      %v2407 = vpack.c.b16 %v2401, %v2400
      %v2408 = vpack.c.b16 %v2403, %v2402
      %v2409 = vpack.c.b16 %v2404, %v2404
      %v2415 = vsel %vm499, %v2409, 0
      %2417 = vmatprep.subr.bf16.mxu0 0
      %2418 = vmatpush1.bf16.msra.mxu0 0
      %2419 = vmatprep.subr.bf16.mxu0 0
      %2420 = vmatpush1.bf16.msra.mxu0 0
      %2421 = vmatprep.subr.bf16.mxu0 0
      %2422 = vmatpush1.bf16.msra.mxu0 0
      %2423 = vmatprep.subr.bf16.mxu0 0
      %2424 = vmatpush1.bf16.msra.mxu0 %v2415
      %2425 = vmatprep.subr.bf16.mxu0 0
      %2426 = vmatpush1.bf16.msra.mxu0 %v2408
      %2427 = vmatprep.subr.bf16.mxu0 0
      %2428 = vmatpush1.bf16.msra.mxu0 %v2407
      %2429 = vmatprep.subr.bf16.mxu0 0
      %2430 = vmatpush1.bf16.msra.mxu0 %v2406
      %2431 = vmatprep.subr.bf16.mxu0 0
      %2432 = vmatpush1.bf16.msra.mxu0 %v2405
      %2433 = vmatprep.subr.bf16.mxu0 0
      %2434 = vmatpush2.bf16.msra.mxu0 0
      %2435 = vmatprep.subr.bf16.mxu0 0
      %2436 = vmatpush2.bf16.msra.mxu0 0
      %2437 = vmatprep.subr.bf16.mxu0 0
      %2438 = vmatpush2.bf16.msra.mxu0 0
      %2439 = vmatprep.subr.bf16.mxu0 0
      %2440 = vmatpush2.bf16.msra.mxu0 0
      %2441 = vmatprep.subr.bf16.mxu0 0
      %2442 = vmatpush2.bf16.msra.mxu0 0
      %2443 = vmatprep.subr.bf16.mxu0 0
      %2444 = vmatpush2.bf16.msra.mxu0 0
      %2445 = vmatprep.subr.bf16.mxu0 0
      %2446 = vmatpush2.bf16.msra.mxu0 0
      %2447 = vmatprep.subr.bf16.mxu0 0
      %2448 = vmatpush2.bf16.msra.mxu0 0
      %2449 = vmatprep.mubr.bf16.mxu0 0
      %2450 = vmatmul.mubr.bf16.gmra.mxu0 %v488
      %v2451 = vpop.f32.mrf.mxu0
      %v2452 = vadd.f32 %v402, %v2451
      %v2453 = vpop.f32.mrf.mxu0
      %v2454 = vpop.f32.mrf.mxu0
      %v2455 = vadd.f32 %v407, %v2454
      %v2456 = vpop.f32.mrf.mxu0
      %2457 = vmatprep.mubr.bf16.mxu0 0
      %2458 = vmatmul.mubr.bf16.gmra.mxu0 %v491
      %v2459 = vpop.f32.mrf.mxu0
      %v2460 = vadd.f32 %v412, %v2459
      %v2461 = vpop.f32.mrf.mxu0
      %v2462 = vpop.f32.mrf.mxu0
      %v2463 = vadd.f32 %v417, %v2462
      %v2464 = vpop.f32.mrf.mxu0
      %2465 = vmatprep.mubr.bf16.mxu0 0
      %2466 = vmatmul.mubr.bf16.gmra.mxu0 %v494
      %v2467 = vpop.f32.mrf.mxu0
      %v2468 = vadd.f32 %v422, %v2467
      %v2469 = vpop.f32.mrf.mxu0
      %v2470 = vpop.f32.mrf.mxu0
      %v2471 = vadd.f32 %v427, %v2470
      %v2472 = vpop.f32.mrf.mxu0
      %2473 = vmatprep.mubr.bf16.mxu0 0
      %2474 = vmatmul.mubr.bf16.gmra.mxu0 %v497
      %v2475 = vpop.f32.mrf.mxu0
      %v2476 = vadd.f32 %v432, %v2475
      %v2477 = vpop.f32.mrf.mxu0
      %v2478 = vpop.f32.mrf.mxu0
      %v2479 = vadd.f32 %v437, %v2478
      %v2480 = vpop.f32.mrf.mxu0
      %2481 = vdwg.mxu0
      %vm2482 = vcmp.ge.f32.partialorder %v2452, 0.0
      %vm2483 = vcmp.ge.f32.partialorder %v2455, 0.0
      %vm2484 = vcmp.ge.f32.partialorder %v2460, 0.0
      %vm2485 = vcmp.ge.f32.partialorder %v2463, 0.0
      %vm2486 = vcmp.ge.f32.partialorder %v2468, 0.0
      %vm2487 = vcmp.ge.f32.partialorder %v2471, 0.0
      %vm2488 = vcmp.ge.f32.partialorder %v2476, 0.0
      %vm2489 = vcmp.ge.f32.partialorder %v2479, 0.0
      %v2490 = vmul.f32 %v2452, 0.1
      %v2491 = vmul.f32 %v2455, 0.1
      %v2492 = vmul.f32 %v2460, 0.1
      %v2493 = vmul.f32 %v2463, 0.1
      %v2494 = vmul.f32 %v2468, 0.1
      %v2495 = vmul.f32 %v2471, 0.1
      %v2496 = vmul.f32 %v2476, 0.1
      %v2497 = vmul.f32 %v2479, 0.1
      %v2498 = vsel %vm2482, %v2452, %v2490
      %v2499 = vsel %vm2483, %v2455, %v2491
      %v2500 = vsel %vm2484, %v2460, %v2492
      %v2501 = vsel %vm2485, %v2463, %v2493
      %v2502 = vsel %vm2486, %v2468, %v2494
      %v2503 = vsel %vm2487, %v2471, %v2495
      %v2504 = vsel %vm2488, %v2476, %v2496
      %v2505 = vsel %vm2489, %v2479, %v2497
      %v2515 = vunpack.c.l.b16 %v2378
      %v2516 = vunpack.c.l.b16 %v2379
      %v2517 = vunpack.c.l.b16 %v2380
      %v2518 = vunpack.c.l.b16 %v2381
      %v2519 = vunpack.c.l.b16 %v2382
      %v2520 = vunpack.c.l.b16 %v2383
      %v2521 = vunpack.c.l.b16 %v2384
      %v2522 = vunpack.c.l.b16 %v2385
      %v2523 = vunpack.c.l.b16 %v2386
      %v2524 = vpack.c.b16 %v2516, %v2515
      %v2525 = vpack.c.b16 %v2518, %v2517
      %v2526 = vpack.c.b16 %v2520, %v2519
      %v2527 = vpack.c.b16 %v2522, %v2521
      %v2528 = vpack.c.b16 %v2523, %v2523
      %v2534 = vsel %vm499, %v2528, 0
      %2536 = vmatprep.subr.bf16.mxu0 0
      %2537 = vmatpush1.bf16.msra.mxu0 0
      %2538 = vmatprep.subr.bf16.mxu0 0
      %2539 = vmatpush1.bf16.msra.mxu0 0
      %2540 = vmatprep.subr.bf16.mxu0 0
      %2541 = vmatpush1.bf16.msra.mxu0 0
      %2542 = vmatprep.subr.bf16.mxu0 0
      %2543 = vmatpush1.bf16.msra.mxu0 %v2534
      %2544 = vmatprep.subr.bf16.mxu0 0
      %2545 = vmatpush1.bf16.msra.mxu0 %v2527
      %2546 = vmatprep.subr.bf16.mxu0 0
      %2547 = vmatpush1.bf16.msra.mxu0 %v2526
      %2548 = vmatprep.subr.bf16.mxu0 0
      %2549 = vmatpush1.bf16.msra.mxu0 %v2525
      %2550 = vmatprep.subr.bf16.mxu0 0
      %2551 = vmatpush1.bf16.msra.mxu0 %v2524
      %2552 = vmatprep.subr.bf16.mxu0 0
      %2553 = vmatpush2.bf16.msra.mxu0 0
      %2554 = vmatprep.subr.bf16.mxu0 0
      %2555 = vmatpush2.bf16.msra.mxu0 0
      %2556 = vmatprep.subr.bf16.mxu0 0
      %2557 = vmatpush2.bf16.msra.mxu0 0
      %2558 = vmatprep.subr.bf16.mxu0 0
      %2559 = vmatpush2.bf16.msra.mxu0 0
      %2560 = vmatprep.subr.bf16.mxu0 0
      %2561 = vmatpush2.bf16.msra.mxu0 0
      %2562 = vmatprep.subr.bf16.mxu0 0
      %2563 = vmatpush2.bf16.msra.mxu0 0
      %2564 = vmatprep.subr.bf16.mxu0 0
      %2565 = vmatpush2.bf16.msra.mxu0 0
      %2566 = vmatprep.subr.bf16.mxu0 0
      %2567 = vmatpush2.bf16.msra.mxu0 0
      %2568 = vmatprep.mubr.bf16.mxu0 0
      %2569 = vmatmul.mubr.bf16.gmra.mxu0 %v488
      %v2570 = vpop.f32.mrf.mxu0
      %v2571 = vadd.f32 %v402, %v2570
      %v2572 = vpop.f32.mrf.mxu0
      %v2573 = vpop.f32.mrf.mxu0
      %v2574 = vadd.f32 %v407, %v2573
      %v2575 = vpop.f32.mrf.mxu0
      %2576 = vmatprep.mubr.bf16.mxu0 0
      %2577 = vmatmul.mubr.bf16.gmra.mxu0 %v491
      %v2578 = vpop.f32.mrf.mxu0
      %v2579 = vadd.f32 %v412, %v2578
      %v2580 = vpop.f32.mrf.mxu0
      %v2581 = vpop.f32.mrf.mxu0
      %v2582 = vadd.f32 %v417, %v2581
      %v2583 = vpop.f32.mrf.mxu0
      %2584 = vmatprep.mubr.bf16.mxu0 0
      %2585 = vmatmul.mubr.bf16.gmra.mxu0 %v494
      %v2586 = vpop.f32.mrf.mxu0
      %v2587 = vadd.f32 %v422, %v2586
      %v2588 = vpop.f32.mrf.mxu0
      %v2589 = vpop.f32.mrf.mxu0
      %v2590 = vadd.f32 %v427, %v2589
      %v2591 = vpop.f32.mrf.mxu0
      %2592 = vmatprep.mubr.bf16.mxu0 0
      %2593 = vmatmul.mubr.bf16.gmra.mxu0 %v497
      %v2594 = vpop.f32.mrf.mxu0
      %v2595 = vadd.f32 %v432, %v2594
      %v2596 = vpop.f32.mrf.mxu0
      %v2597 = vpop.f32.mrf.mxu0
      %v2598 = vadd.f32 %v437, %v2597
      %v2599 = vpop.f32.mrf.mxu0
      %2600 = vdwg.mxu0
      %vm2601 = vcmp.ge.f32.partialorder %v2571, 0.0
      %vm2602 = vcmp.ge.f32.partialorder %v2574, 0.0
      %vm2603 = vcmp.ge.f32.partialorder %v2579, 0.0
      %vm2604 = vcmp.ge.f32.partialorder %v2582, 0.0
      %vm2605 = vcmp.ge.f32.partialorder %v2587, 0.0
      %vm2606 = vcmp.ge.f32.partialorder %v2590, 0.0
      %vm2607 = vcmp.ge.f32.partialorder %v2595, 0.0
      %vm2608 = vcmp.ge.f32.partialorder %v2598, 0.0
      %v2609 = vmul.f32 %v2571, 0.1
      %v2610 = vmul.f32 %v2574, 0.1
      %v2611 = vmul.f32 %v2579, 0.1
      %v2612 = vmul.f32 %v2582, 0.1
      %v2613 = vmul.f32 %v2587, 0.1
      %v2614 = vmul.f32 %v2590, 0.1
      %v2615 = vmul.f32 %v2595, 0.1
      %v2616 = vmul.f32 %v2598, 0.1
      %v2617 = vsel %vm2601, %v2571, %v2609
      %v2618 = vsel %vm2602, %v2574, %v2610
      %v2619 = vsel %vm2603, %v2579, %v2611
      %v2620 = vsel %vm2604, %v2582, %v2612
      %v2621 = vsel %vm2605, %v2587, %v2613
      %v2622 = vsel %vm2606, %v2590, %v2614
      %v2623 = vsel %vm2607, %v2595, %v2615
      %v2624 = vsel %vm2608, %v2598, %v2616
      %v2625 = vmax.f32 %v2498, %v2617
      %v2626 = vmax.f32 %v2499, %v2618
      %v2627 = vmax.f32 %v2500, %v2619
      %v2628 = vmax.f32 %v2501, %v2620
      %v2629 = vmax.f32 %v2502, %v2621
      %v2630 = vmax.f32 %v2503, %v2622
      %v2631 = vmax.f32 %v2504, %v2623
      %v2632 = vmax.f32 %v2505, %v2624
      %2641 = vrot.lane.b32.xlu0 %v2625, 120
      %v2642 = vpop.permute.xlu0 %2641
      %2643 = vrot.lane.b32.xlu0 %v2626, 120
      %v2644 = vpop.permute.xlu0 %2643
      %2645 = vrot.lane.b32.xlu0 %v2627, 120
      %v2646 = vpop.permute.xlu0 %2645
      %2647 = vrot.lane.b32.xlu0 %v2628, 120
      %v2648 = vpop.permute.xlu0 %2647
      %2649 = vrot.lane.b32.xlu0 %v2629, 120
      %v2650 = vpop.permute.xlu0 %2649
      %2651 = vrot.lane.b32.xlu0 %v2630, 120
      %v2652 = vpop.permute.xlu0 %2651
      %2653 = vrot.lane.b32.xlu0 %v2631, 120
      %v2654 = vpop.permute.xlu0 %2653
      %2655 = vrot.lane.b32.xlu0 %v2632, 120
      %v2656 = vpop.permute.xlu0 %2655
      %v2665 = vmax.f32 %v2625, %v2642
      %v2666 = vmax.f32 %v2626, %v2644
      %v2667 = vmax.f32 %v2627, %v2646
      %v2668 = vmax.f32 %v2628, %v2648
      %v2669 = vmax.f32 %v2629, %v2650
      %v2670 = vmax.f32 %v2630, %v2652
      %v2671 = vmax.f32 %v2631, %v2654
      %v2672 = vmax.f32 %v2632, %v2656
      %v2673 = vpack.c.bf16 %v2666, %v2665
      %v2674 = vpack.c.bf16 %v2668, %v2667
      %v2675 = vpack.c.bf16 %v2670, %v2669
      %v2676 = vpack.c.bf16 %v2672, %v2671
      %s2677 = sadd.s32 %s354, 14
      %s2678 = smul.u32 %s2677, 24
      %s2679 = sshra.s32 %s2678, 3
      %s2680 = sand.u32 %s2678, 7
      %s2681 = smul.addr %s2679, 4
      %s2682 = scalar_lea.vmem %s344, %s2681
      %v2683 = vld [vmem:[%s2682] sm:$0xf]
      %v2684 = vld [vmem:[%s2682 + $0x4] sm:$0xf]
      %v2685 = vld [vmem:[%s2682 + $0x8] sm:$0xf]
      %v2686 = vld [vmem:[%s2682 + $0xc] sm:$0xf]
      %v2687 = vld [vmem:[%s2682 + $0x10] sm:$0xf]
      %v2688 = vld [vmem:[%s2682 + $0x14] sm:$0xf]
      %v2689 = vld [vmem:[%s2682 + $0x18] sm:$0xf]
      %v2690 = vld [vmem:[%s2682 + $0x1c] sm:$0xf]
      %v2691 = vld [vmem:[%s2682 + $0x20] sm:$0xf]
      %s2692 = sadd.s32 %s2678, 24
      %s2693 = sshra.s32 %s2692, 3
      %s2694 = sand.u32 %s2692, 7
      %s2695 = smul.addr %s2693, 4
      %s2696 = scalar_lea.vmem %s344, %s2695
      %v2697 = vld [vmem:[%s2696] sm:$0xf]
      %v2698 = vld [vmem:[%s2696 + $0x4] sm:$0xf]
      %v2699 = vld [vmem:[%s2696 + $0x8] sm:$0xf]
      %v2700 = vld [vmem:[%s2696 + $0xc] sm:$0xf]
      %v2701 = vld [vmem:[%s2696 + $0x10] sm:$0xf]
      %v2702 = vld [vmem:[%s2696 + $0x14] sm:$0xf]
      %v2703 = vld [vmem:[%s2696 + $0x18] sm:$0xf]
      %v2704 = vld [vmem:[%s2696 + $0x1c] sm:$0xf]
      %v2705 = vld [vmem:[%s2696 + $0x20] sm:$0xf]
      %v2715 = vunpack.c.l.b16 %v2683
      %v2716 = vunpack.c.l.b16 %v2684
      %v2717 = vunpack.c.l.b16 %v2685
      %v2718 = vunpack.c.l.b16 %v2686
      %v2719 = vunpack.c.l.b16 %v2687
      %v2720 = vunpack.c.l.b16 %v2688
      %v2721 = vunpack.c.l.b16 %v2689
      %v2722 = vunpack.c.l.b16 %v2690
      %v2723 = vunpack.c.l.b16 %v2691
      %v2724 = vpack.c.b16 %v2716, %v2715
      %v2725 = vpack.c.b16 %v2718, %v2717
      %v2726 = vpack.c.b16 %v2720, %v2719
      %v2727 = vpack.c.b16 %v2722, %v2721
      %v2728 = vpack.c.b16 %v2723, %v2723
      %v2734 = vsel %vm499, %v2728, 0
      %2736 = vmatprep.subr.bf16.mxu0 0
      %2737 = vmatpush1.bf16.msra.mxu0 0
      %2738 = vmatprep.subr.bf16.mxu0 0
      %2739 = vmatpush1.bf16.msra.mxu0 0
      %2740 = vmatprep.subr.bf16.mxu0 0
      %2741 = vmatpush1.bf16.msra.mxu0 0
      %2742 = vmatprep.subr.bf16.mxu0 0
      %2743 = vmatpush1.bf16.msra.mxu0 %v2734
      %2744 = vmatprep.subr.bf16.mxu0 0
      %2745 = vmatpush1.bf16.msra.mxu0 %v2727
      %2746 = vmatprep.subr.bf16.mxu0 0
      %2747 = vmatpush1.bf16.msra.mxu0 %v2726
      %2748 = vmatprep.subr.bf16.mxu0 0
      %2749 = vmatpush1.bf16.msra.mxu0 %v2725
      %2750 = vmatprep.subr.bf16.mxu0 0
      %2751 = vmatpush1.bf16.msra.mxu0 %v2724
      %2752 = vmatprep.subr.bf16.mxu0 0
      %2753 = vmatpush2.bf16.msra.mxu0 0
      %2754 = vmatprep.subr.bf16.mxu0 0
      %2755 = vmatpush2.bf16.msra.mxu0 0
      %2756 = vmatprep.subr.bf16.mxu0 0
      %2757 = vmatpush2.bf16.msra.mxu0 0
      %2758 = vmatprep.subr.bf16.mxu0 0
      %2759 = vmatpush2.bf16.msra.mxu0 0
      %2760 = vmatprep.subr.bf16.mxu0 0
      %2761 = vmatpush2.bf16.msra.mxu0 0
      %2762 = vmatprep.subr.bf16.mxu0 0
      %2763 = vmatpush2.bf16.msra.mxu0 0
      %2764 = vmatprep.subr.bf16.mxu0 0
      %2765 = vmatpush2.bf16.msra.mxu0 0
      %2766 = vmatprep.subr.bf16.mxu0 0
      %2767 = vmatpush2.bf16.msra.mxu0 0
      %2768 = vmatprep.mubr.bf16.mxu0 0
      %2769 = vmatmul.mubr.bf16.gmra.mxu0 %v488
      %v2770 = vpop.f32.mrf.mxu0
      %v2771 = vadd.f32 %v402, %v2770
      %v2772 = vpop.f32.mrf.mxu0
      %v2773 = vpop.f32.mrf.mxu0
      %v2774 = vadd.f32 %v407, %v2773
      %v2775 = vpop.f32.mrf.mxu0
      %2776 = vmatprep.mubr.bf16.mxu0 0
      %2777 = vmatmul.mubr.bf16.gmra.mxu0 %v491
      %v2778 = vpop.f32.mrf.mxu0
      %v2779 = vadd.f32 %v412, %v2778
      %v2780 = vpop.f32.mrf.mxu0
      %v2781 = vpop.f32.mrf.mxu0
      %v2782 = vadd.f32 %v417, %v2781
      %v2783 = vpop.f32.mrf.mxu0
      %2784 = vmatprep.mubr.bf16.mxu0 0
      %2785 = vmatmul.mubr.bf16.gmra.mxu0 %v494
      %v2786 = vpop.f32.mrf.mxu0
      %v2787 = vadd.f32 %v422, %v2786
      %v2788 = vpop.f32.mrf.mxu0
      %v2789 = vpop.f32.mrf.mxu0
      %v2790 = vadd.f32 %v427, %v2789
      %v2791 = vpop.f32.mrf.mxu0
      %2792 = vmatprep.mubr.bf16.mxu0 0
      %2793 = vmatmul.mubr.bf16.gmra.mxu0 %v497
      %v2794 = vpop.f32.mrf.mxu0
      %v2795 = vadd.f32 %v432, %v2794
      %v2796 = vpop.f32.mrf.mxu0
      %v2797 = vpop.f32.mrf.mxu0
      %v2798 = vadd.f32 %v437, %v2797
      %v2799 = vpop.f32.mrf.mxu0
      %2800 = vdwg.mxu0
      %vm2801 = vcmp.ge.f32.partialorder %v2771, 0.0
      %vm2802 = vcmp.ge.f32.partialorder %v2774, 0.0
      %vm2803 = vcmp.ge.f32.partialorder %v2779, 0.0
      %vm2804 = vcmp.ge.f32.partialorder %v2782, 0.0
      %vm2805 = vcmp.ge.f32.partialorder %v2787, 0.0
      %vm2806 = vcmp.ge.f32.partialorder %v2790, 0.0
      %vm2807 = vcmp.ge.f32.partialorder %v2795, 0.0
      %vm2808 = vcmp.ge.f32.partialorder %v2798, 0.0
      %v2809 = vmul.f32 %v2771, 0.1
      %v2810 = vmul.f32 %v2774, 0.1
      %v2811 = vmul.f32 %v2779, 0.1
      %v2812 = vmul.f32 %v2782, 0.1
      %v2813 = vmul.f32 %v2787, 0.1
      %v2814 = vmul.f32 %v2790, 0.1
      %v2815 = vmul.f32 %v2795, 0.1
      %v2816 = vmul.f32 %v2798, 0.1
      %v2817 = vsel %vm2801, %v2771, %v2809
      %v2818 = vsel %vm2802, %v2774, %v2810
      %v2819 = vsel %vm2803, %v2779, %v2811
      %v2820 = vsel %vm2804, %v2782, %v2812
      %v2821 = vsel %vm2805, %v2787, %v2813
      %v2822 = vsel %vm2806, %v2790, %v2814
      %v2823 = vsel %vm2807, %v2795, %v2815
      %v2824 = vsel %vm2808, %v2798, %v2816
      %v2834 = vunpack.c.l.b16 %v2697
      %v2835 = vunpack.c.l.b16 %v2698
      %v2836 = vunpack.c.l.b16 %v2699
      %v2837 = vunpack.c.l.b16 %v2700
      %v2838 = vunpack.c.l.b16 %v2701
      %v2839 = vunpack.c.l.b16 %v2702
      %v2840 = vunpack.c.l.b16 %v2703
      %v2841 = vunpack.c.l.b16 %v2704
      %v2842 = vunpack.c.l.b16 %v2705
      %v2843 = vpack.c.b16 %v2835, %v2834
      %v2844 = vpack.c.b16 %v2837, %v2836
      %v2845 = vpack.c.b16 %v2839, %v2838
      %v2846 = vpack.c.b16 %v2841, %v2840
      %v2847 = vpack.c.b16 %v2842, %v2842
      %v2853 = vsel %vm499, %v2847, 0
      %2855 = vmatprep.subr.bf16.mxu0 0
      %2856 = vmatpush1.bf16.msra.mxu0 0
      %2857 = vmatprep.subr.bf16.mxu0 0
      %2858 = vmatpush1.bf16.msra.mxu0 0
      %2859 = vmatprep.subr.bf16.mxu0 0
      %2860 = vmatpush1.bf16.msra.mxu0 0
      %2861 = vmatprep.subr.bf16.mxu0 0
      %2862 = vmatpush1.bf16.msra.mxu0 %v2853
      %2863 = vmatprep.subr.bf16.mxu0 0
      %2864 = vmatpush1.bf16.msra.mxu0 %v2846
      %2865 = vmatprep.subr.bf16.mxu0 0
      %2866 = vmatpush1.bf16.msra.mxu0 %v2845
      %2867 = vmatprep.subr.bf16.mxu0 0
      %2868 = vmatpush1.bf16.msra.mxu0 %v2844
      %2869 = vmatprep.subr.bf16.mxu0 0
      %2870 = vmatpush1.bf16.msra.mxu0 %v2843
      %2871 = vmatprep.subr.bf16.mxu0 0
      %2872 = vmatpush2.bf16.msra.mxu0 0
      %2873 = vmatprep.subr.bf16.mxu0 0
      %2874 = vmatpush2.bf16.msra.mxu0 0
      %2875 = vmatprep.subr.bf16.mxu0 0
      %2876 = vmatpush2.bf16.msra.mxu0 0
      %2877 = vmatprep.subr.bf16.mxu0 0
      %2878 = vmatpush2.bf16.msra.mxu0 0
      %2879 = vmatprep.subr.bf16.mxu0 0
      %2880 = vmatpush2.bf16.msra.mxu0 0
      %2881 = vmatprep.subr.bf16.mxu0 0
      %2882 = vmatpush2.bf16.msra.mxu0 0
      %2883 = vmatprep.subr.bf16.mxu0 0
      %2884 = vmatpush2.bf16.msra.mxu0 0
      %2885 = vmatprep.subr.bf16.mxu0 0
      %2886 = vmatpush2.bf16.msra.mxu0 0
      %2887 = vmatprep.mubr.bf16.mxu0 0
      %2888 = vmatmul.mubr.bf16.gmra.mxu0 %v488
      %v2889 = vpop.f32.mrf.mxu0
      %v2890 = vadd.f32 %v402, %v2889
      %v2891 = vpop.f32.mrf.mxu0
      %v2892 = vpop.f32.mrf.mxu0
      %v2893 = vadd.f32 %v407, %v2892
      %v2894 = vpop.f32.mrf.mxu0
      %2895 = vmatprep.mubr.bf16.mxu0 0
      %2896 = vmatmul.mubr.bf16.gmra.mxu0 %v491
      %v2897 = vpop.f32.mrf.mxu0
      %v2898 = vadd.f32 %v412, %v2897
      %v2899 = vpop.f32.mrf.mxu0
      %v2900 = vpop.f32.mrf.mxu0
      %v2901 = vadd.f32 %v417, %v2900
      %v2902 = vpop.f32.mrf.mxu0
      %2903 = vmatprep.mubr.bf16.mxu0 0
      %2904 = vmatmul.mubr.bf16.gmra.mxu0 %v494
      %v2905 = vpop.f32.mrf.mxu0
      %v2906 = vadd.f32 %v422, %v2905
      %v2907 = vpop.f32.mrf.mxu0
      %v2908 = vpop.f32.mrf.mxu0
      %v2909 = vadd.f32 %v427, %v2908
      %v2910 = vpop.f32.mrf.mxu0
      %2911 = vmatprep.mubr.bf16.mxu0 0
      %2912 = vmatmul.mubr.bf16.gmra.mxu0 %v497
      %v2913 = vpop.f32.mrf.mxu0
      %v2914 = vadd.f32 %v432, %v2913
      %v2915 = vpop.f32.mrf.mxu0
      %v2916 = vpop.f32.mrf.mxu0
      %v2917 = vadd.f32 %v437, %v2916
      %v2918 = vpop.f32.mrf.mxu0
      %2919 = vdwg.mxu0
      %vm2920 = vcmp.ge.f32.partialorder %v2890, 0.0
      %vm2921 = vcmp.ge.f32.partialorder %v2893, 0.0
      %vm2922 = vcmp.ge.f32.partialorder %v2898, 0.0
      %vm2923 = vcmp.ge.f32.partialorder %v2901, 0.0
      %vm2924 = vcmp.ge.f32.partialorder %v2906, 0.0
      %vm2925 = vcmp.ge.f32.partialorder %v2909, 0.0
      %vm2926 = vcmp.ge.f32.partialorder %v2914, 0.0
      %vm2927 = vcmp.ge.f32.partialorder %v2917, 0.0
      %v2928 = vmul.f32 %v2890, 0.1
      %v2929 = vmul.f32 %v2893, 0.1
      %v2930 = vmul.f32 %v2898, 0.1
      %v2931 = vmul.f32 %v2901, 0.1
      %v2932 = vmul.f32 %v2906, 0.1
      %v2933 = vmul.f32 %v2909, 0.1
      %v2934 = vmul.f32 %v2914, 0.1
      %v2935 = vmul.f32 %v2917, 0.1
      %v2936 = vsel %vm2920, %v2890, %v2928
      %v2937 = vsel %vm2921, %v2893, %v2929
      %v2938 = vsel %vm2922, %v2898, %v2930
      %v2939 = vsel %vm2923, %v2901, %v2931
      %v2940 = vsel %vm2924, %v2906, %v2932
      %v2941 = vsel %vm2925, %v2909, %v2933
      %v2942 = vsel %vm2926, %v2914, %v2934
      %v2943 = vsel %vm2927, %v2917, %v2935
      %v2944 = vmax.f32 %v2817, %v2936
      %v2945 = vmax.f32 %v2818, %v2937
      %v2946 = vmax.f32 %v2819, %v2938
      %v2947 = vmax.f32 %v2820, %v2939
      %v2948 = vmax.f32 %v2821, %v2940
      %v2949 = vmax.f32 %v2822, %v2941
      %v2950 = vmax.f32 %v2823, %v2942
      %v2951 = vmax.f32 %v2824, %v2943
      %2960 = vrot.lane.b32.xlu0 %v2944, 120
      %v2961 = vpop.permute.xlu0 %2960
      %2962 = vrot.lane.b32.xlu0 %v2945, 120
      %v2963 = vpop.permute.xlu0 %2962
      %2964 = vrot.lane.b32.xlu0 %v2946, 120
      %v2965 = vpop.permute.xlu0 %2964
      %2966 = vrot.lane.b32.xlu0 %v2947, 120
      %v2967 = vpop.permute.xlu0 %2966
      %2968 = vrot.lane.b32.xlu0 %v2948, 120
      %v2969 = vpop.permute.xlu0 %2968
      %2970 = vrot.lane.b32.xlu0 %v2949, 120
      %v2971 = vpop.permute.xlu0 %2970
      %2972 = vrot.lane.b32.xlu0 %v2950, 120
      %v2973 = vpop.permute.xlu0 %2972
      %2974 = vrot.lane.b32.xlu0 %v2951, 120
      %v2975 = vpop.permute.xlu0 %2974
      %v2984 = vmax.f32 %v2944, %v2961
      %v2985 = vmax.f32 %v2945, %v2963
      %v2986 = vmax.f32 %v2946, %v2965
      %v2987 = vmax.f32 %v2947, %v2967
      %v2988 = vmax.f32 %v2948, %v2969
      %v2989 = vmax.f32 %v2949, %v2971
      %v2990 = vmax.f32 %v2950, %v2973
      %v2991 = vmax.f32 %v2951, %v2975
      %v2992 = vpack.c.bf16 %v2985, %v2984
      %v2993 = vpack.c.bf16 %v2987, %v2986
      %v2994 = vpack.c.bf16 %v2989, %v2988
      %v2995 = vpack.c.bf16 %v2991, %v2990
      %3000 = vrot.lane.b32.xlu0 %v1078, 8
      %v3001 = vpop.permute.xlu0 %3000
      %3002 = vrot.lane.b32.xlu0 %v1079, 8
      %v3003 = vpop.permute.xlu0 %3002
      %3004 = vrot.lane.b32.xlu0 %v1080, 8
      %v3005 = vpop.permute.xlu0 %3004
      %3006 = vrot.lane.b32.xlu0 %v1081, 8
      %v3007 = vpop.permute.xlu0 %3006
      %3012 = vrot.lane.b32.xlu0 %v1397, 16
      %v3013 = vpop.permute.xlu0 %3012
      %3014 = vrot.lane.b32.xlu0 %v1398, 16
      %v3015 = vpop.permute.xlu0 %3014
      %3016 = vrot.lane.b32.xlu0 %v1399, 16
      %v3017 = vpop.permute.xlu0 %3016
      %3018 = vrot.lane.b32.xlu0 %v1400, 16
      %v3019 = vpop.permute.xlu0 %3018
      %3024 = vrot.lane.b32.xlu0 %v1716, 24
      %v3025 = vpop.permute.xlu0 %3024
      %3026 = vrot.lane.b32.xlu0 %v1717, 24
      %v3027 = vpop.permute.xlu0 %3026
      %3028 = vrot.lane.b32.xlu0 %v1718, 24
      %v3029 = vpop.permute.xlu0 %3028
      %3030 = vrot.lane.b32.xlu0 %v1719, 24
      %v3031 = vpop.permute.xlu0 %3030
      %3036 = vrot.lane.b32.xlu0 %v2035, 32
      %v3037 = vpop.permute.xlu0 %3036
      %3038 = vrot.lane.b32.xlu0 %v2036, 32
      %v3039 = vpop.permute.xlu0 %3038
      %3040 = vrot.lane.b32.xlu0 %v2037, 32
      %v3041 = vpop.permute.xlu0 %3040
      %3042 = vrot.lane.b32.xlu0 %v2038, 32
      %v3043 = vpop.permute.xlu0 %3042
      %3048 = vrot.lane.b32.xlu0 %v2354, 40
      %v3049 = vpop.permute.xlu0 %3048
      %3050 = vrot.lane.b32.xlu0 %v2355, 40
      %v3051 = vpop.permute.xlu0 %3050
      %3052 = vrot.lane.b32.xlu0 %v2356, 40
      %v3053 = vpop.permute.xlu0 %3052
      %3054 = vrot.lane.b32.xlu0 %v2357, 40
      %v3055 = vpop.permute.xlu0 %3054
      %3060 = vrot.lane.b32.xlu0 %v2673, 48
      %v3061 = vpop.permute.xlu0 %3060
      %3062 = vrot.lane.b32.xlu0 %v2674, 48
      %v3063 = vpop.permute.xlu0 %3062
      %3064 = vrot.lane.b32.xlu0 %v2675, 48
      %v3065 = vpop.permute.xlu0 %3064
      %3066 = vrot.lane.b32.xlu0 %v2676, 48
      %v3067 = vpop.permute.xlu0 %3066
      %3072 = vrot.lane.b32.xlu0 %v2992, 56
      %v3073 = vpop.permute.xlu0 %3072
      %3074 = vrot.lane.b32.xlu0 %v2993, 56
      %v3075 = vpop.permute.xlu0 %3074
      %3076 = vrot.lane.b32.xlu0 %v2994, 56
      %v3077 = vpop.permute.xlu0 %3076
      %3078 = vrot.lane.b32.xlu0 %v2995, 56
      %v3079 = vpop.permute.xlu0 %3078
      %vm3080 = vcmask 64512
      %v3083 = vsel %vm3080, %v759, %v3001
      %v3086 = vsel %vm3080, %v760, %v3003
      %v3089 = vsel %vm3080, %v761, %v3005
      %v3092 = vsel %vm3080, %v762, %v3007
      %vm3093 = vcmask 130048
      %v3095 = vsel %vm3093, %v3083, %v3013
      %v3097 = vsel %vm3093, %v3086, %v3015
      %v3099 = vsel %vm3093, %v3089, %v3017
      %v3101 = vsel %vm3093, %v3092, %v3019
      %vm3102 = vcmask 195584
      %v3104 = vsel %vm3102, %v3095, %v3025
      %v3106 = vsel %vm3102, %v3097, %v3027
      %v3108 = vsel %vm3102, %v3099, %v3029
      %v3110 = vsel %vm3102, %v3101, %v3031
      %vm3111 = vcmask 261120
      %v3113 = vsel %vm3111, %v3104, %v3037
      %v3115 = vsel %vm3111, %v3106, %v3039
      %v3117 = vsel %vm3111, %v3108, %v3041
      %v3119 = vsel %vm3111, %v3110, %v3043
      %vm3120 = vcmask 326656
      %v3122 = vsel %vm3120, %v3113, %v3049
      %v3124 = vsel %vm3120, %v3115, %v3051
      %v3126 = vsel %vm3120, %v3117, %v3053
      %v3128 = vsel %vm3120, %v3119, %v3055
      %vm3129 = vcmask 392192
      %v3131 = vsel %vm3129, %v3122, %v3061
      %v3133 = vsel %vm3129, %v3124, %v3063
      %v3135 = vsel %vm3129, %v3126, %v3065
      %v3137 = vsel %vm3129, %v3128, %v3067
      %vm3138 = vcmask 457728
      %v3140 = vsel %vm3138, %v3131, %v3073
      %v3143 = vsel %vm3138, %v3133, %v3075
      %v3146 = vsel %vm3138, %v3135, %v3077
      %v3149 = vsel %vm3138, %v3137, %v3079
      %v3151 = vld [vmem:[%s3] sm:$0xf]
      %v3152 = vld [vmem:[%s3 + $0x4] sm:$0xf]
      %v3153 = vld [vmem:[%s3 + $0x8] sm:$0xf]
      %v3154 = vld [vmem:[%s3 + $0xc] sm:$0xf]
      %v3155 = vld [vmem:[%s3 + $0x10] sm:$0xf]
      %v3156 = vld [vmem:[%s3 + $0x14] sm:$0xf]
      %v3157 = vld [vmem:[%s3 + $0x18] sm:$0xf]
      %v3158 = vld [vmem:[%s3 + $0x1c] sm:$0xf]
      %v3159 = vld [vmem:[%s3 + $0x20] sm:$0xf]
      %v3160 = vld [vmem:[%s3 + $0x24] sm:$0xf]
      %v3161 = vld [vmem:[%s3 + $0x28] sm:$0xf]
      %v3162 = vld [vmem:[%s3 + $0x2c] sm:$0xf]
      %v3163 = vld [vmem:[%s3 + $0x30] sm:$0xf]
      %v3164 = vld [vmem:[%s3 + $0x34] sm:$0xf]
      %v3165 = vld [vmem:[%s3 + $0x38] sm:$0xf]
      %v3166 = vld [vmem:[%s3 + $0x3c] sm:$0xf]
      %v3167 = vld [vmem:[%s4] sm:$0xff]
      %v3168 = vld [vmem:[%s4 + $0x8] sm:$0xff]
      %v3169 = vld [vmem:[%s4 + $0x10] sm:$0xff]
      %v3170 = vld [vmem:[%s4 + $0x18] sm:$0xff]
      %v3171 = vld [vmem:[%s4 + $0x20] sm:$0xff]
      %v3172 = vld [vmem:[%s4 + $0x28] sm:$0xff]
      %v3173 = vld [vmem:[%s4 + $0x30] sm:$0xff]
      %v3174 = vld [vmem:[%s4 + $0x38] sm:$0xff]
      %v3175 = vld [vmem:[%s4 + $0x40] sm:$0xff]
      %v3176 = vld [vmem:[%s4 + $0x48] sm:$0xff]
      %v3177 = vld [vmem:[%s4 + $0x50] sm:$0xff]
      %v3178 = vld [vmem:[%s4 + $0x58] sm:$0xff]
      %v3179 = vld [vmem:[%s4 + $0x60] sm:$0xff]
      %v3180 = vld [vmem:[%s4 + $0x68] sm:$0xff]
      %v3181 = vld [vmem:[%s4 + $0x70] sm:$0xff]
      %v3182 = vld [vmem:[%s4 + $0x78] sm:$0xff]
      %3184 = vset.pattern.permute.xlu0 0
      %3185 = vperm.xlu0 %3184, %v3167
      %v3186 = vpop.permute.xlu0 %3185
      %3189 = vset.pattern.permute.xlu0 0
      %3190 = vperm.xlu0 %3189, %v3168
      %v3191 = vpop.permute.xlu0 %3190
      %3194 = vset.pattern.permute.xlu0 0
      %3195 = vperm.xlu0 %3194, %v3169
      %v3196 = vpop.permute.xlu0 %3195
      %3199 = vset.pattern.permute.xlu0 0
      %3200 = vperm.xlu0 %3199, %v3170
      %v3201 = vpop.permute.xlu0 %3200
      %3204 = vset.pattern.permute.xlu0 0
      %3205 = vperm.xlu0 %3204, %v3171
      %v3206 = vpop.permute.xlu0 %3205
      %3209 = vset.pattern.permute.xlu0 0
      %3210 = vperm.xlu0 %3209, %v3172
      %v3211 = vpop.permute.xlu0 %3210
      %3214 = vset.pattern.permute.xlu0 0
      %3215 = vperm.xlu0 %3214, %v3173
      %v3216 = vpop.permute.xlu0 %3215
      %3219 = vset.pattern.permute.xlu0 0
      %3220 = vperm.xlu0 %3219, %v3174
      %v3221 = vpop.permute.xlu0 %3220
      %3224 = vset.pattern.permute.xlu0 0
      %3225 = vperm.xlu0 %3224, %v3175
      %v3226 = vpop.permute.xlu0 %3225
      %3229 = vset.pattern.permute.xlu0 0
      %3230 = vperm.xlu0 %3229, %v3176
      %v3231 = vpop.permute.xlu0 %3230
      %3234 = vset.pattern.permute.xlu0 0
      %3235 = vperm.xlu0 %3234, %v3177
      %v3236 = vpop.permute.xlu0 %3235
      %3239 = vset.pattern.permute.xlu0 0
      %3240 = vperm.xlu0 %3239, %v3178
      %v3241 = vpop.permute.xlu0 %3240
      %3244 = vset.pattern.permute.xlu0 0
      %3245 = vperm.xlu0 %3244, %v3179
      %v3246 = vpop.permute.xlu0 %3245
      %3249 = vset.pattern.permute.xlu0 0
      %3250 = vperm.xlu0 %3249, %v3180
      %v3251 = vpop.permute.xlu0 %3250
      %3254 = vset.pattern.permute.xlu0 0
      %3255 = vperm.xlu0 %3254, %v3181
      %v3256 = vpop.permute.xlu0 %3255
      %3259 = vset.pattern.permute.xlu0 0
      %3260 = vperm.xlu0 %3259, %v3182
      %v3261 = vpop.permute.xlu0 %3260
      %v3279 = vunpack.c.l.b16 %v3151
      %v3280 = vunpack.c.l.b16 %v3152
      %v3281 = vunpack.c.l.b16 %v3153
      %v3282 = vunpack.c.l.b16 %v3154
      %v3283 = vunpack.c.l.b16 %v3155
      %v3284 = vunpack.c.l.b16 %v3156
      %v3285 = vunpack.c.l.b16 %v3157
      %v3286 = vunpack.c.l.b16 %v3158
      %v3287 = vunpack.c.l.b16 %v3159
      %v3288 = vunpack.c.l.b16 %v3160
      %v3289 = vunpack.c.l.b16 %v3161
      %v3290 = vunpack.c.l.b16 %v3162
      %v3291 = vunpack.c.l.b16 %v3163
      %v3292 = vunpack.c.l.b16 %v3164
      %v3293 = vunpack.c.l.b16 %v3165
      %v3294 = vunpack.c.l.b16 %v3166
      %v3295 = vpack.c.b16 %v3280, %v3279
      %v3296 = vpack.c.b16 %v3282, %v3281
      %v3297 = vpack.c.b16 %v3284, %v3283
      %v3298 = vpack.c.b16 %v3286, %v3285
      %v3299 = vpack.c.b16 %v3288, %v3287
      %v3300 = vpack.c.b16 %v3290, %v3289
      %v3301 = vpack.c.b16 %v3292, %v3291
      %v3302 = vpack.c.b16 %v3294, %v3293
      %vm3303 = vcmask 523264
      %v3305 = vsel %vm3303, %v3295, 0
      %v3308 = vsel %vm3303, %v3296, 0
      %v3311 = vsel %vm3303, %v3297, 0
      %v3314 = vsel %vm3303, %v3298, 0
      %v3317 = vsel %vm3303, %v3299, 0
      %v3320 = vsel %vm3303, %v3300, 0
      %v3323 = vsel %vm3303, %v3301, 0
      %v3326 = vsel %vm3303, %v3302, 0
      %3328 = vmatprep.subr.bf16.mxu0 0
      %3329 = vmatpush1.bf16.msra.mxu0 0
      %3330 = vmatprep.subr.bf16.mxu0 0
      %3331 = vmatpush1.bf16.msra.mxu0 0
      %3332 = vmatprep.subr.bf16.mxu0 0
      %3333 = vmatpush1.bf16.msra.mxu0 0
      %3334 = vmatprep.subr.bf16.mxu0 0
      %3335 = vmatpush1.bf16.msra.mxu0 0
      %3336 = vmatprep.subr.bf16.mxu0 0
      %3337 = vmatpush1.bf16.msra.mxu0 %v3149
      %3338 = vmatprep.subr.bf16.mxu0 0
      %3339 = vmatpush1.bf16.msra.mxu0 %v3146
      %3340 = vmatprep.subr.bf16.mxu0 0
      %3341 = vmatpush1.bf16.msra.mxu0 %v3143
      %3342 = vmatprep.subr.bf16.mxu0 0
      %3343 = vmatpush1.bf16.msra.mxu0 %v3140
      %3344 = vmatprep.subr.bf16.mxu0 0
      %3345 = vmatpush2.bf16.msra.mxu0 0
      %3346 = vmatprep.subr.bf16.mxu0 0
      %3347 = vmatpush2.bf16.msra.mxu0 0
      %3348 = vmatprep.subr.bf16.mxu0 0
      %3349 = vmatpush2.bf16.msra.mxu0 0
      %3350 = vmatprep.subr.bf16.mxu0 0
      %3351 = vmatpush2.bf16.msra.mxu0 0
      %3352 = vmatprep.subr.bf16.mxu0 0
      %3353 = vmatpush2.bf16.msra.mxu0 0
      %3354 = vmatprep.subr.bf16.mxu0 0
      %3355 = vmatpush2.bf16.msra.mxu0 0
      %3356 = vmatprep.subr.bf16.mxu0 0
      %3357 = vmatpush2.bf16.msra.mxu0 0
      %3358 = vmatprep.subr.bf16.mxu0 0
      %3359 = vmatpush2.bf16.msra.mxu0 0
      %3360 = vmatprep.mubr.bf16.mxu0 0
      %3361 = vmatmul.mubr.bf16.gmra.mxu0 %v3305
      %v3362 = vpop.f32.mrf.mxu0
      %v3363 = vadd.f32 %v3186, %v3362
      %v3364 = vpop.f32.mrf.mxu0
      %v3365 = vpop.f32.mrf.mxu0
      %v3366 = vadd.f32 %v3191, %v3365
      %v3367 = vpop.f32.mrf.mxu0
      %3368 = vmatprep.mubr.bf16.mxu0 0
      %3369 = vmatmul.mubr.bf16.gmra.mxu0 %v3308
      %v3370 = vpop.f32.mrf.mxu0
      %v3371 = vadd.f32 %v3196, %v3370
      %v3372 = vpop.f32.mrf.mxu0
      %v3373 = vpop.f32.mrf.mxu0
      %v3374 = vadd.f32 %v3201, %v3373
      %v3375 = vpop.f32.mrf.mxu0
      %3376 = vmatprep.mubr.bf16.mxu0 0
      %3377 = vmatmul.mubr.bf16.gmra.mxu0 %v3311
      %v3378 = vpop.f32.mrf.mxu0
      %v3379 = vadd.f32 %v3206, %v3378
      %v3380 = vpop.f32.mrf.mxu0
      %v3381 = vpop.f32.mrf.mxu0
      %v3382 = vadd.f32 %v3211, %v3381
      %v3383 = vpop.f32.mrf.mxu0
      %3384 = vmatprep.mubr.bf16.mxu0 0
      %3385 = vmatmul.mubr.bf16.gmra.mxu0 %v3314
      %v3386 = vpop.f32.mrf.mxu0
      %v3387 = vadd.f32 %v3216, %v3386
      %v3388 = vpop.f32.mrf.mxu0
      %v3389 = vpop.f32.mrf.mxu0
      %v3390 = vadd.f32 %v3221, %v3389
      %v3391 = vpop.f32.mrf.mxu0
      %3392 = vmatprep.mubr.bf16.mxu0 0
      %3393 = vmatmul.mubr.bf16.gmra.mxu0 %v3317
      %v3394 = vpop.f32.mrf.mxu0
      %v3395 = vadd.f32 %v3226, %v3394
      %v3396 = vpop.f32.mrf.mxu0
      %v3397 = vpop.f32.mrf.mxu0
      %v3398 = vadd.f32 %v3231, %v3397
      %v3399 = vpop.f32.mrf.mxu0
      %3400 = vmatprep.mubr.bf16.mxu0 0
      %3401 = vmatmul.mubr.bf16.gmra.mxu0 %v3320
      %v3402 = vpop.f32.mrf.mxu0
      %v3403 = vadd.f32 %v3236, %v3402
      %v3404 = vpop.f32.mrf.mxu0
      %v3405 = vpop.f32.mrf.mxu0
      %v3406 = vadd.f32 %v3241, %v3405
      %v3407 = vpop.f32.mrf.mxu0
      %3408 = vmatprep.mubr.bf16.mxu0 0
      %3409 = vmatmul.mubr.bf16.gmra.mxu0 %v3323
      %v3410 = vpop.f32.mrf.mxu0
      %v3411 = vadd.f32 %v3246, %v3410
      %v3412 = vpop.f32.mrf.mxu0
      %v3413 = vpop.f32.mrf.mxu0
      %v3414 = vadd.f32 %v3251, %v3413
      %v3415 = vpop.f32.mrf.mxu0
      %3416 = vmatprep.mubr.bf16.mxu0 0
      %3417 = vmatmul.mubr.bf16.gmra.mxu0 %v3326
      %v3418 = vpop.f32.mrf.mxu0
      %v3419 = vadd.f32 %v3256, %v3418
      %v3420 = vpop.f32.mrf.mxu0
      %v3421 = vpop.f32.mrf.mxu0
      %v3422 = vadd.f32 %v3261, %v3421
      %v3423 = vpop.f32.mrf.mxu0
      %3424 = vdwg.mxu0
      %vm3425 = vcmp.ge.f32.partialorder %v3363, 0.0
      %vm3426 = vcmp.ge.f32.partialorder %v3366, 0.0
      %vm3427 = vcmp.ge.f32.partialorder %v3371, 0.0
      %vm3428 = vcmp.ge.f32.partialorder %v3374, 0.0
      %vm3429 = vcmp.ge.f32.partialorder %v3379, 0.0
      %vm3430 = vcmp.ge.f32.partialorder %v3382, 0.0
      %vm3431 = vcmp.ge.f32.partialorder %v3387, 0.0
      %vm3432 = vcmp.ge.f32.partialorder %v3390, 0.0
      %vm3433 = vcmp.ge.f32.partialorder %v3395, 0.0
      %vm3434 = vcmp.ge.f32.partialorder %v3398, 0.0
      %vm3435 = vcmp.ge.f32.partialorder %v3403, 0.0
      %vm3436 = vcmp.ge.f32.partialorder %v3406, 0.0
      %vm3437 = vcmp.ge.f32.partialorder %v3411, 0.0
      %vm3438 = vcmp.ge.f32.partialorder %v3414, 0.0
      %vm3439 = vcmp.ge.f32.partialorder %v3419, 0.0
      %vm3440 = vcmp.ge.f32.partialorder %v3422, 0.0
      %v3441 = vmul.f32 %v3363, 0.1
      %v3442 = vmul.f32 %v3366, 0.1
      %v3443 = vmul.f32 %v3371, 0.1
      %v3444 = vmul.f32 %v3374, 0.1
      %v3445 = vmul.f32 %v3379, 0.1
      %v3446 = vmul.f32 %v3382, 0.1
      %v3447 = vmul.f32 %v3387, 0.1
      %v3448 = vmul.f32 %v3390, 0.1
      %v3449 = vmul.f32 %v3395, 0.1
      %v3450 = vmul.f32 %v3398, 0.1
      %v3451 = vmul.f32 %v3403, 0.1
      %v3452 = vmul.f32 %v3406, 0.1
      %v3453 = vmul.f32 %v3411, 0.1
      %v3454 = vmul.f32 %v3414, 0.1
      %v3455 = vmul.f32 %v3419, 0.1
      %v3456 = vmul.f32 %v3422, 0.1
      %v3457 = vsel %vm3425, %v3363, %v3441
      %v3458 = vsel %vm3426, %v3366, %v3442
      %v3459 = vsel %vm3427, %v3371, %v3443
      %v3460 = vsel %vm3428, %v3374, %v3444
      %v3461 = vsel %vm3429, %v3379, %v3445
      %v3462 = vsel %vm3430, %v3382, %v3446
      %v3463 = vsel %vm3431, %v3387, %v3447
      %v3464 = vsel %vm3432, %v3390, %v3448
      %v3465 = vsel %vm3433, %v3395, %v3449
      %v3466 = vsel %vm3434, %v3398, %v3450
      %v3467 = vsel %vm3435, %v3403, %v3451
      %v3468 = vsel %vm3436, %v3406, %v3452
      %v3469 = vsel %vm3437, %v3411, %v3453
      %v3470 = vsel %vm3438, %v3414, %v3454
      %v3471 = vsel %vm3439, %v3419, %v3455
      %v3472 = vsel %vm3440, %v3422, %v3456
      %v3473 = vpack.c.bf16 %v3458, %v3457
      %v3474 = vpack.c.bf16 %v3460, %v3459
      %v3475 = vpack.c.bf16 %v3462, %v3461
      %v3476 = vpack.c.bf16 %v3464, %v3463
      %v3477 = vpack.c.bf16 %v3466, %v3465
      %v3478 = vpack.c.bf16 %v3468, %v3467
      %v3479 = vpack.c.bf16 %v3470, %v3469
      %v3480 = vpack.c.bf16 %v3472, %v3471
      %v3481 = vld [vmem:[%s5] sm:$0xf]
      %v3482 = vld [vmem:[%s5 + $0x4] sm:$0xf]
      %v3483 = vld [vmem:[%s5 + $0x8] sm:$0xf]
      %v3484 = vld [vmem:[%s5 + $0xc] sm:$0xf]
      %v3485 = vld [vmem:[%s5 + $0x10] sm:$0xf]
      %v3486 = vld [vmem:[%s5 + $0x14] sm:$0xf]
      %v3487 = vld [vmem:[%s5 + $0x18] sm:$0xf]
      %v3488 = vld [vmem:[%s5 + $0x1c] sm:$0xf]
      %v3489 = vld [vmem:[%s5 + $0x20] sm:$0xf]
      %v3490 = vld [vmem:[%s5 + $0x24] sm:$0xf]
      %v3491 = vld [vmem:[%s5 + $0x28] sm:$0xf]
      %v3492 = vld [vmem:[%s5 + $0x2c] sm:$0xf]
      %v3493 = vld [vmem:[%s5 + $0x30] sm:$0xf]
      %v3494 = vld [vmem:[%s5 + $0x34] sm:$0xf]
      %v3495 = vld [vmem:[%s5 + $0x38] sm:$0xf]
      %v3496 = vld [vmem:[%s5 + $0x3c] sm:$0xf]
      %v3497 = vld [vmem:[%s5 + $0x40] sm:$0xf]
      %v3498 = vld [vmem:[%s5 + $0x44] sm:$0xf]
      %v3499 = vld [vmem:[%s5 + $0x48] sm:$0xf]
      %v3500 = vld [vmem:[%s5 + $0x4c] sm:$0xf]
      %v3501 = vld [vmem:[%s5 + $0x50] sm:$0xf]
      %v3502 = vld [vmem:[%s5 + $0x54] sm:$0xf]
      %v3503 = vld [vmem:[%s5 + $0x58] sm:$0xf]
      %v3504 = vld [vmem:[%s5 + $0x5c] sm:$0xf]
      %v3505 = vld [vmem:[%s5 + $0x60] sm:$0xf]
      %v3506 = vld [vmem:[%s5 + $0x64] sm:$0xf]
      %v3507 = vld [vmem:[%s5 + $0x68] sm:$0xf]
      %v3508 = vld [vmem:[%s5 + $0x6c] sm:$0xf]
      %v3509 = vld [vmem:[%s5 + $0x70] sm:$0xf]
      %v3510 = vld [vmem:[%s5 + $0x74] sm:$0xf]
      %v3511 = vld [vmem:[%s5 + $0x78] sm:$0xf]
      %v3512 = vld [vmem:[%s5 + $0x7c] sm:$0xf]
      %v3513 = vld [vmem:[%s6] sm:$0xff]
      %v3514 = vld [vmem:[%s6 + $0x8] sm:$0xff]
      %v3515 = vld [vmem:[%s6 + $0x10] sm:$0xff]
      %v3516 = vld [vmem:[%s6 + $0x18] sm:$0xff]
      %v3517 = vld [vmem:[%s6 + $0x20] sm:$0xff]
      %v3518 = vld [vmem:[%s6 + $0x28] sm:$0xff]
      %v3519 = vld [vmem:[%s6 + $0x30] sm:$0xff]
      %v3520 = vld [vmem:[%s6 + $0x38] sm:$0xff]
      %v3521 = vld [vmem:[%s6 + $0x40] sm:$0xff]
      %v3522 = vld [vmem:[%s6 + $0x48] sm:$0xff]
      %v3523 = vld [vmem:[%s6 + $0x50] sm:$0xff]
      %v3524 = vld [vmem:[%s6 + $0x58] sm:$0xff]
      %v3525 = vld [vmem:[%s6 + $0x60] sm:$0xff]
      %v3526 = vld [vmem:[%s6 + $0x68] sm:$0xff]
      %v3527 = vld [vmem:[%s6 + $0x70] sm:$0xff]
      %v3528 = vld [vmem:[%s6 + $0x78] sm:$0xff]
      %v3529 = vld [vmem:[%s6 + $0x80] sm:$0xff]
      %v3530 = vld [vmem:[%s6 + $0x88] sm:$0xff]
      %v3531 = vld [vmem:[%s6 + $0x90] sm:$0xff]
      %v3532 = vld [vmem:[%s6 + $0x98] sm:$0xff]
      %v3533 = vld [vmem:[%s6 + $0xa0] sm:$0xff]
      %v3534 = vld [vmem:[%s6 + $0xa8] sm:$0xff]
      %v3535 = vld [vmem:[%s6 + $0xb0] sm:$0xff]
      %v3536 = vld [vmem:[%s6 + $0xb8] sm:$0xff]
      %v3537 = vld [vmem:[%s6 + $0xc0] sm:$0xff]
      %v3538 = vld [vmem:[%s6 + $0xc8] sm:$0xff]
      %v3539 = vld [vmem:[%s6 + $0xd0] sm:$0xff]
      %v3540 = vld [vmem:[%s6 + $0xd8] sm:$0xff]
      %v3541 = vld [vmem:[%s6 + $0xe0] sm:$0xff]
      %v3542 = vld [vmem:[%s6 + $0xe8] sm:$0xff]
      %v3543 = vld [vmem:[%s6 + $0xf0] sm:$0xff]
      %v3544 = vld [vmem:[%s6 + $0xf8] sm:$0xff]
      %3546 = vset.pattern.permute.xlu0 0
      %3547 = vperm.xlu0 %3546, %v3513
      %v3548 = vpop.permute.xlu0 %3547
      %3551 = vset.pattern.permute.xlu0 0
      %3552 = vperm.xlu0 %3551, %v3514
      %v3553 = vpop.permute.xlu0 %3552
      %3556 = vset.pattern.permute.xlu0 0
      %3557 = vperm.xlu0 %3556, %v3515
      %v3558 = vpop.permute.xlu0 %3557
      %3561 = vset.pattern.permute.xlu0 0
      %3562 = vperm.xlu0 %3561, %v3516
      %v3563 = vpop.permute.xlu0 %3562
      %3566 = vset.pattern.permute.xlu0 0
      %3567 = vperm.xlu0 %3566, %v3517
      %v3568 = vpop.permute.xlu0 %3567
      %3571 = vset.pattern.permute.xlu0 0
      %3572 = vperm.xlu0 %3571, %v3518
      %v3573 = vpop.permute.xlu0 %3572
      %3576 = vset.pattern.permute.xlu0 0
      %3577 = vperm.xlu0 %3576, %v3519
      %v3578 = vpop.permute.xlu0 %3577
      %3581 = vset.pattern.permute.xlu0 0
      %3582 = vperm.xlu0 %3581, %v3520
      %v3583 = vpop.permute.xlu0 %3582
      %3586 = vset.pattern.permute.xlu0 0
      %3587 = vperm.xlu0 %3586, %v3521
      %v3588 = vpop.permute.xlu0 %3587
      %3591 = vset.pattern.permute.xlu0 0
      %3592 = vperm.xlu0 %3591, %v3522
      %v3593 = vpop.permute.xlu0 %3592
      %3596 = vset.pattern.permute.xlu0 0
      %3597 = vperm.xlu0 %3596, %v3523
      %v3598 = vpop.permute.xlu0 %3597
      %3601 = vset.pattern.permute.xlu0 0
      %3602 = vperm.xlu0 %3601, %v3524
      %v3603 = vpop.permute.xlu0 %3602
      %3606 = vset.pattern.permute.xlu0 0
      %3607 = vperm.xlu0 %3606, %v3525
      %v3608 = vpop.permute.xlu0 %3607
      %3611 = vset.pattern.permute.xlu0 0
      %3612 = vperm.xlu0 %3611, %v3526
      %v3613 = vpop.permute.xlu0 %3612
      %3616 = vset.pattern.permute.xlu0 0
      %3617 = vperm.xlu0 %3616, %v3527
      %v3618 = vpop.permute.xlu0 %3617
      %3621 = vset.pattern.permute.xlu0 0
      %3622 = vperm.xlu0 %3621, %v3528
      %v3623 = vpop.permute.xlu0 %3622
      %3626 = vset.pattern.permute.xlu0 0
      %3627 = vperm.xlu0 %3626, %v3529
      %v3628 = vpop.permute.xlu0 %3627
      %3631 = vset.pattern.permute.xlu0 0
      %3632 = vperm.xlu0 %3631, %v3530
      %v3633 = vpop.permute.xlu0 %3632
      %3636 = vset.pattern.permute.xlu0 0
      %3637 = vperm.xlu0 %3636, %v3531
      %v3638 = vpop.permute.xlu0 %3637
      %3641 = vset.pattern.permute.xlu0 0
      %3642 = vperm.xlu0 %3641, %v3532
      %v3643 = vpop.permute.xlu0 %3642
      %3646 = vset.pattern.permute.xlu0 0
      %3647 = vperm.xlu0 %3646, %v3533
      %v3648 = vpop.permute.xlu0 %3647
      %3651 = vset.pattern.permute.xlu0 0
      %3652 = vperm.xlu0 %3651, %v3534
      %v3653 = vpop.permute.xlu0 %3652
      %3656 = vset.pattern.permute.xlu0 0
      %3657 = vperm.xlu0 %3656, %v3535
      %v3658 = vpop.permute.xlu0 %3657
      %3661 = vset.pattern.permute.xlu0 0
      %3662 = vperm.xlu0 %3661, %v3536
      %v3663 = vpop.permute.xlu0 %3662
      %3666 = vset.pattern.permute.xlu0 0
      %3667 = vperm.xlu0 %3666, %v3537
      %v3668 = vpop.permute.xlu0 %3667
      %3671 = vset.pattern.permute.xlu0 0
      %3672 = vperm.xlu0 %3671, %v3538
      %v3673 = vpop.permute.xlu0 %3672
      %3676 = vset.pattern.permute.xlu0 0
      %3677 = vperm.xlu0 %3676, %v3539
      %v3678 = vpop.permute.xlu0 %3677
      %3681 = vset.pattern.permute.xlu0 0
      %3682 = vperm.xlu0 %3681, %v3540
      %v3683 = vpop.permute.xlu0 %3682
      %3686 = vset.pattern.permute.xlu0 0
      %3687 = vperm.xlu0 %3686, %v3541
      %v3688 = vpop.permute.xlu0 %3687
      %3691 = vset.pattern.permute.xlu0 0
      %3692 = vperm.xlu0 %3691, %v3542
      %v3693 = vpop.permute.xlu0 %3692
      %3696 = vset.pattern.permute.xlu0 0
      %3697 = vperm.xlu0 %3696, %v3543
      %v3698 = vpop.permute.xlu0 %3697
      %3701 = vset.pattern.permute.xlu0 0
      %3702 = vperm.xlu0 %3701, %v3544
      %v3703 = vpop.permute.xlu0 %3702
      %v3737 = vunpack.c.l.b16 %v3481
      %v3738 = vunpack.c.l.b16 %v3482
      %v3739 = vunpack.c.l.b16 %v3483
      %v3740 = vunpack.c.l.b16 %v3484
      %v3741 = vunpack.c.l.b16 %v3485
      %v3742 = vunpack.c.l.b16 %v3486
      %v3743 = vunpack.c.l.b16 %v3487
      %v3744 = vunpack.c.l.b16 %v3488
      %v3745 = vunpack.c.l.b16 %v3489
      %v3746 = vunpack.c.l.b16 %v3490
      %v3747 = vunpack.c.l.b16 %v3491
      %v3748 = vunpack.c.l.b16 %v3492
      %v3749 = vunpack.c.l.b16 %v3493
      %v3750 = vunpack.c.l.b16 %v3494
      %v3751 = vunpack.c.l.b16 %v3495
      %v3752 = vunpack.c.l.b16 %v3496
      %v3753 = vunpack.c.l.b16 %v3497
      %v3754 = vunpack.c.l.b16 %v3498
      %v3755 = vunpack.c.l.b16 %v3499
      %v3756 = vunpack.c.l.b16 %v3500
      %v3757 = vunpack.c.l.b16 %v3501
      %v3758 = vunpack.c.l.b16 %v3502
      %v3759 = vunpack.c.l.b16 %v3503
      %v3760 = vunpack.c.l.b16 %v3504
      %v3761 = vunpack.c.l.b16 %v3505
      %v3762 = vunpack.c.l.b16 %v3506
      %v3763 = vunpack.c.l.b16 %v3507
      %v3764 = vunpack.c.l.b16 %v3508
      %v3765 = vunpack.c.l.b16 %v3509
      %v3766 = vunpack.c.l.b16 %v3510
      %v3767 = vunpack.c.l.b16 %v3511
      %v3768 = vunpack.c.l.b16 %v3512
      %v3769 = vpack.c.b16 %v3738, %v3737
      %v3770 = vpack.c.b16 %v3740, %v3739
      %v3771 = vpack.c.b16 %v3742, %v3741
      %v3772 = vpack.c.b16 %v3744, %v3743
      %v3773 = vpack.c.b16 %v3746, %v3745
      %v3774 = vpack.c.b16 %v3748, %v3747
      %v3775 = vpack.c.b16 %v3750, %v3749
      %v3776 = vpack.c.b16 %v3752, %v3751
      %v3777 = vpack.c.b16 %v3754, %v3753
      %v3778 = vpack.c.b16 %v3756, %v3755
      %v3779 = vpack.c.b16 %v3758, %v3757
      %v3780 = vpack.c.b16 %v3760, %v3759
      %v3781 = vpack.c.b16 %v3762, %v3761
      %v3782 = vpack.c.b16 %v3764, %v3763
      %v3783 = vpack.c.b16 %v3766, %v3765
      %v3784 = vpack.c.b16 %v3768, %v3767
      %3801 = vmatprep.subr.bf16.mxu0 0
      %3802 = vmatpush1.bf16.msra.mxu0 %v3480
      %3803 = vmatprep.subr.bf16.mxu0 0
      %3804 = vmatpush1.bf16.msra.mxu0 %v3479
      %3805 = vmatprep.subr.bf16.mxu0 0
      %3806 = vmatpush1.bf16.msra.mxu0 %v3478
      %3807 = vmatprep.subr.bf16.mxu0 0
      %3808 = vmatpush1.bf16.msra.mxu0 %v3477
      %3809 = vmatprep.subr.bf16.mxu0 0
      %3810 = vmatpush1.bf16.msra.mxu0 %v3476
      %3811 = vmatprep.subr.bf16.mxu0 0
      %3812 = vmatpush1.bf16.msra.mxu0 %v3475
      %3813 = vmatprep.subr.bf16.mxu0 0
      %3814 = vmatpush1.bf16.msra.mxu0 %v3474
      %3815 = vmatprep.subr.bf16.mxu0 0
      %3816 = vmatpush1.bf16.msra.mxu0 %v3473
      %3817 = vmatprep.subr.bf16.mxu0 0
      %3818 = vmatpush2.bf16.msra.mxu0 0
      %3819 = vmatprep.subr.bf16.mxu0 0
      %3820 = vmatpush2.bf16.msra.mxu0 0
      %3821 = vmatprep.subr.bf16.mxu0 0
      %3822 = vmatpush2.bf16.msra.mxu0 0
      %3823 = vmatprep.subr.bf16.mxu0 0
      %3824 = vmatpush2.bf16.msra.mxu0 0
      %3825 = vmatprep.subr.bf16.mxu0 0
      %3826 = vmatpush2.bf16.msra.mxu0 0
      %3827 = vmatprep.subr.bf16.mxu0 0
      %3828 = vmatpush2.bf16.msra.mxu0 0
      %3829 = vmatprep.subr.bf16.mxu0 0
      %3830 = vmatpush2.bf16.msra.mxu0 0
      %3831 = vmatprep.subr.bf16.mxu0 0
      %3832 = vmatpush2.bf16.msra.mxu0 0
      %3833 = vmatprep.mubr.bf16.mxu0 0
      %3834 = vmatmul.mubr.bf16.gmra.mxu0 %v3769
      %v3835 = vpop.f32.mrf.mxu0
      %v3836 = vadd.f32 %v3548, %v3835
      %v3837 = vpop.f32.mrf.mxu0
      %v3838 = vpop.f32.mrf.mxu0
      %v3839 = vadd.f32 %v3553, %v3838
      %v3840 = vpop.f32.mrf.mxu0
      %3841 = vmatprep.mubr.bf16.mxu0 0
      %3842 = vmatmul.mubr.bf16.gmra.mxu0 %v3770
      %v3843 = vpop.f32.mrf.mxu0
      %v3844 = vadd.f32 %v3558, %v3843
      %v3845 = vpop.f32.mrf.mxu0
      %v3846 = vpop.f32.mrf.mxu0
      %v3847 = vadd.f32 %v3563, %v3846
      %v3848 = vpop.f32.mrf.mxu0
      %3849 = vmatprep.mubr.bf16.mxu0 0
      %3850 = vmatmul.mubr.bf16.gmra.mxu0 %v3771
      %v3851 = vpop.f32.mrf.mxu0
      %v3852 = vadd.f32 %v3568, %v3851
      %v3853 = vpop.f32.mrf.mxu0
      %v3854 = vpop.f32.mrf.mxu0
      %v3855 = vadd.f32 %v3573, %v3854
      %v3856 = vpop.f32.mrf.mxu0
      %3857 = vmatprep.mubr.bf16.mxu0 0
      %3858 = vmatmul.mubr.bf16.gmra.mxu0 %v3772
      %v3859 = vpop.f32.mrf.mxu0
      %v3860 = vadd.f32 %v3578, %v3859
      %v3861 = vpop.f32.mrf.mxu0
      %v3862 = vpop.f32.mrf.mxu0
      %v3863 = vadd.f32 %v3583, %v3862
      %v3864 = vpop.f32.mrf.mxu0
      %3865 = vmatprep.mubr.bf16.mxu0 0
      %3866 = vmatmul.mubr.bf16.gmra.mxu0 %v3773
      %v3867 = vpop.f32.mrf.mxu0
      %v3868 = vadd.f32 %v3588, %v3867
      %v3869 = vpop.f32.mrf.mxu0
      %v3870 = vpop.f32.mrf.mxu0
      %v3871 = vadd.f32 %v3593, %v3870
      %v3872 = vpop.f32.mrf.mxu0
      %3873 = vmatprep.mubr.bf16.mxu0 0
      %3874 = vmatmul.mubr.bf16.gmra.mxu0 %v3774
      %v3875 = vpop.f32.mrf.mxu0
      %v3876 = vadd.f32 %v3598, %v3875
      %v3877 = vpop.f32.mrf.mxu0
      %v3878 = vpop.f32.mrf.mxu0
      %v3879 = vadd.f32 %v3603, %v3878
      %v3880 = vpop.f32.mrf.mxu0
      %3881 = vmatprep.mubr.bf16.mxu0 0
      %3882 = vmatmul.mubr.bf16.gmra.mxu0 %v3775
      %v3883 = vpop.f32.mrf.mxu0
      %v3884 = vadd.f32 %v3608, %v3883
      %v3885 = vpop.f32.mrf.mxu0
      %v3886 = vpop.f32.mrf.mxu0
      %v3887 = vadd.f32 %v3613, %v3886
      %v3888 = vpop.f32.mrf.mxu0
      %3889 = vmatprep.mubr.bf16.mxu0 0
      %3890 = vmatmul.mubr.bf16.gmra.mxu0 %v3776
      %v3891 = vpop.f32.mrf.mxu0
      %v3892 = vadd.f32 %v3618, %v3891
      %v3893 = vpop.f32.mrf.mxu0
      %v3894 = vpop.f32.mrf.mxu0
      %v3895 = vadd.f32 %v3623, %v3894
      %v3896 = vpop.f32.mrf.mxu0
      %3897 = vmatprep.mubr.bf16.mxu0 0
      %3898 = vmatmul.mubr.bf16.gmra.mxu0 %v3777
      %v3899 = vpop.f32.mrf.mxu0
      %v3900 = vadd.f32 %v3628, %v3899
      %v3901 = vpop.f32.mrf.mxu0
      %v3902 = vpop.f32.mrf.mxu0
      %v3903 = vadd.f32 %v3633, %v3902
      %v3904 = vpop.f32.mrf.mxu0
      %3905 = vmatprep.mubr.bf16.mxu0 0
      %3906 = vmatmul.mubr.bf16.gmra.mxu0 %v3778
      %v3907 = vpop.f32.mrf.mxu0
      %v3908 = vadd.f32 %v3638, %v3907
      %v3909 = vpop.f32.mrf.mxu0
      %v3910 = vpop.f32.mrf.mxu0
      %v3911 = vadd.f32 %v3643, %v3910
      %v3912 = vpop.f32.mrf.mxu0
      %3913 = vmatprep.mubr.bf16.mxu0 0
      %3914 = vmatmul.mubr.bf16.gmra.mxu0 %v3779
      %v3915 = vpop.f32.mrf.mxu0
      %v3916 = vadd.f32 %v3648, %v3915
      %v3917 = vpop.f32.mrf.mxu0
      %v3918 = vpop.f32.mrf.mxu0
      %v3919 = vadd.f32 %v3653, %v3918
      %v3920 = vpop.f32.mrf.mxu0
      %3921 = vmatprep.mubr.bf16.mxu0 0
      %3922 = vmatmul.mubr.bf16.gmra.mxu0 %v3780
      %v3923 = vpop.f32.mrf.mxu0
      %v3924 = vadd.f32 %v3658, %v3923
      %v3925 = vpop.f32.mrf.mxu0
      %v3926 = vpop.f32.mrf.mxu0
      %v3927 = vadd.f32 %v3663, %v3926
      %v3928 = vpop.f32.mrf.mxu0
      %3929 = vmatprep.mubr.bf16.mxu0 0
      %3930 = vmatmul.mubr.bf16.gmra.mxu0 %v3781
      %v3931 = vpop.f32.mrf.mxu0
      %v3932 = vadd.f32 %v3668, %v3931
      %v3933 = vpop.f32.mrf.mxu0
      %v3934 = vpop.f32.mrf.mxu0
      %v3935 = vadd.f32 %v3673, %v3934
      %v3936 = vpop.f32.mrf.mxu0
      %3937 = vmatprep.mubr.bf16.mxu0 0
      %3938 = vmatmul.mubr.bf16.gmra.mxu0 %v3782
      %v3939 = vpop.f32.mrf.mxu0
      %v3940 = vadd.f32 %v3678, %v3939
      %v3941 = vpop.f32.mrf.mxu0
      %v3942 = vpop.f32.mrf.mxu0
      %v3943 = vadd.f32 %v3683, %v3942
      %v3944 = vpop.f32.mrf.mxu0
      %3945 = vmatprep.mubr.bf16.mxu0 0
      %3946 = vmatmul.mubr.bf16.gmra.mxu0 %v3783
      %v3947 = vpop.f32.mrf.mxu0
      %v3948 = vadd.f32 %v3688, %v3947
      %v3949 = vpop.f32.mrf.mxu0
      %v3950 = vpop.f32.mrf.mxu0
      %v3951 = vadd.f32 %v3693, %v3950
      %v3952 = vpop.f32.mrf.mxu0
      %3953 = vmatprep.mubr.bf16.mxu0 0
      %3954 = vmatmul.mubr.bf16.gmra.mxu0 %v3784
      %v3955 = vpop.f32.mrf.mxu0
      %v3956 = vadd.f32 %v3698, %v3955
      %v3957 = vpop.f32.mrf.mxu0
      %v3958 = vpop.f32.mrf.mxu0
      %v3959 = vadd.f32 %v3703, %v3958
      %v3960 = vpop.f32.mrf.mxu0
      %3961 = vdwg.mxu0
      %vm3962 = vcmp.ge.f32.partialorder %v3836, 0.0
      %vm3963 = vcmp.ge.f32.partialorder %v3839, 0.0
      %vm3964 = vcmp.ge.f32.partialorder %v3844, 0.0
      %vm3965 = vcmp.ge.f32.partialorder %v3847, 0.0
      %vm3966 = vcmp.ge.f32.partialorder %v3852, 0.0
      %vm3967 = vcmp.ge.f32.partialorder %v3855, 0.0
      %vm3968 = vcmp.ge.f32.partialorder %v3860, 0.0
      %vm3969 = vcmp.ge.f32.partialorder %v3863, 0.0
      %vm3970 = vcmp.ge.f32.partialorder %v3868, 0.0
      %vm3971 = vcmp.ge.f32.partialorder %v3871, 0.0
      %vm3972 = vcmp.ge.f32.partialorder %v3876, 0.0
      %vm3973 = vcmp.ge.f32.partialorder %v3879, 0.0
      %vm3974 = vcmp.ge.f32.partialorder %v3884, 0.0
      %vm3975 = vcmp.ge.f32.partialorder %v3887, 0.0
      %vm3976 = vcmp.ge.f32.partialorder %v3892, 0.0
      %vm3977 = vcmp.ge.f32.partialorder %v3895, 0.0
      %vm3978 = vcmp.ge.f32.partialorder %v3900, 0.0
      %vm3979 = vcmp.ge.f32.partialorder %v3903, 0.0
      %vm3980 = vcmp.ge.f32.partialorder %v3908, 0.0
      %vm3981 = vcmp.ge.f32.partialorder %v3911, 0.0
      %vm3982 = vcmp.ge.f32.partialorder %v3916, 0.0
      %vm3983 = vcmp.ge.f32.partialorder %v3919, 0.0
      %vm3984 = vcmp.ge.f32.partialorder %v3924, 0.0
      %vm3985 = vcmp.ge.f32.partialorder %v3927, 0.0
      %vm3986 = vcmp.ge.f32.partialorder %v3932, 0.0
      %vm3987 = vcmp.ge.f32.partialorder %v3935, 0.0
      %vm3988 = vcmp.ge.f32.partialorder %v3940, 0.0
      %vm3989 = vcmp.ge.f32.partialorder %v3943, 0.0
      %vm3990 = vcmp.ge.f32.partialorder %v3948, 0.0
      %vm3991 = vcmp.ge.f32.partialorder %v3951, 0.0
      %vm3992 = vcmp.ge.f32.partialorder %v3956, 0.0
      %vm3993 = vcmp.ge.f32.partialorder %v3959, 0.0
      %v3994 = vmul.f32 %v3836, 0.1
      %v3995 = vmul.f32 %v3839, 0.1
      %v3996 = vmul.f32 %v3844, 0.1
      %v3997 = vmul.f32 %v3847, 0.1
      %v3998 = vmul.f32 %v3852, 0.1
      %v3999 = vmul.f32 %v3855, 0.1
      %v4000 = vmul.f32 %v3860, 0.1
      %v4001 = vmul.f32 %v3863, 0.1
      %v4002 = vmul.f32 %v3868, 0.1
      %v4003 = vmul.f32 %v3871, 0.1
      %v4004 = vmul.f32 %v3876, 0.1
      %v4005 = vmul.f32 %v3879, 0.1
      %v4006 = vmul.f32 %v3884, 0.1
      %v4007 = vmul.f32 %v3887, 0.1
      %v4008 = vmul.f32 %v3892, 0.1
      %v4009 = vmul.f32 %v3895, 0.1
      %v4010 = vmul.f32 %v3900, 0.1
      %v4011 = vmul.f32 %v3903, 0.1
      %v4012 = vmul.f32 %v3908, 0.1
      %v4013 = vmul.f32 %v3911, 0.1
      %v4014 = vmul.f32 %v3916, 0.1
      %v4015 = vmul.f32 %v3919, 0.1
      %v4016 = vmul.f32 %v3924, 0.1
      %v4017 = vmul.f32 %v3927, 0.1
      %v4018 = vmul.f32 %v3932, 0.1
      %v4019 = vmul.f32 %v3935, 0.1
      %v4020 = vmul.f32 %v3940, 0.1
      %v4021 = vmul.f32 %v3943, 0.1
      %v4022 = vmul.f32 %v3948, 0.1
      %v4023 = vmul.f32 %v3951, 0.1
      %v4024 = vmul.f32 %v3956, 0.1
      %v4025 = vmul.f32 %v3959, 0.1
      %v4026 = vsel %vm3962, %v3836, %v3994
      %v4027 = vsel %vm3963, %v3839, %v3995
      %v4028 = vsel %vm3964, %v3844, %v3996
      %v4029 = vsel %vm3965, %v3847, %v3997
      %v4030 = vsel %vm3966, %v3852, %v3998
      %v4031 = vsel %vm3967, %v3855, %v3999
      %v4032 = vsel %vm3968, %v3860, %v4000
      %v4033 = vsel %vm3969, %v3863, %v4001
      %v4034 = vsel %vm3970, %v3868, %v4002
      %v4035 = vsel %vm3971, %v3871, %v4003
      %v4036 = vsel %vm3972, %v3876, %v4004
      %v4037 = vsel %vm3973, %v3879, %v4005
      %v4038 = vsel %vm3974, %v3884, %v4006
      %v4039 = vsel %vm3975, %v3887, %v4007
      %v4040 = vsel %vm3976, %v3892, %v4008
      %v4041 = vsel %vm3977, %v3895, %v4009
      %v4042 = vsel %vm3978, %v3900, %v4010
      %v4043 = vsel %vm3979, %v3903, %v4011
      %v4044 = vsel %vm3980, %v3908, %v4012
      %v4045 = vsel %vm3981, %v3911, %v4013
      %v4046 = vsel %vm3982, %v3916, %v4014
      %v4047 = vsel %vm3983, %v3919, %v4015
      %v4048 = vsel %vm3984, %v3924, %v4016
      %v4049 = vsel %vm3985, %v3927, %v4017
      %v4050 = vsel %vm3986, %v3932, %v4018
      %v4051 = vsel %vm3987, %v3935, %v4019
      %v4052 = vsel %vm3988, %v3940, %v4020
      %v4053 = vsel %vm3989, %v3943, %v4021
      %v4054 = vsel %vm3990, %v3948, %v4022
      %v4055 = vsel %vm3991, %v3951, %v4023
      %v4056 = vsel %vm3992, %v3956, %v4024
      %v4057 = vsel %vm3993, %v3959, %v4025
      %v4058 = vpack.c.bf16 %v4027, %v4026
      %v4059 = vpack.c.bf16 %v4029, %v4028
      %v4060 = vpack.c.bf16 %v4031, %v4030
      %v4061 = vpack.c.bf16 %v4033, %v4032
      %v4062 = vpack.c.bf16 %v4035, %v4034
      %v4063 = vpack.c.bf16 %v4037, %v4036
      %v4064 = vpack.c.bf16 %v4039, %v4038
      %v4065 = vpack.c.bf16 %v4041, %v4040
      %v4066 = vpack.c.bf16 %v4043, %v4042
      %v4067 = vpack.c.bf16 %v4045, %v4044
      %v4068 = vpack.c.bf16 %v4047, %v4046
      %v4069 = vpack.c.bf16 %v4049, %v4048
      %v4070 = vpack.c.bf16 %v4051, %v4050
      %v4071 = vpack.c.bf16 %v4053, %v4052
      %v4072 = vpack.c.bf16 %v4055, %v4054
      %v4073 = vpack.c.bf16 %v4057, %v4056
      %v4074 = vld [vmem:[%s7] sm:$0xff]
      %v4075 = vld [vmem:[%s7 + $0x8] sm:$0xff]
      %v4076 = vld [vmem:[%s7 + $0x10] sm:$0xff]
      %v4077 = vld [vmem:[%s7 + $0x18] sm:$0xff]
      %v4078 = vld [vmem:[%s7 + $0x20] sm:$0xff]
      %v4079 = vld [vmem:[%s7 + $0x28] sm:$0xff]
      %v4080 = vld [vmem:[%s7 + $0x30] sm:$0xff]
      %v4081 = vld [vmem:[%s7 + $0x38] sm:$0xff]
      %v4082 = vld [vmem:[%s7 + $0x40] sm:$0xff]
      %v4083 = vld [vmem:[%s7 + $0x48] sm:$0xff]
      %v4084 = vld [vmem:[%s7 + $0x50] sm:$0xff]
      %v4085 = vld [vmem:[%s7 + $0x58] sm:$0xff]
      %v4086 = vld [vmem:[%s7 + $0x60] sm:$0xff]
      %v4087 = vld [vmem:[%s7 + $0x68] sm:$0xff]
      %v4088 = vld [vmem:[%s7 + $0x70] sm:$0xff]
      %v4089 = vld [vmem:[%s7 + $0x78] sm:$0xff]
      %v4090 = vld [vmem:[%s7 + $0x80] sm:$0xff]
      %v4091 = vld [vmem:[%s7 + $0x88] sm:$0xff]
      %v4092 = vld [vmem:[%s7 + $0x90] sm:$0xff]
      %v4093 = vld [vmem:[%s7 + $0x98] sm:$0xff]
      %v4094 = vld [vmem:[%s7 + $0xa0] sm:$0xff]
      %v4095 = vld [vmem:[%s7 + $0xa8] sm:$0xff]
      %v4096 = vld [vmem:[%s7 + $0xb0] sm:$0xff]
      %v4097 = vld [vmem:[%s7 + $0xb8] sm:$0xff]
      %v4098 = vld [vmem:[%s7 + $0xc0] sm:$0xff]
      %v4099 = vld [vmem:[%s7 + $0xc8] sm:$0xff]
      %v4100 = vld [vmem:[%s7 + $0xd0] sm:$0xff]
      %v4101 = vld [vmem:[%s7 + $0xd8] sm:$0xff]
      %v4102 = vld [vmem:[%s7 + $0xe0] sm:$0xff]
      %v4103 = vld [vmem:[%s7 + $0xe8] sm:$0xff]
      %v4104 = vld [vmem:[%s7 + $0xf0] sm:$0xff]
      %v4105 = vld [vmem:[%s7 + $0xf8] sm:$0xff]
      %v4106 = vld [vmem:[%s7 + $0x100] sm:$0xff]
      %v4107 = vld [vmem:[%s7 + $0x108] sm:$0xff]
      %v4108 = vld [vmem:[%s7 + $0x110] sm:$0xff]
      %v4109 = vld [vmem:[%s7 + $0x118] sm:$0xff]
      %v4110 = vld [vmem:[%s7 + $0x120] sm:$0xff]
      %v4111 = vld [vmem:[%s7 + $0x128] sm:$0xff]
      %v4112 = vld [vmem:[%s7 + $0x130] sm:$0xff]
      %v4113 = vld [vmem:[%s7 + $0x138] sm:$0xff]
      %v4114 = vld [vmem:[%s7 + $0x140] sm:$0xff]
      %v4115 = vld [vmem:[%s7 + $0x148] sm:$0xff]
      %v4116 = vld [vmem:[%s7 + $0x150] sm:$0xff]
      %v4117 = vld [vmem:[%s7 + $0x158] sm:$0xff]
      %v4118 = vld [vmem:[%s7 + $0x160] sm:$0xff]
      %v4119 = vld [vmem:[%s7 + $0x168] sm:$0xff]
      %v4120 = vld [vmem:[%s7 + $0x170] sm:$0xff]
      %v4121 = vld [vmem:[%s7 + $0x178] sm:$0xff]
      %v4122 = vld [vmem:[%s7 + $0x180] sm:$0xff]
      %v4123 = vld [vmem:[%s7 + $0x188] sm:$0xff]
      %v4124 = vld [vmem:[%s7 + $0x190] sm:$0xff]
      %v4125 = vld [vmem:[%s7 + $0x198] sm:$0xff]
      %v4126 = vld [vmem:[%s7 + $0x1a0] sm:$0xff]
      %v4127 = vld [vmem:[%s7 + $0x1a8] sm:$0xff]
      %v4128 = vld [vmem:[%s7 + $0x1b0] sm:$0xff]
      %v4129 = vld [vmem:[%s7 + $0x1b8] sm:$0xff]
      %v4130 = vld [vmem:[%s7 + $0x1c0] sm:$0xff]
      %v4131 = vld [vmem:[%s7 + $0x1c8] sm:$0xff]
      %v4132 = vld [vmem:[%s7 + $0x1d0] sm:$0xff]
      %v4133 = vld [vmem:[%s7 + $0x1d8] sm:$0xff]
      %v4134 = vld [vmem:[%s7 + $0x1e0] sm:$0xff]
      %v4135 = vld [vmem:[%s7 + $0x1e8] sm:$0xff]
      %v4136 = vld [vmem:[%s7 + $0x1f0] sm:$0xff]
      %v4137 = vld [vmem:[%s7 + $0x1f8] sm:$0xff]
      %v4138 = vld [vmem:[%s8] sm:$0xff]
      %v4139 = vld [vmem:[%s8 + $0x8] sm:$0xff]
      %v4140 = vld [vmem:[%s8 + $0x10] sm:$0xff]
      %v4141 = vld [vmem:[%s8 + $0x18] sm:$0xff]
      %v4142 = vld [vmem:[%s8 + $0x20] sm:$0xff]
      %v4143 = vld [vmem:[%s8 + $0x28] sm:$0xff]
      %v4144 = vld [vmem:[%s8 + $0x30] sm:$0xff]
      %v4145 = vld [vmem:[%s8 + $0x38] sm:$0xff]
      %v4146 = vld [vmem:[%s8 + $0x40] sm:$0xff]
      %v4147 = vld [vmem:[%s8 + $0x48] sm:$0xff]
      %v4148 = vld [vmem:[%s8 + $0x50] sm:$0xff]
      %v4149 = vld [vmem:[%s8 + $0x58] sm:$0xff]
      %v4150 = vld [vmem:[%s8 + $0x60] sm:$0xff]
      %v4151 = vld [vmem:[%s8 + $0x68] sm:$0xff]
      %v4152 = vld [vmem:[%s8 + $0x70] sm:$0xff]
      %v4153 = vld [vmem:[%s8 + $0x78] sm:$0xff]
      %v4154 = vld [vmem:[%s8 + $0x80] sm:$0xff]
      %v4155 = vld [vmem:[%s8 + $0x88] sm:$0xff]
      %v4156 = vld [vmem:[%s8 + $0x90] sm:$0xff]
      %v4157 = vld [vmem:[%s8 + $0x98] sm:$0xff]
      %v4158 = vld [vmem:[%s8 + $0xa0] sm:$0xff]
      %v4159 = vld [vmem:[%s8 + $0xa8] sm:$0xff]
      %v4160 = vld [vmem:[%s8 + $0xb0] sm:$0xff]
      %v4161 = vld [vmem:[%s8 + $0xb8] sm:$0xff]
      %v4162 = vld [vmem:[%s8 + $0xc0] sm:$0xff]
      %v4163 = vld [vmem:[%s8 + $0xc8] sm:$0xff]
      %v4164 = vld [vmem:[%s8 + $0xd0] sm:$0xff]
      %v4165 = vld [vmem:[%s8 + $0xd8] sm:$0xff]
      %v4166 = vld [vmem:[%s8 + $0xe0] sm:$0xff]
      %v4167 = vld [vmem:[%s8 + $0xe8] sm:$0xff]
      %v4168 = vld [vmem:[%s8 + $0xf0] sm:$0xff]
      %v4169 = vld [vmem:[%s8 + $0xf8] sm:$0xff]
      %v4170 = vld [vmem:[%s8 + $0x100] sm:$0xff]
      %v4171 = vld [vmem:[%s8 + $0x108] sm:$0xff]
      %v4172 = vld [vmem:[%s8 + $0x110] sm:$0xff]
      %v4173 = vld [vmem:[%s8 + $0x118] sm:$0xff]
      %v4174 = vld [vmem:[%s8 + $0x120] sm:$0xff]
      %v4175 = vld [vmem:[%s8 + $0x128] sm:$0xff]
      %v4176 = vld [vmem:[%s8 + $0x130] sm:$0xff]
      %v4177 = vld [vmem:[%s8 + $0x138] sm:$0xff]
      %v4178 = vld [vmem:[%s8 + $0x140] sm:$0xff]
      %v4179 = vld [vmem:[%s8 + $0x148] sm:$0xff]
      %v4180 = vld [vmem:[%s8 + $0x150] sm:$0xff]
      %v4181 = vld [vmem:[%s8 + $0x158] sm:$0xff]
      %v4182 = vld [vmem:[%s8 + $0x160] sm:$0xff]
      %v4183 = vld [vmem:[%s8 + $0x168] sm:$0xff]
      %v4184 = vld [vmem:[%s8 + $0x170] sm:$0xff]
      %v4185 = vld [vmem:[%s8 + $0x178] sm:$0xff]
      %v4186 = vld [vmem:[%s8 + $0x180] sm:$0xff]
      %v4187 = vld [vmem:[%s8 + $0x188] sm:$0xff]
      %v4188 = vld [vmem:[%s8 + $0x190] sm:$0xff]
      %v4189 = vld [vmem:[%s8 + $0x198] sm:$0xff]
      %v4190 = vld [vmem:[%s8 + $0x1a0] sm:$0xff]
      %v4191 = vld [vmem:[%s8 + $0x1a8] sm:$0xff]
      %v4192 = vld [vmem:[%s8 + $0x1b0] sm:$0xff]
      %v4193 = vld [vmem:[%s8 + $0x1b8] sm:$0xff]
      %v4194 = vld [vmem:[%s8 + $0x1c0] sm:$0xff]
      %v4195 = vld [vmem:[%s8 + $0x1c8] sm:$0xff]
      %v4196 = vld [vmem:[%s8 + $0x1d0] sm:$0xff]
      %v4197 = vld [vmem:[%s8 + $0x1d8] sm:$0xff]
      %v4198 = vld [vmem:[%s8 + $0x1e0] sm:$0xff]
      %v4199 = vld [vmem:[%s8 + $0x1e8] sm:$0xff]
      %v4200 = vld [vmem:[%s8 + $0x1f0] sm:$0xff]
      %v4201 = vld [vmem:[%s8 + $0x1f8] sm:$0xff]
      %4203 = vset.pattern.permute.xlu0 0
      %4204 = vperm.xlu0 %4203, %v4138
      %v4205 = vpop.permute.xlu0 %4204
      %4208 = vset.pattern.permute.xlu0 0
      %4209 = vperm.xlu0 %4208, %v4139
      %v4210 = vpop.permute.xlu0 %4209
      %4213 = vset.pattern.permute.xlu0 0
      %4214 = vperm.xlu0 %4213, %v4140
      %v4215 = vpop.permute.xlu0 %4214
      %4218 = vset.pattern.permute.xlu0 0
      %4219 = vperm.xlu0 %4218, %v4141
      %v4220 = vpop.permute.xlu0 %4219
      %4223 = vset.pattern.permute.xlu0 0
      %4224 = vperm.xlu0 %4223, %v4142
      %v4225 = vpop.permute.xlu0 %4224
      %4228 = vset.pattern.permute.xlu0 0
      %4229 = vperm.xlu0 %4228, %v4143
      %v4230 = vpop.permute.xlu0 %4229
      %4233 = vset.pattern.permute.xlu0 0
      %4234 = vperm.xlu0 %4233, %v4144
      %v4235 = vpop.permute.xlu0 %4234
      %4238 = vset.pattern.permute.xlu0 0
      %4239 = vperm.xlu0 %4238, %v4145
      %v4240 = vpop.permute.xlu0 %4239
      %4243 = vset.pattern.permute.xlu0 0
      %4244 = vperm.xlu0 %4243, %v4146
      %v4245 = vpop.permute.xlu0 %4244
      %4248 = vset.pattern.permute.xlu0 0
      %4249 = vperm.xlu0 %4248, %v4147
      %v4250 = vpop.permute.xlu0 %4249
      %4253 = vset.pattern.permute.xlu0 0
      %4254 = vperm.xlu0 %4253, %v4148
      %v4255 = vpop.permute.xlu0 %4254
      %4258 = vset.pattern.permute.xlu0 0
      %4259 = vperm.xlu0 %4258, %v4149
      %v4260 = vpop.permute.xlu0 %4259
      %4263 = vset.pattern.permute.xlu0 0
      %4264 = vperm.xlu0 %4263, %v4150
      %v4265 = vpop.permute.xlu0 %4264
      %4268 = vset.pattern.permute.xlu0 0
      %4269 = vperm.xlu0 %4268, %v4151
      %v4270 = vpop.permute.xlu0 %4269
      %4273 = vset.pattern.permute.xlu0 0
      %4274 = vperm.xlu0 %4273, %v4152
      %v4275 = vpop.permute.xlu0 %4274
      %4278 = vset.pattern.permute.xlu0 0
      %4279 = vperm.xlu0 %4278, %v4153
      %v4280 = vpop.permute.xlu0 %4279
      %4283 = vset.pattern.permute.xlu0 0
      %4284 = vperm.xlu0 %4283, %v4154
      %v4285 = vpop.permute.xlu0 %4284
      %4288 = vset.pattern.permute.xlu0 0
      %4289 = vperm.xlu0 %4288, %v4155
      %v4290 = vpop.permute.xlu0 %4289
      %4293 = vset.pattern.permute.xlu0 0
      %4294 = vperm.xlu0 %4293, %v4156
      %v4295 = vpop.permute.xlu0 %4294
      %4298 = vset.pattern.permute.xlu0 0
      %4299 = vperm.xlu0 %4298, %v4157
      %v4300 = vpop.permute.xlu0 %4299
      %4303 = vset.pattern.permute.xlu0 0
      %4304 = vperm.xlu0 %4303, %v4158
      %v4305 = vpop.permute.xlu0 %4304
      %4308 = vset.pattern.permute.xlu0 0
      %4309 = vperm.xlu0 %4308, %v4159
      %v4310 = vpop.permute.xlu0 %4309
      %4313 = vset.pattern.permute.xlu0 0
      %4314 = vperm.xlu0 %4313, %v4160
      %v4315 = vpop.permute.xlu0 %4314
      %4318 = vset.pattern.permute.xlu0 0
      %4319 = vperm.xlu0 %4318, %v4161
      %v4320 = vpop.permute.xlu0 %4319
      %4323 = vset.pattern.permute.xlu0 0
      %4324 = vperm.xlu0 %4323, %v4162
      %v4325 = vpop.permute.xlu0 %4324
      %4328 = vset.pattern.permute.xlu0 0
      %4329 = vperm.xlu0 %4328, %v4163
      %v4330 = vpop.permute.xlu0 %4329
      %4333 = vset.pattern.permute.xlu0 0
      %4334 = vperm.xlu0 %4333, %v4164
      %v4335 = vpop.permute.xlu0 %4334
      %4338 = vset.pattern.permute.xlu0 0
      %4339 = vperm.xlu0 %4338, %v4165
      %v4340 = vpop.permute.xlu0 %4339
      %4343 = vset.pattern.permute.xlu0 0
      %4344 = vperm.xlu0 %4343, %v4166
      %v4345 = vpop.permute.xlu0 %4344
      %4348 = vset.pattern.permute.xlu0 0
      %4349 = vperm.xlu0 %4348, %v4167
      %v4350 = vpop.permute.xlu0 %4349
      %4353 = vset.pattern.permute.xlu0 0
      %4354 = vperm.xlu0 %4353, %v4168
      %v4355 = vpop.permute.xlu0 %4354
      %4358 = vset.pattern.permute.xlu0 0
      %4359 = vperm.xlu0 %4358, %v4169
      %v4360 = vpop.permute.xlu0 %4359
      %4363 = vset.pattern.permute.xlu0 0
      %4364 = vperm.xlu0 %4363, %v4170
      %v4365 = vpop.permute.xlu0 %4364
      %4368 = vset.pattern.permute.xlu0 0
      %4369 = vperm.xlu0 %4368, %v4171
      %v4370 = vpop.permute.xlu0 %4369
      %4373 = vset.pattern.permute.xlu0 0
      %4374 = vperm.xlu0 %4373, %v4172
      %v4375 = vpop.permute.xlu0 %4374
      %4378 = vset.pattern.permute.xlu0 0
      %4379 = vperm.xlu0 %4378, %v4173
      %v4380 = vpop.permute.xlu0 %4379
      %4383 = vset.pattern.permute.xlu0 0
      %4384 = vperm.xlu0 %4383, %v4174
      %v4385 = vpop.permute.xlu0 %4384
      %4388 = vset.pattern.permute.xlu0 0
      %4389 = vperm.xlu0 %4388, %v4175
      %v4390 = vpop.permute.xlu0 %4389
      %4393 = vset.pattern.permute.xlu0 0
      %4394 = vperm.xlu0 %4393, %v4176
      %v4395 = vpop.permute.xlu0 %4394
      %4398 = vset.pattern.permute.xlu0 0
      %4399 = vperm.xlu0 %4398, %v4177
      %v4400 = vpop.permute.xlu0 %4399
      %4403 = vset.pattern.permute.xlu0 0
      %4404 = vperm.xlu0 %4403, %v4178
      %v4405 = vpop.permute.xlu0 %4404
      %4408 = vset.pattern.permute.xlu0 0
      %4409 = vperm.xlu0 %4408, %v4179
      %v4410 = vpop.permute.xlu0 %4409
      %4413 = vset.pattern.permute.xlu0 0
      %4414 = vperm.xlu0 %4413, %v4180
      %v4415 = vpop.permute.xlu0 %4414
      %4418 = vset.pattern.permute.xlu0 0
      %4419 = vperm.xlu0 %4418, %v4181
      %v4420 = vpop.permute.xlu0 %4419
      %4423 = vset.pattern.permute.xlu0 0
      %4424 = vperm.xlu0 %4423, %v4182
      %v4425 = vpop.permute.xlu0 %4424
      %4428 = vset.pattern.permute.xlu0 0
      %4429 = vperm.xlu0 %4428, %v4183
      %v4430 = vpop.permute.xlu0 %4429
      %4433 = vset.pattern.permute.xlu0 0
      %4434 = vperm.xlu0 %4433, %v4184
      %v4435 = vpop.permute.xlu0 %4434
      %4438 = vset.pattern.permute.xlu0 0
      %4439 = vperm.xlu0 %4438, %v4185
      %v4440 = vpop.permute.xlu0 %4439
      %4443 = vset.pattern.permute.xlu0 0
      %4444 = vperm.xlu0 %4443, %v4186
      %v4445 = vpop.permute.xlu0 %4444
      %4448 = vset.pattern.permute.xlu0 0
      %4449 = vperm.xlu0 %4448, %v4187
      %v4450 = vpop.permute.xlu0 %4449
      %4453 = vset.pattern.permute.xlu0 0
      %4454 = vperm.xlu0 %4453, %v4188
      %v4455 = vpop.permute.xlu0 %4454
      %4458 = vset.pattern.permute.xlu0 0
      %4459 = vperm.xlu0 %4458, %v4189
      %v4460 = vpop.permute.xlu0 %4459
      %4463 = vset.pattern.permute.xlu0 0
      %4464 = vperm.xlu0 %4463, %v4190
      %v4465 = vpop.permute.xlu0 %4464
      %4468 = vset.pattern.permute.xlu0 0
      %4469 = vperm.xlu0 %4468, %v4191
      %v4470 = vpop.permute.xlu0 %4469
      %4473 = vset.pattern.permute.xlu0 0
      %4474 = vperm.xlu0 %4473, %v4192
      %v4475 = vpop.permute.xlu0 %4474
      %4478 = vset.pattern.permute.xlu0 0
      %4479 = vperm.xlu0 %4478, %v4193
      %v4480 = vpop.permute.xlu0 %4479
      %4483 = vset.pattern.permute.xlu0 0
      %4484 = vperm.xlu0 %4483, %v4194
      %v4485 = vpop.permute.xlu0 %4484
      %4488 = vset.pattern.permute.xlu0 0
      %4489 = vperm.xlu0 %4488, %v4195
      %v4490 = vpop.permute.xlu0 %4489
      %4493 = vset.pattern.permute.xlu0 0
      %4494 = vperm.xlu0 %4493, %v4196
      %v4495 = vpop.permute.xlu0 %4494
      %4498 = vset.pattern.permute.xlu0 0
      %4499 = vperm.xlu0 %4498, %v4197
      %v4500 = vpop.permute.xlu0 %4499
      %4503 = vset.pattern.permute.xlu0 0
      %4504 = vperm.xlu0 %4503, %v4198
      %v4505 = vpop.permute.xlu0 %4504
      %4508 = vset.pattern.permute.xlu0 0
      %4509 = vperm.xlu0 %4508, %v4199
      %v4510 = vpop.permute.xlu0 %4509
      %4513 = vset.pattern.permute.xlu0 0
      %4514 = vperm.xlu0 %4513, %v4200
      %v4515 = vpop.permute.xlu0 %4514
      %4518 = vset.pattern.permute.xlu0 0
      %4519 = vperm.xlu0 %4518, %v4201
      %v4520 = vpop.permute.xlu0 %4519
      %v4586 = vunpack.c.l.b16 %v4074
      %v4587 = vunpack.c.h.b16 %v4074
      %v4588 = vunpack.c.l.b16 %v4075
      %v4589 = vunpack.c.h.b16 %v4075
      %v4590 = vunpack.c.l.b16 %v4076
      %v4591 = vunpack.c.h.b16 %v4076
      %v4592 = vunpack.c.l.b16 %v4077
      %v4593 = vunpack.c.h.b16 %v4077
      %v4594 = vunpack.c.l.b16 %v4078
      %v4595 = vunpack.c.h.b16 %v4078
      %v4596 = vunpack.c.l.b16 %v4079
      %v4597 = vunpack.c.h.b16 %v4079
      %v4598 = vunpack.c.l.b16 %v4080
      %v4599 = vunpack.c.h.b16 %v4080
      %v4600 = vunpack.c.l.b16 %v4081
      %v4601 = vunpack.c.h.b16 %v4081
      %v4602 = vunpack.c.l.b16 %v4082
      %v4603 = vunpack.c.h.b16 %v4082
      %v4604 = vunpack.c.l.b16 %v4083
      %v4605 = vunpack.c.h.b16 %v4083
      %v4606 = vunpack.c.l.b16 %v4084
      %v4607 = vunpack.c.h.b16 %v4084
      %v4608 = vunpack.c.l.b16 %v4085
      %v4609 = vunpack.c.h.b16 %v4085
      %v4610 = vunpack.c.l.b16 %v4086
      %v4611 = vunpack.c.h.b16 %v4086
      %v4612 = vunpack.c.l.b16 %v4087
      %v4613 = vunpack.c.h.b16 %v4087
      %v4614 = vunpack.c.l.b16 %v4088
      %v4615 = vunpack.c.h.b16 %v4088
      %v4616 = vunpack.c.l.b16 %v4089
      %v4617 = vunpack.c.h.b16 %v4089
      %v4618 = vunpack.c.l.b16 %v4090
      %v4619 = vunpack.c.h.b16 %v4090
      %v4620 = vunpack.c.l.b16 %v4091
      %v4621 = vunpack.c.h.b16 %v4091
      %v4622 = vunpack.c.l.b16 %v4092
      %v4623 = vunpack.c.h.b16 %v4092
      %v4624 = vunpack.c.l.b16 %v4093
      %v4625 = vunpack.c.h.b16 %v4093
      %v4626 = vunpack.c.l.b16 %v4094
      %v4627 = vunpack.c.h.b16 %v4094
      %v4628 = vunpack.c.l.b16 %v4095
      %v4629 = vunpack.c.h.b16 %v4095
      %v4630 = vunpack.c.l.b16 %v4096
      %v4631 = vunpack.c.h.b16 %v4096
      %v4632 = vunpack.c.l.b16 %v4097
      %v4633 = vunpack.c.h.b16 %v4097
      %v4634 = vunpack.c.l.b16 %v4098
      %v4635 = vunpack.c.h.b16 %v4098
      %v4636 = vunpack.c.l.b16 %v4099
      %v4637 = vunpack.c.h.b16 %v4099
      %v4638 = vunpack.c.l.b16 %v4100
      %v4639 = vunpack.c.h.b16 %v4100
      %v4640 = vunpack.c.l.b16 %v4101
      %v4641 = vunpack.c.h.b16 %v4101
      %v4642 = vunpack.c.l.b16 %v4102
      %v4643 = vunpack.c.h.b16 %v4102
      %v4644 = vunpack.c.l.b16 %v4103
      %v4645 = vunpack.c.h.b16 %v4103
      %v4646 = vunpack.c.l.b16 %v4104
      %v4647 = vunpack.c.h.b16 %v4104
      %v4648 = vunpack.c.l.b16 %v4105
      %v4649 = vunpack.c.h.b16 %v4105
      %v4650 = vunpack.c.l.b16 %v4106
      %v4651 = vunpack.c.h.b16 %v4106
      %v4652 = vunpack.c.l.b16 %v4107
      %v4653 = vunpack.c.h.b16 %v4107
      %v4654 = vunpack.c.l.b16 %v4108
      %v4655 = vunpack.c.h.b16 %v4108
      %v4656 = vunpack.c.l.b16 %v4109
      %v4657 = vunpack.c.h.b16 %v4109
      %v4658 = vunpack.c.l.b16 %v4110
      %v4659 = vunpack.c.h.b16 %v4110
      %v4660 = vunpack.c.l.b16 %v4111
      %v4661 = vunpack.c.h.b16 %v4111
      %v4662 = vunpack.c.l.b16 %v4112
      %v4663 = vunpack.c.h.b16 %v4112
      %v4664 = vunpack.c.l.b16 %v4113
      %v4665 = vunpack.c.h.b16 %v4113
      %v4666 = vunpack.c.l.b16 %v4114
      %v4667 = vunpack.c.h.b16 %v4114
      %v4668 = vunpack.c.l.b16 %v4115
      %v4669 = vunpack.c.h.b16 %v4115
      %v4670 = vunpack.c.l.b16 %v4116
      %v4671 = vunpack.c.h.b16 %v4116
      %v4672 = vunpack.c.l.b16 %v4117
      %v4673 = vunpack.c.h.b16 %v4117
      %v4674 = vunpack.c.l.b16 %v4118
      %v4675 = vunpack.c.h.b16 %v4118
      %v4676 = vunpack.c.l.b16 %v4119
      %v4677 = vunpack.c.h.b16 %v4119
      %v4678 = vunpack.c.l.b16 %v4120
      %v4679 = vunpack.c.h.b16 %v4120
      %v4680 = vunpack.c.l.b16 %v4121
      %v4681 = vunpack.c.h.b16 %v4121
      %v4682 = vunpack.c.l.b16 %v4122
      %v4683 = vunpack.c.h.b16 %v4122
      %v4684 = vunpack.c.l.b16 %v4123
      %v4685 = vunpack.c.h.b16 %v4123
      %v4686 = vunpack.c.l.b16 %v4124
      %v4687 = vunpack.c.h.b16 %v4124
      %v4688 = vunpack.c.l.b16 %v4125
      %v4689 = vunpack.c.h.b16 %v4125
      %v4690 = vunpack.c.l.b16 %v4126
      %v4691 = vunpack.c.h.b16 %v4126
      %v4692 = vunpack.c.l.b16 %v4127
      %v4693 = vunpack.c.h.b16 %v4127
      %v4694 = vunpack.c.l.b16 %v4128
      %v4695 = vunpack.c.h.b16 %v4128
      %v4696 = vunpack.c.l.b16 %v4129
      %v4697 = vunpack.c.h.b16 %v4129
      %v4698 = vunpack.c.l.b16 %v4130
      %v4699 = vunpack.c.h.b16 %v4130
      %v4700 = vunpack.c.l.b16 %v4131
      %v4701 = vunpack.c.h.b16 %v4131
      %v4702 = vunpack.c.l.b16 %v4132
      %v4703 = vunpack.c.h.b16 %v4132
      %v4704 = vunpack.c.l.b16 %v4133
      %v4705 = vunpack.c.h.b16 %v4133
      %v4706 = vunpack.c.l.b16 %v4134
      %v4707 = vunpack.c.h.b16 %v4134
      %v4708 = vunpack.c.l.b16 %v4135
      %v4709 = vunpack.c.h.b16 %v4135
      %v4710 = vunpack.c.l.b16 %v4136
      %v4711 = vunpack.c.h.b16 %v4136
      %v4712 = vunpack.c.l.b16 %v4137
      %v4713 = vunpack.c.h.b16 %v4137
      %v4714 = vpack.c.b16 %v4588, %v4586
      %v4715 = vpack.c.b16 %v4589, %v4587
      %v4716 = vpack.c.b16 %v4592, %v4590
      %v4717 = vpack.c.b16 %v4593, %v4591
      %v4718 = vpack.c.b16 %v4596, %v4594
      %v4719 = vpack.c.b16 %v4597, %v4595
      %v4720 = vpack.c.b16 %v4600, %v4598
      %v4721 = vpack.c.b16 %v4601, %v4599
      %v4722 = vpack.c.b16 %v4604, %v4602
      %v4723 = vpack.c.b16 %v4605, %v4603
      %v4724 = vpack.c.b16 %v4608, %v4606
      %v4725 = vpack.c.b16 %v4609, %v4607
      %v4726 = vpack.c.b16 %v4612, %v4610
      %v4727 = vpack.c.b16 %v4613, %v4611
      %v4728 = vpack.c.b16 %v4616, %v4614
      %v4729 = vpack.c.b16 %v4617, %v4615
      %v4730 = vpack.c.b16 %v4620, %v4618
      %v4731 = vpack.c.b16 %v4621, %v4619
      %v4732 = vpack.c.b16 %v4624, %v4622
      %v4733 = vpack.c.b16 %v4625, %v4623
      %v4734 = vpack.c.b16 %v4628, %v4626
      %v4735 = vpack.c.b16 %v4629, %v4627
      %v4736 = vpack.c.b16 %v4632, %v4630
      %v4737 = vpack.c.b16 %v4633, %v4631
      %v4738 = vpack.c.b16 %v4636, %v4634
      %v4739 = vpack.c.b16 %v4637, %v4635
      %v4740 = vpack.c.b16 %v4640, %v4638
      %v4741 = vpack.c.b16 %v4641, %v4639
      %v4742 = vpack.c.b16 %v4644, %v4642
      %v4743 = vpack.c.b16 %v4645, %v4643
      %v4744 = vpack.c.b16 %v4648, %v4646
      %v4745 = vpack.c.b16 %v4649, %v4647
      %v4746 = vpack.c.b16 %v4652, %v4650
      %v4747 = vpack.c.b16 %v4653, %v4651
      %v4748 = vpack.c.b16 %v4656, %v4654
      %v4749 = vpack.c.b16 %v4657, %v4655
      %v4750 = vpack.c.b16 %v4660, %v4658
      %v4751 = vpack.c.b16 %v4661, %v4659
      %v4752 = vpack.c.b16 %v4664, %v4662
      %v4753 = vpack.c.b16 %v4665, %v4663
      %v4754 = vpack.c.b16 %v4668, %v4666
      %v4755 = vpack.c.b16 %v4669, %v4667
      %v4756 = vpack.c.b16 %v4672, %v4670
      %v4757 = vpack.c.b16 %v4673, %v4671
      %v4758 = vpack.c.b16 %v4676, %v4674
      %v4759 = vpack.c.b16 %v4677, %v4675
      %v4760 = vpack.c.b16 %v4680, %v4678
      %v4761 = vpack.c.b16 %v4681, %v4679
      %v4762 = vpack.c.b16 %v4684, %v4682
      %v4763 = vpack.c.b16 %v4685, %v4683
      %v4764 = vpack.c.b16 %v4688, %v4686
      %v4765 = vpack.c.b16 %v4689, %v4687
      %v4766 = vpack.c.b16 %v4692, %v4690
      %v4767 = vpack.c.b16 %v4693, %v4691
      %v4768 = vpack.c.b16 %v4696, %v4694
      %v4769 = vpack.c.b16 %v4697, %v4695
      %v4770 = vpack.c.b16 %v4700, %v4698
      %v4771 = vpack.c.b16 %v4701, %v4699
      %v4772 = vpack.c.b16 %v4704, %v4702
      %v4773 = vpack.c.b16 %v4705, %v4703
      %v4774 = vpack.c.b16 %v4708, %v4706
      %v4775 = vpack.c.b16 %v4709, %v4707
      %v4776 = vpack.c.b16 %v4712, %v4710
      %v4777 = vpack.c.b16 %v4713, %v4711
      %4842 = vmatprep.subr.bf16.mxu0 0
      %4843 = vmatpush1.bf16.msra.mxu0 %v4065
      %4844 = vmatprep.subr.bf16.mxu0 0
      %4845 = vmatpush1.bf16.msra.mxu0 %v4064
      %4846 = vmatprep.subr.bf16.mxu0 0
      %4847 = vmatpush1.bf16.msra.mxu0 %v4063
      %4848 = vmatprep.subr.bf16.mxu0 0
      %4849 = vmatpush1.bf16.msra.mxu0 %v4062
      %4850 = vmatprep.subr.bf16.mxu0 0
      %4851 = vmatpush1.bf16.msra.mxu0 %v4061
      %4852 = vmatprep.subr.bf16.mxu0 0
      %4853 = vmatpush1.bf16.msra.mxu0 %v4060
      %4854 = vmatprep.subr.bf16.mxu0 0
      %4855 = vmatpush1.bf16.msra.mxu0 %v4059
      %4856 = vmatprep.subr.bf16.mxu0 0
      %4857 = vmatpush1.bf16.msra.mxu0 %v4058
      %4858 = vmatprep.subr.bf16.mxu0 0
      %4859 = vmatpush2.bf16.msra.mxu0 %v4073
      %4860 = vmatprep.subr.bf16.mxu0 0
      %4861 = vmatpush2.bf16.msra.mxu0 %v4072
      %4862 = vmatprep.subr.bf16.mxu0 0
      %4863 = vmatpush2.bf16.msra.mxu0 %v4071
      %4864 = vmatprep.subr.bf16.mxu0 0
      %4865 = vmatpush2.bf16.msra.mxu0 %v4070
      %4866 = vmatprep.subr.bf16.mxu0 0
      %4867 = vmatpush2.bf16.msra.mxu0 %v4069
      %4868 = vmatprep.subr.bf16.mxu0 0
      %4869 = vmatpush2.bf16.msra.mxu0 %v4068
      %4870 = vmatprep.subr.bf16.mxu0 0
      %4871 = vmatpush2.bf16.msra.mxu0 %v4067
      %4872 = vmatprep.subr.bf16.mxu0 0
      %4873 = vmatpush2.bf16.msra.mxu0 %v4066
      %4874 = vmatprep.mubr.bf16.mxu0 %v4715
      %4875 = vmatmul.mubr.bf16.gmra.mxu0 %v4714
      %v4876 = vpop.f32.mrf.mxu0
      %v4877 = vadd.f32 %v4205, %v4876
      %v4878 = vpop.f32.mrf.mxu0
      %v4879 = vpop.f32.mrf.mxu0
      %v4880 = vadd.f32 %v4210, %v4879
      %v4881 = vpop.f32.mrf.mxu0
      %4882 = vmatprep.mubr.bf16.mxu0 %v4717
      %4883 = vmatmul.mubr.bf16.gmra.mxu0 %v4716
      %v4884 = vpop.f32.mrf.mxu0
      %v4885 = vadd.f32 %v4215, %v4884
      %v4886 = vpop.f32.mrf.mxu0
      %v4887 = vpop.f32.mrf.mxu0
      %v4888 = vadd.f32 %v4220, %v4887
      %v4889 = vpop.f32.mrf.mxu0
      %4890 = vmatprep.mubr.bf16.mxu0 %v4719
      %4891 = vmatmul.mubr.bf16.gmra.mxu0 %v4718
      %v4892 = vpop.f32.mrf.mxu0
      %v4893 = vadd.f32 %v4225, %v4892
      %v4894 = vpop.f32.mrf.mxu0
      %v4895 = vpop.f32.mrf.mxu0
      %v4896 = vadd.f32 %v4230, %v4895
      %v4897 = vpop.f32.mrf.mxu0
      %4898 = vmatprep.mubr.bf16.mxu0 %v4721
      %4899 = vmatmul.mubr.bf16.gmra.mxu0 %v4720
      %v4900 = vpop.f32.mrf.mxu0
      %v4901 = vadd.f32 %v4235, %v4900
      %v4902 = vpop.f32.mrf.mxu0
      %v4903 = vpop.f32.mrf.mxu0
      %v4904 = vadd.f32 %v4240, %v4903
      %v4905 = vpop.f32.mrf.mxu0
      %4906 = vmatprep.mubr.bf16.mxu0 %v4723
      %4907 = vmatmul.mubr.bf16.gmra.mxu0 %v4722
      %v4908 = vpop.f32.mrf.mxu0
      %v4909 = vadd.f32 %v4245, %v4908
      %v4910 = vpop.f32.mrf.mxu0
      %v4911 = vpop.f32.mrf.mxu0
      %v4912 = vadd.f32 %v4250, %v4911
      %v4913 = vpop.f32.mrf.mxu0
      %4914 = vmatprep.mubr.bf16.mxu0 %v4725
      %4915 = vmatmul.mubr.bf16.gmra.mxu0 %v4724
      %v4916 = vpop.f32.mrf.mxu0
      %v4917 = vadd.f32 %v4255, %v4916
      %v4918 = vpop.f32.mrf.mxu0
      %v4919 = vpop.f32.mrf.mxu0
      %v4920 = vadd.f32 %v4260, %v4919
      %v4921 = vpop.f32.mrf.mxu0
      %4922 = vmatprep.mubr.bf16.mxu0 %v4727
      %4923 = vmatmul.mubr.bf16.gmra.mxu0 %v4726
      %v4924 = vpop.f32.mrf.mxu0
      %v4925 = vadd.f32 %v4265, %v4924
      %v4926 = vpop.f32.mrf.mxu0
      %v4927 = vpop.f32.mrf.mxu0
      %v4928 = vadd.f32 %v4270, %v4927
      %v4929 = vpop.f32.mrf.mxu0
      %4930 = vmatprep.mubr.bf16.mxu0 %v4729
      %4931 = vmatmul.mubr.bf16.gmra.mxu0 %v4728
      %v4932 = vpop.f32.mrf.mxu0
      %v4933 = vadd.f32 %v4275, %v4932
      %v4934 = vpop.f32.mrf.mxu0
      %v4935 = vpop.f32.mrf.mxu0
      %v4936 = vadd.f32 %v4280, %v4935
      %v4937 = vpop.f32.mrf.mxu0
      %4938 = vmatprep.mubr.bf16.mxu0 %v4731
      %4939 = vmatmul.mubr.bf16.gmra.mxu0 %v4730
      %v4940 = vpop.f32.mrf.mxu0
      %v4941 = vadd.f32 %v4285, %v4940
      %v4942 = vpop.f32.mrf.mxu0
      %v4943 = vpop.f32.mrf.mxu0
      %v4944 = vadd.f32 %v4290, %v4943
      %v4945 = vpop.f32.mrf.mxu0
      %4946 = vmatprep.mubr.bf16.mxu0 %v4733
      %4947 = vmatmul.mubr.bf16.gmra.mxu0 %v4732
      %v4948 = vpop.f32.mrf.mxu0
      %v4949 = vadd.f32 %v4295, %v4948
      %v4950 = vpop.f32.mrf.mxu0
      %v4951 = vpop.f32.mrf.mxu0
      %v4952 = vadd.f32 %v4300, %v4951
      %v4953 = vpop.f32.mrf.mxu0
      %4954 = vmatprep.mubr.bf16.mxu0 %v4735
      %4955 = vmatmul.mubr.bf16.gmra.mxu0 %v4734
      %v4956 = vpop.f32.mrf.mxu0
      %v4957 = vadd.f32 %v4305, %v4956
      %v4958 = vpop.f32.mrf.mxu0
      %v4959 = vpop.f32.mrf.mxu0
      %v4960 = vadd.f32 %v4310, %v4959
      %v4961 = vpop.f32.mrf.mxu0
      %4962 = vmatprep.mubr.bf16.mxu0 %v4737
      %4963 = vmatmul.mubr.bf16.gmra.mxu0 %v4736
      %v4964 = vpop.f32.mrf.mxu0
      %v4965 = vadd.f32 %v4315, %v4964
      %v4966 = vpop.f32.mrf.mxu0
      %v4967 = vpop.f32.mrf.mxu0
      %v4968 = vadd.f32 %v4320, %v4967
      %v4969 = vpop.f32.mrf.mxu0
      %4970 = vmatprep.mubr.bf16.mxu0 %v4739
      %4971 = vmatmul.mubr.bf16.gmra.mxu0 %v4738
      %v4972 = vpop.f32.mrf.mxu0
      %v4973 = vadd.f32 %v4325, %v4972
      %v4974 = vpop.f32.mrf.mxu0
      %v4975 = vpop.f32.mrf.mxu0
      %v4976 = vadd.f32 %v4330, %v4975
      %v4977 = vpop.f32.mrf.mxu0
      %4978 = vmatprep.mubr.bf16.mxu0 %v4741
      %4979 = vmatmul.mubr.bf16.gmra.mxu0 %v4740
      %v4980 = vpop.f32.mrf.mxu0
      %v4981 = vadd.f32 %v4335, %v4980
      %v4982 = vpop.f32.mrf.mxu0
      %v4983 = vpop.f32.mrf.mxu0
      %v4984 = vadd.f32 %v4340, %v4983
      %v4985 = vpop.f32.mrf.mxu0
      %4986 = vmatprep.mubr.bf16.mxu0 %v4743
      %4987 = vmatmul.mubr.bf16.gmra.mxu0 %v4742
      %v4988 = vpop.f32.mrf.mxu0
      %v4989 = vadd.f32 %v4345, %v4988
      %v4990 = vpop.f32.mrf.mxu0
      %v4991 = vpop.f32.mrf.mxu0
      %v4992 = vadd.f32 %v4350, %v4991
      %v4993 = vpop.f32.mrf.mxu0
      %4994 = vmatprep.mubr.bf16.mxu0 %v4745
      %4995 = vmatmul.mubr.bf16.gmra.mxu0 %v4744
      %v4996 = vpop.f32.mrf.mxu0
      %v4997 = vadd.f32 %v4355, %v4996
      %v4998 = vpop.f32.mrf.mxu0
      %v4999 = vpop.f32.mrf.mxu0
      %v5000 = vadd.f32 %v4360, %v4999
      %v5001 = vpop.f32.mrf.mxu0
      %5002 = vmatprep.mubr.bf16.mxu0 %v4747
      %5003 = vmatmul.mubr.bf16.gmra.mxu0 %v4746
      %v5004 = vpop.f32.mrf.mxu0
      %v5005 = vadd.f32 %v4365, %v5004
      %v5006 = vpop.f32.mrf.mxu0
      %v5007 = vpop.f32.mrf.mxu0
      %v5008 = vadd.f32 %v4370, %v5007
      %v5009 = vpop.f32.mrf.mxu0
      %5010 = vmatprep.mubr.bf16.mxu0 %v4749
      %5011 = vmatmul.mubr.bf16.gmra.mxu0 %v4748
      %v5012 = vpop.f32.mrf.mxu0
      %v5013 = vadd.f32 %v4375, %v5012
      %v5014 = vpop.f32.mrf.mxu0
      %v5015 = vpop.f32.mrf.mxu0
      %v5016 = vadd.f32 %v4380, %v5015
      %v5017 = vpop.f32.mrf.mxu0
      %5018 = vmatprep.mubr.bf16.mxu0 %v4751
      %5019 = vmatmul.mubr.bf16.gmra.mxu0 %v4750
      %v5020 = vpop.f32.mrf.mxu0
      %v5021 = vadd.f32 %v4385, %v5020
      %v5022 = vpop.f32.mrf.mxu0
      %v5023 = vpop.f32.mrf.mxu0
      %v5024 = vadd.f32 %v4390, %v5023
      %v5025 = vpop.f32.mrf.mxu0
      %5026 = vmatprep.mubr.bf16.mxu0 %v4753
      %5027 = vmatmul.mubr.bf16.gmra.mxu0 %v4752
      %v5028 = vpop.f32.mrf.mxu0
      %v5029 = vadd.f32 %v4395, %v5028
      %v5030 = vpop.f32.mrf.mxu0
      %v5031 = vpop.f32.mrf.mxu0
      %v5032 = vadd.f32 %v4400, %v5031
      %v5033 = vpop.f32.mrf.mxu0
      %5034 = vmatprep.mubr.bf16.mxu0 %v4755
      %5035 = vmatmul.mubr.bf16.gmra.mxu0 %v4754
      %v5036 = vpop.f32.mrf.mxu0
      %v5037 = vadd.f32 %v4405, %v5036
      %v5038 = vpop.f32.mrf.mxu0
      %v5039 = vpop.f32.mrf.mxu0
      %v5040 = vadd.f32 %v4410, %v5039
      %v5041 = vpop.f32.mrf.mxu0
      %5042 = vmatprep.mubr.bf16.mxu0 %v4757
      %5043 = vmatmul.mubr.bf16.gmra.mxu0 %v4756
      %v5044 = vpop.f32.mrf.mxu0
      %v5045 = vadd.f32 %v4415, %v5044
      %v5046 = vpop.f32.mrf.mxu0
      %v5047 = vpop.f32.mrf.mxu0
      %v5048 = vadd.f32 %v4420, %v5047
      %v5049 = vpop.f32.mrf.mxu0
      %5050 = vmatprep.mubr.bf16.mxu0 %v4759
      %5051 = vmatmul.mubr.bf16.gmra.mxu0 %v4758
      %v5052 = vpop.f32.mrf.mxu0
      %v5053 = vadd.f32 %v4425, %v5052
      %v5054 = vpop.f32.mrf.mxu0
      %v5055 = vpop.f32.mrf.mxu0
      %v5056 = vadd.f32 %v4430, %v5055
      %v5057 = vpop.f32.mrf.mxu0
      %5058 = vmatprep.mubr.bf16.mxu0 %v4761
      %5059 = vmatmul.mubr.bf16.gmra.mxu0 %v4760
      %v5060 = vpop.f32.mrf.mxu0
      %v5061 = vadd.f32 %v4435, %v5060
      %v5062 = vpop.f32.mrf.mxu0
      %v5063 = vpop.f32.mrf.mxu0
      %v5064 = vadd.f32 %v4440, %v5063
      %v5065 = vpop.f32.mrf.mxu0
      %5066 = vmatprep.mubr.bf16.mxu0 %v4763
      %5067 = vmatmul.mubr.bf16.gmra.mxu0 %v4762
      %v5068 = vpop.f32.mrf.mxu0
      %v5069 = vadd.f32 %v4445, %v5068
      %v5070 = vpop.f32.mrf.mxu0
      %v5071 = vpop.f32.mrf.mxu0
      %v5072 = vadd.f32 %v4450, %v5071
      %v5073 = vpop.f32.mrf.mxu0
      %5074 = vmatprep.mubr.bf16.mxu0 %v4765
      %5075 = vmatmul.mubr.bf16.gmra.mxu0 %v4764
      %v5076 = vpop.f32.mrf.mxu0
      %v5077 = vadd.f32 %v4455, %v5076
      %v5078 = vpop.f32.mrf.mxu0
      %v5079 = vpop.f32.mrf.mxu0
      %v5080 = vadd.f32 %v4460, %v5079
      %v5081 = vpop.f32.mrf.mxu0
      %5082 = vmatprep.mubr.bf16.mxu0 %v4767
      %5083 = vmatmul.mubr.bf16.gmra.mxu0 %v4766
      %v5084 = vpop.f32.mrf.mxu0
      %v5085 = vadd.f32 %v4465, %v5084
      %v5086 = vpop.f32.mrf.mxu0
      %v5087 = vpop.f32.mrf.mxu0
      %v5088 = vadd.f32 %v4470, %v5087
      %v5089 = vpop.f32.mrf.mxu0
      %5090 = vmatprep.mubr.bf16.mxu0 %v4769
      %5091 = vmatmul.mubr.bf16.gmra.mxu0 %v4768
      %v5092 = vpop.f32.mrf.mxu0
      %v5093 = vadd.f32 %v4475, %v5092
      %v5094 = vpop.f32.mrf.mxu0
      %v5095 = vpop.f32.mrf.mxu0
      %v5096 = vadd.f32 %v4480, %v5095
      %v5097 = vpop.f32.mrf.mxu0
      %5098 = vmatprep.mubr.bf16.mxu0 %v4771
      %5099 = vmatmul.mubr.bf16.gmra.mxu0 %v4770
      %v5100 = vpop.f32.mrf.mxu0
      %v5101 = vadd.f32 %v4485, %v5100
      %v5102 = vpop.f32.mrf.mxu0
      %v5103 = vpop.f32.mrf.mxu0
      %v5104 = vadd.f32 %v4490, %v5103
      %v5105 = vpop.f32.mrf.mxu0
      %5106 = vmatprep.mubr.bf16.mxu0 %v4773
      %5107 = vmatmul.mubr.bf16.gmra.mxu0 %v4772
      %v5108 = vpop.f32.mrf.mxu0
      %v5109 = vadd.f32 %v4495, %v5108
      %v5110 = vpop.f32.mrf.mxu0
      %v5111 = vpop.f32.mrf.mxu0
      %v5112 = vadd.f32 %v4500, %v5111
      %v5113 = vpop.f32.mrf.mxu0
      %5114 = vmatprep.mubr.bf16.mxu0 %v4775
      %5115 = vmatmul.mubr.bf16.gmra.mxu0 %v4774
      %v5116 = vpop.f32.mrf.mxu0
      %v5117 = vadd.f32 %v4505, %v5116
      %v5118 = vpop.f32.mrf.mxu0
      %v5119 = vpop.f32.mrf.mxu0
      %v5120 = vadd.f32 %v4510, %v5119
      %v5121 = vpop.f32.mrf.mxu0
      %5122 = vmatprep.mubr.bf16.mxu0 %v4777
      %5123 = vmatmul.mubr.bf16.gmra.mxu0 %v4776
      %v5124 = vpop.f32.mrf.mxu0
      %v5125 = vadd.f32 %v4515, %v5124
      %v5126 = vpop.f32.mrf.mxu0
      %v5127 = vpop.f32.mrf.mxu0
      %v5128 = vadd.f32 %v4520, %v5127
      %v5129 = vpop.f32.mrf.mxu0
      %5130 = vdwg.mxu0
      %vm5131 = vcmp.ge.f32.partialorder %v4877, 0.0
      %vm5132 = vcmp.ge.f32.partialorder %v4880, 0.0
      %vm5133 = vcmp.ge.f32.partialorder %v4885, 0.0
      %vm5134 = vcmp.ge.f32.partialorder %v4888, 0.0
      %vm5135 = vcmp.ge.f32.partialorder %v4893, 0.0
      %vm5136 = vcmp.ge.f32.partialorder %v4896, 0.0
      %vm5137 = vcmp.ge.f32.partialorder %v4901, 0.0
      %vm5138 = vcmp.ge.f32.partialorder %v4904, 0.0
      %vm5139 = vcmp.ge.f32.partialorder %v4909, 0.0
      %vm5140 = vcmp.ge.f32.partialorder %v4912, 0.0
      %vm5141 = vcmp.ge.f32.partialorder %v4917, 0.0
      %vm5142 = vcmp.ge.f32.partialorder %v4920, 0.0
      %vm5143 = vcmp.ge.f32.partialorder %v4925, 0.0
      %vm5144 = vcmp.ge.f32.partialorder %v4928, 0.0
      %vm5145 = vcmp.ge.f32.partialorder %v4933, 0.0
      %vm5146 = vcmp.ge.f32.partialorder %v4936, 0.0
      %vm5147 = vcmp.ge.f32.partialorder %v4941, 0.0
      %vm5148 = vcmp.ge.f32.partialorder %v4944, 0.0
      %vm5149 = vcmp.ge.f32.partialorder %v4949, 0.0
      %vm5150 = vcmp.ge.f32.partialorder %v4952, 0.0
      %vm5151 = vcmp.ge.f32.partialorder %v4957, 0.0
      %vm5152 = vcmp.ge.f32.partialorder %v4960, 0.0
      %vm5153 = vcmp.ge.f32.partialorder %v4965, 0.0
      %vm5154 = vcmp.ge.f32.partialorder %v4968, 0.0
      %vm5155 = vcmp.ge.f32.partialorder %v4973, 0.0
      %vm5156 = vcmp.ge.f32.partialorder %v4976, 0.0
      %vm5157 = vcmp.ge.f32.partialorder %v4981, 0.0
      %vm5158 = vcmp.ge.f32.partialorder %v4984, 0.0
      %vm5159 = vcmp.ge.f32.partialorder %v4989, 0.0
      %vm5160 = vcmp.ge.f32.partialorder %v4992, 0.0
      %vm5161 = vcmp.ge.f32.partialorder %v4997, 0.0
      %vm5162 = vcmp.ge.f32.partialorder %v5000, 0.0
      %vm5163 = vcmp.ge.f32.partialorder %v5005, 0.0
      %vm5164 = vcmp.ge.f32.partialorder %v5008, 0.0
      %vm5165 = vcmp.ge.f32.partialorder %v5013, 0.0
      %vm5166 = vcmp.ge.f32.partialorder %v5016, 0.0
      %vm5167 = vcmp.ge.f32.partialorder %v5021, 0.0
      %vm5168 = vcmp.ge.f32.partialorder %v5024, 0.0
      %vm5169 = vcmp.ge.f32.partialorder %v5029, 0.0
      %vm5170 = vcmp.ge.f32.partialorder %v5032, 0.0
      %vm5171 = vcmp.ge.f32.partialorder %v5037, 0.0
      %vm5172 = vcmp.ge.f32.partialorder %v5040, 0.0
      %vm5173 = vcmp.ge.f32.partialorder %v5045, 0.0
      %vm5174 = vcmp.ge.f32.partialorder %v5048, 0.0
      %vm5175 = vcmp.ge.f32.partialorder %v5053, 0.0
      %vm5176 = vcmp.ge.f32.partialorder %v5056, 0.0
      %vm5177 = vcmp.ge.f32.partialorder %v5061, 0.0
      %vm5178 = vcmp.ge.f32.partialorder %v5064, 0.0
      %vm5179 = vcmp.ge.f32.partialorder %v5069, 0.0
      %vm5180 = vcmp.ge.f32.partialorder %v5072, 0.0
      %vm5181 = vcmp.ge.f32.partialorder %v5077, 0.0
      %vm5182 = vcmp.ge.f32.partialorder %v5080, 0.0
      %vm5183 = vcmp.ge.f32.partialorder %v5085, 0.0
      %vm5184 = vcmp.ge.f32.partialorder %v5088, 0.0
      %vm5185 = vcmp.ge.f32.partialorder %v5093, 0.0
      %vm5186 = vcmp.ge.f32.partialorder %v5096, 0.0
      %vm5187 = vcmp.ge.f32.partialorder %v5101, 0.0
      %vm5188 = vcmp.ge.f32.partialorder %v5104, 0.0
      %vm5189 = vcmp.ge.f32.partialorder %v5109, 0.0
      %vm5190 = vcmp.ge.f32.partialorder %v5112, 0.0
      %vm5191 = vcmp.ge.f32.partialorder %v5117, 0.0
      %vm5192 = vcmp.ge.f32.partialorder %v5120, 0.0
      %vm5193 = vcmp.ge.f32.partialorder %v5125, 0.0
      %vm5194 = vcmp.ge.f32.partialorder %v5128, 0.0
      %v5195 = vmul.f32 %v4877, 0.1
      %v5196 = vmul.f32 %v4880, 0.1
      %v5197 = vmul.f32 %v4885, 0.1
      %v5198 = vmul.f32 %v4888, 0.1
      %v5199 = vmul.f32 %v4893, 0.1
      %v5200 = vmul.f32 %v4896, 0.1
      %v5201 = vmul.f32 %v4901, 0.1
      %v5202 = vmul.f32 %v4904, 0.1
      %v5203 = vmul.f32 %v4909, 0.1
      %v5204 = vmul.f32 %v4912, 0.1
      %v5205 = vmul.f32 %v4917, 0.1
      %v5206 = vmul.f32 %v4920, 0.1
      %v5207 = vmul.f32 %v4925, 0.1
      %v5208 = vmul.f32 %v4928, 0.1
      %v5209 = vmul.f32 %v4933, 0.1
      %v5210 = vmul.f32 %v4936, 0.1
      %v5211 = vmul.f32 %v4941, 0.1
      %v5212 = vmul.f32 %v4944, 0.1
      %v5213 = vmul.f32 %v4949, 0.1
      %v5214 = vmul.f32 %v4952, 0.1
      %v5215 = vmul.f32 %v4957, 0.1
      %v5216 = vmul.f32 %v4960, 0.1
      %v5217 = vmul.f32 %v4965, 0.1
      %v5218 = vmul.f32 %v4968, 0.1
      %v5219 = vmul.f32 %v4973, 0.1
      %v5220 = vmul.f32 %v4976, 0.1
      %v5221 = vmul.f32 %v4981, 0.1
      %v5222 = vmul.f32 %v4984, 0.1
      %v5223 = vmul.f32 %v4989, 0.1
      %v5224 = vmul.f32 %v4992, 0.1
      %v5225 = vmul.f32 %v4997, 0.1
      %v5226 = vmul.f32 %v5000, 0.1
      %v5227 = vmul.f32 %v5005, 0.1
      %v5228 = vmul.f32 %v5008, 0.1
      %v5229 = vmul.f32 %v5013, 0.1
      %v5230 = vmul.f32 %v5016, 0.1
      %v5231 = vmul.f32 %v5021, 0.1
      %v5232 = vmul.f32 %v5024, 0.1
      %v5233 = vmul.f32 %v5029, 0.1
      %v5234 = vmul.f32 %v5032, 0.1
      %v5235 = vmul.f32 %v5037, 0.1
      %v5236 = vmul.f32 %v5040, 0.1
      %v5237 = vmul.f32 %v5045, 0.1
      %v5238 = vmul.f32 %v5048, 0.1
      %v5239 = vmul.f32 %v5053, 0.1
      %v5240 = vmul.f32 %v5056, 0.1
      %v5241 = vmul.f32 %v5061, 0.1
      %v5242 = vmul.f32 %v5064, 0.1
      %v5243 = vmul.f32 %v5069, 0.1
      %v5244 = vmul.f32 %v5072, 0.1
      %v5245 = vmul.f32 %v5077, 0.1
      %v5246 = vmul.f32 %v5080, 0.1
      %v5247 = vmul.f32 %v5085, 0.1
      %v5248 = vmul.f32 %v5088, 0.1
      %v5249 = vmul.f32 %v5093, 0.1
      %v5250 = vmul.f32 %v5096, 0.1
      %v5251 = vmul.f32 %v5101, 0.1
      %v5252 = vmul.f32 %v5104, 0.1
      %v5253 = vmul.f32 %v5109, 0.1
      %v5254 = vmul.f32 %v5112, 0.1
      %v5255 = vmul.f32 %v5117, 0.1
      %v5256 = vmul.f32 %v5120, 0.1
      %v5257 = vmul.f32 %v5125, 0.1
      %v5258 = vmul.f32 %v5128, 0.1
      %v5259 = vsel %vm5131, %v4877, %v5195
      %v5260 = vsel %vm5132, %v4880, %v5196
      %v5261 = vsel %vm5133, %v4885, %v5197
      %v5262 = vsel %vm5134, %v4888, %v5198
      %v5263 = vsel %vm5135, %v4893, %v5199
      %v5264 = vsel %vm5136, %v4896, %v5200
      %v5265 = vsel %vm5137, %v4901, %v5201
      %v5266 = vsel %vm5138, %v4904, %v5202
      %v5267 = vsel %vm5139, %v4909, %v5203
      %v5268 = vsel %vm5140, %v4912, %v5204
      %v5269 = vsel %vm5141, %v4917, %v5205
      %v5270 = vsel %vm5142, %v4920, %v5206
      %v5271 = vsel %vm5143, %v4925, %v5207
      %v5272 = vsel %vm5144, %v4928, %v5208
      %v5273 = vsel %vm5145, %v4933, %v5209
      %v5274 = vsel %vm5146, %v4936, %v5210
      %v5275 = vsel %vm5147, %v4941, %v5211
      %v5276 = vsel %vm5148, %v4944, %v5212
      %v5277 = vsel %vm5149, %v4949, %v5213
      %v5278 = vsel %vm5150, %v4952, %v5214
      %v5279 = vsel %vm5151, %v4957, %v5215
      %v5280 = vsel %vm5152, %v4960, %v5216
      %v5281 = vsel %vm5153, %v4965, %v5217
      %v5282 = vsel %vm5154, %v4968, %v5218
      %v5283 = vsel %vm5155, %v4973, %v5219
      %v5284 = vsel %vm5156, %v4976, %v5220
      %v5285 = vsel %vm5157, %v4981, %v5221
      %v5286 = vsel %vm5158, %v4984, %v5222
      %v5287 = vsel %vm5159, %v4989, %v5223
      %v5288 = vsel %vm5160, %v4992, %v5224
      %v5289 = vsel %vm5161, %v4997, %v5225
      %v5290 = vsel %vm5162, %v5000, %v5226
      %v5291 = vsel %vm5163, %v5005, %v5227
      %v5292 = vsel %vm5164, %v5008, %v5228
      %v5293 = vsel %vm5165, %v5013, %v5229
      %v5294 = vsel %vm5166, %v5016, %v5230
      %v5295 = vsel %vm5167, %v5021, %v5231
      %v5296 = vsel %vm5168, %v5024, %v5232
      %v5297 = vsel %vm5169, %v5029, %v5233
      %v5298 = vsel %vm5170, %v5032, %v5234
      %v5299 = vsel %vm5171, %v5037, %v5235
      %v5300 = vsel %vm5172, %v5040, %v5236
      %v5301 = vsel %vm5173, %v5045, %v5237
      %v5302 = vsel %vm5174, %v5048, %v5238
      %v5303 = vsel %vm5175, %v5053, %v5239
      %v5304 = vsel %vm5176, %v5056, %v5240
      %v5305 = vsel %vm5177, %v5061, %v5241
      %v5306 = vsel %vm5178, %v5064, %v5242
      %v5307 = vsel %vm5179, %v5069, %v5243
      %v5308 = vsel %vm5180, %v5072, %v5244
      %v5309 = vsel %vm5181, %v5077, %v5245
      %v5310 = vsel %vm5182, %v5080, %v5246
      %v5311 = vsel %vm5183, %v5085, %v5247
      %v5312 = vsel %vm5184, %v5088, %v5248
      %v5313 = vsel %vm5185, %v5093, %v5249
      %v5314 = vsel %vm5186, %v5096, %v5250
      %v5315 = vsel %vm5187, %v5101, %v5251
      %v5316 = vsel %vm5188, %v5104, %v5252
      %v5317 = vsel %vm5189, %v5109, %v5253
      %v5318 = vsel %vm5190, %v5112, %v5254
      %v5319 = vsel %vm5191, %v5117, %v5255
      %v5320 = vsel %vm5192, %v5120, %v5256
      %v5321 = vsel %vm5193, %v5125, %v5257
      %v5322 = vsel %vm5194, %v5128, %v5258
      %v5323 = vsel %vm3303, %v5259, 0.0
      %5324 = vadd.xlane.f32.xlu0 %v5323
      %v5325 = vpop.xlane.xlu0 %5324
      %v5326 = vsel %vm3303, %v5260, 0.0
      %5327 = vadd.xlane.f32.xlu0 %v5326
      %v5328 = vpop.xlane.xlu0 %5327
      %v5329 = vsel %vm3303, %v5261, 0.0
      %5330 = vadd.xlane.f32.xlu0 %v5329
      %v5331 = vpop.xlane.xlu0 %5330
      %v5332 = vsel %vm3303, %v5262, 0.0
      %5333 = vadd.xlane.f32.xlu0 %v5332
      %v5334 = vpop.xlane.xlu0 %5333
      %v5335 = vsel %vm3303, %v5263, 0.0
      %5336 = vadd.xlane.f32.xlu0 %v5335
      %v5337 = vpop.xlane.xlu0 %5336
      %v5338 = vsel %vm3303, %v5264, 0.0
      %5339 = vadd.xlane.f32.xlu0 %v5338
      %v5340 = vpop.xlane.xlu0 %5339
      %v5341 = vsel %vm3303, %v5265, 0.0
      %5342 = vadd.xlane.f32.xlu0 %v5341
      %v5343 = vpop.xlane.xlu0 %5342
      %v5344 = vsel %vm3303, %v5266, 0.0
      %5345 = vadd.xlane.f32.xlu0 %v5344
      %v5346 = vpop.xlane.xlu0 %5345
      %v5347 = vsel %vm3303, %v5267, 0.0
      %5348 = vadd.xlane.f32.xlu0 %v5347
      %v5349 = vpop.xlane.xlu0 %5348
      %v5350 = vsel %vm3303, %v5268, 0.0
      %5351 = vadd.xlane.f32.xlu0 %v5350
      %v5352 = vpop.xlane.xlu0 %5351
      %v5353 = vsel %vm3303, %v5269, 0.0
      %5354 = vadd.xlane.f32.xlu0 %v5353
      %v5355 = vpop.xlane.xlu0 %5354
      %v5356 = vsel %vm3303, %v5270, 0.0
      %5357 = vadd.xlane.f32.xlu0 %v5356
      %v5358 = vpop.xlane.xlu0 %5357
      %v5359 = vsel %vm3303, %v5271, 0.0
      %5360 = vadd.xlane.f32.xlu0 %v5359
      %v5361 = vpop.xlane.xlu0 %5360
      %v5362 = vsel %vm3303, %v5272, 0.0
      %5363 = vadd.xlane.f32.xlu0 %v5362
      %v5364 = vpop.xlane.xlu0 %5363
      %v5365 = vsel %vm3303, %v5273, 0.0
      %5366 = vadd.xlane.f32.xlu0 %v5365
      %v5367 = vpop.xlane.xlu0 %5366
      %v5368 = vsel %vm3303, %v5274, 0.0
      %5369 = vadd.xlane.f32.xlu0 %v5368
      %v5370 = vpop.xlane.xlu0 %5369
      %v5371 = vsel %vm3303, %v5275, 0.0
      %5372 = vadd.xlane.f32.xlu0 %v5371
      %v5373 = vpop.xlane.xlu0 %5372
      %v5374 = vsel %vm3303, %v5276, 0.0
      %5375 = vadd.xlane.f32.xlu0 %v5374
      %v5376 = vpop.xlane.xlu0 %5375
      %v5377 = vsel %vm3303, %v5277, 0.0
      %5378 = vadd.xlane.f32.xlu0 %v5377
      %v5379 = vpop.xlane.xlu0 %5378
      %v5380 = vsel %vm3303, %v5278, 0.0
      %5381 = vadd.xlane.f32.xlu0 %v5380
      %v5382 = vpop.xlane.xlu0 %5381
      %v5383 = vsel %vm3303, %v5279, 0.0
      %5384 = vadd.xlane.f32.xlu0 %v5383
      %v5385 = vpop.xlane.xlu0 %5384
      %v5386 = vsel %vm3303, %v5280, 0.0
      %5387 = vadd.xlane.f32.xlu0 %v5386
      %v5388 = vpop.xlane.xlu0 %5387
      %v5389 = vsel %vm3303, %v5281, 0.0
      %5390 = vadd.xlane.f32.xlu0 %v5389
      %v5391 = vpop.xlane.xlu0 %5390
      %v5392 = vsel %vm3303, %v5282, 0.0
      %5393 = vadd.xlane.f32.xlu0 %v5392
      %v5394 = vpop.xlane.xlu0 %5393
      %v5395 = vsel %vm3303, %v5283, 0.0
      %5396 = vadd.xlane.f32.xlu0 %v5395
      %v5397 = vpop.xlane.xlu0 %5396
      %v5398 = vsel %vm3303, %v5284, 0.0
      %5399 = vadd.xlane.f32.xlu0 %v5398
      %v5400 = vpop.xlane.xlu0 %5399
      %v5401 = vsel %vm3303, %v5285, 0.0
      %5402 = vadd.xlane.f32.xlu0 %v5401
      %v5403 = vpop.xlane.xlu0 %5402
      %v5404 = vsel %vm3303, %v5286, 0.0
      %5405 = vadd.xlane.f32.xlu0 %v5404
      %v5406 = vpop.xlane.xlu0 %5405
      %v5407 = vsel %vm3303, %v5287, 0.0
      %5408 = vadd.xlane.f32.xlu0 %v5407
      %v5409 = vpop.xlane.xlu0 %5408
      %v5410 = vsel %vm3303, %v5288, 0.0
      %5411 = vadd.xlane.f32.xlu0 %v5410
      %v5412 = vpop.xlane.xlu0 %5411
      %v5413 = vsel %vm3303, %v5289, 0.0
      %5414 = vadd.xlane.f32.xlu0 %v5413
      %v5415 = vpop.xlane.xlu0 %5414
      %v5416 = vsel %vm3303, %v5290, 0.0
      %5417 = vadd.xlane.f32.xlu0 %v5416
      %v5418 = vpop.xlane.xlu0 %5417
      %v5419 = vsel %vm3303, %v5291, 0.0
      %5420 = vadd.xlane.f32.xlu0 %v5419
      %v5421 = vpop.xlane.xlu0 %5420
      %v5422 = vsel %vm3303, %v5292, 0.0
      %5423 = vadd.xlane.f32.xlu0 %v5422
      %v5424 = vpop.xlane.xlu0 %5423
      %v5425 = vsel %vm3303, %v5293, 0.0
      %5426 = vadd.xlane.f32.xlu0 %v5425
      %v5427 = vpop.xlane.xlu0 %5426
      %v5428 = vsel %vm3303, %v5294, 0.0
      %5429 = vadd.xlane.f32.xlu0 %v5428
      %v5430 = vpop.xlane.xlu0 %5429
      %v5431 = vsel %vm3303, %v5295, 0.0
      %5432 = vadd.xlane.f32.xlu0 %v5431
      %v5433 = vpop.xlane.xlu0 %5432
      %v5434 = vsel %vm3303, %v5296, 0.0
      %5435 = vadd.xlane.f32.xlu0 %v5434
      %v5436 = vpop.xlane.xlu0 %5435
      %v5437 = vsel %vm3303, %v5297, 0.0
      %5438 = vadd.xlane.f32.xlu0 %v5437
      %v5439 = vpop.xlane.xlu0 %5438
      %v5440 = vsel %vm3303, %v5298, 0.0
      %5441 = vadd.xlane.f32.xlu0 %v5440
      %v5442 = vpop.xlane.xlu0 %5441
      %v5443 = vsel %vm3303, %v5299, 0.0
      %5444 = vadd.xlane.f32.xlu0 %v5443
      %v5445 = vpop.xlane.xlu0 %5444
      %v5446 = vsel %vm3303, %v5300, 0.0
      %5447 = vadd.xlane.f32.xlu0 %v5446
      %v5448 = vpop.xlane.xlu0 %5447
      %v5449 = vsel %vm3303, %v5301, 0.0
      %5450 = vadd.xlane.f32.xlu0 %v5449
      %v5451 = vpop.xlane.xlu0 %5450
      %v5452 = vsel %vm3303, %v5302, 0.0
      %5453 = vadd.xlane.f32.xlu0 %v5452
      %v5454 = vpop.xlane.xlu0 %5453
      %v5455 = vsel %vm3303, %v5303, 0.0
      %5456 = vadd.xlane.f32.xlu0 %v5455
      %v5457 = vpop.xlane.xlu0 %5456
      %v5458 = vsel %vm3303, %v5304, 0.0
      %5459 = vadd.xlane.f32.xlu0 %v5458
      %v5460 = vpop.xlane.xlu0 %5459
      %v5461 = vsel %vm3303, %v5305, 0.0
      %5462 = vadd.xlane.f32.xlu0 %v5461
      %v5463 = vpop.xlane.xlu0 %5462
      %v5464 = vsel %vm3303, %v5306, 0.0
      %5465 = vadd.xlane.f32.xlu0 %v5464
      %v5466 = vpop.xlane.xlu0 %5465
      %v5467 = vsel %vm3303, %v5307, 0.0
      %5468 = vadd.xlane.f32.xlu0 %v5467
      %v5469 = vpop.xlane.xlu0 %5468
      %v5470 = vsel %vm3303, %v5308, 0.0
      %5471 = vadd.xlane.f32.xlu0 %v5470
      %v5472 = vpop.xlane.xlu0 %5471
      %v5473 = vsel %vm3303, %v5309, 0.0
      %5474 = vadd.xlane.f32.xlu0 %v5473
      %v5475 = vpop.xlane.xlu0 %5474
      %v5476 = vsel %vm3303, %v5310, 0.0
      %5477 = vadd.xlane.f32.xlu0 %v5476
      %v5478 = vpop.xlane.xlu0 %5477
      %v5479 = vsel %vm3303, %v5311, 0.0
      %5480 = vadd.xlane.f32.xlu0 %v5479
      %v5481 = vpop.xlane.xlu0 %5480
      %v5482 = vsel %vm3303, %v5312, 0.0
      %5483 = vadd.xlane.f32.xlu0 %v5482
      %v5484 = vpop.xlane.xlu0 %5483
      %v5485 = vsel %vm3303, %v5313, 0.0
      %5486 = vadd.xlane.f32.xlu0 %v5485
      %v5487 = vpop.xlane.xlu0 %5486
      %v5488 = vsel %vm3303, %v5314, 0.0
      %5489 = vadd.xlane.f32.xlu0 %v5488
      %v5490 = vpop.xlane.xlu0 %5489
      %v5491 = vsel %vm3303, %v5315, 0.0
      %5492 = vadd.xlane.f32.xlu0 %v5491
      %v5493 = vpop.xlane.xlu0 %5492
      %v5494 = vsel %vm3303, %v5316, 0.0
      %5495 = vadd.xlane.f32.xlu0 %v5494
      %v5496 = vpop.xlane.xlu0 %5495
      %v5497 = vsel %vm3303, %v5317, 0.0
      %5498 = vadd.xlane.f32.xlu0 %v5497
      %v5499 = vpop.xlane.xlu0 %5498
      %v5500 = vsel %vm3303, %v5318, 0.0
      %5501 = vadd.xlane.f32.xlu0 %v5500
      %v5502 = vpop.xlane.xlu0 %5501
      %v5503 = vsel %vm3303, %v5319, 0.0
      %5504 = vadd.xlane.f32.xlu0 %v5503
      %v5505 = vpop.xlane.xlu0 %5504
      %v5506 = vsel %vm3303, %v5320, 0.0
      %5507 = vadd.xlane.f32.xlu0 %v5506
      %v5508 = vpop.xlane.xlu0 %5507
      %v5509 = vsel %vm3303, %v5321, 0.0
      %5510 = vadd.xlane.f32.xlu0 %v5509
      %v5511 = vpop.xlane.xlu0 %5510
      %v5512 = vsel %vm3303, %v5322, 0.0
      %5513 = vadd.xlane.f32.xlu0 %v5512
      %v5514 = vpop.xlane.xlu0 %5513
      %v5515 = vmul.f32 %v5325, 0.015625
      %v5516 = vmul.f32 %v5328, 0.015625
      %v5517 = vmul.f32 %v5331, 0.015625
      %v5518 = vmul.f32 %v5334, 0.015625
      %v5519 = vmul.f32 %v5337, 0.015625
      %v5520 = vmul.f32 %v5340, 0.015625
      %v5521 = vmul.f32 %v5343, 0.015625
      %v5522 = vmul.f32 %v5346, 0.015625
      %v5523 = vmul.f32 %v5349, 0.015625
      %v5524 = vmul.f32 %v5352, 0.015625
      %v5525 = vmul.f32 %v5355, 0.015625
      %v5526 = vmul.f32 %v5358, 0.015625
      %v5527 = vmul.f32 %v5361, 0.015625
      %v5528 = vmul.f32 %v5364, 0.015625
      %v5529 = vmul.f32 %v5367, 0.015625
      %v5530 = vmul.f32 %v5370, 0.015625
      %v5531 = vmul.f32 %v5373, 0.015625
      %v5532 = vmul.f32 %v5376, 0.015625
      %v5533 = vmul.f32 %v5379, 0.015625
      %v5534 = vmul.f32 %v5382, 0.015625
      %v5535 = vmul.f32 %v5385, 0.015625
      %v5536 = vmul.f32 %v5388, 0.015625
      %v5537 = vmul.f32 %v5391, 0.015625
      %v5538 = vmul.f32 %v5394, 0.015625
      %v5539 = vmul.f32 %v5397, 0.015625
      %v5540 = vmul.f32 %v5400, 0.015625
      %v5541 = vmul.f32 %v5403, 0.015625
      %v5542 = vmul.f32 %v5406, 0.015625
      %v5543 = vmul.f32 %v5409, 0.015625
      %v5544 = vmul.f32 %v5412, 0.015625
      %v5545 = vmul.f32 %v5415, 0.015625
      %v5546 = vmul.f32 %v5418, 0.015625
      %v5547 = vmul.f32 %v5421, 0.015625
      %v5548 = vmul.f32 %v5424, 0.015625
      %v5549 = vmul.f32 %v5427, 0.015625
      %v5550 = vmul.f32 %v5430, 0.015625
      %v5551 = vmul.f32 %v5433, 0.015625
      %v5552 = vmul.f32 %v5436, 0.015625
      %v5553 = vmul.f32 %v5439, 0.015625
      %v5554 = vmul.f32 %v5442, 0.015625
      %v5555 = vmul.f32 %v5445, 0.015625
      %v5556 = vmul.f32 %v5448, 0.015625
      %v5557 = vmul.f32 %v5451, 0.015625
      %v5558 = vmul.f32 %v5454, 0.015625
      %v5559 = vmul.f32 %v5457, 0.015625
      %v5560 = vmul.f32 %v5460, 0.015625
      %v5561 = vmul.f32 %v5463, 0.015625
      %v5562 = vmul.f32 %v5466, 0.015625
      %v5563 = vmul.f32 %v5469, 0.015625
      %v5564 = vmul.f32 %v5472, 0.015625
      %v5565 = vmul.f32 %v5475, 0.015625
      %v5566 = vmul.f32 %v5478, 0.015625
      %v5567 = vmul.f32 %v5481, 0.015625
      %v5568 = vmul.f32 %v5484, 0.015625
      %v5569 = vmul.f32 %v5487, 0.015625
      %v5570 = vmul.f32 %v5490, 0.015625
      %v5571 = vmul.f32 %v5493, 0.015625
      %v5572 = vmul.f32 %v5496, 0.015625
      %v5573 = vmul.f32 %v5499, 0.015625
      %v5574 = vmul.f32 %v5502, 0.015625
      %v5575 = vmul.f32 %v5505, 0.015625
      %v5576 = vmul.f32 %v5508, 0.015625
      %v5577 = vmul.f32 %v5511, 0.015625
      %v5578 = vmul.f32 %v5514, 0.015625
      %v5643 = vlaneseq
      %v5644 = vshrl.u32 %v5643, 7
      %v5645 = vsub.s32 0, %v5644
      %v5646 = vrot.slane %v5515, %v5645
      %v5647 = vlaneseq
      %v5648 = vshrl.u32 %v5647, 7
      %v5649 = vsub.s32 1, %v5648
      %v5650 = vrot.slane %v5515, %v5649
      %v5651 = vlaneseq
      %v5652 = vshrl.u32 %v5651, 7
      %v5653 = vsub.s32 2, %v5652
      %v5654 = vrot.slane %v5515, %v5653
      %v5655 = vlaneseq
      %v5656 = vshrl.u32 %v5655, 7
      %v5657 = vsub.s32 3, %v5656
      %v5658 = vrot.slane %v5515, %v5657
      %v5659 = vlaneseq
      %v5660 = vshrl.u32 %v5659, 7
      %v5661 = vsub.s32 4, %v5660
      %v5662 = vrot.slane %v5515, %v5661
      %v5663 = vlaneseq
      %v5664 = vshrl.u32 %v5663, 7
      %v5665 = vsub.s32 5, %v5664
      %v5666 = vrot.slane %v5515, %v5665
      %v5667 = vlaneseq
      %v5668 = vshrl.u32 %v5667, 7
      %v5669 = vsub.s32 6, %v5668
      %v5670 = vrot.slane %v5515, %v5669
      %v5671 = vlaneseq
      %v5672 = vshrl.u32 %v5671, 7
      %v5673 = vsub.s32 7, %v5672
      %v5674 = vrot.slane %v5515, %v5673
      %v5675 = vlaneseq
      %v5676 = vshrl.u32 %v5675, 7
      %v5677 = vsub.s32 0, %v5676
      %v5678 = vrot.slane %v5516, %v5677
      %v5679 = vlaneseq
      %v5680 = vshrl.u32 %v5679, 7
      %v5681 = vsub.s32 1, %v5680
      %v5682 = vrot.slane %v5516, %v5681
      %v5683 = vlaneseq
      %v5684 = vshrl.u32 %v5683, 7
      %v5685 = vsub.s32 2, %v5684
      %v5686 = vrot.slane %v5516, %v5685
      %v5687 = vlaneseq
      %v5688 = vshrl.u32 %v5687, 7
      %v5689 = vsub.s32 3, %v5688
      %v5690 = vrot.slane %v5516, %v5689
      %v5691 = vlaneseq
      %v5692 = vshrl.u32 %v5691, 7
      %v5693 = vsub.s32 4, %v5692
      %v5694 = vrot.slane %v5516, %v5693
      %v5695 = vlaneseq
      %v5696 = vshrl.u32 %v5695, 7
      %v5697 = vsub.s32 5, %v5696
      %v5698 = vrot.slane %v5516, %v5697
      %v5699 = vlaneseq
      %v5700 = vshrl.u32 %v5699, 7
      %v5701 = vsub.s32 6, %v5700
      %v5702 = vrot.slane %v5516, %v5701
      %v5703 = vlaneseq
      %v5704 = vshrl.u32 %v5703, 7
      %v5705 = vsub.s32 7, %v5704
      %v5706 = vrot.slane %v5516, %v5705
      %v5707 = vlaneseq
      %v5708 = vshrl.u32 %v5707, 7
      %v5709 = vsub.s32 0, %v5708
      %v5710 = vrot.slane %v5517, %v5709
      %v5711 = vlaneseq
      %v5712 = vshrl.u32 %v5711, 7
      %v5713 = vsub.s32 1, %v5712
      %v5714 = vrot.slane %v5517, %v5713
      %v5715 = vlaneseq
      %v5716 = vshrl.u32 %v5715, 7
      %v5717 = vsub.s32 2, %v5716
      %v5718 = vrot.slane %v5517, %v5717
      %v5719 = vlaneseq
      %v5720 = vshrl.u32 %v5719, 7
      %v5721 = vsub.s32 3, %v5720
      %v5722 = vrot.slane %v5517, %v5721
      %v5723 = vlaneseq
      %v5724 = vshrl.u32 %v5723, 7
      %v5725 = vsub.s32 4, %v5724
      %v5726 = vrot.slane %v5517, %v5725
      %v5727 = vlaneseq
      %v5728 = vshrl.u32 %v5727, 7
      %v5729 = vsub.s32 5, %v5728
      %v5730 = vrot.slane %v5517, %v5729
      %v5731 = vlaneseq
      %v5732 = vshrl.u32 %v5731, 7
      %v5733 = vsub.s32 6, %v5732
      %v5734 = vrot.slane %v5517, %v5733
      %v5735 = vlaneseq
      %v5736 = vshrl.u32 %v5735, 7
      %v5737 = vsub.s32 7, %v5736
      %v5738 = vrot.slane %v5517, %v5737
      %v5739 = vlaneseq
      %v5740 = vshrl.u32 %v5739, 7
      %v5741 = vsub.s32 0, %v5740
      %v5742 = vrot.slane %v5518, %v5741
      %v5743 = vlaneseq
      %v5744 = vshrl.u32 %v5743, 7
      %v5745 = vsub.s32 1, %v5744
      %v5746 = vrot.slane %v5518, %v5745
      %v5747 = vlaneseq
      %v5748 = vshrl.u32 %v5747, 7
      %v5749 = vsub.s32 2, %v5748
      %v5750 = vrot.slane %v5518, %v5749
      %v5751 = vlaneseq
      %v5752 = vshrl.u32 %v5751, 7
      %v5753 = vsub.s32 3, %v5752
      %v5754 = vrot.slane %v5518, %v5753
      %v5755 = vlaneseq
      %v5756 = vshrl.u32 %v5755, 7
      %v5757 = vsub.s32 4, %v5756
      %v5758 = vrot.slane %v5518, %v5757
      %v5759 = vlaneseq
      %v5760 = vshrl.u32 %v5759, 7
      %v5761 = vsub.s32 5, %v5760
      %v5762 = vrot.slane %v5518, %v5761
      %v5763 = vlaneseq
      %v5764 = vshrl.u32 %v5763, 7
      %v5765 = vsub.s32 6, %v5764
      %v5766 = vrot.slane %v5518, %v5765
      %v5767 = vlaneseq
      %v5768 = vshrl.u32 %v5767, 7
      %v5769 = vsub.s32 7, %v5768
      %v5770 = vrot.slane %v5518, %v5769
      %v5771 = vlaneseq
      %v5772 = vshrl.u32 %v5771, 7
      %v5773 = vsub.s32 0, %v5772
      %v5774 = vrot.slane %v5519, %v5773
      %v5775 = vlaneseq
      %v5776 = vshrl.u32 %v5775, 7
      %v5777 = vsub.s32 1, %v5776
      %v5778 = vrot.slane %v5519, %v5777
      %v5779 = vlaneseq
      %v5780 = vshrl.u32 %v5779, 7
      %v5781 = vsub.s32 2, %v5780
      %v5782 = vrot.slane %v5519, %v5781
      %v5783 = vlaneseq
      %v5784 = vshrl.u32 %v5783, 7
      %v5785 = vsub.s32 3, %v5784
      %v5786 = vrot.slane %v5519, %v5785
      %v5787 = vlaneseq
      %v5788 = vshrl.u32 %v5787, 7
      %v5789 = vsub.s32 4, %v5788
      %v5790 = vrot.slane %v5519, %v5789
      %v5791 = vlaneseq
      %v5792 = vshrl.u32 %v5791, 7
      %v5793 = vsub.s32 5, %v5792
      %v5794 = vrot.slane %v5519, %v5793
      %v5795 = vlaneseq
      %v5796 = vshrl.u32 %v5795, 7
      %v5797 = vsub.s32 6, %v5796
      %v5798 = vrot.slane %v5519, %v5797
      %v5799 = vlaneseq
      %v5800 = vshrl.u32 %v5799, 7
      %v5801 = vsub.s32 7, %v5800
      %v5802 = vrot.slane %v5519, %v5801
      %v5803 = vlaneseq
      %v5804 = vshrl.u32 %v5803, 7
      %v5805 = vsub.s32 0, %v5804
      %v5806 = vrot.slane %v5520, %v5805
      %v5807 = vlaneseq
      %v5808 = vshrl.u32 %v5807, 7
      %v5809 = vsub.s32 1, %v5808
      %v5810 = vrot.slane %v5520, %v5809
      %v5811 = vlaneseq
      %v5812 = vshrl.u32 %v5811, 7
      %v5813 = vsub.s32 2, %v5812
      %v5814 = vrot.slane %v5520, %v5813
      %v5815 = vlaneseq
      %v5816 = vshrl.u32 %v5815, 7
      %v5817 = vsub.s32 3, %v5816
      %v5818 = vrot.slane %v5520, %v5817
      %v5819 = vlaneseq
      %v5820 = vshrl.u32 %v5819, 7
      %v5821 = vsub.s32 4, %v5820
      %v5822 = vrot.slane %v5520, %v5821
      %v5823 = vlaneseq
      %v5824 = vshrl.u32 %v5823, 7
      %v5825 = vsub.s32 5, %v5824
      %v5826 = vrot.slane %v5520, %v5825
      %v5827 = vlaneseq
      %v5828 = vshrl.u32 %v5827, 7
      %v5829 = vsub.s32 6, %v5828
      %v5830 = vrot.slane %v5520, %v5829
      %v5831 = vlaneseq
      %v5832 = vshrl.u32 %v5831, 7
      %v5833 = vsub.s32 7, %v5832
      %v5834 = vrot.slane %v5520, %v5833
      %v5835 = vlaneseq
      %v5836 = vshrl.u32 %v5835, 7
      %v5837 = vsub.s32 0, %v5836
      %v5838 = vrot.slane %v5521, %v5837
      %v5839 = vlaneseq
      %v5840 = vshrl.u32 %v5839, 7
      %v5841 = vsub.s32 1, %v5840
      %v5842 = vrot.slane %v5521, %v5841
      %v5843 = vlaneseq
      %v5844 = vshrl.u32 %v5843, 7
      %v5845 = vsub.s32 2, %v5844
      %v5846 = vrot.slane %v5521, %v5845
      %v5847 = vlaneseq
      %v5848 = vshrl.u32 %v5847, 7
      %v5849 = vsub.s32 3, %v5848
      %v5850 = vrot.slane %v5521, %v5849
      %v5851 = vlaneseq
      %v5852 = vshrl.u32 %v5851, 7
      %v5853 = vsub.s32 4, %v5852
      %v5854 = vrot.slane %v5521, %v5853
      %v5855 = vlaneseq
      %v5856 = vshrl.u32 %v5855, 7
      %v5857 = vsub.s32 5, %v5856
      %v5858 = vrot.slane %v5521, %v5857
      %v5859 = vlaneseq
      %v5860 = vshrl.u32 %v5859, 7
      %v5861 = vsub.s32 6, %v5860
      %v5862 = vrot.slane %v5521, %v5861
      %v5863 = vlaneseq
      %v5864 = vshrl.u32 %v5863, 7
      %v5865 = vsub.s32 7, %v5864
      %v5866 = vrot.slane %v5521, %v5865
      %v5867 = vlaneseq
      %v5868 = vshrl.u32 %v5867, 7
      %v5869 = vsub.s32 0, %v5868
      %v5870 = vrot.slane %v5522, %v5869
      %v5871 = vlaneseq
      %v5872 = vshrl.u32 %v5871, 7
      %v5873 = vsub.s32 1, %v5872
      %v5874 = vrot.slane %v5522, %v5873
      %v5875 = vlaneseq
      %v5876 = vshrl.u32 %v5875, 7
      %v5877 = vsub.s32 2, %v5876
      %v5878 = vrot.slane %v5522, %v5877
      %v5879 = vlaneseq
      %v5880 = vshrl.u32 %v5879, 7
      %v5881 = vsub.s32 3, %v5880
      %v5882 = vrot.slane %v5522, %v5881
      %v5883 = vlaneseq
      %v5884 = vshrl.u32 %v5883, 7
      %v5885 = vsub.s32 4, %v5884
      %v5886 = vrot.slane %v5522, %v5885
      %v5887 = vlaneseq
      %v5888 = vshrl.u32 %v5887, 7
      %v5889 = vsub.s32 5, %v5888
      %v5890 = vrot.slane %v5522, %v5889
      %v5891 = vlaneseq
      %v5892 = vshrl.u32 %v5891, 7
      %v5893 = vsub.s32 6, %v5892
      %v5894 = vrot.slane %v5522, %v5893
      %v5895 = vlaneseq
      %v5896 = vshrl.u32 %v5895, 7
      %v5897 = vsub.s32 7, %v5896
      %v5898 = vrot.slane %v5522, %v5897
      %v5899 = vlaneseq
      %v5900 = vshrl.u32 %v5899, 7
      %v5901 = vsub.s32 0, %v5900
      %v5902 = vrot.slane %v5523, %v5901
      %v5903 = vlaneseq
      %v5904 = vshrl.u32 %v5903, 7
      %v5905 = vsub.s32 1, %v5904
      %v5906 = vrot.slane %v5523, %v5905
      %v5907 = vlaneseq
      %v5908 = vshrl.u32 %v5907, 7
      %v5909 = vsub.s32 2, %v5908
      %v5910 = vrot.slane %v5523, %v5909
      %v5911 = vlaneseq
      %v5912 = vshrl.u32 %v5911, 7
      %v5913 = vsub.s32 3, %v5912
      %v5914 = vrot.slane %v5523, %v5913
      %v5915 = vlaneseq
      %v5916 = vshrl.u32 %v5915, 7
      %v5917 = vsub.s32 4, %v5916
      %v5918 = vrot.slane %v5523, %v5917
      %v5919 = vlaneseq
      %v5920 = vshrl.u32 %v5919, 7
      %v5921 = vsub.s32 5, %v5920
      %v5922 = vrot.slane %v5523, %v5921
      %v5923 = vlaneseq
      %v5924 = vshrl.u32 %v5923, 7
      %v5925 = vsub.s32 6, %v5924
      %v5926 = vrot.slane %v5523, %v5925
      %v5927 = vlaneseq
      %v5928 = vshrl.u32 %v5927, 7
      %v5929 = vsub.s32 7, %v5928
      %v5930 = vrot.slane %v5523, %v5929
      %v5931 = vlaneseq
      %v5932 = vshrl.u32 %v5931, 7
      %v5933 = vsub.s32 0, %v5932
      %v5934 = vrot.slane %v5524, %v5933
      %v5935 = vlaneseq
      %v5936 = vshrl.u32 %v5935, 7
      %v5937 = vsub.s32 1, %v5936
      %v5938 = vrot.slane %v5524, %v5937
      %v5939 = vlaneseq
      %v5940 = vshrl.u32 %v5939, 7
      %v5941 = vsub.s32 2, %v5940
      %v5942 = vrot.slane %v5524, %v5941
      %v5943 = vlaneseq
      %v5944 = vshrl.u32 %v5943, 7
      %v5945 = vsub.s32 3, %v5944
      %v5946 = vrot.slane %v5524, %v5945
      %v5947 = vlaneseq
      %v5948 = vshrl.u32 %v5947, 7
      %v5949 = vsub.s32 4, %v5948
      %v5950 = vrot.slane %v5524, %v5949
      %v5951 = vlaneseq
      %v5952 = vshrl.u32 %v5951, 7
      %v5953 = vsub.s32 5, %v5952
      %v5954 = vrot.slane %v5524, %v5953
      %v5955 = vlaneseq
      %v5956 = vshrl.u32 %v5955, 7
      %v5957 = vsub.s32 6, %v5956
      %v5958 = vrot.slane %v5524, %v5957
      %v5959 = vlaneseq
      %v5960 = vshrl.u32 %v5959, 7
      %v5961 = vsub.s32 7, %v5960
      %v5962 = vrot.slane %v5524, %v5961
      %v5963 = vlaneseq
      %v5964 = vshrl.u32 %v5963, 7
      %v5965 = vsub.s32 0, %v5964
      %v5966 = vrot.slane %v5525, %v5965
      %v5967 = vlaneseq
      %v5968 = vshrl.u32 %v5967, 7
      %v5969 = vsub.s32 1, %v5968
      %v5970 = vrot.slane %v5525, %v5969
      %v5971 = vlaneseq
      %v5972 = vshrl.u32 %v5971, 7
      %v5973 = vsub.s32 2, %v5972
      %v5974 = vrot.slane %v5525, %v5973
      %v5975 = vlaneseq
      %v5976 = vshrl.u32 %v5975, 7
      %v5977 = vsub.s32 3, %v5976
      %v5978 = vrot.slane %v5525, %v5977
      %v5979 = vlaneseq
      %v5980 = vshrl.u32 %v5979, 7
      %v5981 = vsub.s32 4, %v5980
      %v5982 = vrot.slane %v5525, %v5981
      %v5983 = vlaneseq
      %v5984 = vshrl.u32 %v5983, 7
      %v5985 = vsub.s32 5, %v5984
      %v5986 = vrot.slane %v5525, %v5985
      %v5987 = vlaneseq
      %v5988 = vshrl.u32 %v5987, 7
      %v5989 = vsub.s32 6, %v5988
      %v5990 = vrot.slane %v5525, %v5989
      %v5991 = vlaneseq
      %v5992 = vshrl.u32 %v5991, 7
      %v5993 = vsub.s32 7, %v5992
      %v5994 = vrot.slane %v5525, %v5993
      %v5995 = vlaneseq
      %v5996 = vshrl.u32 %v5995, 7
      %v5997 = vsub.s32 0, %v5996
      %v5998 = vrot.slane %v5526, %v5997
      %v5999 = vlaneseq
      %v6000 = vshrl.u32 %v5999, 7
      %v6001 = vsub.s32 1, %v6000
      %v6002 = vrot.slane %v5526, %v6001
      %v6003 = vlaneseq
      %v6004 = vshrl.u32 %v6003, 7
      %v6005 = vsub.s32 2, %v6004
      %v6006 = vrot.slane %v5526, %v6005
      %v6007 = vlaneseq
      %v6008 = vshrl.u32 %v6007, 7
      %v6009 = vsub.s32 3, %v6008
      %v6010 = vrot.slane %v5526, %v6009
      %v6011 = vlaneseq
      %v6012 = vshrl.u32 %v6011, 7
      %v6013 = vsub.s32 4, %v6012
      %v6014 = vrot.slane %v5526, %v6013
      %v6015 = vlaneseq
      %v6016 = vshrl.u32 %v6015, 7
      %v6017 = vsub.s32 5, %v6016
      %v6018 = vrot.slane %v5526, %v6017
      %v6019 = vlaneseq
      %v6020 = vshrl.u32 %v6019, 7
      %v6021 = vsub.s32 6, %v6020
      %v6022 = vrot.slane %v5526, %v6021
      %v6023 = vlaneseq
      %v6024 = vshrl.u32 %v6023, 7
      %v6025 = vsub.s32 7, %v6024
      %v6026 = vrot.slane %v5526, %v6025
      %v6027 = vlaneseq
      %v6028 = vshrl.u32 %v6027, 7
      %v6029 = vsub.s32 0, %v6028
      %v6030 = vrot.slane %v5527, %v6029
      %v6031 = vlaneseq
      %v6032 = vshrl.u32 %v6031, 7
      %v6033 = vsub.s32 1, %v6032
      %v6034 = vrot.slane %v5527, %v6033
      %v6035 = vlaneseq
      %v6036 = vshrl.u32 %v6035, 7
      %v6037 = vsub.s32 2, %v6036
      %v6038 = vrot.slane %v5527, %v6037
      %v6039 = vlaneseq
      %v6040 = vshrl.u32 %v6039, 7
      %v6041 = vsub.s32 3, %v6040
      %v6042 = vrot.slane %v5527, %v6041
      %v6043 = vlaneseq
      %v6044 = vshrl.u32 %v6043, 7
      %v6045 = vsub.s32 4, %v6044
      %v6046 = vrot.slane %v5527, %v6045
      %v6047 = vlaneseq
      %v6048 = vshrl.u32 %v6047, 7
      %v6049 = vsub.s32 5, %v6048
      %v6050 = vrot.slane %v5527, %v6049
      %v6051 = vlaneseq
      %v6052 = vshrl.u32 %v6051, 7
      %v6053 = vsub.s32 6, %v6052
      %v6054 = vrot.slane %v5527, %v6053
      %v6055 = vlaneseq
      %v6056 = vshrl.u32 %v6055, 7
      %v6057 = vsub.s32 7, %v6056
      %v6058 = vrot.slane %v5527, %v6057
      %v6059 = vlaneseq
      %v6060 = vshrl.u32 %v6059, 7
      %v6061 = vsub.s32 0, %v6060
      %v6062 = vrot.slane %v5528, %v6061
      %v6063 = vlaneseq
      %v6064 = vshrl.u32 %v6063, 7
      %v6065 = vsub.s32 1, %v6064
      %v6066 = vrot.slane %v5528, %v6065
      %v6067 = vlaneseq
      %v6068 = vshrl.u32 %v6067, 7
      %v6069 = vsub.s32 2, %v6068
      %v6070 = vrot.slane %v5528, %v6069
      %v6071 = vlaneseq
      %v6072 = vshrl.u32 %v6071, 7
      %v6073 = vsub.s32 3, %v6072
      %v6074 = vrot.slane %v5528, %v6073
      %v6075 = vlaneseq
      %v6076 = vshrl.u32 %v6075, 7
      %v6077 = vsub.s32 4, %v6076
      %v6078 = vrot.slane %v5528, %v6077
      %v6079 = vlaneseq
      %v6080 = vshrl.u32 %v6079, 7
      %v6081 = vsub.s32 5, %v6080
      %v6082 = vrot.slane %v5528, %v6081
      %v6083 = vlaneseq
      %v6084 = vshrl.u32 %v6083, 7
      %v6085 = vsub.s32 6, %v6084
      %v6086 = vrot.slane %v5528, %v6085
      %v6087 = vlaneseq
      %v6088 = vshrl.u32 %v6087, 7
      %v6089 = vsub.s32 7, %v6088
      %v6090 = vrot.slane %v5528, %v6089
      %v6091 = vlaneseq
      %v6092 = vshrl.u32 %v6091, 7
      %v6093 = vsub.s32 0, %v6092
      %v6094 = vrot.slane %v5529, %v6093
      %v6095 = vlaneseq
      %v6096 = vshrl.u32 %v6095, 7
      %v6097 = vsub.s32 1, %v6096
      %v6098 = vrot.slane %v5529, %v6097
      %v6099 = vlaneseq
      %v6100 = vshrl.u32 %v6099, 7
      %v6101 = vsub.s32 2, %v6100
      %v6102 = vrot.slane %v5529, %v6101
      %v6103 = vlaneseq
      %v6104 = vshrl.u32 %v6103, 7
      %v6105 = vsub.s32 3, %v6104
      %v6106 = vrot.slane %v5529, %v6105
      %v6107 = vlaneseq
      %v6108 = vshrl.u32 %v6107, 7
      %v6109 = vsub.s32 4, %v6108
      %v6110 = vrot.slane %v5529, %v6109
      %v6111 = vlaneseq
      %v6112 = vshrl.u32 %v6111, 7
      %v6113 = vsub.s32 5, %v6112
      %v6114 = vrot.slane %v5529, %v6113
      %v6115 = vlaneseq
      %v6116 = vshrl.u32 %v6115, 7
      %v6117 = vsub.s32 6, %v6116
      %v6118 = vrot.slane %v5529, %v6117
      %v6119 = vlaneseq
      %v6120 = vshrl.u32 %v6119, 7
      %v6121 = vsub.s32 7, %v6120
      %v6122 = vrot.slane %v5529, %v6121
      %v6123 = vlaneseq
      %v6124 = vshrl.u32 %v6123, 7
      %v6125 = vsub.s32 0, %v6124
      %v6126 = vrot.slane %v5530, %v6125
      %v6127 = vlaneseq
      %v6128 = vshrl.u32 %v6127, 7
      %v6129 = vsub.s32 1, %v6128
      %v6130 = vrot.slane %v5530, %v6129
      %v6131 = vlaneseq
      %v6132 = vshrl.u32 %v6131, 7
      %v6133 = vsub.s32 2, %v6132
      %v6134 = vrot.slane %v5530, %v6133
      %v6135 = vlaneseq
      %v6136 = vshrl.u32 %v6135, 7
      %v6137 = vsub.s32 3, %v6136
      %v6138 = vrot.slane %v5530, %v6137
      %v6139 = vlaneseq
      %v6140 = vshrl.u32 %v6139, 7
      %v6141 = vsub.s32 4, %v6140
      %v6142 = vrot.slane %v5530, %v6141
      %v6143 = vlaneseq
      %v6144 = vshrl.u32 %v6143, 7
      %v6145 = vsub.s32 5, %v6144
      %v6146 = vrot.slane %v5530, %v6145
      %v6147 = vlaneseq
      %v6148 = vshrl.u32 %v6147, 7
      %v6149 = vsub.s32 6, %v6148
      %v6150 = vrot.slane %v5530, %v6149
      %v6151 = vlaneseq
      %v6152 = vshrl.u32 %v6151, 7
      %v6153 = vsub.s32 7, %v6152
      %v6154 = vrot.slane %v5530, %v6153
      %v6155 = vlaneseq
      %v6156 = vshrl.u32 %v6155, 7
      %v6157 = vsub.s32 0, %v6156
      %v6158 = vrot.slane %v5531, %v6157
      %v6159 = vlaneseq
      %v6160 = vshrl.u32 %v6159, 7
      %v6161 = vsub.s32 1, %v6160
      %v6162 = vrot.slane %v5531, %v6161
      %v6163 = vlaneseq
      %v6164 = vshrl.u32 %v6163, 7
      %v6165 = vsub.s32 2, %v6164
      %v6166 = vrot.slane %v5531, %v6165
      %v6167 = vlaneseq
      %v6168 = vshrl.u32 %v6167, 7
      %v6169 = vsub.s32 3, %v6168
      %v6170 = vrot.slane %v5531, %v6169
      %v6171 = vlaneseq
      %v6172 = vshrl.u32 %v6171, 7
      %v6173 = vsub.s32 4, %v6172
      %v6174 = vrot.slane %v5531, %v6173
      %v6175 = vlaneseq
      %v6176 = vshrl.u32 %v6175, 7
      %v6177 = vsub.s32 5, %v6176
      %v6178 = vrot.slane %v5531, %v6177
      %v6179 = vlaneseq
      %v6180 = vshrl.u32 %v6179, 7
      %v6181 = vsub.s32 6, %v6180
      %v6182 = vrot.slane %v5531, %v6181
      %v6183 = vlaneseq
      %v6184 = vshrl.u32 %v6183, 7
      %v6185 = vsub.s32 7, %v6184
      %v6186 = vrot.slane %v5531, %v6185
      %v6187 = vlaneseq
      %v6188 = vshrl.u32 %v6187, 7
      %v6189 = vsub.s32 0, %v6188
      %v6190 = vrot.slane %v5532, %v6189
      %v6191 = vlaneseq
      %v6192 = vshrl.u32 %v6191, 7
      %v6193 = vsub.s32 1, %v6192
      %v6194 = vrot.slane %v5532, %v6193
      %v6195 = vlaneseq
      %v6196 = vshrl.u32 %v6195, 7
      %v6197 = vsub.s32 2, %v6196
      %v6198 = vrot.slane %v5532, %v6197
      %v6199 = vlaneseq
      %v6200 = vshrl.u32 %v6199, 7
      %v6201 = vsub.s32 3, %v6200
      %v6202 = vrot.slane %v5532, %v6201
      %v6203 = vlaneseq
      %v6204 = vshrl.u32 %v6203, 7
      %v6205 = vsub.s32 4, %v6204
      %v6206 = vrot.slane %v5532, %v6205
      %v6207 = vlaneseq
      %v6208 = vshrl.u32 %v6207, 7
      %v6209 = vsub.s32 5, %v6208
      %v6210 = vrot.slane %v5532, %v6209
      %v6211 = vlaneseq
      %v6212 = vshrl.u32 %v6211, 7
      %v6213 = vsub.s32 6, %v6212
      %v6214 = vrot.slane %v5532, %v6213
      %v6215 = vlaneseq
      %v6216 = vshrl.u32 %v6215, 7
      %v6217 = vsub.s32 7, %v6216
      %v6218 = vrot.slane %v5532, %v6217
      %v6219 = vlaneseq
      %v6220 = vshrl.u32 %v6219, 7
      %v6221 = vsub.s32 0, %v6220
      %v6222 = vrot.slane %v5533, %v6221
      %v6223 = vlaneseq
      %v6224 = vshrl.u32 %v6223, 7
      %v6225 = vsub.s32 1, %v6224
      %v6226 = vrot.slane %v5533, %v6225
      %v6227 = vlaneseq
      %v6228 = vshrl.u32 %v6227, 7
      %v6229 = vsub.s32 2, %v6228
      %v6230 = vrot.slane %v5533, %v6229
      %v6231 = vlaneseq
      %v6232 = vshrl.u32 %v6231, 7
      %v6233 = vsub.s32 3, %v6232
      %v6234 = vrot.slane %v5533, %v6233
      %v6235 = vlaneseq
      %v6236 = vshrl.u32 %v6235, 7
      %v6237 = vsub.s32 4, %v6236
      %v6238 = vrot.slane %v5533, %v6237
      %v6239 = vlaneseq
      %v6240 = vshrl.u32 %v6239, 7
      %v6241 = vsub.s32 5, %v6240
      %v6242 = vrot.slane %v5533, %v6241
      %v6243 = vlaneseq
      %v6244 = vshrl.u32 %v6243, 7
      %v6245 = vsub.s32 6, %v6244
      %v6246 = vrot.slane %v5533, %v6245
      %v6247 = vlaneseq
      %v6248 = vshrl.u32 %v6247, 7
      %v6249 = vsub.s32 7, %v6248
      %v6250 = vrot.slane %v5533, %v6249
      %v6251 = vlaneseq
      %v6252 = vshrl.u32 %v6251, 7
      %v6253 = vsub.s32 0, %v6252
      %v6254 = vrot.slane %v5534, %v6253
      %v6255 = vlaneseq
      %v6256 = vshrl.u32 %v6255, 7
      %v6257 = vsub.s32 1, %v6256
      %v6258 = vrot.slane %v5534, %v6257
      %v6259 = vlaneseq
      %v6260 = vshrl.u32 %v6259, 7
      %v6261 = vsub.s32 2, %v6260
      %v6262 = vrot.slane %v5534, %v6261
      %v6263 = vlaneseq
      %v6264 = vshrl.u32 %v6263, 7
      %v6265 = vsub.s32 3, %v6264
      %v6266 = vrot.slane %v5534, %v6265
      %v6267 = vlaneseq
      %v6268 = vshrl.u32 %v6267, 7
      %v6269 = vsub.s32 4, %v6268
      %v6270 = vrot.slane %v5534, %v6269
      %v6271 = vlaneseq
      %v6272 = vshrl.u32 %v6271, 7
      %v6273 = vsub.s32 5, %v6272
      %v6274 = vrot.slane %v5534, %v6273
      %v6275 = vlaneseq
      %v6276 = vshrl.u32 %v6275, 7
      %v6277 = vsub.s32 6, %v6276
      %v6278 = vrot.slane %v5534, %v6277
      %v6279 = vlaneseq
      %v6280 = vshrl.u32 %v6279, 7
      %v6281 = vsub.s32 7, %v6280
      %v6282 = vrot.slane %v5534, %v6281
      %v6283 = vlaneseq
      %v6284 = vshrl.u32 %v6283, 7
      %v6285 = vsub.s32 0, %v6284
      %v6286 = vrot.slane %v5535, %v6285
      %v6287 = vlaneseq
      %v6288 = vshrl.u32 %v6287, 7
      %v6289 = vsub.s32 1, %v6288
      %v6290 = vrot.slane %v5535, %v6289
      %v6291 = vlaneseq
      %v6292 = vshrl.u32 %v6291, 7
      %v6293 = vsub.s32 2, %v6292
      %v6294 = vrot.slane %v5535, %v6293
      %v6295 = vlaneseq
      %v6296 = vshrl.u32 %v6295, 7
      %v6297 = vsub.s32 3, %v6296
      %v6298 = vrot.slane %v5535, %v6297
      %v6299 = vlaneseq
      %v6300 = vshrl.u32 %v6299, 7
      %v6301 = vsub.s32 4, %v6300
      %v6302 = vrot.slane %v5535, %v6301
      %v6303 = vlaneseq
      %v6304 = vshrl.u32 %v6303, 7
      %v6305 = vsub.s32 5, %v6304
      %v6306 = vrot.slane %v5535, %v6305
      %v6307 = vlaneseq
      %v6308 = vshrl.u32 %v6307, 7
      %v6309 = vsub.s32 6, %v6308
      %v6310 = vrot.slane %v5535, %v6309
      %v6311 = vlaneseq
      %v6312 = vshrl.u32 %v6311, 7
      %v6313 = vsub.s32 7, %v6312
      %v6314 = vrot.slane %v5535, %v6313
      %v6315 = vlaneseq
      %v6316 = vshrl.u32 %v6315, 7
      %v6317 = vsub.s32 0, %v6316
      %v6318 = vrot.slane %v5536, %v6317
      %v6319 = vlaneseq
      %v6320 = vshrl.u32 %v6319, 7
      %v6321 = vsub.s32 1, %v6320
      %v6322 = vrot.slane %v5536, %v6321
      %v6323 = vlaneseq
      %v6324 = vshrl.u32 %v6323, 7
      %v6325 = vsub.s32 2, %v6324
      %v6326 = vrot.slane %v5536, %v6325
      %v6327 = vlaneseq
      %v6328 = vshrl.u32 %v6327, 7
      %v6329 = vsub.s32 3, %v6328
      %v6330 = vrot.slane %v5536, %v6329
      %v6331 = vlaneseq
      %v6332 = vshrl.u32 %v6331, 7
      %v6333 = vsub.s32 4, %v6332
      %v6334 = vrot.slane %v5536, %v6333
      %v6335 = vlaneseq
      %v6336 = vshrl.u32 %v6335, 7
      %v6337 = vsub.s32 5, %v6336
      %v6338 = vrot.slane %v5536, %v6337
      %v6339 = vlaneseq
      %v6340 = vshrl.u32 %v6339, 7
      %v6341 = vsub.s32 6, %v6340
      %v6342 = vrot.slane %v5536, %v6341
      %v6343 = vlaneseq
      %v6344 = vshrl.u32 %v6343, 7
      %v6345 = vsub.s32 7, %v6344
      %v6346 = vrot.slane %v5536, %v6345
      %v6347 = vlaneseq
      %v6348 = vshrl.u32 %v6347, 7
      %v6349 = vsub.s32 0, %v6348
      %v6350 = vrot.slane %v5537, %v6349
      %v6351 = vlaneseq
      %v6352 = vshrl.u32 %v6351, 7
      %v6353 = vsub.s32 1, %v6352
      %v6354 = vrot.slane %v5537, %v6353
      %v6355 = vlaneseq
      %v6356 = vshrl.u32 %v6355, 7
      %v6357 = vsub.s32 2, %v6356
      %v6358 = vrot.slane %v5537, %v6357
      %v6359 = vlaneseq
      %v6360 = vshrl.u32 %v6359, 7
      %v6361 = vsub.s32 3, %v6360
      %v6362 = vrot.slane %v5537, %v6361
      %v6363 = vlaneseq
      %v6364 = vshrl.u32 %v6363, 7
      %v6365 = vsub.s32 4, %v6364
      %v6366 = vrot.slane %v5537, %v6365
      %v6367 = vlaneseq
      %v6368 = vshrl.u32 %v6367, 7
      %v6369 = vsub.s32 5, %v6368
      %v6370 = vrot.slane %v5537, %v6369
      %v6371 = vlaneseq
      %v6372 = vshrl.u32 %v6371, 7
      %v6373 = vsub.s32 6, %v6372
      %v6374 = vrot.slane %v5537, %v6373
      %v6375 = vlaneseq
      %v6376 = vshrl.u32 %v6375, 7
      %v6377 = vsub.s32 7, %v6376
      %v6378 = vrot.slane %v5537, %v6377
      %v6379 = vlaneseq
      %v6380 = vshrl.u32 %v6379, 7
      %v6381 = vsub.s32 0, %v6380
      %v6382 = vrot.slane %v5538, %v6381
      %v6383 = vlaneseq
      %v6384 = vshrl.u32 %v6383, 7
      %v6385 = vsub.s32 1, %v6384
      %v6386 = vrot.slane %v5538, %v6385
      %v6387 = vlaneseq
      %v6388 = vshrl.u32 %v6387, 7
      %v6389 = vsub.s32 2, %v6388
      %v6390 = vrot.slane %v5538, %v6389
      %v6391 = vlaneseq
      %v6392 = vshrl.u32 %v6391, 7
      %v6393 = vsub.s32 3, %v6392
      %v6394 = vrot.slane %v5538, %v6393
      %v6395 = vlaneseq
      %v6396 = vshrl.u32 %v6395, 7
      %v6397 = vsub.s32 4, %v6396
      %v6398 = vrot.slane %v5538, %v6397
      %v6399 = vlaneseq
      %v6400 = vshrl.u32 %v6399, 7
      %v6401 = vsub.s32 5, %v6400
      %v6402 = vrot.slane %v5538, %v6401
      %v6403 = vlaneseq
      %v6404 = vshrl.u32 %v6403, 7
      %v6405 = vsub.s32 6, %v6404
      %v6406 = vrot.slane %v5538, %v6405
      %v6407 = vlaneseq
      %v6408 = vshrl.u32 %v6407, 7
      %v6409 = vsub.s32 7, %v6408
      %v6410 = vrot.slane %v5538, %v6409
      %v6411 = vlaneseq
      %v6412 = vshrl.u32 %v6411, 7
      %v6413 = vsub.s32 0, %v6412
      %v6414 = vrot.slane %v5539, %v6413
      %v6415 = vlaneseq
      %v6416 = vshrl.u32 %v6415, 7
      %v6417 = vsub.s32 1, %v6416
      %v6418 = vrot.slane %v5539, %v6417
      %v6419 = vlaneseq
      %v6420 = vshrl.u32 %v6419, 7
      %v6421 = vsub.s32 2, %v6420
      %v6422 = vrot.slane %v5539, %v6421
      %v6423 = vlaneseq
      %v6424 = vshrl.u32 %v6423, 7
      %v6425 = vsub.s32 3, %v6424
      %v6426 = vrot.slane %v5539, %v6425
      %v6427 = vlaneseq
      %v6428 = vshrl.u32 %v6427, 7
      %v6429 = vsub.s32 4, %v6428
      %v6430 = vrot.slane %v5539, %v6429
      %v6431 = vlaneseq
      %v6432 = vshrl.u32 %v6431, 7
      %v6433 = vsub.s32 5, %v6432
      %v6434 = vrot.slane %v5539, %v6433
      %v6435 = vlaneseq
      %v6436 = vshrl.u32 %v6435, 7
      %v6437 = vsub.s32 6, %v6436
      %v6438 = vrot.slane %v5539, %v6437
      %v6439 = vlaneseq
      %v6440 = vshrl.u32 %v6439, 7
      %v6441 = vsub.s32 7, %v6440
      %v6442 = vrot.slane %v5539, %v6441
      %v6443 = vlaneseq
      %v6444 = vshrl.u32 %v6443, 7
      %v6445 = vsub.s32 0, %v6444
      %v6446 = vrot.slane %v5540, %v6445
      %v6447 = vlaneseq
      %v6448 = vshrl.u32 %v6447, 7
      %v6449 = vsub.s32 1, %v6448
      %v6450 = vrot.slane %v5540, %v6449
      %v6451 = vlaneseq
      %v6452 = vshrl.u32 %v6451, 7
      %v6453 = vsub.s32 2, %v6452
      %v6454 = vrot.slane %v5540, %v6453
      %v6455 = vlaneseq
      %v6456 = vshrl.u32 %v6455, 7
      %v6457 = vsub.s32 3, %v6456
      %v6458 = vrot.slane %v5540, %v6457
      %v6459 = vlaneseq
      %v6460 = vshrl.u32 %v6459, 7
      %v6461 = vsub.s32 4, %v6460
      %v6462 = vrot.slane %v5540, %v6461
      %v6463 = vlaneseq
      %v6464 = vshrl.u32 %v6463, 7
      %v6465 = vsub.s32 5, %v6464
      %v6466 = vrot.slane %v5540, %v6465
      %v6467 = vlaneseq
      %v6468 = vshrl.u32 %v6467, 7
      %v6469 = vsub.s32 6, %v6468
      %v6470 = vrot.slane %v5540, %v6469
      %v6471 = vlaneseq
      %v6472 = vshrl.u32 %v6471, 7
      %v6473 = vsub.s32 7, %v6472
      %v6474 = vrot.slane %v5540, %v6473
      %v6475 = vlaneseq
      %v6476 = vshrl.u32 %v6475, 7
      %v6477 = vsub.s32 0, %v6476
      %v6478 = vrot.slane %v5541, %v6477
      %v6479 = vlaneseq
      %v6480 = vshrl.u32 %v6479, 7
      %v6481 = vsub.s32 1, %v6480
      %v6482 = vrot.slane %v5541, %v6481
      %v6483 = vlaneseq
      %v6484 = vshrl.u32 %v6483, 7
      %v6485 = vsub.s32 2, %v6484
      %v6486 = vrot.slane %v5541, %v6485
      %v6487 = vlaneseq
      %v6488 = vshrl.u32 %v6487, 7
      %v6489 = vsub.s32 3, %v6488
      %v6490 = vrot.slane %v5541, %v6489
      %v6491 = vlaneseq
      %v6492 = vshrl.u32 %v6491, 7
      %v6493 = vsub.s32 4, %v6492
      %v6494 = vrot.slane %v5541, %v6493
      %v6495 = vlaneseq
      %v6496 = vshrl.u32 %v6495, 7
      %v6497 = vsub.s32 5, %v6496
      %v6498 = vrot.slane %v5541, %v6497
      %v6499 = vlaneseq
      %v6500 = vshrl.u32 %v6499, 7
      %v6501 = vsub.s32 6, %v6500
      %v6502 = vrot.slane %v5541, %v6501
      %v6503 = vlaneseq
      %v6504 = vshrl.u32 %v6503, 7
      %v6505 = vsub.s32 7, %v6504
      %v6506 = vrot.slane %v5541, %v6505
      %v6507 = vlaneseq
      %v6508 = vshrl.u32 %v6507, 7
      %v6509 = vsub.s32 0, %v6508
      %v6510 = vrot.slane %v5542, %v6509
      %v6511 = vlaneseq
      %v6512 = vshrl.u32 %v6511, 7
      %v6513 = vsub.s32 1, %v6512
      %v6514 = vrot.slane %v5542, %v6513
      %v6515 = vlaneseq
      %v6516 = vshrl.u32 %v6515, 7
      %v6517 = vsub.s32 2, %v6516
      %v6518 = vrot.slane %v5542, %v6517
      %v6519 = vlaneseq
      %v6520 = vshrl.u32 %v6519, 7
      %v6521 = vsub.s32 3, %v6520
      %v6522 = vrot.slane %v5542, %v6521
      %v6523 = vlaneseq
      %v6524 = vshrl.u32 %v6523, 7
      %v6525 = vsub.s32 4, %v6524
      %v6526 = vrot.slane %v5542, %v6525
      %v6527 = vlaneseq
      %v6528 = vshrl.u32 %v6527, 7
      %v6529 = vsub.s32 5, %v6528
      %v6530 = vrot.slane %v5542, %v6529
      %v6531 = vlaneseq
      %v6532 = vshrl.u32 %v6531, 7
      %v6533 = vsub.s32 6, %v6532
      %v6534 = vrot.slane %v5542, %v6533
      %v6535 = vlaneseq
      %v6536 = vshrl.u32 %v6535, 7
      %v6537 = vsub.s32 7, %v6536
      %v6538 = vrot.slane %v5542, %v6537
      %v6539 = vlaneseq
      %v6540 = vshrl.u32 %v6539, 7
      %v6541 = vsub.s32 0, %v6540
      %v6542 = vrot.slane %v5543, %v6541
      %v6543 = vlaneseq
      %v6544 = vshrl.u32 %v6543, 7
      %v6545 = vsub.s32 1, %v6544
      %v6546 = vrot.slane %v5543, %v6545
      %v6547 = vlaneseq
      %v6548 = vshrl.u32 %v6547, 7
      %v6549 = vsub.s32 2, %v6548
      %v6550 = vrot.slane %v5543, %v6549
      %v6551 = vlaneseq
      %v6552 = vshrl.u32 %v6551, 7
      %v6553 = vsub.s32 3, %v6552
      %v6554 = vrot.slane %v5543, %v6553
      %v6555 = vlaneseq
      %v6556 = vshrl.u32 %v6555, 7
      %v6557 = vsub.s32 4, %v6556
      %v6558 = vrot.slane %v5543, %v6557
      %v6559 = vlaneseq
      %v6560 = vshrl.u32 %v6559, 7
      %v6561 = vsub.s32 5, %v6560
      %v6562 = vrot.slane %v5543, %v6561
      %v6563 = vlaneseq
      %v6564 = vshrl.u32 %v6563, 7
      %v6565 = vsub.s32 6, %v6564
      %v6566 = vrot.slane %v5543, %v6565
      %v6567 = vlaneseq
      %v6568 = vshrl.u32 %v6567, 7
      %v6569 = vsub.s32 7, %v6568
      %v6570 = vrot.slane %v5543, %v6569
      %v6571 = vlaneseq
      %v6572 = vshrl.u32 %v6571, 7
      %v6573 = vsub.s32 0, %v6572
      %v6574 = vrot.slane %v5544, %v6573
      %v6575 = vlaneseq
      %v6576 = vshrl.u32 %v6575, 7
      %v6577 = vsub.s32 1, %v6576
      %v6578 = vrot.slane %v5544, %v6577
      %v6579 = vlaneseq
      %v6580 = vshrl.u32 %v6579, 7
      %v6581 = vsub.s32 2, %v6580
      %v6582 = vrot.slane %v5544, %v6581
      %v6583 = vlaneseq
      %v6584 = vshrl.u32 %v6583, 7
      %v6585 = vsub.s32 3, %v6584
      %v6586 = vrot.slane %v5544, %v6585
      %v6587 = vlaneseq
      %v6588 = vshrl.u32 %v6587, 7
      %v6589 = vsub.s32 4, %v6588
      %v6590 = vrot.slane %v5544, %v6589
      %v6591 = vlaneseq
      %v6592 = vshrl.u32 %v6591, 7
      %v6593 = vsub.s32 5, %v6592
      %v6594 = vrot.slane %v5544, %v6593
      %v6595 = vlaneseq
      %v6596 = vshrl.u32 %v6595, 7
      %v6597 = vsub.s32 6, %v6596
      %v6598 = vrot.slane %v5544, %v6597
      %v6599 = vlaneseq
      %v6600 = vshrl.u32 %v6599, 7
      %v6601 = vsub.s32 7, %v6600
      %v6602 = vrot.slane %v5544, %v6601
      %v6603 = vlaneseq
      %v6604 = vshrl.u32 %v6603, 7
      %v6605 = vsub.s32 0, %v6604
      %v6606 = vrot.slane %v5545, %v6605
      %v6607 = vlaneseq
      %v6608 = vshrl.u32 %v6607, 7
      %v6609 = vsub.s32 1, %v6608
      %v6610 = vrot.slane %v5545, %v6609
      %v6611 = vlaneseq
      %v6612 = vshrl.u32 %v6611, 7
      %v6613 = vsub.s32 2, %v6612
      %v6614 = vrot.slane %v5545, %v6613
      %v6615 = vlaneseq
      %v6616 = vshrl.u32 %v6615, 7
      %v6617 = vsub.s32 3, %v6616
      %v6618 = vrot.slane %v5545, %v6617
      %v6619 = vlaneseq
      %v6620 = vshrl.u32 %v6619, 7
      %v6621 = vsub.s32 4, %v6620
      %v6622 = vrot.slane %v5545, %v6621
      %v6623 = vlaneseq
      %v6624 = vshrl.u32 %v6623, 7
      %v6625 = vsub.s32 5, %v6624
      %v6626 = vrot.slane %v5545, %v6625
      %v6627 = vlaneseq
      %v6628 = vshrl.u32 %v6627, 7
      %v6629 = vsub.s32 6, %v6628
      %v6630 = vrot.slane %v5545, %v6629
      %v6631 = vlaneseq
      %v6632 = vshrl.u32 %v6631, 7
      %v6633 = vsub.s32 7, %v6632
      %v6634 = vrot.slane %v5545, %v6633
      %v6635 = vlaneseq
      %v6636 = vshrl.u32 %v6635, 7
      %v6637 = vsub.s32 0, %v6636
      %v6638 = vrot.slane %v5546, %v6637
      %v6639 = vlaneseq
      %v6640 = vshrl.u32 %v6639, 7
      %v6641 = vsub.s32 1, %v6640
      %v6642 = vrot.slane %v5546, %v6641
      %v6643 = vlaneseq
      %v6644 = vshrl.u32 %v6643, 7
      %v6645 = vsub.s32 2, %v6644
      %v6646 = vrot.slane %v5546, %v6645
      %v6647 = vlaneseq
      %v6648 = vshrl.u32 %v6647, 7
      %v6649 = vsub.s32 3, %v6648
      %v6650 = vrot.slane %v5546, %v6649
      %v6651 = vlaneseq
      %v6652 = vshrl.u32 %v6651, 7
      %v6653 = vsub.s32 4, %v6652
      %v6654 = vrot.slane %v5546, %v6653
      %v6655 = vlaneseq
      %v6656 = vshrl.u32 %v6655, 7
      %v6657 = vsub.s32 5, %v6656
      %v6658 = vrot.slane %v5546, %v6657
      %v6659 = vlaneseq
      %v6660 = vshrl.u32 %v6659, 7
      %v6661 = vsub.s32 6, %v6660
      %v6662 = vrot.slane %v5546, %v6661
      %v6663 = vlaneseq
      %v6664 = vshrl.u32 %v6663, 7
      %v6665 = vsub.s32 7, %v6664
      %v6666 = vrot.slane %v5546, %v6665
      %v6667 = vlaneseq
      %v6668 = vshrl.u32 %v6667, 7
      %v6669 = vsub.s32 0, %v6668
      %v6670 = vrot.slane %v5547, %v6669
      %v6671 = vlaneseq
      %v6672 = vshrl.u32 %v6671, 7
      %v6673 = vsub.s32 1, %v6672
      %v6674 = vrot.slane %v5547, %v6673
      %v6675 = vlaneseq
      %v6676 = vshrl.u32 %v6675, 7
      %v6677 = vsub.s32 2, %v6676
      %v6678 = vrot.slane %v5547, %v6677
      %v6679 = vlaneseq
      %v6680 = vshrl.u32 %v6679, 7
      %v6681 = vsub.s32 3, %v6680
      %v6682 = vrot.slane %v5547, %v6681
      %v6683 = vlaneseq
      %v6684 = vshrl.u32 %v6683, 7
      %v6685 = vsub.s32 4, %v6684
      %v6686 = vrot.slane %v5547, %v6685
      %v6687 = vlaneseq
      %v6688 = vshrl.u32 %v6687, 7
      %v6689 = vsub.s32 5, %v6688
      %v6690 = vrot.slane %v5547, %v6689
      %v6691 = vlaneseq
      %v6692 = vshrl.u32 %v6691, 7
      %v6693 = vsub.s32 6, %v6692
      %v6694 = vrot.slane %v5547, %v6693
      %v6695 = vlaneseq
      %v6696 = vshrl.u32 %v6695, 7
      %v6697 = vsub.s32 7, %v6696
      %v6698 = vrot.slane %v5547, %v6697
      %v6699 = vlaneseq
      %v6700 = vshrl.u32 %v6699, 7
      %v6701 = vsub.s32 0, %v6700
      %v6702 = vrot.slane %v5548, %v6701
      %v6703 = vlaneseq
      %v6704 = vshrl.u32 %v6703, 7
      %v6705 = vsub.s32 1, %v6704
      %v6706 = vrot.slane %v5548, %v6705
      %v6707 = vlaneseq
      %v6708 = vshrl.u32 %v6707, 7
      %v6709 = vsub.s32 2, %v6708
      %v6710 = vrot.slane %v5548, %v6709
      %v6711 = vlaneseq
      %v6712 = vshrl.u32 %v6711, 7
      %v6713 = vsub.s32 3, %v6712
      %v6714 = vrot.slane %v5548, %v6713
      %v6715 = vlaneseq
      %v6716 = vshrl.u32 %v6715, 7
      %v6717 = vsub.s32 4, %v6716
      %v6718 = vrot.slane %v5548, %v6717
      %v6719 = vlaneseq
      %v6720 = vshrl.u32 %v6719, 7
      %v6721 = vsub.s32 5, %v6720
      %v6722 = vrot.slane %v5548, %v6721
      %v6723 = vlaneseq
      %v6724 = vshrl.u32 %v6723, 7
      %v6725 = vsub.s32 6, %v6724
      %v6726 = vrot.slane %v5548, %v6725
      %v6727 = vlaneseq
      %v6728 = vshrl.u32 %v6727, 7
      %v6729 = vsub.s32 7, %v6728
      %v6730 = vrot.slane %v5548, %v6729
      %v6731 = vlaneseq
      %v6732 = vshrl.u32 %v6731, 7
      %v6733 = vsub.s32 0, %v6732
      %v6734 = vrot.slane %v5549, %v6733
      %v6735 = vlaneseq
      %v6736 = vshrl.u32 %v6735, 7
      %v6737 = vsub.s32 1, %v6736
      %v6738 = vrot.slane %v5549, %v6737
      %v6739 = vlaneseq
      %v6740 = vshrl.u32 %v6739, 7
      %v6741 = vsub.s32 2, %v6740
      %v6742 = vrot.slane %v5549, %v6741
      %v6743 = vlaneseq
      %v6744 = vshrl.u32 %v6743, 7
      %v6745 = vsub.s32 3, %v6744
      %v6746 = vrot.slane %v5549, %v6745
      %v6747 = vlaneseq
      %v6748 = vshrl.u32 %v6747, 7
      %v6749 = vsub.s32 4, %v6748
      %v6750 = vrot.slane %v5549, %v6749
      %v6751 = vlaneseq
      %v6752 = vshrl.u32 %v6751, 7
      %v6753 = vsub.s32 5, %v6752
      %v6754 = vrot.slane %v5549, %v6753
      %v6755 = vlaneseq
      %v6756 = vshrl.u32 %v6755, 7
      %v6757 = vsub.s32 6, %v6756
      %v6758 = vrot.slane %v5549, %v6757
      %v6759 = vlaneseq
      %v6760 = vshrl.u32 %v6759, 7
      %v6761 = vsub.s32 7, %v6760
      %v6762 = vrot.slane %v5549, %v6761
      %v6763 = vlaneseq
      %v6764 = vshrl.u32 %v6763, 7
      %v6765 = vsub.s32 0, %v6764
      %v6766 = vrot.slane %v5550, %v6765
      %v6767 = vlaneseq
      %v6768 = vshrl.u32 %v6767, 7
      %v6769 = vsub.s32 1, %v6768
      %v6770 = vrot.slane %v5550, %v6769
      %v6771 = vlaneseq
      %v6772 = vshrl.u32 %v6771, 7
      %v6773 = vsub.s32 2, %v6772
      %v6774 = vrot.slane %v5550, %v6773
      %v6775 = vlaneseq
      %v6776 = vshrl.u32 %v6775, 7
      %v6777 = vsub.s32 3, %v6776
      %v6778 = vrot.slane %v5550, %v6777
      %v6779 = vlaneseq
      %v6780 = vshrl.u32 %v6779, 7
      %v6781 = vsub.s32 4, %v6780
      %v6782 = vrot.slane %v5550, %v6781
      %v6783 = vlaneseq
      %v6784 = vshrl.u32 %v6783, 7
      %v6785 = vsub.s32 5, %v6784
      %v6786 = vrot.slane %v5550, %v6785
      %v6787 = vlaneseq
      %v6788 = vshrl.u32 %v6787, 7
      %v6789 = vsub.s32 6, %v6788
      %v6790 = vrot.slane %v5550, %v6789
      %v6791 = vlaneseq
      %v6792 = vshrl.u32 %v6791, 7
      %v6793 = vsub.s32 7, %v6792
      %v6794 = vrot.slane %v5550, %v6793
      %v6795 = vlaneseq
      %v6796 = vshrl.u32 %v6795, 7
      %v6797 = vsub.s32 0, %v6796
      %v6798 = vrot.slane %v5551, %v6797
      %v6799 = vlaneseq
      %v6800 = vshrl.u32 %v6799, 7
      %v6801 = vsub.s32 1, %v6800
      %v6802 = vrot.slane %v5551, %v6801
      %v6803 = vlaneseq
      %v6804 = vshrl.u32 %v6803, 7
      %v6805 = vsub.s32 2, %v6804
      %v6806 = vrot.slane %v5551, %v6805
      %v6807 = vlaneseq
      %v6808 = vshrl.u32 %v6807, 7
      %v6809 = vsub.s32 3, %v6808
      %v6810 = vrot.slane %v5551, %v6809
      %v6811 = vlaneseq
      %v6812 = vshrl.u32 %v6811, 7
      %v6813 = vsub.s32 4, %v6812
      %v6814 = vrot.slane %v5551, %v6813
      %v6815 = vlaneseq
      %v6816 = vshrl.u32 %v6815, 7
      %v6817 = vsub.s32 5, %v6816
      %v6818 = vrot.slane %v5551, %v6817
      %v6819 = vlaneseq
      %v6820 = vshrl.u32 %v6819, 7
      %v6821 = vsub.s32 6, %v6820
      %v6822 = vrot.slane %v5551, %v6821
      %v6823 = vlaneseq
      %v6824 = vshrl.u32 %v6823, 7
      %v6825 = vsub.s32 7, %v6824
      %v6826 = vrot.slane %v5551, %v6825
      %v6827 = vlaneseq
      %v6828 = vshrl.u32 %v6827, 7
      %v6829 = vsub.s32 0, %v6828
      %v6830 = vrot.slane %v5552, %v6829
      %v6831 = vlaneseq
      %v6832 = vshrl.u32 %v6831, 7
      %v6833 = vsub.s32 1, %v6832
      %v6834 = vrot.slane %v5552, %v6833
      %v6835 = vlaneseq
      %v6836 = vshrl.u32 %v6835, 7
      %v6837 = vsub.s32 2, %v6836
      %v6838 = vrot.slane %v5552, %v6837
      %v6839 = vlaneseq
      %v6840 = vshrl.u32 %v6839, 7
      %v6841 = vsub.s32 3, %v6840
      %v6842 = vrot.slane %v5552, %v6841
      %v6843 = vlaneseq
      %v6844 = vshrl.u32 %v6843, 7
      %v6845 = vsub.s32 4, %v6844
      %v6846 = vrot.slane %v5552, %v6845
      %v6847 = vlaneseq
      %v6848 = vshrl.u32 %v6847, 7
      %v6849 = vsub.s32 5, %v6848
      %v6850 = vrot.slane %v5552, %v6849
      %v6851 = vlaneseq
      %v6852 = vshrl.u32 %v6851, 7
      %v6853 = vsub.s32 6, %v6852
      %v6854 = vrot.slane %v5552, %v6853
      %v6855 = vlaneseq
      %v6856 = vshrl.u32 %v6855, 7
      %v6857 = vsub.s32 7, %v6856
      %v6858 = vrot.slane %v5552, %v6857
      %v6859 = vlaneseq
      %v6860 = vshrl.u32 %v6859, 7
      %v6861 = vsub.s32 0, %v6860
      %v6862 = vrot.slane %v5553, %v6861
      %v6863 = vlaneseq
      %v6864 = vshrl.u32 %v6863, 7
      %v6865 = vsub.s32 1, %v6864
      %v6866 = vrot.slane %v5553, %v6865
      %v6867 = vlaneseq
      %v6868 = vshrl.u32 %v6867, 7
      %v6869 = vsub.s32 2, %v6868
      %v6870 = vrot.slane %v5553, %v6869
      %v6871 = vlaneseq
      %v6872 = vshrl.u32 %v6871, 7
      %v6873 = vsub.s32 3, %v6872
      %v6874 = vrot.slane %v5553, %v6873
      %v6875 = vlaneseq
      %v6876 = vshrl.u32 %v6875, 7
      %v6877 = vsub.s32 4, %v6876
      %v6878 = vrot.slane %v5553, %v6877
      %v6879 = vlaneseq
      %v6880 = vshrl.u32 %v6879, 7
      %v6881 = vsub.s32 5, %v6880
      %v6882 = vrot.slane %v5553, %v6881
      %v6883 = vlaneseq
      %v6884 = vshrl.u32 %v6883, 7
      %v6885 = vsub.s32 6, %v6884
      %v6886 = vrot.slane %v5553, %v6885
      %v6887 = vlaneseq
      %v6888 = vshrl.u32 %v6887, 7
      %v6889 = vsub.s32 7, %v6888
      %v6890 = vrot.slane %v5553, %v6889
      %v6891 = vlaneseq
      %v6892 = vshrl.u32 %v6891, 7
      %v6893 = vsub.s32 0, %v6892
      %v6894 = vrot.slane %v5554, %v6893
      %v6895 = vlaneseq
      %v6896 = vshrl.u32 %v6895, 7
      %v6897 = vsub.s32 1, %v6896
      %v6898 = vrot.slane %v5554, %v6897
      %v6899 = vlaneseq
      %v6900 = vshrl.u32 %v6899, 7
      %v6901 = vsub.s32 2, %v6900
      %v6902 = vrot.slane %v5554, %v6901
      %v6903 = vlaneseq
      %v6904 = vshrl.u32 %v6903, 7
      %v6905 = vsub.s32 3, %v6904
      %v6906 = vrot.slane %v5554, %v6905
      %v6907 = vlaneseq
      %v6908 = vshrl.u32 %v6907, 7
      %v6909 = vsub.s32 4, %v6908
      %v6910 = vrot.slane %v5554, %v6909
      %v6911 = vlaneseq
      %v6912 = vshrl.u32 %v6911, 7
      %v6913 = vsub.s32 5, %v6912
      %v6914 = vrot.slane %v5554, %v6913
      %v6915 = vlaneseq
      %v6916 = vshrl.u32 %v6915, 7
      %v6917 = vsub.s32 6, %v6916
      %v6918 = vrot.slane %v5554, %v6917
      %v6919 = vlaneseq
      %v6920 = vshrl.u32 %v6919, 7
      %v6921 = vsub.s32 7, %v6920
      %v6922 = vrot.slane %v5554, %v6921
      %v6923 = vlaneseq
      %v6924 = vshrl.u32 %v6923, 7
      %v6925 = vsub.s32 0, %v6924
      %v6926 = vrot.slane %v5555, %v6925
      %v6927 = vlaneseq
      %v6928 = vshrl.u32 %v6927, 7
      %v6929 = vsub.s32 1, %v6928
      %v6930 = vrot.slane %v5555, %v6929
      %v6931 = vlaneseq
      %v6932 = vshrl.u32 %v6931, 7
      %v6933 = vsub.s32 2, %v6932
      %v6934 = vrot.slane %v5555, %v6933
      %v6935 = vlaneseq
      %v6936 = vshrl.u32 %v6935, 7
      %v6937 = vsub.s32 3, %v6936
      %v6938 = vrot.slane %v5555, %v6937
      %v6939 = vlaneseq
      %v6940 = vshrl.u32 %v6939, 7
      %v6941 = vsub.s32 4, %v6940
      %v6942 = vrot.slane %v5555, %v6941
      %v6943 = vlaneseq
      %v6944 = vshrl.u32 %v6943, 7
      %v6945 = vsub.s32 5, %v6944
      %v6946 = vrot.slane %v5555, %v6945
      %v6947 = vlaneseq
      %v6948 = vshrl.u32 %v6947, 7
      %v6949 = vsub.s32 6, %v6948
      %v6950 = vrot.slane %v5555, %v6949
      %v6951 = vlaneseq
      %v6952 = vshrl.u32 %v6951, 7
      %v6953 = vsub.s32 7, %v6952
      %v6954 = vrot.slane %v5555, %v6953
      %v6955 = vlaneseq
      %v6956 = vshrl.u32 %v6955, 7
      %v6957 = vsub.s32 0, %v6956
      %v6958 = vrot.slane %v5556, %v6957
      %v6959 = vlaneseq
      %v6960 = vshrl.u32 %v6959, 7
      %v6961 = vsub.s32 1, %v6960
      %v6962 = vrot.slane %v5556, %v6961
      %v6963 = vlaneseq
      %v6964 = vshrl.u32 %v6963, 7
      %v6965 = vsub.s32 2, %v6964
      %v6966 = vrot.slane %v5556, %v6965
      %v6967 = vlaneseq
      %v6968 = vshrl.u32 %v6967, 7
      %v6969 = vsub.s32 3, %v6968
      %v6970 = vrot.slane %v5556, %v6969
      %v6971 = vlaneseq
      %v6972 = vshrl.u32 %v6971, 7
      %v6973 = vsub.s32 4, %v6972
      %v6974 = vrot.slane %v5556, %v6973
      %v6975 = vlaneseq
      %v6976 = vshrl.u32 %v6975, 7
      %v6977 = vsub.s32 5, %v6976
      %v6978 = vrot.slane %v5556, %v6977
      %v6979 = vlaneseq
      %v6980 = vshrl.u32 %v6979, 7
      %v6981 = vsub.s32 6, %v6980
      %v6982 = vrot.slane %v5556, %v6981
      %v6983 = vlaneseq
      %v6984 = vshrl.u32 %v6983, 7
      %v6985 = vsub.s32 7, %v6984
      %v6986 = vrot.slane %v5556, %v6985
      %v6987 = vlaneseq
      %v6988 = vshrl.u32 %v6987, 7
      %v6989 = vsub.s32 0, %v6988
      %v6990 = vrot.slane %v5557, %v6989
      %v6991 = vlaneseq
      %v6992 = vshrl.u32 %v6991, 7
      %v6993 = vsub.s32 1, %v6992
      %v6994 = vrot.slane %v5557, %v6993
      %v6995 = vlaneseq
      %v6996 = vshrl.u32 %v6995, 7
      %v6997 = vsub.s32 2, %v6996
      %v6998 = vrot.slane %v5557, %v6997
      %v6999 = vlaneseq
      %v7000 = vshrl.u32 %v6999, 7
      %v7001 = vsub.s32 3, %v7000
      %v7002 = vrot.slane %v5557, %v7001
      %v7003 = vlaneseq
      %v7004 = vshrl.u32 %v7003, 7
      %v7005 = vsub.s32 4, %v7004
      %v7006 = vrot.slane %v5557, %v7005
      %v7007 = vlaneseq
      %v7008 = vshrl.u32 %v7007, 7
      %v7009 = vsub.s32 5, %v7008
      %v7010 = vrot.slane %v5557, %v7009
      %v7011 = vlaneseq
      %v7012 = vshrl.u32 %v7011, 7
      %v7013 = vsub.s32 6, %v7012
      %v7014 = vrot.slane %v5557, %v7013
      %v7015 = vlaneseq
      %v7016 = vshrl.u32 %v7015, 7
      %v7017 = vsub.s32 7, %v7016
      %v7018 = vrot.slane %v5557, %v7017
      %v7019 = vlaneseq
      %v7020 = vshrl.u32 %v7019, 7
      %v7021 = vsub.s32 0, %v7020
      %v7022 = vrot.slane %v5558, %v7021
      %v7023 = vlaneseq
      %v7024 = vshrl.u32 %v7023, 7
      %v7025 = vsub.s32 1, %v7024
      %v7026 = vrot.slane %v5558, %v7025
      %v7027 = vlaneseq
      %v7028 = vshrl.u32 %v7027, 7
      %v7029 = vsub.s32 2, %v7028
      %v7030 = vrot.slane %v5558, %v7029
      %v7031 = vlaneseq
      %v7032 = vshrl.u32 %v7031, 7
      %v7033 = vsub.s32 3, %v7032
      %v7034 = vrot.slane %v5558, %v7033
      %v7035 = vlaneseq
      %v7036 = vshrl.u32 %v7035, 7
      %v7037 = vsub.s32 4, %v7036
      %v7038 = vrot.slane %v5558, %v7037
      %v7039 = vlaneseq
      %v7040 = vshrl.u32 %v7039, 7
      %v7041 = vsub.s32 5, %v7040
      %v7042 = vrot.slane %v5558, %v7041
      %v7043 = vlaneseq
      %v7044 = vshrl.u32 %v7043, 7
      %v7045 = vsub.s32 6, %v7044
      %v7046 = vrot.slane %v5558, %v7045
      %v7047 = vlaneseq
      %v7048 = vshrl.u32 %v7047, 7
      %v7049 = vsub.s32 7, %v7048
      %v7050 = vrot.slane %v5558, %v7049
      %v7051 = vlaneseq
      %v7052 = vshrl.u32 %v7051, 7
      %v7053 = vsub.s32 0, %v7052
      %v7054 = vrot.slane %v5559, %v7053
      %v7055 = vlaneseq
      %v7056 = vshrl.u32 %v7055, 7
      %v7057 = vsub.s32 1, %v7056
      %v7058 = vrot.slane %v5559, %v7057
      %v7059 = vlaneseq
      %v7060 = vshrl.u32 %v7059, 7
      %v7061 = vsub.s32 2, %v7060
      %v7062 = vrot.slane %v5559, %v7061
      %v7063 = vlaneseq
      %v7064 = vshrl.u32 %v7063, 7
      %v7065 = vsub.s32 3, %v7064
      %v7066 = vrot.slane %v5559, %v7065
      %v7067 = vlaneseq
      %v7068 = vshrl.u32 %v7067, 7
      %v7069 = vsub.s32 4, %v7068
      %v7070 = vrot.slane %v5559, %v7069
      %v7071 = vlaneseq
      %v7072 = vshrl.u32 %v7071, 7
      %v7073 = vsub.s32 5, %v7072
      %v7074 = vrot.slane %v5559, %v7073
      %v7075 = vlaneseq
      %v7076 = vshrl.u32 %v7075, 7
      %v7077 = vsub.s32 6, %v7076
      %v7078 = vrot.slane %v5559, %v7077
      %v7079 = vlaneseq
      %v7080 = vshrl.u32 %v7079, 7
      %v7081 = vsub.s32 7, %v7080
      %v7082 = vrot.slane %v5559, %v7081
      %v7083 = vlaneseq
      %v7084 = vshrl.u32 %v7083, 7
      %v7085 = vsub.s32 0, %v7084
      %v7086 = vrot.slane %v5560, %v7085
      %v7087 = vlaneseq
      %v7088 = vshrl.u32 %v7087, 7
      %v7089 = vsub.s32 1, %v7088
      %v7090 = vrot.slane %v5560, %v7089
      %v7091 = vlaneseq
      %v7092 = vshrl.u32 %v7091, 7
      %v7093 = vsub.s32 2, %v7092
      %v7094 = vrot.slane %v5560, %v7093
      %v7095 = vlaneseq
      %v7096 = vshrl.u32 %v7095, 7
      %v7097 = vsub.s32 3, %v7096
      %v7098 = vrot.slane %v5560, %v7097
      %v7099 = vlaneseq
      %v7100 = vshrl.u32 %v7099, 7
      %v7101 = vsub.s32 4, %v7100
      %v7102 = vrot.slane %v5560, %v7101
      %v7103 = vlaneseq
      %v7104 = vshrl.u32 %v7103, 7
      %v7105 = vsub.s32 5, %v7104
      %v7106 = vrot.slane %v5560, %v7105
      %v7107 = vlaneseq
      %v7108 = vshrl.u32 %v7107, 7
      %v7109 = vsub.s32 6, %v7108
      %v7110 = vrot.slane %v5560, %v7109
      %v7111 = vlaneseq
      %v7112 = vshrl.u32 %v7111, 7
      %v7113 = vsub.s32 7, %v7112
      %v7114 = vrot.slane %v5560, %v7113
      %v7115 = vlaneseq
      %v7116 = vshrl.u32 %v7115, 7
      %v7117 = vsub.s32 0, %v7116
      %v7118 = vrot.slane %v5561, %v7117
      %v7119 = vlaneseq
      %v7120 = vshrl.u32 %v7119, 7
      %v7121 = vsub.s32 1, %v7120
      %v7122 = vrot.slane %v5561, %v7121
      %v7123 = vlaneseq
      %v7124 = vshrl.u32 %v7123, 7
      %v7125 = vsub.s32 2, %v7124
      %v7126 = vrot.slane %v5561, %v7125
      %v7127 = vlaneseq
      %v7128 = vshrl.u32 %v7127, 7
      %v7129 = vsub.s32 3, %v7128
      %v7130 = vrot.slane %v5561, %v7129
      %v7131 = vlaneseq
      %v7132 = vshrl.u32 %v7131, 7
      %v7133 = vsub.s32 4, %v7132
      %v7134 = vrot.slane %v5561, %v7133
      %v7135 = vlaneseq
      %v7136 = vshrl.u32 %v7135, 7
      %v7137 = vsub.s32 5, %v7136
      %v7138 = vrot.slane %v5561, %v7137
      %v7139 = vlaneseq
      %v7140 = vshrl.u32 %v7139, 7
      %v7141 = vsub.s32 6, %v7140
      %v7142 = vrot.slane %v5561, %v7141
      %v7143 = vlaneseq
      %v7144 = vshrl.u32 %v7143, 7
      %v7145 = vsub.s32 7, %v7144
      %v7146 = vrot.slane %v5561, %v7145
      %v7147 = vlaneseq
      %v7148 = vshrl.u32 %v7147, 7
      %v7149 = vsub.s32 0, %v7148
      %v7150 = vrot.slane %v5562, %v7149
      %v7151 = vlaneseq
      %v7152 = vshrl.u32 %v7151, 7
      %v7153 = vsub.s32 1, %v7152
      %v7154 = vrot.slane %v5562, %v7153
      %v7155 = vlaneseq
      %v7156 = vshrl.u32 %v7155, 7
      %v7157 = vsub.s32 2, %v7156
      %v7158 = vrot.slane %v5562, %v7157
      %v7159 = vlaneseq
      %v7160 = vshrl.u32 %v7159, 7
      %v7161 = vsub.s32 3, %v7160
      %v7162 = vrot.slane %v5562, %v7161
      %v7163 = vlaneseq
      %v7164 = vshrl.u32 %v7163, 7
      %v7165 = vsub.s32 4, %v7164
      %v7166 = vrot.slane %v5562, %v7165
      %v7167 = vlaneseq
      %v7168 = vshrl.u32 %v7167, 7
      %v7169 = vsub.s32 5, %v7168
      %v7170 = vrot.slane %v5562, %v7169
      %v7171 = vlaneseq
      %v7172 = vshrl.u32 %v7171, 7
      %v7173 = vsub.s32 6, %v7172
      %v7174 = vrot.slane %v5562, %v7173
      %v7175 = vlaneseq
      %v7176 = vshrl.u32 %v7175, 7
      %v7177 = vsub.s32 7, %v7176
      %v7178 = vrot.slane %v5562, %v7177
      %v7179 = vlaneseq
      %v7180 = vshrl.u32 %v7179, 7
      %v7181 = vsub.s32 0, %v7180
      %v7182 = vrot.slane %v5563, %v7181
      %v7183 = vlaneseq
      %v7184 = vshrl.u32 %v7183, 7
      %v7185 = vsub.s32 1, %v7184
      %v7186 = vrot.slane %v5563, %v7185
      %v7187 = vlaneseq
      %v7188 = vshrl.u32 %v7187, 7
      %v7189 = vsub.s32 2, %v7188
      %v7190 = vrot.slane %v5563, %v7189
      %v7191 = vlaneseq
      %v7192 = vshrl.u32 %v7191, 7
      %v7193 = vsub.s32 3, %v7192
      %v7194 = vrot.slane %v5563, %v7193
      %v7195 = vlaneseq
      %v7196 = vshrl.u32 %v7195, 7
      %v7197 = vsub.s32 4, %v7196
      %v7198 = vrot.slane %v5563, %v7197
      %v7199 = vlaneseq
      %v7200 = vshrl.u32 %v7199, 7
      %v7201 = vsub.s32 5, %v7200
      %v7202 = vrot.slane %v5563, %v7201
      %v7203 = vlaneseq
      %v7204 = vshrl.u32 %v7203, 7
      %v7205 = vsub.s32 6, %v7204
      %v7206 = vrot.slane %v5563, %v7205
      %v7207 = vlaneseq
      %v7208 = vshrl.u32 %v7207, 7
      %v7209 = vsub.s32 7, %v7208
      %v7210 = vrot.slane %v5563, %v7209
      %v7211 = vlaneseq
      %v7212 = vshrl.u32 %v7211, 7
      %v7213 = vsub.s32 0, %v7212
      %v7214 = vrot.slane %v5564, %v7213
      %v7215 = vlaneseq
      %v7216 = vshrl.u32 %v7215, 7
      %v7217 = vsub.s32 1, %v7216
      %v7218 = vrot.slane %v5564, %v7217
      %v7219 = vlaneseq
      %v7220 = vshrl.u32 %v7219, 7
      %v7221 = vsub.s32 2, %v7220
      %v7222 = vrot.slane %v5564, %v7221
      %v7223 = vlaneseq
      %v7224 = vshrl.u32 %v7223, 7
      %v7225 = vsub.s32 3, %v7224
      %v7226 = vrot.slane %v5564, %v7225
      %v7227 = vlaneseq
      %v7228 = vshrl.u32 %v7227, 7
      %v7229 = vsub.s32 4, %v7228
      %v7230 = vrot.slane %v5564, %v7229
      %v7231 = vlaneseq
      %v7232 = vshrl.u32 %v7231, 7
      %v7233 = vsub.s32 5, %v7232
      %v7234 = vrot.slane %v5564, %v7233
      %v7235 = vlaneseq
      %v7236 = vshrl.u32 %v7235, 7
      %v7237 = vsub.s32 6, %v7236
      %v7238 = vrot.slane %v5564, %v7237
      %v7239 = vlaneseq
      %v7240 = vshrl.u32 %v7239, 7
      %v7241 = vsub.s32 7, %v7240
      %v7242 = vrot.slane %v5564, %v7241
      %v7243 = vlaneseq
      %v7244 = vshrl.u32 %v7243, 7
      %v7245 = vsub.s32 0, %v7244
      %v7246 = vrot.slane %v5565, %v7245
      %v7247 = vlaneseq
      %v7248 = vshrl.u32 %v7247, 7
      %v7249 = vsub.s32 1, %v7248
      %v7250 = vrot.slane %v5565, %v7249
      %v7251 = vlaneseq
      %v7252 = vshrl.u32 %v7251, 7
      %v7253 = vsub.s32 2, %v7252
      %v7254 = vrot.slane %v5565, %v7253
      %v7255 = vlaneseq
      %v7256 = vshrl.u32 %v7255, 7
      %v7257 = vsub.s32 3, %v7256
      %v7258 = vrot.slane %v5565, %v7257
      %v7259 = vlaneseq
      %v7260 = vshrl.u32 %v7259, 7
      %v7261 = vsub.s32 4, %v7260
      %v7262 = vrot.slane %v5565, %v7261
      %v7263 = vlaneseq
      %v7264 = vshrl.u32 %v7263, 7
      %v7265 = vsub.s32 5, %v7264
      %v7266 = vrot.slane %v5565, %v7265
      %v7267 = vlaneseq
      %v7268 = vshrl.u32 %v7267, 7
      %v7269 = vsub.s32 6, %v7268
      %v7270 = vrot.slane %v5565, %v7269
      %v7271 = vlaneseq
      %v7272 = vshrl.u32 %v7271, 7
      %v7273 = vsub.s32 7, %v7272
      %v7274 = vrot.slane %v5565, %v7273
      %v7275 = vlaneseq
      %v7276 = vshrl.u32 %v7275, 7
      %v7277 = vsub.s32 0, %v7276
      %v7278 = vrot.slane %v5566, %v7277
      %v7279 = vlaneseq
      %v7280 = vshrl.u32 %v7279, 7
      %v7281 = vsub.s32 1, %v7280
      %v7282 = vrot.slane %v5566, %v7281
      %v7283 = vlaneseq
      %v7284 = vshrl.u32 %v7283, 7
      %v7285 = vsub.s32 2, %v7284
      %v7286 = vrot.slane %v5566, %v7285
      %v7287 = vlaneseq
      %v7288 = vshrl.u32 %v7287, 7
      %v7289 = vsub.s32 3, %v7288
      %v7290 = vrot.slane %v5566, %v7289
      %v7291 = vlaneseq
      %v7292 = vshrl.u32 %v7291, 7
      %v7293 = vsub.s32 4, %v7292
      %v7294 = vrot.slane %v5566, %v7293
      %v7295 = vlaneseq
      %v7296 = vshrl.u32 %v7295, 7
      %v7297 = vsub.s32 5, %v7296
      %v7298 = vrot.slane %v5566, %v7297
      %v7299 = vlaneseq
      %v7300 = vshrl.u32 %v7299, 7
      %v7301 = vsub.s32 6, %v7300
      %v7302 = vrot.slane %v5566, %v7301
      %v7303 = vlaneseq
      %v7304 = vshrl.u32 %v7303, 7
      %v7305 = vsub.s32 7, %v7304
      %v7306 = vrot.slane %v5566, %v7305
      %v7307 = vlaneseq
      %v7308 = vshrl.u32 %v7307, 7
      %v7309 = vsub.s32 0, %v7308
      %v7310 = vrot.slane %v5567, %v7309
      %v7311 = vlaneseq
      %v7312 = vshrl.u32 %v7311, 7
      %v7313 = vsub.s32 1, %v7312
      %v7314 = vrot.slane %v5567, %v7313
      %v7315 = vlaneseq
      %v7316 = vshrl.u32 %v7315, 7
      %v7317 = vsub.s32 2, %v7316
      %v7318 = vrot.slane %v5567, %v7317
      %v7319 = vlaneseq
      %v7320 = vshrl.u32 %v7319, 7
      %v7321 = vsub.s32 3, %v7320
      %v7322 = vrot.slane %v5567, %v7321
      %v7323 = vlaneseq
      %v7324 = vshrl.u32 %v7323, 7
      %v7325 = vsub.s32 4, %v7324
      %v7326 = vrot.slane %v5567, %v7325
      %v7327 = vlaneseq
      %v7328 = vshrl.u32 %v7327, 7
      %v7329 = vsub.s32 5, %v7328
      %v7330 = vrot.slane %v5567, %v7329
      %v7331 = vlaneseq
      %v7332 = vshrl.u32 %v7331, 7
      %v7333 = vsub.s32 6, %v7332
      %v7334 = vrot.slane %v5567, %v7333
      %v7335 = vlaneseq
      %v7336 = vshrl.u32 %v7335, 7
      %v7337 = vsub.s32 7, %v7336
      %v7338 = vrot.slane %v5567, %v7337
      %v7339 = vlaneseq
      %v7340 = vshrl.u32 %v7339, 7
      %v7341 = vsub.s32 0, %v7340
      %v7342 = vrot.slane %v5568, %v7341
      %v7343 = vlaneseq
      %v7344 = vshrl.u32 %v7343, 7
      %v7345 = vsub.s32 1, %v7344
      %v7346 = vrot.slane %v5568, %v7345
      %v7347 = vlaneseq
      %v7348 = vshrl.u32 %v7347, 7
      %v7349 = vsub.s32 2, %v7348
      %v7350 = vrot.slane %v5568, %v7349
      %v7351 = vlaneseq
      %v7352 = vshrl.u32 %v7351, 7
      %v7353 = vsub.s32 3, %v7352
      %v7354 = vrot.slane %v5568, %v7353
      %v7355 = vlaneseq
      %v7356 = vshrl.u32 %v7355, 7
      %v7357 = vsub.s32 4, %v7356
      %v7358 = vrot.slane %v5568, %v7357
      %v7359 = vlaneseq
      %v7360 = vshrl.u32 %v7359, 7
      %v7361 = vsub.s32 5, %v7360
      %v7362 = vrot.slane %v5568, %v7361
      %v7363 = vlaneseq
      %v7364 = vshrl.u32 %v7363, 7
      %v7365 = vsub.s32 6, %v7364
      %v7366 = vrot.slane %v5568, %v7365
      %v7367 = vlaneseq
      %v7368 = vshrl.u32 %v7367, 7
      %v7369 = vsub.s32 7, %v7368
      %v7370 = vrot.slane %v5568, %v7369
      %v7371 = vlaneseq
      %v7372 = vshrl.u32 %v7371, 7
      %v7373 = vsub.s32 0, %v7372
      %v7374 = vrot.slane %v5569, %v7373
      %v7375 = vlaneseq
      %v7376 = vshrl.u32 %v7375, 7
      %v7377 = vsub.s32 1, %v7376
      %v7378 = vrot.slane %v5569, %v7377
      %v7379 = vlaneseq
      %v7380 = vshrl.u32 %v7379, 7
      %v7381 = vsub.s32 2, %v7380
      %v7382 = vrot.slane %v5569, %v7381
      %v7383 = vlaneseq
      %v7384 = vshrl.u32 %v7383, 7
      %v7385 = vsub.s32 3, %v7384
      %v7386 = vrot.slane %v5569, %v7385
      %v7387 = vlaneseq
      %v7388 = vshrl.u32 %v7387, 7
      %v7389 = vsub.s32 4, %v7388
      %v7390 = vrot.slane %v5569, %v7389
      %v7391 = vlaneseq
      %v7392 = vshrl.u32 %v7391, 7
      %v7393 = vsub.s32 5, %v7392
      %v7394 = vrot.slane %v5569, %v7393
      %v7395 = vlaneseq
      %v7396 = vshrl.u32 %v7395, 7
      %v7397 = vsub.s32 6, %v7396
      %v7398 = vrot.slane %v5569, %v7397
      %v7399 = vlaneseq
      %v7400 = vshrl.u32 %v7399, 7
      %v7401 = vsub.s32 7, %v7400
      %v7402 = vrot.slane %v5569, %v7401
      %v7403 = vlaneseq
      %v7404 = vshrl.u32 %v7403, 7
      %v7405 = vsub.s32 0, %v7404
      %v7406 = vrot.slane %v5570, %v7405
      %v7407 = vlaneseq
      %v7408 = vshrl.u32 %v7407, 7
      %v7409 = vsub.s32 1, %v7408
      %v7410 = vrot.slane %v5570, %v7409
      %v7411 = vlaneseq
      %v7412 = vshrl.u32 %v7411, 7
      %v7413 = vsub.s32 2, %v7412
      %v7414 = vrot.slane %v5570, %v7413
      %v7415 = vlaneseq
      %v7416 = vshrl.u32 %v7415, 7
      %v7417 = vsub.s32 3, %v7416
      %v7418 = vrot.slane %v5570, %v7417
      %v7419 = vlaneseq
      %v7420 = vshrl.u32 %v7419, 7
      %v7421 = vsub.s32 4, %v7420
      %v7422 = vrot.slane %v5570, %v7421
      %v7423 = vlaneseq
      %v7424 = vshrl.u32 %v7423, 7
      %v7425 = vsub.s32 5, %v7424
      %v7426 = vrot.slane %v5570, %v7425
      %v7427 = vlaneseq
      %v7428 = vshrl.u32 %v7427, 7
      %v7429 = vsub.s32 6, %v7428
      %v7430 = vrot.slane %v5570, %v7429
      %v7431 = vlaneseq
      %v7432 = vshrl.u32 %v7431, 7
      %v7433 = vsub.s32 7, %v7432
      %v7434 = vrot.slane %v5570, %v7433
      %v7435 = vlaneseq
      %v7436 = vshrl.u32 %v7435, 7
      %v7437 = vsub.s32 0, %v7436
      %v7438 = vrot.slane %v5571, %v7437
      %v7439 = vlaneseq
      %v7440 = vshrl.u32 %v7439, 7
      %v7441 = vsub.s32 1, %v7440
      %v7442 = vrot.slane %v5571, %v7441
      %v7443 = vlaneseq
      %v7444 = vshrl.u32 %v7443, 7
      %v7445 = vsub.s32 2, %v7444
      %v7446 = vrot.slane %v5571, %v7445
      %v7447 = vlaneseq
      %v7448 = vshrl.u32 %v7447, 7
      %v7449 = vsub.s32 3, %v7448
      %v7450 = vrot.slane %v5571, %v7449
      %v7451 = vlaneseq
      %v7452 = vshrl.u32 %v7451, 7
      %v7453 = vsub.s32 4, %v7452
      %v7454 = vrot.slane %v5571, %v7453
      %v7455 = vlaneseq
      %v7456 = vshrl.u32 %v7455, 7
      %v7457 = vsub.s32 5, %v7456
      %v7458 = vrot.slane %v5571, %v7457
      %v7459 = vlaneseq
      %v7460 = vshrl.u32 %v7459, 7
      %v7461 = vsub.s32 6, %v7460
      %v7462 = vrot.slane %v5571, %v7461
      %v7463 = vlaneseq
      %v7464 = vshrl.u32 %v7463, 7
      %v7465 = vsub.s32 7, %v7464
      %v7466 = vrot.slane %v5571, %v7465
      %v7467 = vlaneseq
      %v7468 = vshrl.u32 %v7467, 7
      %v7469 = vsub.s32 0, %v7468
      %v7470 = vrot.slane %v5572, %v7469
      %v7471 = vlaneseq
      %v7472 = vshrl.u32 %v7471, 7
      %v7473 = vsub.s32 1, %v7472
      %v7474 = vrot.slane %v5572, %v7473
      %v7475 = vlaneseq
      %v7476 = vshrl.u32 %v7475, 7
      %v7477 = vsub.s32 2, %v7476
      %v7478 = vrot.slane %v5572, %v7477
      %v7479 = vlaneseq
      %v7480 = vshrl.u32 %v7479, 7
      %v7481 = vsub.s32 3, %v7480
      %v7482 = vrot.slane %v5572, %v7481
      %v7483 = vlaneseq
      %v7484 = vshrl.u32 %v7483, 7
      %v7485 = vsub.s32 4, %v7484
      %v7486 = vrot.slane %v5572, %v7485
      %v7487 = vlaneseq
      %v7488 = vshrl.u32 %v7487, 7
      %v7489 = vsub.s32 5, %v7488
      %v7490 = vrot.slane %v5572, %v7489
      %v7491 = vlaneseq
      %v7492 = vshrl.u32 %v7491, 7
      %v7493 = vsub.s32 6, %v7492
      %v7494 = vrot.slane %v5572, %v7493
      %v7495 = vlaneseq
      %v7496 = vshrl.u32 %v7495, 7
      %v7497 = vsub.s32 7, %v7496
      %v7498 = vrot.slane %v5572, %v7497
      %v7499 = vlaneseq
      %v7500 = vshrl.u32 %v7499, 7
      %v7501 = vsub.s32 0, %v7500
      %v7502 = vrot.slane %v5573, %v7501
      %v7503 = vlaneseq
      %v7504 = vshrl.u32 %v7503, 7
      %v7505 = vsub.s32 1, %v7504
      %v7506 = vrot.slane %v5573, %v7505
      %v7507 = vlaneseq
      %v7508 = vshrl.u32 %v7507, 7
      %v7509 = vsub.s32 2, %v7508
      %v7510 = vrot.slane %v5573, %v7509
      %v7511 = vlaneseq
      %v7512 = vshrl.u32 %v7511, 7
      %v7513 = vsub.s32 3, %v7512
      %v7514 = vrot.slane %v5573, %v7513
      %v7515 = vlaneseq
      %v7516 = vshrl.u32 %v7515, 7
      %v7517 = vsub.s32 4, %v7516
      %v7518 = vrot.slane %v5573, %v7517
      %v7519 = vlaneseq
      %v7520 = vshrl.u32 %v7519, 7
      %v7521 = vsub.s32 5, %v7520
      %v7522 = vrot.slane %v5573, %v7521
      %v7523 = vlaneseq
      %v7524 = vshrl.u32 %v7523, 7
      %v7525 = vsub.s32 6, %v7524
      %v7526 = vrot.slane %v5573, %v7525
      %v7527 = vlaneseq
      %v7528 = vshrl.u32 %v7527, 7
      %v7529 = vsub.s32 7, %v7528
      %v7530 = vrot.slane %v5573, %v7529
      %v7531 = vlaneseq
      %v7532 = vshrl.u32 %v7531, 7
      %v7533 = vsub.s32 0, %v7532
      %v7534 = vrot.slane %v5574, %v7533
      %v7535 = vlaneseq
      %v7536 = vshrl.u32 %v7535, 7
      %v7537 = vsub.s32 1, %v7536
      %v7538 = vrot.slane %v5574, %v7537
      %v7539 = vlaneseq
      %v7540 = vshrl.u32 %v7539, 7
      %v7541 = vsub.s32 2, %v7540
      %v7542 = vrot.slane %v5574, %v7541
      %v7543 = vlaneseq
      %v7544 = vshrl.u32 %v7543, 7
      %v7545 = vsub.s32 3, %v7544
      %v7546 = vrot.slane %v5574, %v7545
      %v7547 = vlaneseq
      %v7548 = vshrl.u32 %v7547, 7
      %v7549 = vsub.s32 4, %v7548
      %v7550 = vrot.slane %v5574, %v7549
      %v7551 = vlaneseq
      %v7552 = vshrl.u32 %v7551, 7
      %v7553 = vsub.s32 5, %v7552
      %v7554 = vrot.slane %v5574, %v7553
      %v7555 = vlaneseq
      %v7556 = vshrl.u32 %v7555, 7
      %v7557 = vsub.s32 6, %v7556
      %v7558 = vrot.slane %v5574, %v7557
      %v7559 = vlaneseq
      %v7560 = vshrl.u32 %v7559, 7
      %v7561 = vsub.s32 7, %v7560
      %v7562 = vrot.slane %v5574, %v7561
      %v7563 = vlaneseq
      %v7564 = vshrl.u32 %v7563, 7
      %v7565 = vsub.s32 0, %v7564
      %v7566 = vrot.slane %v5575, %v7565
      %v7567 = vlaneseq
      %v7568 = vshrl.u32 %v7567, 7
      %v7569 = vsub.s32 1, %v7568
      %v7570 = vrot.slane %v5575, %v7569
      %v7571 = vlaneseq
      %v7572 = vshrl.u32 %v7571, 7
      %v7573 = vsub.s32 2, %v7572
      %v7574 = vrot.slane %v5575, %v7573
      %v7575 = vlaneseq
      %v7576 = vshrl.u32 %v7575, 7
      %v7577 = vsub.s32 3, %v7576
      %v7578 = vrot.slane %v5575, %v7577
      %v7579 = vlaneseq
      %v7580 = vshrl.u32 %v7579, 7
      %v7581 = vsub.s32 4, %v7580
      %v7582 = vrot.slane %v5575, %v7581
      %v7583 = vlaneseq
      %v7584 = vshrl.u32 %v7583, 7
      %v7585 = vsub.s32 5, %v7584
      %v7586 = vrot.slane %v5575, %v7585
      %v7587 = vlaneseq
      %v7588 = vshrl.u32 %v7587, 7
      %v7589 = vsub.s32 6, %v7588
      %v7590 = vrot.slane %v5575, %v7589
      %v7591 = vlaneseq
      %v7592 = vshrl.u32 %v7591, 7
      %v7593 = vsub.s32 7, %v7592
      %v7594 = vrot.slane %v5575, %v7593
      %v7595 = vlaneseq
      %v7596 = vshrl.u32 %v7595, 7
      %v7597 = vsub.s32 0, %v7596
      %v7598 = vrot.slane %v5576, %v7597
      %v7599 = vlaneseq
      %v7600 = vshrl.u32 %v7599, 7
      %v7601 = vsub.s32 1, %v7600
      %v7602 = vrot.slane %v5576, %v7601
      %v7603 = vlaneseq
      %v7604 = vshrl.u32 %v7603, 7
      %v7605 = vsub.s32 2, %v7604
      %v7606 = vrot.slane %v5576, %v7605
      %v7607 = vlaneseq
      %v7608 = vshrl.u32 %v7607, 7
      %v7609 = vsub.s32 3, %v7608
      %v7610 = vrot.slane %v5576, %v7609
      %v7611 = vlaneseq
      %v7612 = vshrl.u32 %v7611, 7
      %v7613 = vsub.s32 4, %v7612
      %v7614 = vrot.slane %v5576, %v7613
      %v7615 = vlaneseq
      %v7616 = vshrl.u32 %v7615, 7
      %v7617 = vsub.s32 5, %v7616
      %v7618 = vrot.slane %v5576, %v7617
      %v7619 = vlaneseq
      %v7620 = vshrl.u32 %v7619, 7
      %v7621 = vsub.s32 6, %v7620
      %v7622 = vrot.slane %v5576, %v7621
      %v7623 = vlaneseq
      %v7624 = vshrl.u32 %v7623, 7
      %v7625 = vsub.s32 7, %v7624
      %v7626 = vrot.slane %v5576, %v7625
      %v7627 = vlaneseq
      %v7628 = vshrl.u32 %v7627, 7
      %v7629 = vsub.s32 0, %v7628
      %v7630 = vrot.slane %v5577, %v7629
      %v7631 = vlaneseq
      %v7632 = vshrl.u32 %v7631, 7
      %v7633 = vsub.s32 1, %v7632
      %v7634 = vrot.slane %v5577, %v7633
      %v7635 = vlaneseq
      %v7636 = vshrl.u32 %v7635, 7
      %v7637 = vsub.s32 2, %v7636
      %v7638 = vrot.slane %v5577, %v7637
      %v7639 = vlaneseq
      %v7640 = vshrl.u32 %v7639, 7
      %v7641 = vsub.s32 3, %v7640
      %v7642 = vrot.slane %v5577, %v7641
      %v7643 = vlaneseq
      %v7644 = vshrl.u32 %v7643, 7
      %v7645 = vsub.s32 4, %v7644
      %v7646 = vrot.slane %v5577, %v7645
      %v7647 = vlaneseq
      %v7648 = vshrl.u32 %v7647, 7
      %v7649 = vsub.s32 5, %v7648
      %v7650 = vrot.slane %v5577, %v7649
      %v7651 = vlaneseq
      %v7652 = vshrl.u32 %v7651, 7
      %v7653 = vsub.s32 6, %v7652
      %v7654 = vrot.slane %v5577, %v7653
      %v7655 = vlaneseq
      %v7656 = vshrl.u32 %v7655, 7
      %v7657 = vsub.s32 7, %v7656
      %v7658 = vrot.slane %v5577, %v7657
      %v7659 = vlaneseq
      %v7660 = vshrl.u32 %v7659, 7
      %v7661 = vsub.s32 0, %v7660
      %v7662 = vrot.slane %v5578, %v7661
      %v7663 = vlaneseq
      %v7664 = vshrl.u32 %v7663, 7
      %v7665 = vsub.s32 1, %v7664
      %v7666 = vrot.slane %v5578, %v7665
      %v7667 = vlaneseq
      %v7668 = vshrl.u32 %v7667, 7
      %v7669 = vsub.s32 2, %v7668
      %v7670 = vrot.slane %v5578, %v7669
      %v7671 = vlaneseq
      %v7672 = vshrl.u32 %v7671, 7
      %v7673 = vsub.s32 3, %v7672
      %v7674 = vrot.slane %v5578, %v7673
      %v7675 = vlaneseq
      %v7676 = vshrl.u32 %v7675, 7
      %v7677 = vsub.s32 4, %v7676
      %v7678 = vrot.slane %v5578, %v7677
      %v7679 = vlaneseq
      %v7680 = vshrl.u32 %v7679, 7
      %v7681 = vsub.s32 5, %v7680
      %v7682 = vrot.slane %v5578, %v7681
      %v7683 = vlaneseq
      %v7684 = vshrl.u32 %v7683, 7
      %v7685 = vsub.s32 6, %v7684
      %v7686 = vrot.slane %v5578, %v7685
      %v7687 = vlaneseq
      %v7688 = vshrl.u32 %v7687, 7
      %v7689 = vsub.s32 7, %v7688
      %v7690 = vrot.slane %v5578, %v7689
      %v7691 = vcombine.low %v5646, %v5650
      %v7692 = vcombine.low %v5654, %v5658
      %v7693 = vcombine.low %v5662, %v5666
      %v7694 = vcombine.low %v5670, %v5674
      %v7696 = vunpack.c.l.s4 1966171168
      %v7697 = vunpack.c.0.s8 %v7696
      %v7698 = vlaneseq
      %v7699 = vshrl.u32 %v7698, 7
      %v7700 = vsub.s32 %v7697, %v7699
      %v7701 = vrot.slane %v7691, %v7700
      %v7703 = vunpack.c.l.s4 1966171168
      %v7704 = vunpack.c.0.s8 %v7703
      %v7705 = vlaneseq
      %v7706 = vshrl.u32 %v7705, 7
      %v7707 = vsub.s32 %v7704, %v7706
      %v7708 = vrot.slane %v7692, %v7707
      %v7710 = vunpack.c.l.s4 1966171168
      %v7711 = vunpack.c.0.s8 %v7710
      %v7712 = vlaneseq
      %v7713 = vshrl.u32 %v7712, 7
      %v7714 = vsub.s32 %v7711, %v7713
      %v7715 = vrot.slane %v7693, %v7714
      %v7717 = vunpack.c.l.s4 1966171168
      %v7718 = vunpack.c.0.s8 %v7717
      %v7719 = vlaneseq
      %v7720 = vshrl.u32 %v7719, 7
      %v7721 = vsub.s32 %v7718, %v7720
      %v7722 = vrot.slane %v7694, %v7721
      %v7723 = vcombine.low %v7701, %v7708
      %v7724 = vcombine.low %v7715, %v7722
      %v7726 = vunpack.c.l.s4 1966171168
      %v7727 = vunpack.c.0.s8 %v7726
      %v7728 = vlaneseq
      %v7729 = vshrl.u32 %v7728, 7
      %v7730 = vsub.s32 %v7727, %v7729
      %v7731 = vrot.slane %v7723, %v7730
      %v7733 = vunpack.c.l.s4 1966171168
      %v7734 = vunpack.c.0.s8 %v7733
      %v7735 = vlaneseq
      %v7736 = vshrl.u32 %v7735, 7
      %v7737 = vsub.s32 %v7734, %v7736
      %v7738 = vrot.slane %v7724, %v7737
      %v7739 = vcombine.low %v7731, %v7738
      %v7740 = vcombine.low %v5678, %v5682
      %v7741 = vcombine.low %v5686, %v5690
      %v7742 = vcombine.low %v5694, %v5698
      %v7743 = vcombine.low %v5702, %v5706
      %v7745 = vunpack.c.l.s4 1966171168
      %v7746 = vunpack.c.0.s8 %v7745
      %v7747 = vlaneseq
      %v7748 = vshrl.u32 %v7747, 7
      %v7749 = vsub.s32 %v7746, %v7748
      %v7750 = vrot.slane %v7740, %v7749
      %v7752 = vunpack.c.l.s4 1966171168
      %v7753 = vunpack.c.0.s8 %v7752
      %v7754 = vlaneseq
      %v7755 = vshrl.u32 %v7754, 7
      %v7756 = vsub.s32 %v7753, %v7755
      %v7757 = vrot.slane %v7741, %v7756
      %v7759 = vunpack.c.l.s4 1966171168
      %v7760 = vunpack.c.0.s8 %v7759
      %v7761 = vlaneseq
      %v7762 = vshrl.u32 %v7761, 7
      %v7763 = vsub.s32 %v7760, %v7762
      %v7764 = vrot.slane %v7742, %v7763
      %v7766 = vunpack.c.l.s4 1966171168
      %v7767 = vunpack.c.0.s8 %v7766
      %v7768 = vlaneseq
      %v7769 = vshrl.u32 %v7768, 7
      %v7770 = vsub.s32 %v7767, %v7769
      %v7771 = vrot.slane %v7743, %v7770
      %v7772 = vcombine.low %v7750, %v7757
      %v7773 = vcombine.low %v7764, %v7771
      %v7775 = vunpack.c.l.s4 1966171168
      %v7776 = vunpack.c.0.s8 %v7775
      %v7777 = vlaneseq
      %v7778 = vshrl.u32 %v7777, 7
      %v7779 = vsub.s32 %v7776, %v7778
      %v7780 = vrot.slane %v7772, %v7779
      %v7782 = vunpack.c.l.s4 1966171168
      %v7783 = vunpack.c.0.s8 %v7782
      %v7784 = vlaneseq
      %v7785 = vshrl.u32 %v7784, 7
      %v7786 = vsub.s32 %v7783, %v7785
      %v7787 = vrot.slane %v7773, %v7786
      %v7788 = vcombine.low %v7780, %v7787
      %v7789 = vcombine.low %v5710, %v5714
      %v7790 = vcombine.low %v5718, %v5722
      %v7791 = vcombine.low %v5726, %v5730
      %v7792 = vcombine.low %v5734, %v5738
      %v7794 = vunpack.c.l.s4 1966171168
      %v7795 = vunpack.c.0.s8 %v7794
      %v7796 = vlaneseq
      %v7797 = vshrl.u32 %v7796, 7
      %v7798 = vsub.s32 %v7795, %v7797
      %v7799 = vrot.slane %v7789, %v7798
      %v7801 = vunpack.c.l.s4 1966171168
      %v7802 = vunpack.c.0.s8 %v7801
      %v7803 = vlaneseq
      %v7804 = vshrl.u32 %v7803, 7
      %v7805 = vsub.s32 %v7802, %v7804
      %v7806 = vrot.slane %v7790, %v7805
      %v7808 = vunpack.c.l.s4 1966171168
      %v7809 = vunpack.c.0.s8 %v7808
      %v7810 = vlaneseq
      %v7811 = vshrl.u32 %v7810, 7
      %v7812 = vsub.s32 %v7809, %v7811
      %v7813 = vrot.slane %v7791, %v7812
      %v7815 = vunpack.c.l.s4 1966171168
      %v7816 = vunpack.c.0.s8 %v7815
      %v7817 = vlaneseq
      %v7818 = vshrl.u32 %v7817, 7
      %v7819 = vsub.s32 %v7816, %v7818
      %v7820 = vrot.slane %v7792, %v7819
      %v7821 = vcombine.low %v7799, %v7806
      %v7822 = vcombine.low %v7813, %v7820
      %v7824 = vunpack.c.l.s4 1966171168
      %v7825 = vunpack.c.0.s8 %v7824
      %v7826 = vlaneseq
      %v7827 = vshrl.u32 %v7826, 7
      %v7828 = vsub.s32 %v7825, %v7827
      %v7829 = vrot.slane %v7821, %v7828
      %v7831 = vunpack.c.l.s4 1966171168
      %v7832 = vunpack.c.0.s8 %v7831
      %v7833 = vlaneseq
      %v7834 = vshrl.u32 %v7833, 7
      %v7835 = vsub.s32 %v7832, %v7834
      %v7836 = vrot.slane %v7822, %v7835
      %v7837 = vcombine.low %v7829, %v7836
      %v7838 = vcombine.low %v5742, %v5746
      %v7839 = vcombine.low %v5750, %v5754
      %v7840 = vcombine.low %v5758, %v5762
      %v7841 = vcombine.low %v5766, %v5770
      %v7843 = vunpack.c.l.s4 1966171168
      %v7844 = vunpack.c.0.s8 %v7843
      %v7845 = vlaneseq
      %v7846 = vshrl.u32 %v7845, 7
      %v7847 = vsub.s32 %v7844, %v7846
      %v7848 = vrot.slane %v7838, %v7847
      %v7850 = vunpack.c.l.s4 1966171168
      %v7851 = vunpack.c.0.s8 %v7850
      %v7852 = vlaneseq
      %v7853 = vshrl.u32 %v7852, 7
      %v7854 = vsub.s32 %v7851, %v7853
      %v7855 = vrot.slane %v7839, %v7854
      %v7857 = vunpack.c.l.s4 1966171168
      %v7858 = vunpack.c.0.s8 %v7857
      %v7859 = vlaneseq
      %v7860 = vshrl.u32 %v7859, 7
      %v7861 = vsub.s32 %v7858, %v7860
      %v7862 = vrot.slane %v7840, %v7861
      %v7864 = vunpack.c.l.s4 1966171168
      %v7865 = vunpack.c.0.s8 %v7864
      %v7866 = vlaneseq
      %v7867 = vshrl.u32 %v7866, 7
      %v7868 = vsub.s32 %v7865, %v7867
      %v7869 = vrot.slane %v7841, %v7868
      %v7870 = vcombine.low %v7848, %v7855
      %v7871 = vcombine.low %v7862, %v7869
      %v7873 = vunpack.c.l.s4 1966171168
      %v7874 = vunpack.c.0.s8 %v7873
      %v7875 = vlaneseq
      %v7876 = vshrl.u32 %v7875, 7
      %v7877 = vsub.s32 %v7874, %v7876
      %v7878 = vrot.slane %v7870, %v7877
      %v7880 = vunpack.c.l.s4 1966171168
      %v7881 = vunpack.c.0.s8 %v7880
      %v7882 = vlaneseq
      %v7883 = vshrl.u32 %v7882, 7
      %v7884 = vsub.s32 %v7881, %v7883
      %v7885 = vrot.slane %v7871, %v7884
      %v7886 = vcombine.low %v7878, %v7885
      %v7887 = vcombine.low %v5774, %v5778
      %v7888 = vcombine.low %v5782, %v5786
      %v7889 = vcombine.low %v5790, %v5794
      %v7890 = vcombine.low %v5798, %v5802
      %v7892 = vunpack.c.l.s4 1966171168
      %v7893 = vunpack.c.0.s8 %v7892
      %v7894 = vlaneseq
      %v7895 = vshrl.u32 %v7894, 7
      %v7896 = vsub.s32 %v7893, %v7895
      %v7897 = vrot.slane %v7887, %v7896
      %v7899 = vunpack.c.l.s4 1966171168
      %v7900 = vunpack.c.0.s8 %v7899
      %v7901 = vlaneseq
      %v7902 = vshrl.u32 %v7901, 7
      %v7903 = vsub.s32 %v7900, %v7902
      %v7904 = vrot.slane %v7888, %v7903
      %v7906 = vunpack.c.l.s4 1966171168
      %v7907 = vunpack.c.0.s8 %v7906
      %v7908 = vlaneseq
      %v7909 = vshrl.u32 %v7908, 7
      %v7910 = vsub.s32 %v7907, %v7909
      %v7911 = vrot.slane %v7889, %v7910
      %v7913 = vunpack.c.l.s4 1966171168
      %v7914 = vunpack.c.0.s8 %v7913
      %v7915 = vlaneseq
      %v7916 = vshrl.u32 %v7915, 7
      %v7917 = vsub.s32 %v7914, %v7916
      %v7918 = vrot.slane %v7890, %v7917
      %v7919 = vcombine.low %v7897, %v7904
      %v7920 = vcombine.low %v7911, %v7918
      %v7922 = vunpack.c.l.s4 1966171168
      %v7923 = vunpack.c.0.s8 %v7922
      %v7924 = vlaneseq
      %v7925 = vshrl.u32 %v7924, 7
      %v7926 = vsub.s32 %v7923, %v7925
      %v7927 = vrot.slane %v7919, %v7926
      %v7929 = vunpack.c.l.s4 1966171168
      %v7930 = vunpack.c.0.s8 %v7929
      %v7931 = vlaneseq
      %v7932 = vshrl.u32 %v7931, 7
      %v7933 = vsub.s32 %v7930, %v7932
      %v7934 = vrot.slane %v7920, %v7933
      %v7935 = vcombine.low %v7927, %v7934
      %v7936 = vcombine.low %v5806, %v5810
      %v7937 = vcombine.low %v5814, %v5818
      %v7938 = vcombine.low %v5822, %v5826
      %v7939 = vcombine.low %v5830, %v5834
      %v7941 = vunpack.c.l.s4 1966171168
      %v7942 = vunpack.c.0.s8 %v7941
      %v7943 = vlaneseq
      %v7944 = vshrl.u32 %v7943, 7
      %v7945 = vsub.s32 %v7942, %v7944
      %v7946 = vrot.slane %v7936, %v7945
      %v7948 = vunpack.c.l.s4 1966171168
      %v7949 = vunpack.c.0.s8 %v7948
      %v7950 = vlaneseq
      %v7951 = vshrl.u32 %v7950, 7
      %v7952 = vsub.s32 %v7949, %v7951
      %v7953 = vrot.slane %v7937, %v7952
      %v7955 = vunpack.c.l.s4 1966171168
      %v7956 = vunpack.c.0.s8 %v7955
      %v7957 = vlaneseq
      %v7958 = vshrl.u32 %v7957, 7
      %v7959 = vsub.s32 %v7956, %v7958
      %v7960 = vrot.slane %v7938, %v7959
      %v7962 = vunpack.c.l.s4 1966171168
      %v7963 = vunpack.c.0.s8 %v7962
      %v7964 = vlaneseq
      %v7965 = vshrl.u32 %v7964, 7
      %v7966 = vsub.s32 %v7963, %v7965
      %v7967 = vrot.slane %v7939, %v7966
      %v7968 = vcombine.low %v7946, %v7953
      %v7969 = vcombine.low %v7960, %v7967
      %v7971 = vunpack.c.l.s4 1966171168
      %v7972 = vunpack.c.0.s8 %v7971
      %v7973 = vlaneseq
      %v7974 = vshrl.u32 %v7973, 7
      %v7975 = vsub.s32 %v7972, %v7974
      %v7976 = vrot.slane %v7968, %v7975
      %v7978 = vunpack.c.l.s4 1966171168
      %v7979 = vunpack.c.0.s8 %v7978
      %v7980 = vlaneseq
      %v7981 = vshrl.u32 %v7980, 7
      %v7982 = vsub.s32 %v7979, %v7981
      %v7983 = vrot.slane %v7969, %v7982
      %v7984 = vcombine.low %v7976, %v7983
      %v7985 = vcombine.low %v5838, %v5842
      %v7986 = vcombine.low %v5846, %v5850
      %v7987 = vcombine.low %v5854, %v5858
      %v7988 = vcombine.low %v5862, %v5866
      %v7990 = vunpack.c.l.s4 1966171168
      %v7991 = vunpack.c.0.s8 %v7990
      %v7992 = vlaneseq
      %v7993 = vshrl.u32 %v7992, 7
      %v7994 = vsub.s32 %v7991, %v7993
      %v7995 = vrot.slane %v7985, %v7994
      %v7997 = vunpack.c.l.s4 1966171168
      %v7998 = vunpack.c.0.s8 %v7997
      %v7999 = vlaneseq
      %v8000 = vshrl.u32 %v7999, 7
      %v8001 = vsub.s32 %v7998, %v8000
      %v8002 = vrot.slane %v7986, %v8001
      %v8004 = vunpack.c.l.s4 1966171168
      %v8005 = vunpack.c.0.s8 %v8004
      %v8006 = vlaneseq
      %v8007 = vshrl.u32 %v8006, 7
      %v8008 = vsub.s32 %v8005, %v8007
      %v8009 = vrot.slane %v7987, %v8008
      %v8011 = vunpack.c.l.s4 1966171168
      %v8012 = vunpack.c.0.s8 %v8011
      %v8013 = vlaneseq
      %v8014 = vshrl.u32 %v8013, 7
      %v8015 = vsub.s32 %v8012, %v8014
      %v8016 = vrot.slane %v7988, %v8015
      %v8017 = vcombine.low %v7995, %v8002
      %v8018 = vcombine.low %v8009, %v8016
      %v8020 = vunpack.c.l.s4 1966171168
      %v8021 = vunpack.c.0.s8 %v8020
      %v8022 = vlaneseq
      %v8023 = vshrl.u32 %v8022, 7
      %v8024 = vsub.s32 %v8021, %v8023
      %v8025 = vrot.slane %v8017, %v8024
      %v8027 = vunpack.c.l.s4 1966171168
      %v8028 = vunpack.c.0.s8 %v8027
      %v8029 = vlaneseq
      %v8030 = vshrl.u32 %v8029, 7
      %v8031 = vsub.s32 %v8028, %v8030
      %v8032 = vrot.slane %v8018, %v8031
      %v8033 = vcombine.low %v8025, %v8032
      %v8034 = vcombine.low %v5870, %v5874
      %v8035 = vcombine.low %v5878, %v5882
      %v8036 = vcombine.low %v5886, %v5890
      %v8037 = vcombine.low %v5894, %v5898
      %v8039 = vunpack.c.l.s4 1966171168
      %v8040 = vunpack.c.0.s8 %v8039
      %v8041 = vlaneseq
      %v8042 = vshrl.u32 %v8041, 7
      %v8043 = vsub.s32 %v8040, %v8042
      %v8044 = vrot.slane %v8034, %v8043
      %v8046 = vunpack.c.l.s4 1966171168
      %v8047 = vunpack.c.0.s8 %v8046
      %v8048 = vlaneseq
      %v8049 = vshrl.u32 %v8048, 7
      %v8050 = vsub.s32 %v8047, %v8049
      %v8051 = vrot.slane %v8035, %v8050
      %v8053 = vunpack.c.l.s4 1966171168
      %v8054 = vunpack.c.0.s8 %v8053
      %v8055 = vlaneseq
      %v8056 = vshrl.u32 %v8055, 7
      %v8057 = vsub.s32 %v8054, %v8056
      %v8058 = vrot.slane %v8036, %v8057
      %v8060 = vunpack.c.l.s4 1966171168
      %v8061 = vunpack.c.0.s8 %v8060
      %v8062 = vlaneseq
      %v8063 = vshrl.u32 %v8062, 7
      %v8064 = vsub.s32 %v8061, %v8063
      %v8065 = vrot.slane %v8037, %v8064
      %v8066 = vcombine.low %v8044, %v8051
      %v8067 = vcombine.low %v8058, %v8065
      %v8069 = vunpack.c.l.s4 1966171168
      %v8070 = vunpack.c.0.s8 %v8069
      %v8071 = vlaneseq
      %v8072 = vshrl.u32 %v8071, 7
      %v8073 = vsub.s32 %v8070, %v8072
      %v8074 = vrot.slane %v8066, %v8073
      %v8076 = vunpack.c.l.s4 1966171168
      %v8077 = vunpack.c.0.s8 %v8076
      %v8078 = vlaneseq
      %v8079 = vshrl.u32 %v8078, 7
      %v8080 = vsub.s32 %v8077, %v8079
      %v8081 = vrot.slane %v8067, %v8080
      %v8082 = vcombine.low %v8074, %v8081
      %v8083 = vcombine.low %v5902, %v5906
      %v8084 = vcombine.low %v5910, %v5914
      %v8085 = vcombine.low %v5918, %v5922
      %v8086 = vcombine.low %v5926, %v5930
      %v8088 = vunpack.c.l.s4 1966171168
      %v8089 = vunpack.c.0.s8 %v8088
      %v8090 = vlaneseq
      %v8091 = vshrl.u32 %v8090, 7
      %v8092 = vsub.s32 %v8089, %v8091
      %v8093 = vrot.slane %v8083, %v8092
      %v8095 = vunpack.c.l.s4 1966171168
      %v8096 = vunpack.c.0.s8 %v8095
      %v8097 = vlaneseq
      %v8098 = vshrl.u32 %v8097, 7
      %v8099 = vsub.s32 %v8096, %v8098
      %v8100 = vrot.slane %v8084, %v8099
      %v8102 = vunpack.c.l.s4 1966171168
      %v8103 = vunpack.c.0.s8 %v8102
      %v8104 = vlaneseq
      %v8105 = vshrl.u32 %v8104, 7
      %v8106 = vsub.s32 %v8103, %v8105
      %v8107 = vrot.slane %v8085, %v8106
      %v8109 = vunpack.c.l.s4 1966171168
      %v8110 = vunpack.c.0.s8 %v8109
      %v8111 = vlaneseq
      %v8112 = vshrl.u32 %v8111, 7
      %v8113 = vsub.s32 %v8110, %v8112
      %v8114 = vrot.slane %v8086, %v8113
      %v8115 = vcombine.low %v8093, %v8100
      %v8116 = vcombine.low %v8107, %v8114
      %v8118 = vunpack.c.l.s4 1966171168
      %v8119 = vunpack.c.0.s8 %v8118
      %v8120 = vlaneseq
      %v8121 = vshrl.u32 %v8120, 7
      %v8122 = vsub.s32 %v8119, %v8121
      %v8123 = vrot.slane %v8115, %v8122
      %v8125 = vunpack.c.l.s4 1966171168
      %v8126 = vunpack.c.0.s8 %v8125
      %v8127 = vlaneseq
      %v8128 = vshrl.u32 %v8127, 7
      %v8129 = vsub.s32 %v8126, %v8128
      %v8130 = vrot.slane %v8116, %v8129
      %v8131 = vcombine.low %v8123, %v8130
      %v8132 = vcombine.low %v5934, %v5938
      %v8133 = vcombine.low %v5942, %v5946
      %v8134 = vcombine.low %v5950, %v5954
      %v8135 = vcombine.low %v5958, %v5962
      %v8137 = vunpack.c.l.s4 1966171168
      %v8138 = vunpack.c.0.s8 %v8137
      %v8139 = vlaneseq
      %v8140 = vshrl.u32 %v8139, 7
      %v8141 = vsub.s32 %v8138, %v8140
      %v8142 = vrot.slane %v8132, %v8141
      %v8144 = vunpack.c.l.s4 1966171168
      %v8145 = vunpack.c.0.s8 %v8144
      %v8146 = vlaneseq
      %v8147 = vshrl.u32 %v8146, 7
      %v8148 = vsub.s32 %v8145, %v8147
      %v8149 = vrot.slane %v8133, %v8148
      %v8151 = vunpack.c.l.s4 1966171168
      %v8152 = vunpack.c.0.s8 %v8151
      %v8153 = vlaneseq
      %v8154 = vshrl.u32 %v8153, 7
      %v8155 = vsub.s32 %v8152, %v8154
      %v8156 = vrot.slane %v8134, %v8155
      %v8158 = vunpack.c.l.s4 1966171168
      %v8159 = vunpack.c.0.s8 %v8158
      %v8160 = vlaneseq
      %v8161 = vshrl.u32 %v8160, 7
      %v8162 = vsub.s32 %v8159, %v8161
      %v8163 = vrot.slane %v8135, %v8162
      %v8164 = vcombine.low %v8142, %v8149
      %v8165 = vcombine.low %v8156, %v8163
      %v8167 = vunpack.c.l.s4 1966171168
      %v8168 = vunpack.c.0.s8 %v8167
      %v8169 = vlaneseq
      %v8170 = vshrl.u32 %v8169, 7
      %v8171 = vsub.s32 %v8168, %v8170
      %v8172 = vrot.slane %v8164, %v8171
      %v8174 = vunpack.c.l.s4 1966171168
      %v8175 = vunpack.c.0.s8 %v8174
      %v8176 = vlaneseq
      %v8177 = vshrl.u32 %v8176, 7
      %v8178 = vsub.s32 %v8175, %v8177
      %v8179 = vrot.slane %v8165, %v8178
      %v8180 = vcombine.low %v8172, %v8179
      %v8181 = vcombine.low %v5966, %v5970
      %v8182 = vcombine.low %v5974, %v5978
      %v8183 = vcombine.low %v5982, %v5986
      %v8184 = vcombine.low %v5990, %v5994
      %v8186 = vunpack.c.l.s4 1966171168
      %v8187 = vunpack.c.0.s8 %v8186
      %v8188 = vlaneseq
      %v8189 = vshrl.u32 %v8188, 7
      %v8190 = vsub.s32 %v8187, %v8189
      %v8191 = vrot.slane %v8181, %v8190
      %v8193 = vunpack.c.l.s4 1966171168
      %v8194 = vunpack.c.0.s8 %v8193
      %v8195 = vlaneseq
      %v8196 = vshrl.u32 %v8195, 7
      %v8197 = vsub.s32 %v8194, %v8196
      %v8198 = vrot.slane %v8182, %v8197
      %v8200 = vunpack.c.l.s4 1966171168
      %v8201 = vunpack.c.0.s8 %v8200
      %v8202 = vlaneseq
      %v8203 = vshrl.u32 %v8202, 7
      %v8204 = vsub.s32 %v8201, %v8203
      %v8205 = vrot.slane %v8183, %v8204
      %v8207 = vunpack.c.l.s4 1966171168
      %v8208 = vunpack.c.0.s8 %v8207
      %v8209 = vlaneseq
      %v8210 = vshrl.u32 %v8209, 7
      %v8211 = vsub.s32 %v8208, %v8210
      %v8212 = vrot.slane %v8184, %v8211
      %v8213 = vcombine.low %v8191, %v8198
      %v8214 = vcombine.low %v8205, %v8212
      %v8216 = vunpack.c.l.s4 1966171168
      %v8217 = vunpack.c.0.s8 %v8216
      %v8218 = vlaneseq
      %v8219 = vshrl.u32 %v8218, 7
      %v8220 = vsub.s32 %v8217, %v8219
      %v8221 = vrot.slane %v8213, %v8220
      %v8223 = vunpack.c.l.s4 1966171168
      %v8224 = vunpack.c.0.s8 %v8223
      %v8225 = vlaneseq
      %v8226 = vshrl.u32 %v8225, 7
      %v8227 = vsub.s32 %v8224, %v8226
      %v8228 = vrot.slane %v8214, %v8227
      %v8229 = vcombine.low %v8221, %v8228
      %v8230 = vcombine.low %v5998, %v6002
      %v8231 = vcombine.low %v6006, %v6010
      %v8232 = vcombine.low %v6014, %v6018
      %v8233 = vcombine.low %v6022, %v6026
      %v8235 = vunpack.c.l.s4 1966171168
      %v8236 = vunpack.c.0.s8 %v8235
      %v8237 = vlaneseq
      %v8238 = vshrl.u32 %v8237, 7
      %v8239 = vsub.s32 %v8236, %v8238
      %v8240 = vrot.slane %v8230, %v8239
      %v8242 = vunpack.c.l.s4 1966171168
      %v8243 = vunpack.c.0.s8 %v8242
      %v8244 = vlaneseq
      %v8245 = vshrl.u32 %v8244, 7
      %v8246 = vsub.s32 %v8243, %v8245
      %v8247 = vrot.slane %v8231, %v8246
      %v8249 = vunpack.c.l.s4 1966171168
      %v8250 = vunpack.c.0.s8 %v8249
      %v8251 = vlaneseq
      %v8252 = vshrl.u32 %v8251, 7
      %v8253 = vsub.s32 %v8250, %v8252
      %v8254 = vrot.slane %v8232, %v8253
      %v8256 = vunpack.c.l.s4 1966171168
      %v8257 = vunpack.c.0.s8 %v8256
      %v8258 = vlaneseq
      %v8259 = vshrl.u32 %v8258, 7
      %v8260 = vsub.s32 %v8257, %v8259
      %v8261 = vrot.slane %v8233, %v8260
      %v8262 = vcombine.low %v8240, %v8247
      %v8263 = vcombine.low %v8254, %v8261
      %v8265 = vunpack.c.l.s4 1966171168
      %v8266 = vunpack.c.0.s8 %v8265
      %v8267 = vlaneseq
      %v8268 = vshrl.u32 %v8267, 7
      %v8269 = vsub.s32 %v8266, %v8268
      %v8270 = vrot.slane %v8262, %v8269
      %v8272 = vunpack.c.l.s4 1966171168
      %v8273 = vunpack.c.0.s8 %v8272
      %v8274 = vlaneseq
      %v8275 = vshrl.u32 %v8274, 7
      %v8276 = vsub.s32 %v8273, %v8275
      %v8277 = vrot.slane %v8263, %v8276
      %v8278 = vcombine.low %v8270, %v8277
      %v8279 = vcombine.low %v6030, %v6034
      %v8280 = vcombine.low %v6038, %v6042
      %v8281 = vcombine.low %v6046, %v6050
      %v8282 = vcombine.low %v6054, %v6058
      %v8284 = vunpack.c.l.s4 1966171168
      %v8285 = vunpack.c.0.s8 %v8284
      %v8286 = vlaneseq
      %v8287 = vshrl.u32 %v8286, 7
      %v8288 = vsub.s32 %v8285, %v8287
      %v8289 = vrot.slane %v8279, %v8288
      %v8291 = vunpack.c.l.s4 1966171168
      %v8292 = vunpack.c.0.s8 %v8291
      %v8293 = vlaneseq
      %v8294 = vshrl.u32 %v8293, 7
      %v8295 = vsub.s32 %v8292, %v8294
      %v8296 = vrot.slane %v8280, %v8295
      %v8298 = vunpack.c.l.s4 1966171168
      %v8299 = vunpack.c.0.s8 %v8298
      %v8300 = vlaneseq
      %v8301 = vshrl.u32 %v8300, 7
      %v8302 = vsub.s32 %v8299, %v8301
      %v8303 = vrot.slane %v8281, %v8302
      %v8305 = vunpack.c.l.s4 1966171168
      %v8306 = vunpack.c.0.s8 %v8305
      %v8307 = vlaneseq
      %v8308 = vshrl.u32 %v8307, 7
      %v8309 = vsub.s32 %v8306, %v8308
      %v8310 = vrot.slane %v8282, %v8309
      %v8311 = vcombine.low %v8289, %v8296
      %v8312 = vcombine.low %v8303, %v8310
      %v8314 = vunpack.c.l.s4 1966171168
      %v8315 = vunpack.c.0.s8 %v8314
      %v8316 = vlaneseq
      %v8317 = vshrl.u32 %v8316, 7
      %v8318 = vsub.s32 %v8315, %v8317
      %v8319 = vrot.slane %v8311, %v8318
      %v8321 = vunpack.c.l.s4 1966171168
      %v8322 = vunpack.c.0.s8 %v8321
      %v8323 = vlaneseq
      %v8324 = vshrl.u32 %v8323, 7
      %v8325 = vsub.s32 %v8322, %v8324
      %v8326 = vrot.slane %v8312, %v8325
      %v8327 = vcombine.low %v8319, %v8326
      %v8328 = vcombine.low %v6062, %v6066
      %v8329 = vcombine.low %v6070, %v6074
      %v8330 = vcombine.low %v6078, %v6082
      %v8331 = vcombine.low %v6086, %v6090
      %v8333 = vunpack.c.l.s4 1966171168
      %v8334 = vunpack.c.0.s8 %v8333
      %v8335 = vlaneseq
      %v8336 = vshrl.u32 %v8335, 7
      %v8337 = vsub.s32 %v8334, %v8336
      %v8338 = vrot.slane %v8328, %v8337
      %v8340 = vunpack.c.l.s4 1966171168
      %v8341 = vunpack.c.0.s8 %v8340
      %v8342 = vlaneseq
      %v8343 = vshrl.u32 %v8342, 7
      %v8344 = vsub.s32 %v8341, %v8343
      %v8345 = vrot.slane %v8329, %v8344
      %v8347 = vunpack.c.l.s4 1966171168
      %v8348 = vunpack.c.0.s8 %v8347
      %v8349 = vlaneseq
      %v8350 = vshrl.u32 %v8349, 7
      %v8351 = vsub.s32 %v8348, %v8350
      %v8352 = vrot.slane %v8330, %v8351
      %v8354 = vunpack.c.l.s4 1966171168
      %v8355 = vunpack.c.0.s8 %v8354
      %v8356 = vlaneseq
      %v8357 = vshrl.u32 %v8356, 7
      %v8358 = vsub.s32 %v8355, %v8357
      %v8359 = vrot.slane %v8331, %v8358
      %v8360 = vcombine.low %v8338, %v8345
      %v8361 = vcombine.low %v8352, %v8359
      %v8363 = vunpack.c.l.s4 1966171168
      %v8364 = vunpack.c.0.s8 %v8363
      %v8365 = vlaneseq
      %v8366 = vshrl.u32 %v8365, 7
      %v8367 = vsub.s32 %v8364, %v8366
      %v8368 = vrot.slane %v8360, %v8367
      %v8370 = vunpack.c.l.s4 1966171168
      %v8371 = vunpack.c.0.s8 %v8370
      %v8372 = vlaneseq
      %v8373 = vshrl.u32 %v8372, 7
      %v8374 = vsub.s32 %v8371, %v8373
      %v8375 = vrot.slane %v8361, %v8374
      %v8376 = vcombine.low %v8368, %v8375
      %v8377 = vcombine.low %v6094, %v6098
      %v8378 = vcombine.low %v6102, %v6106
      %v8379 = vcombine.low %v6110, %v6114
      %v8380 = vcombine.low %v6118, %v6122
      %v8382 = vunpack.c.l.s4 1966171168
      %v8383 = vunpack.c.0.s8 %v8382
      %v8384 = vlaneseq
      %v8385 = vshrl.u32 %v8384, 7
      %v8386 = vsub.s32 %v8383, %v8385
      %v8387 = vrot.slane %v8377, %v8386
      %v8389 = vunpack.c.l.s4 1966171168
      %v8390 = vunpack.c.0.s8 %v8389
      %v8391 = vlaneseq
      %v8392 = vshrl.u32 %v8391, 7
      %v8393 = vsub.s32 %v8390, %v8392
      %v8394 = vrot.slane %v8378, %v8393
      %v8396 = vunpack.c.l.s4 1966171168
      %v8397 = vunpack.c.0.s8 %v8396
      %v8398 = vlaneseq
      %v8399 = vshrl.u32 %v8398, 7
      %v8400 = vsub.s32 %v8397, %v8399
      %v8401 = vrot.slane %v8379, %v8400
      %v8403 = vunpack.c.l.s4 1966171168
      %v8404 = vunpack.c.0.s8 %v8403
      %v8405 = vlaneseq
      %v8406 = vshrl.u32 %v8405, 7
      %v8407 = vsub.s32 %v8404, %v8406
      %v8408 = vrot.slane %v8380, %v8407
      %v8409 = vcombine.low %v8387, %v8394
      %v8410 = vcombine.low %v8401, %v8408
      %v8412 = vunpack.c.l.s4 1966171168
      %v8413 = vunpack.c.0.s8 %v8412
      %v8414 = vlaneseq
      %v8415 = vshrl.u32 %v8414, 7
      %v8416 = vsub.s32 %v8413, %v8415
      %v8417 = vrot.slane %v8409, %v8416
      %v8419 = vunpack.c.l.s4 1966171168
      %v8420 = vunpack.c.0.s8 %v8419
      %v8421 = vlaneseq
      %v8422 = vshrl.u32 %v8421, 7
      %v8423 = vsub.s32 %v8420, %v8422
      %v8424 = vrot.slane %v8410, %v8423
      %v8425 = vcombine.low %v8417, %v8424
      %v8426 = vcombine.low %v6126, %v6130
      %v8427 = vcombine.low %v6134, %v6138
      %v8428 = vcombine.low %v6142, %v6146
      %v8429 = vcombine.low %v6150, %v6154
      %v8431 = vunpack.c.l.s4 1966171168
      %v8432 = vunpack.c.0.s8 %v8431
      %v8433 = vlaneseq
      %v8434 = vshrl.u32 %v8433, 7
      %v8435 = vsub.s32 %v8432, %v8434
      %v8436 = vrot.slane %v8426, %v8435
      %v8438 = vunpack.c.l.s4 1966171168
      %v8439 = vunpack.c.0.s8 %v8438
      %v8440 = vlaneseq
      %v8441 = vshrl.u32 %v8440, 7
      %v8442 = vsub.s32 %v8439, %v8441
      %v8443 = vrot.slane %v8427, %v8442
      %v8445 = vunpack.c.l.s4 1966171168
      %v8446 = vunpack.c.0.s8 %v8445
      %v8447 = vlaneseq
      %v8448 = vshrl.u32 %v8447, 7
      %v8449 = vsub.s32 %v8446, %v8448
      %v8450 = vrot.slane %v8428, %v8449
      %v8452 = vunpack.c.l.s4 1966171168
      %v8453 = vunpack.c.0.s8 %v8452
      %v8454 = vlaneseq
      %v8455 = vshrl.u32 %v8454, 7
      %v8456 = vsub.s32 %v8453, %v8455
      %v8457 = vrot.slane %v8429, %v8456
      %v8458 = vcombine.low %v8436, %v8443
      %v8459 = vcombine.low %v8450, %v8457
      %v8461 = vunpack.c.l.s4 1966171168
      %v8462 = vunpack.c.0.s8 %v8461
      %v8463 = vlaneseq
      %v8464 = vshrl.u32 %v8463, 7
      %v8465 = vsub.s32 %v8462, %v8464
      %v8466 = vrot.slane %v8458, %v8465
      %v8468 = vunpack.c.l.s4 1966171168
      %v8469 = vunpack.c.0.s8 %v8468
      %v8470 = vlaneseq
      %v8471 = vshrl.u32 %v8470, 7
      %v8472 = vsub.s32 %v8469, %v8471
      %v8473 = vrot.slane %v8459, %v8472
      %v8474 = vcombine.low %v8466, %v8473
      %v8475 = vcombine.low %v6158, %v6162
      %v8476 = vcombine.low %v6166, %v6170
      %v8477 = vcombine.low %v6174, %v6178
      %v8478 = vcombine.low %v6182, %v6186
      %v8480 = vunpack.c.l.s4 1966171168
      %v8481 = vunpack.c.0.s8 %v8480
      %v8482 = vlaneseq
      %v8483 = vshrl.u32 %v8482, 7
      %v8484 = vsub.s32 %v8481, %v8483
      %v8485 = vrot.slane %v8475, %v8484
      %v8487 = vunpack.c.l.s4 1966171168
      %v8488 = vunpack.c.0.s8 %v8487
      %v8489 = vlaneseq
      %v8490 = vshrl.u32 %v8489, 7
      %v8491 = vsub.s32 %v8488, %v8490
      %v8492 = vrot.slane %v8476, %v8491
      %v8494 = vunpack.c.l.s4 1966171168
      %v8495 = vunpack.c.0.s8 %v8494
      %v8496 = vlaneseq
      %v8497 = vshrl.u32 %v8496, 7
      %v8498 = vsub.s32 %v8495, %v8497
      %v8499 = vrot.slane %v8477, %v8498
      %v8501 = vunpack.c.l.s4 1966171168
      %v8502 = vunpack.c.0.s8 %v8501
      %v8503 = vlaneseq
      %v8504 = vshrl.u32 %v8503, 7
      %v8505 = vsub.s32 %v8502, %v8504
      %v8506 = vrot.slane %v8478, %v8505
      %v8507 = vcombine.low %v8485, %v8492
      %v8508 = vcombine.low %v8499, %v8506
      %v8510 = vunpack.c.l.s4 1966171168
      %v8511 = vunpack.c.0.s8 %v8510
      %v8512 = vlaneseq
      %v8513 = vshrl.u32 %v8512, 7
      %v8514 = vsub.s32 %v8511, %v8513
      %v8515 = vrot.slane %v8507, %v8514
      %v8517 = vunpack.c.l.s4 1966171168
      %v8518 = vunpack.c.0.s8 %v8517
      %v8519 = vlaneseq
      %v8520 = vshrl.u32 %v8519, 7
      %v8521 = vsub.s32 %v8518, %v8520
      %v8522 = vrot.slane %v8508, %v8521
      %v8523 = vcombine.low %v8515, %v8522
      %v8524 = vcombine.low %v6190, %v6194
      %v8525 = vcombine.low %v6198, %v6202
      %v8526 = vcombine.low %v6206, %v6210
      %v8527 = vcombine.low %v6214, %v6218
      %v8529 = vunpack.c.l.s4 1966171168
      %v8530 = vunpack.c.0.s8 %v8529
      %v8531 = vlaneseq
      %v8532 = vshrl.u32 %v8531, 7
      %v8533 = vsub.s32 %v8530, %v8532
      %v8534 = vrot.slane %v8524, %v8533
      %v8536 = vunpack.c.l.s4 1966171168
      %v8537 = vunpack.c.0.s8 %v8536
      %v8538 = vlaneseq
      %v8539 = vshrl.u32 %v8538, 7
      %v8540 = vsub.s32 %v8537, %v8539
      %v8541 = vrot.slane %v8525, %v8540
      %v8543 = vunpack.c.l.s4 1966171168
      %v8544 = vunpack.c.0.s8 %v8543
      %v8545 = vlaneseq
      %v8546 = vshrl.u32 %v8545, 7
      %v8547 = vsub.s32 %v8544, %v8546
      %v8548 = vrot.slane %v8526, %v8547
      %v8550 = vunpack.c.l.s4 1966171168
      %v8551 = vunpack.c.0.s8 %v8550
      %v8552 = vlaneseq
      %v8553 = vshrl.u32 %v8552, 7
      %v8554 = vsub.s32 %v8551, %v8553
      %v8555 = vrot.slane %v8527, %v8554
      %v8556 = vcombine.low %v8534, %v8541
      %v8557 = vcombine.low %v8548, %v8555
      %v8559 = vunpack.c.l.s4 1966171168
      %v8560 = vunpack.c.0.s8 %v8559
      %v8561 = vlaneseq
      %v8562 = vshrl.u32 %v8561, 7
      %v8563 = vsub.s32 %v8560, %v8562
      %v8564 = vrot.slane %v8556, %v8563
      %v8566 = vunpack.c.l.s4 1966171168
      %v8567 = vunpack.c.0.s8 %v8566
      %v8568 = vlaneseq
      %v8569 = vshrl.u32 %v8568, 7
      %v8570 = vsub.s32 %v8567, %v8569
      %v8571 = vrot.slane %v8557, %v8570
      %v8572 = vcombine.low %v8564, %v8571
      %v8573 = vcombine.low %v6222, %v6226
      %v8574 = vcombine.low %v6230, %v6234
      %v8575 = vcombine.low %v6238, %v6242
      %v8576 = vcombine.low %v6246, %v6250
      %v8578 = vunpack.c.l.s4 1966171168
      %v8579 = vunpack.c.0.s8 %v8578
      %v8580 = vlaneseq
      %v8581 = vshrl.u32 %v8580, 7
      %v8582 = vsub.s32 %v8579, %v8581
      %v8583 = vrot.slane %v8573, %v8582
      %v8585 = vunpack.c.l.s4 1966171168
      %v8586 = vunpack.c.0.s8 %v8585
      %v8587 = vlaneseq
      %v8588 = vshrl.u32 %v8587, 7
      %v8589 = vsub.s32 %v8586, %v8588
      %v8590 = vrot.slane %v8574, %v8589
      %v8592 = vunpack.c.l.s4 1966171168
      %v8593 = vunpack.c.0.s8 %v8592
      %v8594 = vlaneseq
      %v8595 = vshrl.u32 %v8594, 7
      %v8596 = vsub.s32 %v8593, %v8595
      %v8597 = vrot.slane %v8575, %v8596
      %v8599 = vunpack.c.l.s4 1966171168
      %v8600 = vunpack.c.0.s8 %v8599
      %v8601 = vlaneseq
      %v8602 = vshrl.u32 %v8601, 7
      %v8603 = vsub.s32 %v8600, %v8602
      %v8604 = vrot.slane %v8576, %v8603
      %v8605 = vcombine.low %v8583, %v8590
      %v8606 = vcombine.low %v8597, %v8604
      %v8608 = vunpack.c.l.s4 1966171168
      %v8609 = vunpack.c.0.s8 %v8608
      %v8610 = vlaneseq
      %v8611 = vshrl.u32 %v8610, 7
      %v8612 = vsub.s32 %v8609, %v8611
      %v8613 = vrot.slane %v8605, %v8612
      %v8615 = vunpack.c.l.s4 1966171168
      %v8616 = vunpack.c.0.s8 %v8615
      %v8617 = vlaneseq
      %v8618 = vshrl.u32 %v8617, 7
      %v8619 = vsub.s32 %v8616, %v8618
      %v8620 = vrot.slane %v8606, %v8619
      %v8621 = vcombine.low %v8613, %v8620
      %v8622 = vcombine.low %v6254, %v6258
      %v8623 = vcombine.low %v6262, %v6266
      %v8624 = vcombine.low %v6270, %v6274
      %v8625 = vcombine.low %v6278, %v6282
      %v8627 = vunpack.c.l.s4 1966171168
      %v8628 = vunpack.c.0.s8 %v8627
      %v8629 = vlaneseq
      %v8630 = vshrl.u32 %v8629, 7
      %v8631 = vsub.s32 %v8628, %v8630
      %v8632 = vrot.slane %v8622, %v8631
      %v8634 = vunpack.c.l.s4 1966171168
      %v8635 = vunpack.c.0.s8 %v8634
      %v8636 = vlaneseq
      %v8637 = vshrl.u32 %v8636, 7
      %v8638 = vsub.s32 %v8635, %v8637
      %v8639 = vrot.slane %v8623, %v8638
      %v8641 = vunpack.c.l.s4 1966171168
      %v8642 = vunpack.c.0.s8 %v8641
      %v8643 = vlaneseq
      %v8644 = vshrl.u32 %v8643, 7
      %v8645 = vsub.s32 %v8642, %v8644
      %v8646 = vrot.slane %v8624, %v8645
      %v8648 = vunpack.c.l.s4 1966171168
      %v8649 = vunpack.c.0.s8 %v8648
      %v8650 = vlaneseq
      %v8651 = vshrl.u32 %v8650, 7
      %v8652 = vsub.s32 %v8649, %v8651
      %v8653 = vrot.slane %v8625, %v8652
      %v8654 = vcombine.low %v8632, %v8639
      %v8655 = vcombine.low %v8646, %v8653
      %v8657 = vunpack.c.l.s4 1966171168
      %v8658 = vunpack.c.0.s8 %v8657
      %v8659 = vlaneseq
      %v8660 = vshrl.u32 %v8659, 7
      %v8661 = vsub.s32 %v8658, %v8660
      %v8662 = vrot.slane %v8654, %v8661
      %v8664 = vunpack.c.l.s4 1966171168
      %v8665 = vunpack.c.0.s8 %v8664
      %v8666 = vlaneseq
      %v8667 = vshrl.u32 %v8666, 7
      %v8668 = vsub.s32 %v8665, %v8667
      %v8669 = vrot.slane %v8655, %v8668
      %v8670 = vcombine.low %v8662, %v8669
      %v8671 = vcombine.low %v6286, %v6290
      %v8672 = vcombine.low %v6294, %v6298
      %v8673 = vcombine.low %v6302, %v6306
      %v8674 = vcombine.low %v6310, %v6314
      %v8676 = vunpack.c.l.s4 1966171168
      %v8677 = vunpack.c.0.s8 %v8676
      %v8678 = vlaneseq
      %v8679 = vshrl.u32 %v8678, 7
      %v8680 = vsub.s32 %v8677, %v8679
      %v8681 = vrot.slane %v8671, %v8680
      %v8683 = vunpack.c.l.s4 1966171168
      %v8684 = vunpack.c.0.s8 %v8683
      %v8685 = vlaneseq
      %v8686 = vshrl.u32 %v8685, 7
      %v8687 = vsub.s32 %v8684, %v8686
      %v8688 = vrot.slane %v8672, %v8687
      %v8690 = vunpack.c.l.s4 1966171168
      %v8691 = vunpack.c.0.s8 %v8690
      %v8692 = vlaneseq
      %v8693 = vshrl.u32 %v8692, 7
      %v8694 = vsub.s32 %v8691, %v8693
      %v8695 = vrot.slane %v8673, %v8694
      %v8697 = vunpack.c.l.s4 1966171168
      %v8698 = vunpack.c.0.s8 %v8697
      %v8699 = vlaneseq
      %v8700 = vshrl.u32 %v8699, 7
      %v8701 = vsub.s32 %v8698, %v8700
      %v8702 = vrot.slane %v8674, %v8701
      %v8703 = vcombine.low %v8681, %v8688
      %v8704 = vcombine.low %v8695, %v8702
      %v8706 = vunpack.c.l.s4 1966171168
      %v8707 = vunpack.c.0.s8 %v8706
      %v8708 = vlaneseq
      %v8709 = vshrl.u32 %v8708, 7
      %v8710 = vsub.s32 %v8707, %v8709
      %v8711 = vrot.slane %v8703, %v8710
      %v8713 = vunpack.c.l.s4 1966171168
      %v8714 = vunpack.c.0.s8 %v8713
      %v8715 = vlaneseq
      %v8716 = vshrl.u32 %v8715, 7
      %v8717 = vsub.s32 %v8714, %v8716
      %v8718 = vrot.slane %v8704, %v8717
      %v8719 = vcombine.low %v8711, %v8718
      %v8720 = vcombine.low %v6318, %v6322
      %v8721 = vcombine.low %v6326, %v6330
      %v8722 = vcombine.low %v6334, %v6338
      %v8723 = vcombine.low %v6342, %v6346
      %v8725 = vunpack.c.l.s4 1966171168
      %v8726 = vunpack.c.0.s8 %v8725
      %v8727 = vlaneseq
      %v8728 = vshrl.u32 %v8727, 7
      %v8729 = vsub.s32 %v8726, %v8728
      %v8730 = vrot.slane %v8720, %v8729
      %v8732 = vunpack.c.l.s4 1966171168
      %v8733 = vunpack.c.0.s8 %v8732
      %v8734 = vlaneseq
      %v8735 = vshrl.u32 %v8734, 7
      %v8736 = vsub.s32 %v8733, %v8735
      %v8737 = vrot.slane %v8721, %v8736
      %v8739 = vunpack.c.l.s4 1966171168
      %v8740 = vunpack.c.0.s8 %v8739
      %v8741 = vlaneseq
      %v8742 = vshrl.u32 %v8741, 7
      %v8743 = vsub.s32 %v8740, %v8742
      %v8744 = vrot.slane %v8722, %v8743
      %v8746 = vunpack.c.l.s4 1966171168
      %v8747 = vunpack.c.0.s8 %v8746
      %v8748 = vlaneseq
      %v8749 = vshrl.u32 %v8748, 7
      %v8750 = vsub.s32 %v8747, %v8749
      %v8751 = vrot.slane %v8723, %v8750
      %v8752 = vcombine.low %v8730, %v8737
      %v8753 = vcombine.low %v8744, %v8751
      %v8755 = vunpack.c.l.s4 1966171168
      %v8756 = vunpack.c.0.s8 %v8755
      %v8757 = vlaneseq
      %v8758 = vshrl.u32 %v8757, 7
      %v8759 = vsub.s32 %v8756, %v8758
      %v8760 = vrot.slane %v8752, %v8759
      %v8762 = vunpack.c.l.s4 1966171168
      %v8763 = vunpack.c.0.s8 %v8762
      %v8764 = vlaneseq
      %v8765 = vshrl.u32 %v8764, 7
      %v8766 = vsub.s32 %v8763, %v8765
      %v8767 = vrot.slane %v8753, %v8766
      %v8768 = vcombine.low %v8760, %v8767
      %v8769 = vcombine.low %v6350, %v6354
      %v8770 = vcombine.low %v6358, %v6362
      %v8771 = vcombine.low %v6366, %v6370
      %v8772 = vcombine.low %v6374, %v6378
      %v8774 = vunpack.c.l.s4 1966171168
      %v8775 = vunpack.c.0.s8 %v8774
      %v8776 = vlaneseq
      %v8777 = vshrl.u32 %v8776, 7
      %v8778 = vsub.s32 %v8775, %v8777
      %v8779 = vrot.slane %v8769, %v8778
      %v8781 = vunpack.c.l.s4 1966171168
      %v8782 = vunpack.c.0.s8 %v8781
      %v8783 = vlaneseq
      %v8784 = vshrl.u32 %v8783, 7
      %v8785 = vsub.s32 %v8782, %v8784
      %v8786 = vrot.slane %v8770, %v8785
      %v8788 = vunpack.c.l.s4 1966171168
      %v8789 = vunpack.c.0.s8 %v8788
      %v8790 = vlaneseq
      %v8791 = vshrl.u32 %v8790, 7
      %v8792 = vsub.s32 %v8789, %v8791
      %v8793 = vrot.slane %v8771, %v8792
      %v8795 = vunpack.c.l.s4 1966171168
      %v8796 = vunpack.c.0.s8 %v8795
      %v8797 = vlaneseq
      %v8798 = vshrl.u32 %v8797, 7
      %v8799 = vsub.s32 %v8796, %v8798
      %v8800 = vrot.slane %v8772, %v8799
      %v8801 = vcombine.low %v8779, %v8786
      %v8802 = vcombine.low %v8793, %v8800
      %v8804 = vunpack.c.l.s4 1966171168
      %v8805 = vunpack.c.0.s8 %v8804
      %v8806 = vlaneseq
      %v8807 = vshrl.u32 %v8806, 7
      %v8808 = vsub.s32 %v8805, %v8807
      %v8809 = vrot.slane %v8801, %v8808
      %v8811 = vunpack.c.l.s4 1966171168
      %v8812 = vunpack.c.0.s8 %v8811
      %v8813 = vlaneseq
      %v8814 = vshrl.u32 %v8813, 7
      %v8815 = vsub.s32 %v8812, %v8814
      %v8816 = vrot.slane %v8802, %v8815
      %v8817 = vcombine.low %v8809, %v8816
      %v8818 = vcombine.low %v6382, %v6386
      %v8819 = vcombine.low %v6390, %v6394
      %v8820 = vcombine.low %v6398, %v6402
      %v8821 = vcombine.low %v6406, %v6410
      %v8823 = vunpack.c.l.s4 1966171168
      %v8824 = vunpack.c.0.s8 %v8823
      %v8825 = vlaneseq
      %v8826 = vshrl.u32 %v8825, 7
      %v8827 = vsub.s32 %v8824, %v8826
      %v8828 = vrot.slane %v8818, %v8827
      %v8830 = vunpack.c.l.s4 1966171168
      %v8831 = vunpack.c.0.s8 %v8830
      %v8832 = vlaneseq
      %v8833 = vshrl.u32 %v8832, 7
      %v8834 = vsub.s32 %v8831, %v8833
      %v8835 = vrot.slane %v8819, %v8834
      %v8837 = vunpack.c.l.s4 1966171168
      %v8838 = vunpack.c.0.s8 %v8837
      %v8839 = vlaneseq
      %v8840 = vshrl.u32 %v8839, 7
      %v8841 = vsub.s32 %v8838, %v8840
      %v8842 = vrot.slane %v8820, %v8841
      %v8844 = vunpack.c.l.s4 1966171168
      %v8845 = vunpack.c.0.s8 %v8844
      %v8846 = vlaneseq
      %v8847 = vshrl.u32 %v8846, 7
      %v8848 = vsub.s32 %v8845, %v8847
      %v8849 = vrot.slane %v8821, %v8848
      %v8850 = vcombine.low %v8828, %v8835
      %v8851 = vcombine.low %v8842, %v8849
      %v8853 = vunpack.c.l.s4 1966171168
      %v8854 = vunpack.c.0.s8 %v8853
      %v8855 = vlaneseq
      %v8856 = vshrl.u32 %v8855, 7
      %v8857 = vsub.s32 %v8854, %v8856
      %v8858 = vrot.slane %v8850, %v8857
      %v8860 = vunpack.c.l.s4 1966171168
      %v8861 = vunpack.c.0.s8 %v8860
      %v8862 = vlaneseq
      %v8863 = vshrl.u32 %v8862, 7
      %v8864 = vsub.s32 %v8861, %v8863
      %v8865 = vrot.slane %v8851, %v8864
      %v8866 = vcombine.low %v8858, %v8865
      %v8867 = vcombine.low %v6414, %v6418
      %v8868 = vcombine.low %v6422, %v6426
      %v8869 = vcombine.low %v6430, %v6434
      %v8870 = vcombine.low %v6438, %v6442
      %v8872 = vunpack.c.l.s4 1966171168
      %v8873 = vunpack.c.0.s8 %v8872
      %v8874 = vlaneseq
      %v8875 = vshrl.u32 %v8874, 7
      %v8876 = vsub.s32 %v8873, %v8875
      %v8877 = vrot.slane %v8867, %v8876
      %v8879 = vunpack.c.l.s4 1966171168
      %v8880 = vunpack.c.0.s8 %v8879
      %v8881 = vlaneseq
      %v8882 = vshrl.u32 %v8881, 7
      %v8883 = vsub.s32 %v8880, %v8882
      %v8884 = vrot.slane %v8868, %v8883
      %v8886 = vunpack.c.l.s4 1966171168
      %v8887 = vunpack.c.0.s8 %v8886
      %v8888 = vlaneseq
      %v8889 = vshrl.u32 %v8888, 7
      %v8890 = vsub.s32 %v8887, %v8889
      %v8891 = vrot.slane %v8869, %v8890
      %v8893 = vunpack.c.l.s4 1966171168
      %v8894 = vunpack.c.0.s8 %v8893
      %v8895 = vlaneseq
      %v8896 = vshrl.u32 %v8895, 7
      %v8897 = vsub.s32 %v8894, %v8896
      %v8898 = vrot.slane %v8870, %v8897
      %v8899 = vcombine.low %v8877, %v8884
      %v8900 = vcombine.low %v8891, %v8898
      %v8902 = vunpack.c.l.s4 1966171168
      %v8903 = vunpack.c.0.s8 %v8902
      %v8904 = vlaneseq
      %v8905 = vshrl.u32 %v8904, 7
      %v8906 = vsub.s32 %v8903, %v8905
      %v8907 = vrot.slane %v8899, %v8906
      %v8909 = vunpack.c.l.s4 1966171168
      %v8910 = vunpack.c.0.s8 %v8909
      %v8911 = vlaneseq
      %v8912 = vshrl.u32 %v8911, 7
      %v8913 = vsub.s32 %v8910, %v8912
      %v8914 = vrot.slane %v8900, %v8913
      %v8915 = vcombine.low %v8907, %v8914
      %v8916 = vcombine.low %v6446, %v6450
      %v8917 = vcombine.low %v6454, %v6458
      %v8918 = vcombine.low %v6462, %v6466
      %v8919 = vcombine.low %v6470, %v6474
      %v8921 = vunpack.c.l.s4 1966171168
      %v8922 = vunpack.c.0.s8 %v8921
      %v8923 = vlaneseq
      %v8924 = vshrl.u32 %v8923, 7
      %v8925 = vsub.s32 %v8922, %v8924
      %v8926 = vrot.slane %v8916, %v8925
      %v8928 = vunpack.c.l.s4 1966171168
      %v8929 = vunpack.c.0.s8 %v8928
      %v8930 = vlaneseq
      %v8931 = vshrl.u32 %v8930, 7
      %v8932 = vsub.s32 %v8929, %v8931
      %v8933 = vrot.slane %v8917, %v8932
      %v8935 = vunpack.c.l.s4 1966171168
      %v8936 = vunpack.c.0.s8 %v8935
      %v8937 = vlaneseq
      %v8938 = vshrl.u32 %v8937, 7
      %v8939 = vsub.s32 %v8936, %v8938
      %v8940 = vrot.slane %v8918, %v8939
      %v8942 = vunpack.c.l.s4 1966171168
      %v8943 = vunpack.c.0.s8 %v8942
      %v8944 = vlaneseq
      %v8945 = vshrl.u32 %v8944, 7
      %v8946 = vsub.s32 %v8943, %v8945
      %v8947 = vrot.slane %v8919, %v8946
      %v8948 = vcombine.low %v8926, %v8933
      %v8949 = vcombine.low %v8940, %v8947
      %v8951 = vunpack.c.l.s4 1966171168
      %v8952 = vunpack.c.0.s8 %v8951
      %v8953 = vlaneseq
      %v8954 = vshrl.u32 %v8953, 7
      %v8955 = vsub.s32 %v8952, %v8954
      %v8956 = vrot.slane %v8948, %v8955
      %v8958 = vunpack.c.l.s4 1966171168
      %v8959 = vunpack.c.0.s8 %v8958
      %v8960 = vlaneseq
      %v8961 = vshrl.u32 %v8960, 7
      %v8962 = vsub.s32 %v8959, %v8961
      %v8963 = vrot.slane %v8949, %v8962
      %v8964 = vcombine.low %v8956, %v8963
      %v8965 = vcombine.low %v6478, %v6482
      %v8966 = vcombine.low %v6486, %v6490
      %v8967 = vcombine.low %v6494, %v6498
      %v8968 = vcombine.low %v6502, %v6506
      %v8970 = vunpack.c.l.s4 1966171168
      %v8971 = vunpack.c.0.s8 %v8970
      %v8972 = vlaneseq
      %v8973 = vshrl.u32 %v8972, 7
      %v8974 = vsub.s32 %v8971, %v8973
      %v8975 = vrot.slane %v8965, %v8974
      %v8977 = vunpack.c.l.s4 1966171168
      %v8978 = vunpack.c.0.s8 %v8977
      %v8979 = vlaneseq
      %v8980 = vshrl.u32 %v8979, 7
      %v8981 = vsub.s32 %v8978, %v8980
      %v8982 = vrot.slane %v8966, %v8981
      %v8984 = vunpack.c.l.s4 1966171168
      %v8985 = vunpack.c.0.s8 %v8984
      %v8986 = vlaneseq
      %v8987 = vshrl.u32 %v8986, 7
      %v8988 = vsub.s32 %v8985, %v8987
      %v8989 = vrot.slane %v8967, %v8988
      %v8991 = vunpack.c.l.s4 1966171168
      %v8992 = vunpack.c.0.s8 %v8991
      %v8993 = vlaneseq
      %v8994 = vshrl.u32 %v8993, 7
      %v8995 = vsub.s32 %v8992, %v8994
      %v8996 = vrot.slane %v8968, %v8995
      %v8997 = vcombine.low %v8975, %v8982
      %v8998 = vcombine.low %v8989, %v8996
      %v9000 = vunpack.c.l.s4 1966171168
      %v9001 = vunpack.c.0.s8 %v9000
      %v9002 = vlaneseq
      %v9003 = vshrl.u32 %v9002, 7
      %v9004 = vsub.s32 %v9001, %v9003
      %v9005 = vrot.slane %v8997, %v9004
      %v9007 = vunpack.c.l.s4 1966171168
      %v9008 = vunpack.c.0.s8 %v9007
      %v9009 = vlaneseq
      %v9010 = vshrl.u32 %v9009, 7
      %v9011 = vsub.s32 %v9008, %v9010
      %v9012 = vrot.slane %v8998, %v9011
      %v9013 = vcombine.low %v9005, %v9012
      %v9014 = vcombine.low %v6510, %v6514
      %v9015 = vcombine.low %v6518, %v6522
      %v9016 = vcombine.low %v6526, %v6530
      %v9017 = vcombine.low %v6534, %v6538
      %v9019 = vunpack.c.l.s4 1966171168
      %v9020 = vunpack.c.0.s8 %v9019
      %v9021 = vlaneseq
      %v9022 = vshrl.u32 %v9021, 7
      %v9023 = vsub.s32 %v9020, %v9022
      %v9024 = vrot.slane %v9014, %v9023
      %v9026 = vunpack.c.l.s4 1966171168
      %v9027 = vunpack.c.0.s8 %v9026
      %v9028 = vlaneseq
      %v9029 = vshrl.u32 %v9028, 7
      %v9030 = vsub.s32 %v9027, %v9029
      %v9031 = vrot.slane %v9015, %v9030
      %v9033 = vunpack.c.l.s4 1966171168
      %v9034 = vunpack.c.0.s8 %v9033
      %v9035 = vlaneseq
      %v9036 = vshrl.u32 %v9035, 7
      %v9037 = vsub.s32 %v9034, %v9036
      %v9038 = vrot.slane %v9016, %v9037
      %v9040 = vunpack.c.l.s4 1966171168
      %v9041 = vunpack.c.0.s8 %v9040
      %v9042 = vlaneseq
      %v9043 = vshrl.u32 %v9042, 7
      %v9044 = vsub.s32 %v9041, %v9043
      %v9045 = vrot.slane %v9017, %v9044
      %v9046 = vcombine.low %v9024, %v9031
      %v9047 = vcombine.low %v9038, %v9045
      %v9049 = vunpack.c.l.s4 1966171168
      %v9050 = vunpack.c.0.s8 %v9049
      %v9051 = vlaneseq
      %v9052 = vshrl.u32 %v9051, 7
      %v9053 = vsub.s32 %v9050, %v9052
      %v9054 = vrot.slane %v9046, %v9053
      %v9056 = vunpack.c.l.s4 1966171168
      %v9057 = vunpack.c.0.s8 %v9056
      %v9058 = vlaneseq
      %v9059 = vshrl.u32 %v9058, 7
      %v9060 = vsub.s32 %v9057, %v9059
      %v9061 = vrot.slane %v9047, %v9060
      %v9062 = vcombine.low %v9054, %v9061
      %v9063 = vcombine.low %v6542, %v6546
      %v9064 = vcombine.low %v6550, %v6554
      %v9065 = vcombine.low %v6558, %v6562
      %v9066 = vcombine.low %v6566, %v6570
      %v9068 = vunpack.c.l.s4 1966171168
      %v9069 = vunpack.c.0.s8 %v9068
      %v9070 = vlaneseq
      %v9071 = vshrl.u32 %v9070, 7
      %v9072 = vsub.s32 %v9069, %v9071
      %v9073 = vrot.slane %v9063, %v9072
      %v9075 = vunpack.c.l.s4 1966171168
      %v9076 = vunpack.c.0.s8 %v9075
      %v9077 = vlaneseq
      %v9078 = vshrl.u32 %v9077, 7
      %v9079 = vsub.s32 %v9076, %v9078
      %v9080 = vrot.slane %v9064, %v9079
      %v9082 = vunpack.c.l.s4 1966171168
      %v9083 = vunpack.c.0.s8 %v9082
      %v9084 = vlaneseq
      %v9085 = vshrl.u32 %v9084, 7
      %v9086 = vsub.s32 %v9083, %v9085
      %v9087 = vrot.slane %v9065, %v9086
      %v9089 = vunpack.c.l.s4 1966171168
      %v9090 = vunpack.c.0.s8 %v9089
      %v9091 = vlaneseq
      %v9092 = vshrl.u32 %v9091, 7
      %v9093 = vsub.s32 %v9090, %v9092
      %v9094 = vrot.slane %v9066, %v9093
      %v9095 = vcombine.low %v9073, %v9080
      %v9096 = vcombine.low %v9087, %v9094
      %v9098 = vunpack.c.l.s4 1966171168
      %v9099 = vunpack.c.0.s8 %v9098
      %v9100 = vlaneseq
      %v9101 = vshrl.u32 %v9100, 7
      %v9102 = vsub.s32 %v9099, %v9101
      %v9103 = vrot.slane %v9095, %v9102
      %v9105 = vunpack.c.l.s4 1966171168
      %v9106 = vunpack.c.0.s8 %v9105
      %v9107 = vlaneseq
      %v9108 = vshrl.u32 %v9107, 7
      %v9109 = vsub.s32 %v9106, %v9108
      %v9110 = vrot.slane %v9096, %v9109
      %v9111 = vcombine.low %v9103, %v9110
      %v9112 = vcombine.low %v6574, %v6578
      %v9113 = vcombine.low %v6582, %v6586
      %v9114 = vcombine.low %v6590, %v6594
      %v9115 = vcombine.low %v6598, %v6602
      %v9117 = vunpack.c.l.s4 1966171168
      %v9118 = vunpack.c.0.s8 %v9117
      %v9119 = vlaneseq
      %v9120 = vshrl.u32 %v9119, 7
      %v9121 = vsub.s32 %v9118, %v9120
      %v9122 = vrot.slane %v9112, %v9121
      %v9124 = vunpack.c.l.s4 1966171168
      %v9125 = vunpack.c.0.s8 %v9124
      %v9126 = vlaneseq
      %v9127 = vshrl.u32 %v9126, 7
      %v9128 = vsub.s32 %v9125, %v9127
      %v9129 = vrot.slane %v9113, %v9128
      %v9131 = vunpack.c.l.s4 1966171168
      %v9132 = vunpack.c.0.s8 %v9131
      %v9133 = vlaneseq
      %v9134 = vshrl.u32 %v9133, 7
      %v9135 = vsub.s32 %v9132, %v9134
      %v9136 = vrot.slane %v9114, %v9135
      %v9138 = vunpack.c.l.s4 1966171168
      %v9139 = vunpack.c.0.s8 %v9138
      %v9140 = vlaneseq
      %v9141 = vshrl.u32 %v9140, 7
      %v9142 = vsub.s32 %v9139, %v9141
      %v9143 = vrot.slane %v9115, %v9142
      %v9144 = vcombine.low %v9122, %v9129
      %v9145 = vcombine.low %v9136, %v9143
      %v9147 = vunpack.c.l.s4 1966171168
      %v9148 = vunpack.c.0.s8 %v9147
      %v9149 = vlaneseq
      %v9150 = vshrl.u32 %v9149, 7
      %v9151 = vsub.s32 %v9148, %v9150
      %v9152 = vrot.slane %v9144, %v9151
      %v9154 = vunpack.c.l.s4 1966171168
      %v9155 = vunpack.c.0.s8 %v9154
      %v9156 = vlaneseq
      %v9157 = vshrl.u32 %v9156, 7
      %v9158 = vsub.s32 %v9155, %v9157
      %v9159 = vrot.slane %v9145, %v9158
      %v9160 = vcombine.low %v9152, %v9159
      %v9161 = vcombine.low %v6606, %v6610
      %v9162 = vcombine.low %v6614, %v6618
      %v9163 = vcombine.low %v6622, %v6626
      %v9164 = vcombine.low %v6630, %v6634
      %v9166 = vunpack.c.l.s4 1966171168
      %v9167 = vunpack.c.0.s8 %v9166
      %v9168 = vlaneseq
      %v9169 = vshrl.u32 %v9168, 7
      %v9170 = vsub.s32 %v9167, %v9169
      %v9171 = vrot.slane %v9161, %v9170
      %v9173 = vunpack.c.l.s4 1966171168
      %v9174 = vunpack.c.0.s8 %v9173
      %v9175 = vlaneseq
      %v9176 = vshrl.u32 %v9175, 7
      %v9177 = vsub.s32 %v9174, %v9176
      %v9178 = vrot.slane %v9162, %v9177
      %v9180 = vunpack.c.l.s4 1966171168
      %v9181 = vunpack.c.0.s8 %v9180
      %v9182 = vlaneseq
      %v9183 = vshrl.u32 %v9182, 7
      %v9184 = vsub.s32 %v9181, %v9183
      %v9185 = vrot.slane %v9163, %v9184
      %v9187 = vunpack.c.l.s4 1966171168
      %v9188 = vunpack.c.0.s8 %v9187
      %v9189 = vlaneseq
      %v9190 = vshrl.u32 %v9189, 7
      %v9191 = vsub.s32 %v9188, %v9190
      %v9192 = vrot.slane %v9164, %v9191
      %v9193 = vcombine.low %v9171, %v9178
      %v9194 = vcombine.low %v9185, %v9192
      %v9196 = vunpack.c.l.s4 1966171168
      %v9197 = vunpack.c.0.s8 %v9196
      %v9198 = vlaneseq
      %v9199 = vshrl.u32 %v9198, 7
      %v9200 = vsub.s32 %v9197, %v9199
      %v9201 = vrot.slane %v9193, %v9200
      %v9203 = vunpack.c.l.s4 1966171168
      %v9204 = vunpack.c.0.s8 %v9203
      %v9205 = vlaneseq
      %v9206 = vshrl.u32 %v9205, 7
      %v9207 = vsub.s32 %v9204, %v9206
      %v9208 = vrot.slane %v9194, %v9207
      %v9209 = vcombine.low %v9201, %v9208
      %v9210 = vcombine.low %v6638, %v6642
      %v9211 = vcombine.low %v6646, %v6650
      %v9212 = vcombine.low %v6654, %v6658
      %v9213 = vcombine.low %v6662, %v6666
      %v9215 = vunpack.c.l.s4 1966171168
      %v9216 = vunpack.c.0.s8 %v9215
      %v9217 = vlaneseq
      %v9218 = vshrl.u32 %v9217, 7
      %v9219 = vsub.s32 %v9216, %v9218
      %v9220 = vrot.slane %v9210, %v9219
      %v9222 = vunpack.c.l.s4 1966171168
      %v9223 = vunpack.c.0.s8 %v9222
      %v9224 = vlaneseq
      %v9225 = vshrl.u32 %v9224, 7
      %v9226 = vsub.s32 %v9223, %v9225
      %v9227 = vrot.slane %v9211, %v9226
      %v9229 = vunpack.c.l.s4 1966171168
      %v9230 = vunpack.c.0.s8 %v9229
      %v9231 = vlaneseq
      %v9232 = vshrl.u32 %v9231, 7
      %v9233 = vsub.s32 %v9230, %v9232
      %v9234 = vrot.slane %v9212, %v9233
      %v9236 = vunpack.c.l.s4 1966171168
      %v9237 = vunpack.c.0.s8 %v9236
      %v9238 = vlaneseq
      %v9239 = vshrl.u32 %v9238, 7
      %v9240 = vsub.s32 %v9237, %v9239
      %v9241 = vrot.slane %v9213, %v9240
      %v9242 = vcombine.low %v9220, %v9227
      %v9243 = vcombine.low %v9234, %v9241
      %v9245 = vunpack.c.l.s4 1966171168
      %v9246 = vunpack.c.0.s8 %v9245
      %v9247 = vlaneseq
      %v9248 = vshrl.u32 %v9247, 7
      %v9249 = vsub.s32 %v9246, %v9248
      %v9250 = vrot.slane %v9242, %v9249
      %v9252 = vunpack.c.l.s4 1966171168
      %v9253 = vunpack.c.0.s8 %v9252
      %v9254 = vlaneseq
      %v9255 = vshrl.u32 %v9254, 7
      %v9256 = vsub.s32 %v9253, %v9255
      %v9257 = vrot.slane %v9243, %v9256
      %v9258 = vcombine.low %v9250, %v9257
      %v9259 = vcombine.low %v6670, %v6674
      %v9260 = vcombine.low %v6678, %v6682
      %v9261 = vcombine.low %v6686, %v6690
      %v9262 = vcombine.low %v6694, %v6698
      %v9264 = vunpack.c.l.s4 1966171168
      %v9265 = vunpack.c.0.s8 %v9264
      %v9266 = vlaneseq
      %v9267 = vshrl.u32 %v9266, 7
      %v9268 = vsub.s32 %v9265, %v9267
      %v9269 = vrot.slane %v9259, %v9268
      %v9271 = vunpack.c.l.s4 1966171168
      %v9272 = vunpack.c.0.s8 %v9271
      %v9273 = vlaneseq
      %v9274 = vshrl.u32 %v9273, 7
      %v9275 = vsub.s32 %v9272, %v9274
      %v9276 = vrot.slane %v9260, %v9275
      %v9278 = vunpack.c.l.s4 1966171168
      %v9279 = vunpack.c.0.s8 %v9278
      %v9280 = vlaneseq
      %v9281 = vshrl.u32 %v9280, 7
      %v9282 = vsub.s32 %v9279, %v9281
      %v9283 = vrot.slane %v9261, %v9282
      %v9285 = vunpack.c.l.s4 1966171168
      %v9286 = vunpack.c.0.s8 %v9285
      %v9287 = vlaneseq
      %v9288 = vshrl.u32 %v9287, 7
      %v9289 = vsub.s32 %v9286, %v9288
      %v9290 = vrot.slane %v9262, %v9289
      %v9291 = vcombine.low %v9269, %v9276
      %v9292 = vcombine.low %v9283, %v9290
      %v9294 = vunpack.c.l.s4 1966171168
      %v9295 = vunpack.c.0.s8 %v9294
      %v9296 = vlaneseq
      %v9297 = vshrl.u32 %v9296, 7
      %v9298 = vsub.s32 %v9295, %v9297
      %v9299 = vrot.slane %v9291, %v9298
      %v9301 = vunpack.c.l.s4 1966171168
      %v9302 = vunpack.c.0.s8 %v9301
      %v9303 = vlaneseq
      %v9304 = vshrl.u32 %v9303, 7
      %v9305 = vsub.s32 %v9302, %v9304
      %v9306 = vrot.slane %v9292, %v9305
      %v9307 = vcombine.low %v9299, %v9306
      %v9308 = vcombine.low %v6702, %v6706
      %v9309 = vcombine.low %v6710, %v6714
      %v9310 = vcombine.low %v6718, %v6722
      %v9311 = vcombine.low %v6726, %v6730
      %v9313 = vunpack.c.l.s4 1966171168
      %v9314 = vunpack.c.0.s8 %v9313
      %v9315 = vlaneseq
      %v9316 = vshrl.u32 %v9315, 7
      %v9317 = vsub.s32 %v9314, %v9316
      %v9318 = vrot.slane %v9308, %v9317
      %v9320 = vunpack.c.l.s4 1966171168
      %v9321 = vunpack.c.0.s8 %v9320
      %v9322 = vlaneseq
      %v9323 = vshrl.u32 %v9322, 7
      %v9324 = vsub.s32 %v9321, %v9323
      %v9325 = vrot.slane %v9309, %v9324
      %v9327 = vunpack.c.l.s4 1966171168
      %v9328 = vunpack.c.0.s8 %v9327
      %v9329 = vlaneseq
      %v9330 = vshrl.u32 %v9329, 7
      %v9331 = vsub.s32 %v9328, %v9330
      %v9332 = vrot.slane %v9310, %v9331
      %v9334 = vunpack.c.l.s4 1966171168
      %v9335 = vunpack.c.0.s8 %v9334
      %v9336 = vlaneseq
      %v9337 = vshrl.u32 %v9336, 7
      %v9338 = vsub.s32 %v9335, %v9337
      %v9339 = vrot.slane %v9311, %v9338
      %v9340 = vcombine.low %v9318, %v9325
      %v9341 = vcombine.low %v9332, %v9339
      %v9343 = vunpack.c.l.s4 1966171168
      %v9344 = vunpack.c.0.s8 %v9343
      %v9345 = vlaneseq
      %v9346 = vshrl.u32 %v9345, 7
      %v9347 = vsub.s32 %v9344, %v9346
      %v9348 = vrot.slane %v9340, %v9347
      %v9350 = vunpack.c.l.s4 1966171168
      %v9351 = vunpack.c.0.s8 %v9350
      %v9352 = vlaneseq
      %v9353 = vshrl.u32 %v9352, 7
      %v9354 = vsub.s32 %v9351, %v9353
      %v9355 = vrot.slane %v9341, %v9354
      %v9356 = vcombine.low %v9348, %v9355
      %v9357 = vcombine.low %v6734, %v6738
      %v9358 = vcombine.low %v6742, %v6746
      %v9359 = vcombine.low %v6750, %v6754
      %v9360 = vcombine.low %v6758, %v6762
      %v9362 = vunpack.c.l.s4 1966171168
      %v9363 = vunpack.c.0.s8 %v9362
      %v9364 = vlaneseq
      %v9365 = vshrl.u32 %v9364, 7
      %v9366 = vsub.s32 %v9363, %v9365
      %v9367 = vrot.slane %v9357, %v9366
      %v9369 = vunpack.c.l.s4 1966171168
      %v9370 = vunpack.c.0.s8 %v9369
      %v9371 = vlaneseq
      %v9372 = vshrl.u32 %v9371, 7
      %v9373 = vsub.s32 %v9370, %v9372
      %v9374 = vrot.slane %v9358, %v9373
      %v9376 = vunpack.c.l.s4 1966171168
      %v9377 = vunpack.c.0.s8 %v9376
      %v9378 = vlaneseq
      %v9379 = vshrl.u32 %v9378, 7
      %v9380 = vsub.s32 %v9377, %v9379
      %v9381 = vrot.slane %v9359, %v9380
      %v9383 = vunpack.c.l.s4 1966171168
      %v9384 = vunpack.c.0.s8 %v9383
      %v9385 = vlaneseq
      %v9386 = vshrl.u32 %v9385, 7
      %v9387 = vsub.s32 %v9384, %v9386
      %v9388 = vrot.slane %v9360, %v9387
      %v9389 = vcombine.low %v9367, %v9374
      %v9390 = vcombine.low %v9381, %v9388
      %v9392 = vunpack.c.l.s4 1966171168
      %v9393 = vunpack.c.0.s8 %v9392
      %v9394 = vlaneseq
      %v9395 = vshrl.u32 %v9394, 7
      %v9396 = vsub.s32 %v9393, %v9395
      %v9397 = vrot.slane %v9389, %v9396
      %v9399 = vunpack.c.l.s4 1966171168
      %v9400 = vunpack.c.0.s8 %v9399
      %v9401 = vlaneseq
      %v9402 = vshrl.u32 %v9401, 7
      %v9403 = vsub.s32 %v9400, %v9402
      %v9404 = vrot.slane %v9390, %v9403
      %v9405 = vcombine.low %v9397, %v9404
      %v9406 = vcombine.low %v6766, %v6770
      %v9407 = vcombine.low %v6774, %v6778
      %v9408 = vcombine.low %v6782, %v6786
      %v9409 = vcombine.low %v6790, %v6794
      %v9411 = vunpack.c.l.s4 1966171168
      %v9412 = vunpack.c.0.s8 %v9411
      %v9413 = vlaneseq
      %v9414 = vshrl.u32 %v9413, 7
      %v9415 = vsub.s32 %v9412, %v9414
      %v9416 = vrot.slane %v9406, %v9415
      %v9418 = vunpack.c.l.s4 1966171168
      %v9419 = vunpack.c.0.s8 %v9418
      %v9420 = vlaneseq
      %v9421 = vshrl.u32 %v9420, 7
      %v9422 = vsub.s32 %v9419, %v9421
      %v9423 = vrot.slane %v9407, %v9422
      %v9425 = vunpack.c.l.s4 1966171168
      %v9426 = vunpack.c.0.s8 %v9425
      %v9427 = vlaneseq
      %v9428 = vshrl.u32 %v9427, 7
      %v9429 = vsub.s32 %v9426, %v9428
      %v9430 = vrot.slane %v9408, %v9429
      %v9432 = vunpack.c.l.s4 1966171168
      %v9433 = vunpack.c.0.s8 %v9432
      %v9434 = vlaneseq
      %v9435 = vshrl.u32 %v9434, 7
      %v9436 = vsub.s32 %v9433, %v9435
      %v9437 = vrot.slane %v9409, %v9436
      %v9438 = vcombine.low %v9416, %v9423
      %v9439 = vcombine.low %v9430, %v9437
      %v9441 = vunpack.c.l.s4 1966171168
      %v9442 = vunpack.c.0.s8 %v9441
      %v9443 = vlaneseq
      %v9444 = vshrl.u32 %v9443, 7
      %v9445 = vsub.s32 %v9442, %v9444
      %v9446 = vrot.slane %v9438, %v9445
      %v9448 = vunpack.c.l.s4 1966171168
      %v9449 = vunpack.c.0.s8 %v9448
      %v9450 = vlaneseq
      %v9451 = vshrl.u32 %v9450, 7
      %v9452 = vsub.s32 %v9449, %v9451
      %v9453 = vrot.slane %v9439, %v9452
      %v9454 = vcombine.low %v9446, %v9453
      %v9455 = vcombine.low %v6798, %v6802
      %v9456 = vcombine.low %v6806, %v6810
      %v9457 = vcombine.low %v6814, %v6818
      %v9458 = vcombine.low %v6822, %v6826
      %v9460 = vunpack.c.l.s4 1966171168
      %v9461 = vunpack.c.0.s8 %v9460
      %v9462 = vlaneseq
      %v9463 = vshrl.u32 %v9462, 7
      %v9464 = vsub.s32 %v9461, %v9463
      %v9465 = vrot.slane %v9455, %v9464
      %v9467 = vunpack.c.l.s4 1966171168
      %v9468 = vunpack.c.0.s8 %v9467
      %v9469 = vlaneseq
      %v9470 = vshrl.u32 %v9469, 7
      %v9471 = vsub.s32 %v9468, %v9470
      %v9472 = vrot.slane %v9456, %v9471
      %v9474 = vunpack.c.l.s4 1966171168
      %v9475 = vunpack.c.0.s8 %v9474
      %v9476 = vlaneseq
      %v9477 = vshrl.u32 %v9476, 7
      %v9478 = vsub.s32 %v9475, %v9477
      %v9479 = vrot.slane %v9457, %v9478
      %v9481 = vunpack.c.l.s4 1966171168
      %v9482 = vunpack.c.0.s8 %v9481
      %v9483 = vlaneseq
      %v9484 = vshrl.u32 %v9483, 7
      %v9485 = vsub.s32 %v9482, %v9484
      %v9486 = vrot.slane %v9458, %v9485
      %v9487 = vcombine.low %v9465, %v9472
      %v9488 = vcombine.low %v9479, %v9486
      %v9490 = vunpack.c.l.s4 1966171168
      %v9491 = vunpack.c.0.s8 %v9490
      %v9492 = vlaneseq
      %v9493 = vshrl.u32 %v9492, 7
      %v9494 = vsub.s32 %v9491, %v9493
      %v9495 = vrot.slane %v9487, %v9494
      %v9497 = vunpack.c.l.s4 1966171168
      %v9498 = vunpack.c.0.s8 %v9497
      %v9499 = vlaneseq
      %v9500 = vshrl.u32 %v9499, 7
      %v9501 = vsub.s32 %v9498, %v9500
      %v9502 = vrot.slane %v9488, %v9501
      %v9503 = vcombine.low %v9495, %v9502
      %v9504 = vcombine.low %v6830, %v6834
      %v9505 = vcombine.low %v6838, %v6842
      %v9506 = vcombine.low %v6846, %v6850
      %v9507 = vcombine.low %v6854, %v6858
      %v9509 = vunpack.c.l.s4 1966171168
      %v9510 = vunpack.c.0.s8 %v9509
      %v9511 = vlaneseq
      %v9512 = vshrl.u32 %v9511, 7
      %v9513 = vsub.s32 %v9510, %v9512
      %v9514 = vrot.slane %v9504, %v9513
      %v9516 = vunpack.c.l.s4 1966171168
      %v9517 = vunpack.c.0.s8 %v9516
      %v9518 = vlaneseq
      %v9519 = vshrl.u32 %v9518, 7
      %v9520 = vsub.s32 %v9517, %v9519
      %v9521 = vrot.slane %v9505, %v9520
      %v9523 = vunpack.c.l.s4 1966171168
      %v9524 = vunpack.c.0.s8 %v9523
      %v9525 = vlaneseq
      %v9526 = vshrl.u32 %v9525, 7
      %v9527 = vsub.s32 %v9524, %v9526
      %v9528 = vrot.slane %v9506, %v9527
      %v9530 = vunpack.c.l.s4 1966171168
      %v9531 = vunpack.c.0.s8 %v9530
      %v9532 = vlaneseq
      %v9533 = vshrl.u32 %v9532, 7
      %v9534 = vsub.s32 %v9531, %v9533
      %v9535 = vrot.slane %v9507, %v9534
      %v9536 = vcombine.low %v9514, %v9521
      %v9537 = vcombine.low %v9528, %v9535
      %v9539 = vunpack.c.l.s4 1966171168
      %v9540 = vunpack.c.0.s8 %v9539
      %v9541 = vlaneseq
      %v9542 = vshrl.u32 %v9541, 7
      %v9543 = vsub.s32 %v9540, %v9542
      %v9544 = vrot.slane %v9536, %v9543
      %v9546 = vunpack.c.l.s4 1966171168
      %v9547 = vunpack.c.0.s8 %v9546
      %v9548 = vlaneseq
      %v9549 = vshrl.u32 %v9548, 7
      %v9550 = vsub.s32 %v9547, %v9549
      %v9551 = vrot.slane %v9537, %v9550
      %v9552 = vcombine.low %v9544, %v9551
      %v9553 = vcombine.low %v6862, %v6866
      %v9554 = vcombine.low %v6870, %v6874
      %v9555 = vcombine.low %v6878, %v6882
      %v9556 = vcombine.low %v6886, %v6890
      %v9558 = vunpack.c.l.s4 1966171168
      %v9559 = vunpack.c.0.s8 %v9558
      %v9560 = vlaneseq
      %v9561 = vshrl.u32 %v9560, 7
      %v9562 = vsub.s32 %v9559, %v9561
      %v9563 = vrot.slane %v9553, %v9562
      %v9565 = vunpack.c.l.s4 1966171168
      %v9566 = vunpack.c.0.s8 %v9565
      %v9567 = vlaneseq
      %v9568 = vshrl.u32 %v9567, 7
      %v9569 = vsub.s32 %v9566, %v9568
      %v9570 = vrot.slane %v9554, %v9569
      %v9572 = vunpack.c.l.s4 1966171168
      %v9573 = vunpack.c.0.s8 %v9572
      %v9574 = vlaneseq
      %v9575 = vshrl.u32 %v9574, 7
      %v9576 = vsub.s32 %v9573, %v9575
      %v9577 = vrot.slane %v9555, %v9576
      %v9579 = vunpack.c.l.s4 1966171168
      %v9580 = vunpack.c.0.s8 %v9579
      %v9581 = vlaneseq
      %v9582 = vshrl.u32 %v9581, 7
      %v9583 = vsub.s32 %v9580, %v9582
      %v9584 = vrot.slane %v9556, %v9583
      %v9585 = vcombine.low %v9563, %v9570
      %v9586 = vcombine.low %v9577, %v9584
      %v9588 = vunpack.c.l.s4 1966171168
      %v9589 = vunpack.c.0.s8 %v9588
      %v9590 = vlaneseq
      %v9591 = vshrl.u32 %v9590, 7
      %v9592 = vsub.s32 %v9589, %v9591
      %v9593 = vrot.slane %v9585, %v9592
      %v9595 = vunpack.c.l.s4 1966171168
      %v9596 = vunpack.c.0.s8 %v9595
      %v9597 = vlaneseq
      %v9598 = vshrl.u32 %v9597, 7
      %v9599 = vsub.s32 %v9596, %v9598
      %v9600 = vrot.slane %v9586, %v9599
      %v9601 = vcombine.low %v9593, %v9600
      %v9602 = vcombine.low %v6894, %v6898
      %v9603 = vcombine.low %v6902, %v6906
      %v9604 = vcombine.low %v6910, %v6914
      %v9605 = vcombine.low %v6918, %v6922
      %v9607 = vunpack.c.l.s4 1966171168
      %v9608 = vunpack.c.0.s8 %v9607
      %v9609 = vlaneseq
      %v9610 = vshrl.u32 %v9609, 7
      %v9611 = vsub.s32 %v9608, %v9610
      %v9612 = vrot.slane %v9602, %v9611
      %v9614 = vunpack.c.l.s4 1966171168
      %v9615 = vunpack.c.0.s8 %v9614
      %v9616 = vlaneseq
      %v9617 = vshrl.u32 %v9616, 7
      %v9618 = vsub.s32 %v9615, %v9617
      %v9619 = vrot.slane %v9603, %v9618
      %v9621 = vunpack.c.l.s4 1966171168
      %v9622 = vunpack.c.0.s8 %v9621
      %v9623 = vlaneseq
      %v9624 = vshrl.u32 %v9623, 7
      %v9625 = vsub.s32 %v9622, %v9624
      %v9626 = vrot.slane %v9604, %v9625
      %v9628 = vunpack.c.l.s4 1966171168
      %v9629 = vunpack.c.0.s8 %v9628
      %v9630 = vlaneseq
      %v9631 = vshrl.u32 %v9630, 7
      %v9632 = vsub.s32 %v9629, %v9631
      %v9633 = vrot.slane %v9605, %v9632
      %v9634 = vcombine.low %v9612, %v9619
      %v9635 = vcombine.low %v9626, %v9633
      %v9637 = vunpack.c.l.s4 1966171168
      %v9638 = vunpack.c.0.s8 %v9637
      %v9639 = vlaneseq
      %v9640 = vshrl.u32 %v9639, 7
      %v9641 = vsub.s32 %v9638, %v9640
      %v9642 = vrot.slane %v9634, %v9641
      %v9644 = vunpack.c.l.s4 1966171168
      %v9645 = vunpack.c.0.s8 %v9644
      %v9646 = vlaneseq
      %v9647 = vshrl.u32 %v9646, 7
      %v9648 = vsub.s32 %v9645, %v9647
      %v9649 = vrot.slane %v9635, %v9648
      %v9650 = vcombine.low %v9642, %v9649
      %v9651 = vcombine.low %v6926, %v6930
      %v9652 = vcombine.low %v6934, %v6938
      %v9653 = vcombine.low %v6942, %v6946
      %v9654 = vcombine.low %v6950, %v6954
      %v9656 = vunpack.c.l.s4 1966171168
      %v9657 = vunpack.c.0.s8 %v9656
      %v9658 = vlaneseq
      %v9659 = vshrl.u32 %v9658, 7
      %v9660 = vsub.s32 %v9657, %v9659
      %v9661 = vrot.slane %v9651, %v9660
      %v9663 = vunpack.c.l.s4 1966171168
      %v9664 = vunpack.c.0.s8 %v9663
      %v9665 = vlaneseq
      %v9666 = vshrl.u32 %v9665, 7
      %v9667 = vsub.s32 %v9664, %v9666
      %v9668 = vrot.slane %v9652, %v9667
      %v9670 = vunpack.c.l.s4 1966171168
      %v9671 = vunpack.c.0.s8 %v9670
      %v9672 = vlaneseq
      %v9673 = vshrl.u32 %v9672, 7
      %v9674 = vsub.s32 %v9671, %v9673
      %v9675 = vrot.slane %v9653, %v9674
      %v9677 = vunpack.c.l.s4 1966171168
      %v9678 = vunpack.c.0.s8 %v9677
      %v9679 = vlaneseq
      %v9680 = vshrl.u32 %v9679, 7
      %v9681 = vsub.s32 %v9678, %v9680
      %v9682 = vrot.slane %v9654, %v9681
      %v9683 = vcombine.low %v9661, %v9668
      %v9684 = vcombine.low %v9675, %v9682
      %v9686 = vunpack.c.l.s4 1966171168
      %v9687 = vunpack.c.0.s8 %v9686
      %v9688 = vlaneseq
      %v9689 = vshrl.u32 %v9688, 7
      %v9690 = vsub.s32 %v9687, %v9689
      %v9691 = vrot.slane %v9683, %v9690
      %v9693 = vunpack.c.l.s4 1966171168
      %v9694 = vunpack.c.0.s8 %v9693
      %v9695 = vlaneseq
      %v9696 = vshrl.u32 %v9695, 7
      %v9697 = vsub.s32 %v9694, %v9696
      %v9698 = vrot.slane %v9684, %v9697
      %v9699 = vcombine.low %v9691, %v9698
      %v9700 = vcombine.low %v6958, %v6962
      %v9701 = vcombine.low %v6966, %v6970
      %v9702 = vcombine.low %v6974, %v6978
      %v9703 = vcombine.low %v6982, %v6986
      %v9705 = vunpack.c.l.s4 1966171168
      %v9706 = vunpack.c.0.s8 %v9705
      %v9707 = vlaneseq
      %v9708 = vshrl.u32 %v9707, 7
      %v9709 = vsub.s32 %v9706, %v9708
      %v9710 = vrot.slane %v9700, %v9709
      %v9712 = vunpack.c.l.s4 1966171168
      %v9713 = vunpack.c.0.s8 %v9712
      %v9714 = vlaneseq
      %v9715 = vshrl.u32 %v9714, 7
      %v9716 = vsub.s32 %v9713, %v9715
      %v9717 = vrot.slane %v9701, %v9716
      %v9719 = vunpack.c.l.s4 1966171168
      %v9720 = vunpack.c.0.s8 %v9719
      %v9721 = vlaneseq
      %v9722 = vshrl.u32 %v9721, 7
      %v9723 = vsub.s32 %v9720, %v9722
      %v9724 = vrot.slane %v9702, %v9723
      %v9726 = vunpack.c.l.s4 1966171168
      %v9727 = vunpack.c.0.s8 %v9726
      %v9728 = vlaneseq
      %v9729 = vshrl.u32 %v9728, 7
      %v9730 = vsub.s32 %v9727, %v9729
      %v9731 = vrot.slane %v9703, %v9730
      %v9732 = vcombine.low %v9710, %v9717
      %v9733 = vcombine.low %v9724, %v9731
      %v9735 = vunpack.c.l.s4 1966171168
      %v9736 = vunpack.c.0.s8 %v9735
      %v9737 = vlaneseq
      %v9738 = vshrl.u32 %v9737, 7
      %v9739 = vsub.s32 %v9736, %v9738
      %v9740 = vrot.slane %v9732, %v9739
      %v9742 = vunpack.c.l.s4 1966171168
      %v9743 = vunpack.c.0.s8 %v9742
      %v9744 = vlaneseq
      %v9745 = vshrl.u32 %v9744, 7
      %v9746 = vsub.s32 %v9743, %v9745
      %v9747 = vrot.slane %v9733, %v9746
      %v9748 = vcombine.low %v9740, %v9747
      %v9749 = vcombine.low %v6990, %v6994
      %v9750 = vcombine.low %v6998, %v7002
      %v9751 = vcombine.low %v7006, %v7010
      %v9752 = vcombine.low %v7014, %v7018
      %v9754 = vunpack.c.l.s4 1966171168
      %v9755 = vunpack.c.0.s8 %v9754
      %v9756 = vlaneseq
      %v9757 = vshrl.u32 %v9756, 7
      %v9758 = vsub.s32 %v9755, %v9757
      %v9759 = vrot.slane %v9749, %v9758
      %v9761 = vunpack.c.l.s4 1966171168
      %v9762 = vunpack.c.0.s8 %v9761
      %v9763 = vlaneseq
      %v9764 = vshrl.u32 %v9763, 7
      %v9765 = vsub.s32 %v9762, %v9764
      %v9766 = vrot.slane %v9750, %v9765
      %v9768 = vunpack.c.l.s4 1966171168
      %v9769 = vunpack.c.0.s8 %v9768
      %v9770 = vlaneseq
      %v9771 = vshrl.u32 %v9770, 7
      %v9772 = vsub.s32 %v9769, %v9771
      %v9773 = vrot.slane %v9751, %v9772
      %v9775 = vunpack.c.l.s4 1966171168
      %v9776 = vunpack.c.0.s8 %v9775
      %v9777 = vlaneseq
      %v9778 = vshrl.u32 %v9777, 7
      %v9779 = vsub.s32 %v9776, %v9778
      %v9780 = vrot.slane %v9752, %v9779
      %v9781 = vcombine.low %v9759, %v9766
      %v9782 = vcombine.low %v9773, %v9780
      %v9784 = vunpack.c.l.s4 1966171168
      %v9785 = vunpack.c.0.s8 %v9784
      %v9786 = vlaneseq
      %v9787 = vshrl.u32 %v9786, 7
      %v9788 = vsub.s32 %v9785, %v9787
      %v9789 = vrot.slane %v9781, %v9788
      %v9791 = vunpack.c.l.s4 1966171168
      %v9792 = vunpack.c.0.s8 %v9791
      %v9793 = vlaneseq
      %v9794 = vshrl.u32 %v9793, 7
      %v9795 = vsub.s32 %v9792, %v9794
      %v9796 = vrot.slane %v9782, %v9795
      %v9797 = vcombine.low %v9789, %v9796
      %v9798 = vcombine.low %v7022, %v7026
      %v9799 = vcombine.low %v7030, %v7034
      %v9800 = vcombine.low %v7038, %v7042
      %v9801 = vcombine.low %v7046, %v7050
      %v9803 = vunpack.c.l.s4 1966171168
      %v9804 = vunpack.c.0.s8 %v9803
      %v9805 = vlaneseq
      %v9806 = vshrl.u32 %v9805, 7
      %v9807 = vsub.s32 %v9804, %v9806
      %v9808 = vrot.slane %v9798, %v9807
      %v9810 = vunpack.c.l.s4 1966171168
      %v9811 = vunpack.c.0.s8 %v9810
      %v9812 = vlaneseq
      %v9813 = vshrl.u32 %v9812, 7
      %v9814 = vsub.s32 %v9811, %v9813
      %v9815 = vrot.slane %v9799, %v9814
      %v9817 = vunpack.c.l.s4 1966171168
      %v9818 = vunpack.c.0.s8 %v9817
      %v9819 = vlaneseq
      %v9820 = vshrl.u32 %v9819, 7
      %v9821 = vsub.s32 %v9818, %v9820
      %v9822 = vrot.slane %v9800, %v9821
      %v9824 = vunpack.c.l.s4 1966171168
      %v9825 = vunpack.c.0.s8 %v9824
      %v9826 = vlaneseq
      %v9827 = vshrl.u32 %v9826, 7
      %v9828 = vsub.s32 %v9825, %v9827
      %v9829 = vrot.slane %v9801, %v9828
      %v9830 = vcombine.low %v9808, %v9815
      %v9831 = vcombine.low %v9822, %v9829
      %v9833 = vunpack.c.l.s4 1966171168
      %v9834 = vunpack.c.0.s8 %v9833
      %v9835 = vlaneseq
      %v9836 = vshrl.u32 %v9835, 7
      %v9837 = vsub.s32 %v9834, %v9836
      %v9838 = vrot.slane %v9830, %v9837
      %v9840 = vunpack.c.l.s4 1966171168
      %v9841 = vunpack.c.0.s8 %v9840
      %v9842 = vlaneseq
      %v9843 = vshrl.u32 %v9842, 7
      %v9844 = vsub.s32 %v9841, %v9843
      %v9845 = vrot.slane %v9831, %v9844
      %v9846 = vcombine.low %v9838, %v9845
      %v9847 = vcombine.low %v7054, %v7058
      %v9848 = vcombine.low %v7062, %v7066
      %v9849 = vcombine.low %v7070, %v7074
      %v9850 = vcombine.low %v7078, %v7082
      %v9852 = vunpack.c.l.s4 1966171168
      %v9853 = vunpack.c.0.s8 %v9852
      %v9854 = vlaneseq
      %v9855 = vshrl.u32 %v9854, 7
      %v9856 = vsub.s32 %v9853, %v9855
      %v9857 = vrot.slane %v9847, %v9856
      %v9859 = vunpack.c.l.s4 1966171168
      %v9860 = vunpack.c.0.s8 %v9859
      %v9861 = vlaneseq
      %v9862 = vshrl.u32 %v9861, 7
      %v9863 = vsub.s32 %v9860, %v9862
      %v9864 = vrot.slane %v9848, %v9863
      %v9866 = vunpack.c.l.s4 1966171168
      %v9867 = vunpack.c.0.s8 %v9866
      %v9868 = vlaneseq
      %v9869 = vshrl.u32 %v9868, 7
      %v9870 = vsub.s32 %v9867, %v9869
      %v9871 = vrot.slane %v9849, %v9870
      %v9873 = vunpack.c.l.s4 1966171168
      %v9874 = vunpack.c.0.s8 %v9873
      %v9875 = vlaneseq
      %v9876 = vshrl.u32 %v9875, 7
      %v9877 = vsub.s32 %v9874, %v9876
      %v9878 = vrot.slane %v9850, %v9877
      %v9879 = vcombine.low %v9857, %v9864
      %v9880 = vcombine.low %v9871, %v9878
      %v9882 = vunpack.c.l.s4 1966171168
      %v9883 = vunpack.c.0.s8 %v9882
      %v9884 = vlaneseq
      %v9885 = vshrl.u32 %v9884, 7
      %v9886 = vsub.s32 %v9883, %v9885
      %v9887 = vrot.slane %v9879, %v9886
      %v9889 = vunpack.c.l.s4 1966171168
      %v9890 = vunpack.c.0.s8 %v9889
      %v9891 = vlaneseq
      %v9892 = vshrl.u32 %v9891, 7
      %v9893 = vsub.s32 %v9890, %v9892
      %v9894 = vrot.slane %v9880, %v9893
      %v9895 = vcombine.low %v9887, %v9894
      %v9896 = vcombine.low %v7086, %v7090
      %v9897 = vcombine.low %v7094, %v7098
      %v9898 = vcombine.low %v7102, %v7106
      %v9899 = vcombine.low %v7110, %v7114
      %v9901 = vunpack.c.l.s4 1966171168
      %v9902 = vunpack.c.0.s8 %v9901
      %v9903 = vlaneseq
      %v9904 = vshrl.u32 %v9903, 7
      %v9905 = vsub.s32 %v9902, %v9904
      %v9906 = vrot.slane %v9896, %v9905
      %v9908 = vunpack.c.l.s4 1966171168
      %v9909 = vunpack.c.0.s8 %v9908
      %v9910 = vlaneseq
      %v9911 = vshrl.u32 %v9910, 7
      %v9912 = vsub.s32 %v9909, %v9911
      %v9913 = vrot.slane %v9897, %v9912
      %v9915 = vunpack.c.l.s4 1966171168
      %v9916 = vunpack.c.0.s8 %v9915
      %v9917 = vlaneseq
      %v9918 = vshrl.u32 %v9917, 7
      %v9919 = vsub.s32 %v9916, %v9918
      %v9920 = vrot.slane %v9898, %v9919
      %v9922 = vunpack.c.l.s4 1966171168
      %v9923 = vunpack.c.0.s8 %v9922
      %v9924 = vlaneseq
      %v9925 = vshrl.u32 %v9924, 7
      %v9926 = vsub.s32 %v9923, %v9925
      %v9927 = vrot.slane %v9899, %v9926
      %v9928 = vcombine.low %v9906, %v9913
      %v9929 = vcombine.low %v9920, %v9927
      %v9931 = vunpack.c.l.s4 1966171168
      %v9932 = vunpack.c.0.s8 %v9931
      %v9933 = vlaneseq
      %v9934 = vshrl.u32 %v9933, 7
      %v9935 = vsub.s32 %v9932, %v9934
      %v9936 = vrot.slane %v9928, %v9935
      %v9938 = vunpack.c.l.s4 1966171168
      %v9939 = vunpack.c.0.s8 %v9938
      %v9940 = vlaneseq
      %v9941 = vshrl.u32 %v9940, 7
      %v9942 = vsub.s32 %v9939, %v9941
      %v9943 = vrot.slane %v9929, %v9942
      %v9944 = vcombine.low %v9936, %v9943
      %v9945 = vcombine.low %v7118, %v7122
      %v9946 = vcombine.low %v7126, %v7130
      %v9947 = vcombine.low %v7134, %v7138
      %v9948 = vcombine.low %v7142, %v7146
      %v9950 = vunpack.c.l.s4 1966171168
      %v9951 = vunpack.c.0.s8 %v9950
      %v9952 = vlaneseq
      %v9953 = vshrl.u32 %v9952, 7
      %v9954 = vsub.s32 %v9951, %v9953
      %v9955 = vrot.slane %v9945, %v9954
      %v9957 = vunpack.c.l.s4 1966171168
      %v9958 = vunpack.c.0.s8 %v9957
      %v9959 = vlaneseq
      %v9960 = vshrl.u32 %v9959, 7
      %v9961 = vsub.s32 %v9958, %v9960
      %v9962 = vrot.slane %v9946, %v9961
      %v9964 = vunpack.c.l.s4 1966171168
      %v9965 = vunpack.c.0.s8 %v9964
      %v9966 = vlaneseq
      %v9967 = vshrl.u32 %v9966, 7
      %v9968 = vsub.s32 %v9965, %v9967
      %v9969 = vrot.slane %v9947, %v9968
      %v9971 = vunpack.c.l.s4 1966171168
      %v9972 = vunpack.c.0.s8 %v9971
      %v9973 = vlaneseq
      %v9974 = vshrl.u32 %v9973, 7
      %v9975 = vsub.s32 %v9972, %v9974
      %v9976 = vrot.slane %v9948, %v9975
      %v9977 = vcombine.low %v9955, %v9962
      %v9978 = vcombine.low %v9969, %v9976
      %v9980 = vunpack.c.l.s4 1966171168
      %v9981 = vunpack.c.0.s8 %v9980
      %v9982 = vlaneseq
      %v9983 = vshrl.u32 %v9982, 7
      %v9984 = vsub.s32 %v9981, %v9983
      %v9985 = vrot.slane %v9977, %v9984
      %v9987 = vunpack.c.l.s4 1966171168
      %v9988 = vunpack.c.0.s8 %v9987
      %v9989 = vlaneseq
      %v9990 = vshrl.u32 %v9989, 7
      %v9991 = vsub.s32 %v9988, %v9990
      %v9992 = vrot.slane %v9978, %v9991
      %v9993 = vcombine.low %v9985, %v9992
      %v9994 = vcombine.low %v7150, %v7154
      %v9995 = vcombine.low %v7158, %v7162
      %v9996 = vcombine.low %v7166, %v7170
      %v9997 = vcombine.low %v7174, %v7178
      %v9999 = vunpack.c.l.s4 1966171168
      %v10000 = vunpack.c.0.s8 %v9999
      %v10001 = vlaneseq
      %v10002 = vshrl.u32 %v10001, 7
      %v10003 = vsub.s32 %v10000, %v10002
      %v10004 = vrot.slane %v9994, %v10003
      %v10006 = vunpack.c.l.s4 1966171168
      %v10007 = vunpack.c.0.s8 %v10006
      %v10008 = vlaneseq
      %v10009 = vshrl.u32 %v10008, 7
      %v10010 = vsub.s32 %v10007, %v10009
      %v10011 = vrot.slane %v9995, %v10010
      %v10013 = vunpack.c.l.s4 1966171168
      %v10014 = vunpack.c.0.s8 %v10013
      %v10015 = vlaneseq
      %v10016 = vshrl.u32 %v10015, 7
      %v10017 = vsub.s32 %v10014, %v10016
      %v10018 = vrot.slane %v9996, %v10017
      %v10020 = vunpack.c.l.s4 1966171168
      %v10021 = vunpack.c.0.s8 %v10020
      %v10022 = vlaneseq
      %v10023 = vshrl.u32 %v10022, 7
      %v10024 = vsub.s32 %v10021, %v10023
      %v10025 = vrot.slane %v9997, %v10024
      %v10026 = vcombine.low %v10004, %v10011
      %v10027 = vcombine.low %v10018, %v10025
      %v10029 = vunpack.c.l.s4 1966171168
      %v10030 = vunpack.c.0.s8 %v10029
      %v10031 = vlaneseq
      %v10032 = vshrl.u32 %v10031, 7
      %v10033 = vsub.s32 %v10030, %v10032
      %v10034 = vrot.slane %v10026, %v10033
      %v10036 = vunpack.c.l.s4 1966171168
      %v10037 = vunpack.c.0.s8 %v10036
      %v10038 = vlaneseq
      %v10039 = vshrl.u32 %v10038, 7
      %v10040 = vsub.s32 %v10037, %v10039
      %v10041 = vrot.slane %v10027, %v10040
      %v10042 = vcombine.low %v10034, %v10041
      %v10043 = vcombine.low %v7182, %v7186
      %v10044 = vcombine.low %v7190, %v7194
      %v10045 = vcombine.low %v7198, %v7202
      %v10046 = vcombine.low %v7206, %v7210
      %v10048 = vunpack.c.l.s4 1966171168
      %v10049 = vunpack.c.0.s8 %v10048
      %v10050 = vlaneseq
      %v10051 = vshrl.u32 %v10050, 7
      %v10052 = vsub.s32 %v10049, %v10051
      %v10053 = vrot.slane %v10043, %v10052
      %v10055 = vunpack.c.l.s4 1966171168
      %v10056 = vunpack.c.0.s8 %v10055
      %v10057 = vlaneseq
      %v10058 = vshrl.u32 %v10057, 7
      %v10059 = vsub.s32 %v10056, %v10058
      %v10060 = vrot.slane %v10044, %v10059
      %v10062 = vunpack.c.l.s4 1966171168
      %v10063 = vunpack.c.0.s8 %v10062
      %v10064 = vlaneseq
      %v10065 = vshrl.u32 %v10064, 7
      %v10066 = vsub.s32 %v10063, %v10065
      %v10067 = vrot.slane %v10045, %v10066
      %v10069 = vunpack.c.l.s4 1966171168
      %v10070 = vunpack.c.0.s8 %v10069
      %v10071 = vlaneseq
      %v10072 = vshrl.u32 %v10071, 7
      %v10073 = vsub.s32 %v10070, %v10072
      %v10074 = vrot.slane %v10046, %v10073
      %v10075 = vcombine.low %v10053, %v10060
      %v10076 = vcombine.low %v10067, %v10074
      %v10078 = vunpack.c.l.s4 1966171168
      %v10079 = vunpack.c.0.s8 %v10078
      %v10080 = vlaneseq
      %v10081 = vshrl.u32 %v10080, 7
      %v10082 = vsub.s32 %v10079, %v10081
      %v10083 = vrot.slane %v10075, %v10082
      %v10085 = vunpack.c.l.s4 1966171168
      %v10086 = vunpack.c.0.s8 %v10085
      %v10087 = vlaneseq
      %v10088 = vshrl.u32 %v10087, 7
      %v10089 = vsub.s32 %v10086, %v10088
      %v10090 = vrot.slane %v10076, %v10089
      %v10091 = vcombine.low %v10083, %v10090
      %v10092 = vcombine.low %v7214, %v7218
      %v10093 = vcombine.low %v7222, %v7226
      %v10094 = vcombine.low %v7230, %v7234
      %v10095 = vcombine.low %v7238, %v7242
      %v10097 = vunpack.c.l.s4 1966171168
      %v10098 = vunpack.c.0.s8 %v10097
      %v10099 = vlaneseq
      %v10100 = vshrl.u32 %v10099, 7
      %v10101 = vsub.s32 %v10098, %v10100
      %v10102 = vrot.slane %v10092, %v10101
      %v10104 = vunpack.c.l.s4 1966171168
      %v10105 = vunpack.c.0.s8 %v10104
      %v10106 = vlaneseq
      %v10107 = vshrl.u32 %v10106, 7
      %v10108 = vsub.s32 %v10105, %v10107
      %v10109 = vrot.slane %v10093, %v10108
      %v10111 = vunpack.c.l.s4 1966171168
      %v10112 = vunpack.c.0.s8 %v10111
      %v10113 = vlaneseq
      %v10114 = vshrl.u32 %v10113, 7
      %v10115 = vsub.s32 %v10112, %v10114
      %v10116 = vrot.slane %v10094, %v10115
      %v10118 = vunpack.c.l.s4 1966171168
      %v10119 = vunpack.c.0.s8 %v10118
      %v10120 = vlaneseq
      %v10121 = vshrl.u32 %v10120, 7
      %v10122 = vsub.s32 %v10119, %v10121
      %v10123 = vrot.slane %v10095, %v10122
      %v10124 = vcombine.low %v10102, %v10109
      %v10125 = vcombine.low %v10116, %v10123
      %v10127 = vunpack.c.l.s4 1966171168
      %v10128 = vunpack.c.0.s8 %v10127
      %v10129 = vlaneseq
      %v10130 = vshrl.u32 %v10129, 7
      %v10131 = vsub.s32 %v10128, %v10130
      %v10132 = vrot.slane %v10124, %v10131
      %v10134 = vunpack.c.l.s4 1966171168
      %v10135 = vunpack.c.0.s8 %v10134
      %v10136 = vlaneseq
      %v10137 = vshrl.u32 %v10136, 7
      %v10138 = vsub.s32 %v10135, %v10137
      %v10139 = vrot.slane %v10125, %v10138
      %v10140 = vcombine.low %v10132, %v10139
      %v10141 = vcombine.low %v7246, %v7250
      %v10142 = vcombine.low %v7254, %v7258
      %v10143 = vcombine.low %v7262, %v7266
      %v10144 = vcombine.low %v7270, %v7274
      %v10146 = vunpack.c.l.s4 1966171168
      %v10147 = vunpack.c.0.s8 %v10146
      %v10148 = vlaneseq
      %v10149 = vshrl.u32 %v10148, 7
      %v10150 = vsub.s32 %v10147, %v10149
      %v10151 = vrot.slane %v10141, %v10150
      %v10153 = vunpack.c.l.s4 1966171168
      %v10154 = vunpack.c.0.s8 %v10153
      %v10155 = vlaneseq
      %v10156 = vshrl.u32 %v10155, 7
      %v10157 = vsub.s32 %v10154, %v10156
      %v10158 = vrot.slane %v10142, %v10157
      %v10160 = vunpack.c.l.s4 1966171168
      %v10161 = vunpack.c.0.s8 %v10160
      %v10162 = vlaneseq
      %v10163 = vshrl.u32 %v10162, 7
      %v10164 = vsub.s32 %v10161, %v10163
      %v10165 = vrot.slane %v10143, %v10164
      %v10167 = vunpack.c.l.s4 1966171168
      %v10168 = vunpack.c.0.s8 %v10167
      %v10169 = vlaneseq
      %v10170 = vshrl.u32 %v10169, 7
      %v10171 = vsub.s32 %v10168, %v10170
      %v10172 = vrot.slane %v10144, %v10171
      %v10173 = vcombine.low %v10151, %v10158
      %v10174 = vcombine.low %v10165, %v10172
      %v10176 = vunpack.c.l.s4 1966171168
      %v10177 = vunpack.c.0.s8 %v10176
      %v10178 = vlaneseq
      %v10179 = vshrl.u32 %v10178, 7
      %v10180 = vsub.s32 %v10177, %v10179
      %v10181 = vrot.slane %v10173, %v10180
      %v10183 = vunpack.c.l.s4 1966171168
      %v10184 = vunpack.c.0.s8 %v10183
      %v10185 = vlaneseq
      %v10186 = vshrl.u32 %v10185, 7
      %v10187 = vsub.s32 %v10184, %v10186
      %v10188 = vrot.slane %v10174, %v10187
      %v10189 = vcombine.low %v10181, %v10188
      %v10190 = vcombine.low %v7278, %v7282
      %v10191 = vcombine.low %v7286, %v7290
      %v10192 = vcombine.low %v7294, %v7298
      %v10193 = vcombine.low %v7302, %v7306
      %v10195 = vunpack.c.l.s4 1966171168
      %v10196 = vunpack.c.0.s8 %v10195
      %v10197 = vlaneseq
      %v10198 = vshrl.u32 %v10197, 7
      %v10199 = vsub.s32 %v10196, %v10198
      %v10200 = vrot.slane %v10190, %v10199
      %v10202 = vunpack.c.l.s4 1966171168
      %v10203 = vunpack.c.0.s8 %v10202
      %v10204 = vlaneseq
      %v10205 = vshrl.u32 %v10204, 7
      %v10206 = vsub.s32 %v10203, %v10205
      %v10207 = vrot.slane %v10191, %v10206
      %v10209 = vunpack.c.l.s4 1966171168
      %v10210 = vunpack.c.0.s8 %v10209
      %v10211 = vlaneseq
      %v10212 = vshrl.u32 %v10211, 7
      %v10213 = vsub.s32 %v10210, %v10212
      %v10214 = vrot.slane %v10192, %v10213
      %v10216 = vunpack.c.l.s4 1966171168
      %v10217 = vunpack.c.0.s8 %v10216
      %v10218 = vlaneseq
      %v10219 = vshrl.u32 %v10218, 7
      %v10220 = vsub.s32 %v10217, %v10219
      %v10221 = vrot.slane %v10193, %v10220
      %v10222 = vcombine.low %v10200, %v10207
      %v10223 = vcombine.low %v10214, %v10221
      %v10225 = vunpack.c.l.s4 1966171168
      %v10226 = vunpack.c.0.s8 %v10225
      %v10227 = vlaneseq
      %v10228 = vshrl.u32 %v10227, 7
      %v10229 = vsub.s32 %v10226, %v10228
      %v10230 = vrot.slane %v10222, %v10229
      %v10232 = vunpack.c.l.s4 1966171168
      %v10233 = vunpack.c.0.s8 %v10232
      %v10234 = vlaneseq
      %v10235 = vshrl.u32 %v10234, 7
      %v10236 = vsub.s32 %v10233, %v10235
      %v10237 = vrot.slane %v10223, %v10236
      %v10238 = vcombine.low %v10230, %v10237
      %v10239 = vcombine.low %v7310, %v7314
      %v10240 = vcombine.low %v7318, %v7322
      %v10241 = vcombine.low %v7326, %v7330
      %v10242 = vcombine.low %v7334, %v7338
      %v10244 = vunpack.c.l.s4 1966171168
      %v10245 = vunpack.c.0.s8 %v10244
      %v10246 = vlaneseq
      %v10247 = vshrl.u32 %v10246, 7
      %v10248 = vsub.s32 %v10245, %v10247
      %v10249 = vrot.slane %v10239, %v10248
      %v10251 = vunpack.c.l.s4 1966171168
      %v10252 = vunpack.c.0.s8 %v10251
      %v10253 = vlaneseq
      %v10254 = vshrl.u32 %v10253, 7
      %v10255 = vsub.s32 %v10252, %v10254
      %v10256 = vrot.slane %v10240, %v10255
      %v10258 = vunpack.c.l.s4 1966171168
      %v10259 = vunpack.c.0.s8 %v10258
      %v10260 = vlaneseq
      %v10261 = vshrl.u32 %v10260, 7
      %v10262 = vsub.s32 %v10259, %v10261
      %v10263 = vrot.slane %v10241, %v10262
      %v10265 = vunpack.c.l.s4 1966171168
      %v10266 = vunpack.c.0.s8 %v10265
      %v10267 = vlaneseq
      %v10268 = vshrl.u32 %v10267, 7
      %v10269 = vsub.s32 %v10266, %v10268
      %v10270 = vrot.slane %v10242, %v10269
      %v10271 = vcombine.low %v10249, %v10256
      %v10272 = vcombine.low %v10263, %v10270
      %v10274 = vunpack.c.l.s4 1966171168
      %v10275 = vunpack.c.0.s8 %v10274
      %v10276 = vlaneseq
      %v10277 = vshrl.u32 %v10276, 7
      %v10278 = vsub.s32 %v10275, %v10277
      %v10279 = vrot.slane %v10271, %v10278
      %v10281 = vunpack.c.l.s4 1966171168
      %v10282 = vunpack.c.0.s8 %v10281
      %v10283 = vlaneseq
      %v10284 = vshrl.u32 %v10283, 7
      %v10285 = vsub.s32 %v10282, %v10284
      %v10286 = vrot.slane %v10272, %v10285
      %v10287 = vcombine.low %v10279, %v10286
      %v10288 = vcombine.low %v7342, %v7346
      %v10289 = vcombine.low %v7350, %v7354
      %v10290 = vcombine.low %v7358, %v7362
      %v10291 = vcombine.low %v7366, %v7370
      %v10293 = vunpack.c.l.s4 1966171168
      %v10294 = vunpack.c.0.s8 %v10293
      %v10295 = vlaneseq
      %v10296 = vshrl.u32 %v10295, 7
      %v10297 = vsub.s32 %v10294, %v10296
      %v10298 = vrot.slane %v10288, %v10297
      %v10300 = vunpack.c.l.s4 1966171168
      %v10301 = vunpack.c.0.s8 %v10300
      %v10302 = vlaneseq
      %v10303 = vshrl.u32 %v10302, 7
      %v10304 = vsub.s32 %v10301, %v10303
      %v10305 = vrot.slane %v10289, %v10304
      %v10307 = vunpack.c.l.s4 1966171168
      %v10308 = vunpack.c.0.s8 %v10307
      %v10309 = vlaneseq
      %v10310 = vshrl.u32 %v10309, 7
      %v10311 = vsub.s32 %v10308, %v10310
      %v10312 = vrot.slane %v10290, %v10311
      %v10314 = vunpack.c.l.s4 1966171168
      %v10315 = vunpack.c.0.s8 %v10314
      %v10316 = vlaneseq
      %v10317 = vshrl.u32 %v10316, 7
      %v10318 = vsub.s32 %v10315, %v10317
      %v10319 = vrot.slane %v10291, %v10318
      %v10320 = vcombine.low %v10298, %v10305
      %v10321 = vcombine.low %v10312, %v10319
      %v10323 = vunpack.c.l.s4 1966171168
      %v10324 = vunpack.c.0.s8 %v10323
      %v10325 = vlaneseq
      %v10326 = vshrl.u32 %v10325, 7
      %v10327 = vsub.s32 %v10324, %v10326
      %v10328 = vrot.slane %v10320, %v10327
      %v10330 = vunpack.c.l.s4 1966171168
      %v10331 = vunpack.c.0.s8 %v10330
      %v10332 = vlaneseq
      %v10333 = vshrl.u32 %v10332, 7
      %v10334 = vsub.s32 %v10331, %v10333
      %v10335 = vrot.slane %v10321, %v10334
      %v10336 = vcombine.low %v10328, %v10335
      %v10337 = vcombine.low %v7374, %v7378
      %v10338 = vcombine.low %v7382, %v7386
      %v10339 = vcombine.low %v7390, %v7394
      %v10340 = vcombine.low %v7398, %v7402
      %v10342 = vunpack.c.l.s4 1966171168
      %v10343 = vunpack.c.0.s8 %v10342
      %v10344 = vlaneseq
      %v10345 = vshrl.u32 %v10344, 7
      %v10346 = vsub.s32 %v10343, %v10345
      %v10347 = vrot.slane %v10337, %v10346
      %v10349 = vunpack.c.l.s4 1966171168
      %v10350 = vunpack.c.0.s8 %v10349
      %v10351 = vlaneseq
      %v10352 = vshrl.u32 %v10351, 7
      %v10353 = vsub.s32 %v10350, %v10352
      %v10354 = vrot.slane %v10338, %v10353
      %v10356 = vunpack.c.l.s4 1966171168
      %v10357 = vunpack.c.0.s8 %v10356
      %v10358 = vlaneseq
      %v10359 = vshrl.u32 %v10358, 7
      %v10360 = vsub.s32 %v10357, %v10359
      %v10361 = vrot.slane %v10339, %v10360
      %v10363 = vunpack.c.l.s4 1966171168
      %v10364 = vunpack.c.0.s8 %v10363
      %v10365 = vlaneseq
      %v10366 = vshrl.u32 %v10365, 7
      %v10367 = vsub.s32 %v10364, %v10366
      %v10368 = vrot.slane %v10340, %v10367
      %v10369 = vcombine.low %v10347, %v10354
      %v10370 = vcombine.low %v10361, %v10368
      %v10372 = vunpack.c.l.s4 1966171168
      %v10373 = vunpack.c.0.s8 %v10372
      %v10374 = vlaneseq
      %v10375 = vshrl.u32 %v10374, 7
      %v10376 = vsub.s32 %v10373, %v10375
      %v10377 = vrot.slane %v10369, %v10376
      %v10379 = vunpack.c.l.s4 1966171168
      %v10380 = vunpack.c.0.s8 %v10379
      %v10381 = vlaneseq
      %v10382 = vshrl.u32 %v10381, 7
      %v10383 = vsub.s32 %v10380, %v10382
      %v10384 = vrot.slane %v10370, %v10383
      %v10385 = vcombine.low %v10377, %v10384
      %v10386 = vcombine.low %v7406, %v7410
      %v10387 = vcombine.low %v7414, %v7418
      %v10388 = vcombine.low %v7422, %v7426
      %v10389 = vcombine.low %v7430, %v7434
      %v10391 = vunpack.c.l.s4 1966171168
      %v10392 = vunpack.c.0.s8 %v10391
      %v10393 = vlaneseq
      %v10394 = vshrl.u32 %v10393, 7
      %v10395 = vsub.s32 %v10392, %v10394
      %v10396 = vrot.slane %v10386, %v10395
      %v10398 = vunpack.c.l.s4 1966171168
      %v10399 = vunpack.c.0.s8 %v10398
      %v10400 = vlaneseq
      %v10401 = vshrl.u32 %v10400, 7
      %v10402 = vsub.s32 %v10399, %v10401
      %v10403 = vrot.slane %v10387, %v10402
      %v10405 = vunpack.c.l.s4 1966171168
      %v10406 = vunpack.c.0.s8 %v10405
      %v10407 = vlaneseq
      %v10408 = vshrl.u32 %v10407, 7
      %v10409 = vsub.s32 %v10406, %v10408
      %v10410 = vrot.slane %v10388, %v10409
      %v10412 = vunpack.c.l.s4 1966171168
      %v10413 = vunpack.c.0.s8 %v10412
      %v10414 = vlaneseq
      %v10415 = vshrl.u32 %v10414, 7
      %v10416 = vsub.s32 %v10413, %v10415
      %v10417 = vrot.slane %v10389, %v10416
      %v10418 = vcombine.low %v10396, %v10403
      %v10419 = vcombine.low %v10410, %v10417
      %v10421 = vunpack.c.l.s4 1966171168
      %v10422 = vunpack.c.0.s8 %v10421
      %v10423 = vlaneseq
      %v10424 = vshrl.u32 %v10423, 7
      %v10425 = vsub.s32 %v10422, %v10424
      %v10426 = vrot.slane %v10418, %v10425
      %v10428 = vunpack.c.l.s4 1966171168
      %v10429 = vunpack.c.0.s8 %v10428
      %v10430 = vlaneseq
      %v10431 = vshrl.u32 %v10430, 7
      %v10432 = vsub.s32 %v10429, %v10431
      %v10433 = vrot.slane %v10419, %v10432
      %v10434 = vcombine.low %v10426, %v10433
      %v10435 = vcombine.low %v7438, %v7442
      %v10436 = vcombine.low %v7446, %v7450
      %v10437 = vcombine.low %v7454, %v7458
      %v10438 = vcombine.low %v7462, %v7466
      %v10440 = vunpack.c.l.s4 1966171168
      %v10441 = vunpack.c.0.s8 %v10440
      %v10442 = vlaneseq
      %v10443 = vshrl.u32 %v10442, 7
      %v10444 = vsub.s32 %v10441, %v10443
      %v10445 = vrot.slane %v10435, %v10444
      %v10447 = vunpack.c.l.s4 1966171168
      %v10448 = vunpack.c.0.s8 %v10447
      %v10449 = vlaneseq
      %v10450 = vshrl.u32 %v10449, 7
      %v10451 = vsub.s32 %v10448, %v10450
      %v10452 = vrot.slane %v10436, %v10451
      %v10454 = vunpack.c.l.s4 1966171168
      %v10455 = vunpack.c.0.s8 %v10454
      %v10456 = vlaneseq
      %v10457 = vshrl.u32 %v10456, 7
      %v10458 = vsub.s32 %v10455, %v10457
      %v10459 = vrot.slane %v10437, %v10458
      %v10461 = vunpack.c.l.s4 1966171168
      %v10462 = vunpack.c.0.s8 %v10461
      %v10463 = vlaneseq
      %v10464 = vshrl.u32 %v10463, 7
      %v10465 = vsub.s32 %v10462, %v10464
      %v10466 = vrot.slane %v10438, %v10465
      %v10467 = vcombine.low %v10445, %v10452
      %v10468 = vcombine.low %v10459, %v10466
      %v10470 = vunpack.c.l.s4 1966171168
      %v10471 = vunpack.c.0.s8 %v10470
      %v10472 = vlaneseq
      %v10473 = vshrl.u32 %v10472, 7
      %v10474 = vsub.s32 %v10471, %v10473
      %v10475 = vrot.slane %v10467, %v10474
      %v10477 = vunpack.c.l.s4 1966171168
      %v10478 = vunpack.c.0.s8 %v10477
      %v10479 = vlaneseq
      %v10480 = vshrl.u32 %v10479, 7
      %v10481 = vsub.s32 %v10478, %v10480
      %v10482 = vrot.slane %v10468, %v10481
      %v10483 = vcombine.low %v10475, %v10482
      %v10484 = vcombine.low %v7470, %v7474
      %v10485 = vcombine.low %v7478, %v7482
      %v10486 = vcombine.low %v7486, %v7490
      %v10487 = vcombine.low %v7494, %v7498
      %v10489 = vunpack.c.l.s4 1966171168
      %v10490 = vunpack.c.0.s8 %v10489
      %v10491 = vlaneseq
      %v10492 = vshrl.u32 %v10491, 7
      %v10493 = vsub.s32 %v10490, %v10492
      %v10494 = vrot.slane %v10484, %v10493
      %v10496 = vunpack.c.l.s4 1966171168
      %v10497 = vunpack.c.0.s8 %v10496
      %v10498 = vlaneseq
      %v10499 = vshrl.u32 %v10498, 7
      %v10500 = vsub.s32 %v10497, %v10499
      %v10501 = vrot.slane %v10485, %v10500
      %v10503 = vunpack.c.l.s4 1966171168
      %v10504 = vunpack.c.0.s8 %v10503
      %v10505 = vlaneseq
      %v10506 = vshrl.u32 %v10505, 7
      %v10507 = vsub.s32 %v10504, %v10506
      %v10508 = vrot.slane %v10486, %v10507
      %v10510 = vunpack.c.l.s4 1966171168
      %v10511 = vunpack.c.0.s8 %v10510
      %v10512 = vlaneseq
      %v10513 = vshrl.u32 %v10512, 7
      %v10514 = vsub.s32 %v10511, %v10513
      %v10515 = vrot.slane %v10487, %v10514
      %v10516 = vcombine.low %v10494, %v10501
      %v10517 = vcombine.low %v10508, %v10515
      %v10519 = vunpack.c.l.s4 1966171168
      %v10520 = vunpack.c.0.s8 %v10519
      %v10521 = vlaneseq
      %v10522 = vshrl.u32 %v10521, 7
      %v10523 = vsub.s32 %v10520, %v10522
      %v10524 = vrot.slane %v10516, %v10523
      %v10526 = vunpack.c.l.s4 1966171168
      %v10527 = vunpack.c.0.s8 %v10526
      %v10528 = vlaneseq
      %v10529 = vshrl.u32 %v10528, 7
      %v10530 = vsub.s32 %v10527, %v10529
      %v10531 = vrot.slane %v10517, %v10530
      %v10532 = vcombine.low %v10524, %v10531
      %v10533 = vcombine.low %v7502, %v7506
      %v10534 = vcombine.low %v7510, %v7514
      %v10535 = vcombine.low %v7518, %v7522
      %v10536 = vcombine.low %v7526, %v7530
      %v10538 = vunpack.c.l.s4 1966171168
      %v10539 = vunpack.c.0.s8 %v10538
      %v10540 = vlaneseq
      %v10541 = vshrl.u32 %v10540, 7
      %v10542 = vsub.s32 %v10539, %v10541
      %v10543 = vrot.slane %v10533, %v10542
      %v10545 = vunpack.c.l.s4 1966171168
      %v10546 = vunpack.c.0.s8 %v10545
      %v10547 = vlaneseq
      %v10548 = vshrl.u32 %v10547, 7
      %v10549 = vsub.s32 %v10546, %v10548
      %v10550 = vrot.slane %v10534, %v10549
      %v10552 = vunpack.c.l.s4 1966171168
      %v10553 = vunpack.c.0.s8 %v10552
      %v10554 = vlaneseq
      %v10555 = vshrl.u32 %v10554, 7
      %v10556 = vsub.s32 %v10553, %v10555
      %v10557 = vrot.slane %v10535, %v10556
      %v10559 = vunpack.c.l.s4 1966171168
      %v10560 = vunpack.c.0.s8 %v10559
      %v10561 = vlaneseq
      %v10562 = vshrl.u32 %v10561, 7
      %v10563 = vsub.s32 %v10560, %v10562
      %v10564 = vrot.slane %v10536, %v10563
      %v10565 = vcombine.low %v10543, %v10550
      %v10566 = vcombine.low %v10557, %v10564
      %v10568 = vunpack.c.l.s4 1966171168
      %v10569 = vunpack.c.0.s8 %v10568
      %v10570 = vlaneseq
      %v10571 = vshrl.u32 %v10570, 7
      %v10572 = vsub.s32 %v10569, %v10571
      %v10573 = vrot.slane %v10565, %v10572
      %v10575 = vunpack.c.l.s4 1966171168
      %v10576 = vunpack.c.0.s8 %v10575
      %v10577 = vlaneseq
      %v10578 = vshrl.u32 %v10577, 7
      %v10579 = vsub.s32 %v10576, %v10578
      %v10580 = vrot.slane %v10566, %v10579
      %v10581 = vcombine.low %v10573, %v10580
      %v10582 = vcombine.low %v7534, %v7538
      %v10583 = vcombine.low %v7542, %v7546
      %v10584 = vcombine.low %v7550, %v7554
      %v10585 = vcombine.low %v7558, %v7562
      %v10587 = vunpack.c.l.s4 1966171168
      %v10588 = vunpack.c.0.s8 %v10587
      %v10589 = vlaneseq
      %v10590 = vshrl.u32 %v10589, 7
      %v10591 = vsub.s32 %v10588, %v10590
      %v10592 = vrot.slane %v10582, %v10591
      %v10594 = vunpack.c.l.s4 1966171168
      %v10595 = vunpack.c.0.s8 %v10594
      %v10596 = vlaneseq
      %v10597 = vshrl.u32 %v10596, 7
      %v10598 = vsub.s32 %v10595, %v10597
      %v10599 = vrot.slane %v10583, %v10598
      %v10601 = vunpack.c.l.s4 1966171168
      %v10602 = vunpack.c.0.s8 %v10601
      %v10603 = vlaneseq
      %v10604 = vshrl.u32 %v10603, 7
      %v10605 = vsub.s32 %v10602, %v10604
      %v10606 = vrot.slane %v10584, %v10605
      %v10608 = vunpack.c.l.s4 1966171168
      %v10609 = vunpack.c.0.s8 %v10608
      %v10610 = vlaneseq
      %v10611 = vshrl.u32 %v10610, 7
      %v10612 = vsub.s32 %v10609, %v10611
      %v10613 = vrot.slane %v10585, %v10612
      %v10614 = vcombine.low %v10592, %v10599
      %v10615 = vcombine.low %v10606, %v10613
      %v10617 = vunpack.c.l.s4 1966171168
      %v10618 = vunpack.c.0.s8 %v10617
      %v10619 = vlaneseq
      %v10620 = vshrl.u32 %v10619, 7
      %v10621 = vsub.s32 %v10618, %v10620
      %v10622 = vrot.slane %v10614, %v10621
      %v10624 = vunpack.c.l.s4 1966171168
      %v10625 = vunpack.c.0.s8 %v10624
      %v10626 = vlaneseq
      %v10627 = vshrl.u32 %v10626, 7
      %v10628 = vsub.s32 %v10625, %v10627
      %v10629 = vrot.slane %v10615, %v10628
      %v10630 = vcombine.low %v10622, %v10629
      %v10631 = vcombine.low %v7566, %v7570
      %v10632 = vcombine.low %v7574, %v7578
      %v10633 = vcombine.low %v7582, %v7586
      %v10634 = vcombine.low %v7590, %v7594
      %v10636 = vunpack.c.l.s4 1966171168
      %v10637 = vunpack.c.0.s8 %v10636
      %v10638 = vlaneseq
      %v10639 = vshrl.u32 %v10638, 7
      %v10640 = vsub.s32 %v10637, %v10639
      %v10641 = vrot.slane %v10631, %v10640
      %v10643 = vunpack.c.l.s4 1966171168
      %v10644 = vunpack.c.0.s8 %v10643
      %v10645 = vlaneseq
      %v10646 = vshrl.u32 %v10645, 7
      %v10647 = vsub.s32 %v10644, %v10646
      %v10648 = vrot.slane %v10632, %v10647
      %v10650 = vunpack.c.l.s4 1966171168
      %v10651 = vunpack.c.0.s8 %v10650
      %v10652 = vlaneseq
      %v10653 = vshrl.u32 %v10652, 7
      %v10654 = vsub.s32 %v10651, %v10653
      %v10655 = vrot.slane %v10633, %v10654
      %v10657 = vunpack.c.l.s4 1966171168
      %v10658 = vunpack.c.0.s8 %v10657
      %v10659 = vlaneseq
      %v10660 = vshrl.u32 %v10659, 7
      %v10661 = vsub.s32 %v10658, %v10660
      %v10662 = vrot.slane %v10634, %v10661
      %v10663 = vcombine.low %v10641, %v10648
      %v10664 = vcombine.low %v10655, %v10662
      %v10666 = vunpack.c.l.s4 1966171168
      %v10667 = vunpack.c.0.s8 %v10666
      %v10668 = vlaneseq
      %v10669 = vshrl.u32 %v10668, 7
      %v10670 = vsub.s32 %v10667, %v10669
      %v10671 = vrot.slane %v10663, %v10670
      %v10673 = vunpack.c.l.s4 1966171168
      %v10674 = vunpack.c.0.s8 %v10673
      %v10675 = vlaneseq
      %v10676 = vshrl.u32 %v10675, 7
      %v10677 = vsub.s32 %v10674, %v10676
      %v10678 = vrot.slane %v10664, %v10677
      %v10679 = vcombine.low %v10671, %v10678
      %v10680 = vcombine.low %v7598, %v7602
      %v10681 = vcombine.low %v7606, %v7610
      %v10682 = vcombine.low %v7614, %v7618
      %v10683 = vcombine.low %v7622, %v7626
      %v10685 = vunpack.c.l.s4 1966171168
      %v10686 = vunpack.c.0.s8 %v10685
      %v10687 = vlaneseq
      %v10688 = vshrl.u32 %v10687, 7
      %v10689 = vsub.s32 %v10686, %v10688
      %v10690 = vrot.slane %v10680, %v10689
      %v10692 = vunpack.c.l.s4 1966171168
      %v10693 = vunpack.c.0.s8 %v10692
      %v10694 = vlaneseq
      %v10695 = vshrl.u32 %v10694, 7
      %v10696 = vsub.s32 %v10693, %v10695
      %v10697 = vrot.slane %v10681, %v10696
      %v10699 = vunpack.c.l.s4 1966171168
      %v10700 = vunpack.c.0.s8 %v10699
      %v10701 = vlaneseq
      %v10702 = vshrl.u32 %v10701, 7
      %v10703 = vsub.s32 %v10700, %v10702
      %v10704 = vrot.slane %v10682, %v10703
      %v10706 = vunpack.c.l.s4 1966171168
      %v10707 = vunpack.c.0.s8 %v10706
      %v10708 = vlaneseq
      %v10709 = vshrl.u32 %v10708, 7
      %v10710 = vsub.s32 %v10707, %v10709
      %v10711 = vrot.slane %v10683, %v10710
      %v10712 = vcombine.low %v10690, %v10697
      %v10713 = vcombine.low %v10704, %v10711
      %v10715 = vunpack.c.l.s4 1966171168
      %v10716 = vunpack.c.0.s8 %v10715
      %v10717 = vlaneseq
      %v10718 = vshrl.u32 %v10717, 7
      %v10719 = vsub.s32 %v10716, %v10718
      %v10720 = vrot.slane %v10712, %v10719
      %v10722 = vunpack.c.l.s4 1966171168
      %v10723 = vunpack.c.0.s8 %v10722
      %v10724 = vlaneseq
      %v10725 = vshrl.u32 %v10724, 7
      %v10726 = vsub.s32 %v10723, %v10725
      %v10727 = vrot.slane %v10713, %v10726
      %v10728 = vcombine.low %v10720, %v10727
      %v10729 = vcombine.low %v7630, %v7634
      %v10730 = vcombine.low %v7638, %v7642
      %v10731 = vcombine.low %v7646, %v7650
      %v10732 = vcombine.low %v7654, %v7658
      %v10734 = vunpack.c.l.s4 1966171168
      %v10735 = vunpack.c.0.s8 %v10734
      %v10736 = vlaneseq
      %v10737 = vshrl.u32 %v10736, 7
      %v10738 = vsub.s32 %v10735, %v10737
      %v10739 = vrot.slane %v10729, %v10738
      %v10741 = vunpack.c.l.s4 1966171168
      %v10742 = vunpack.c.0.s8 %v10741
      %v10743 = vlaneseq
      %v10744 = vshrl.u32 %v10743, 7
      %v10745 = vsub.s32 %v10742, %v10744
      %v10746 = vrot.slane %v10730, %v10745
      %v10748 = vunpack.c.l.s4 1966171168
      %v10749 = vunpack.c.0.s8 %v10748
      %v10750 = vlaneseq
      %v10751 = vshrl.u32 %v10750, 7
      %v10752 = vsub.s32 %v10749, %v10751
      %v10753 = vrot.slane %v10731, %v10752
      %v10755 = vunpack.c.l.s4 1966171168
      %v10756 = vunpack.c.0.s8 %v10755
      %v10757 = vlaneseq
      %v10758 = vshrl.u32 %v10757, 7
      %v10759 = vsub.s32 %v10756, %v10758
      %v10760 = vrot.slane %v10732, %v10759
      %v10761 = vcombine.low %v10739, %v10746
      %v10762 = vcombine.low %v10753, %v10760
      %v10764 = vunpack.c.l.s4 1966171168
      %v10765 = vunpack.c.0.s8 %v10764
      %v10766 = vlaneseq
      %v10767 = vshrl.u32 %v10766, 7
      %v10768 = vsub.s32 %v10765, %v10767
      %v10769 = vrot.slane %v10761, %v10768
      %v10771 = vunpack.c.l.s4 1966171168
      %v10772 = vunpack.c.0.s8 %v10771
      %v10773 = vlaneseq
      %v10774 = vshrl.u32 %v10773, 7
      %v10775 = vsub.s32 %v10772, %v10774
      %v10776 = vrot.slane %v10762, %v10775
      %v10777 = vcombine.low %v10769, %v10776
      %v10778 = vcombine.low %v7662, %v7666
      %v10779 = vcombine.low %v7670, %v7674
      %v10780 = vcombine.low %v7678, %v7682
      %v10781 = vcombine.low %v7686, %v7690
      %v10783 = vunpack.c.l.s4 1966171168
      %v10784 = vunpack.c.0.s8 %v10783
      %v10785 = vlaneseq
      %v10786 = vshrl.u32 %v10785, 7
      %v10787 = vsub.s32 %v10784, %v10786
      %v10788 = vrot.slane %v10778, %v10787
      %v10790 = vunpack.c.l.s4 1966171168
      %v10791 = vunpack.c.0.s8 %v10790
      %v10792 = vlaneseq
      %v10793 = vshrl.u32 %v10792, 7
      %v10794 = vsub.s32 %v10791, %v10793
      %v10795 = vrot.slane %v10779, %v10794
      %v10797 = vunpack.c.l.s4 1966171168
      %v10798 = vunpack.c.0.s8 %v10797
      %v10799 = vlaneseq
      %v10800 = vshrl.u32 %v10799, 7
      %v10801 = vsub.s32 %v10798, %v10800
      %v10802 = vrot.slane %v10780, %v10801
      %v10804 = vunpack.c.l.s4 1966171168
      %v10805 = vunpack.c.0.s8 %v10804
      %v10806 = vlaneseq
      %v10807 = vshrl.u32 %v10806, 7
      %v10808 = vsub.s32 %v10805, %v10807
      %v10809 = vrot.slane %v10781, %v10808
      %v10810 = vcombine.low %v10788, %v10795
      %v10811 = vcombine.low %v10802, %v10809
      %v10813 = vunpack.c.l.s4 1966171168
      %v10814 = vunpack.c.0.s8 %v10813
      %v10815 = vlaneseq
      %v10816 = vshrl.u32 %v10815, 7
      %v10817 = vsub.s32 %v10814, %v10816
      %v10818 = vrot.slane %v10810, %v10817
      %v10820 = vunpack.c.l.s4 1966171168
      %v10821 = vunpack.c.0.s8 %v10820
      %v10822 = vlaneseq
      %v10823 = vshrl.u32 %v10822, 7
      %v10824 = vsub.s32 %v10821, %v10823
      %v10825 = vrot.slane %v10811, %v10824
      %v10826 = vcombine.low %v10818, %v10825
      %10827 = vset.pattern.permute.xlu0 0
      %10828 = vperm.xlu0 %10827, %v7739
      %v10829 = vpop.permute.xlu0 %10828
      %10830 = vset.pattern.permute.xlu0 0
      %10831 = vperm.xlu0 %10830, %v7788
      %v10832 = vpop.permute.xlu0 %10831
      %10833 = vset.pattern.permute.xlu0 0
      %10834 = vperm.xlu0 %10833, %v7837
      %v10835 = vpop.permute.xlu0 %10834
      %10836 = vset.pattern.permute.xlu0 0
      %10837 = vperm.xlu0 %10836, %v7886
      %v10838 = vpop.permute.xlu0 %10837
      %10839 = vset.pattern.permute.xlu0 0
      %10840 = vperm.xlu0 %10839, %v7935
      %v10841 = vpop.permute.xlu0 %10840
      %10842 = vset.pattern.permute.xlu0 0
      %10843 = vperm.xlu0 %10842, %v7984
      %v10844 = vpop.permute.xlu0 %10843
      %10845 = vset.pattern.permute.xlu0 0
      %10846 = vperm.xlu0 %10845, %v8033
      %v10847 = vpop.permute.xlu0 %10846
      %10848 = vset.pattern.permute.xlu0 0
      %10849 = vperm.xlu0 %10848, %v8082
      %v10850 = vpop.permute.xlu0 %10849
      %10851 = vset.pattern.permute.xlu0 0
      %10852 = vperm.xlu0 %10851, %v8131
      %v10853 = vpop.permute.xlu0 %10852
      %10854 = vset.pattern.permute.xlu0 0
      %10855 = vperm.xlu0 %10854, %v8180
      %v10856 = vpop.permute.xlu0 %10855
      %10857 = vset.pattern.permute.xlu0 0
      %10858 = vperm.xlu0 %10857, %v8229
      %v10859 = vpop.permute.xlu0 %10858
      %10860 = vset.pattern.permute.xlu0 0
      %10861 = vperm.xlu0 %10860, %v8278
      %v10862 = vpop.permute.xlu0 %10861
      %10863 = vset.pattern.permute.xlu0 0
      %10864 = vperm.xlu0 %10863, %v8327
      %v10865 = vpop.permute.xlu0 %10864
      %10866 = vset.pattern.permute.xlu0 0
      %10867 = vperm.xlu0 %10866, %v8376
      %v10868 = vpop.permute.xlu0 %10867
      %10869 = vset.pattern.permute.xlu0 0
      %10870 = vperm.xlu0 %10869, %v8425
      %v10871 = vpop.permute.xlu0 %10870
      %10872 = vset.pattern.permute.xlu0 0
      %10873 = vperm.xlu0 %10872, %v8474
      %v10874 = vpop.permute.xlu0 %10873
      %10875 = vset.pattern.permute.xlu0 0
      %10876 = vperm.xlu0 %10875, %v8523
      %v10877 = vpop.permute.xlu0 %10876
      %10878 = vset.pattern.permute.xlu0 0
      %10879 = vperm.xlu0 %10878, %v8572
      %v10880 = vpop.permute.xlu0 %10879
      %10881 = vset.pattern.permute.xlu0 0
      %10882 = vperm.xlu0 %10881, %v8621
      %v10883 = vpop.permute.xlu0 %10882
      %10884 = vset.pattern.permute.xlu0 0
      %10885 = vperm.xlu0 %10884, %v8670
      %v10886 = vpop.permute.xlu0 %10885
      %10887 = vset.pattern.permute.xlu0 0
      %10888 = vperm.xlu0 %10887, %v8719
      %v10889 = vpop.permute.xlu0 %10888
      %10890 = vset.pattern.permute.xlu0 0
      %10891 = vperm.xlu0 %10890, %v8768
      %v10892 = vpop.permute.xlu0 %10891
      %10893 = vset.pattern.permute.xlu0 0
      %10894 = vperm.xlu0 %10893, %v8817
      %v10895 = vpop.permute.xlu0 %10894
      %10896 = vset.pattern.permute.xlu0 0
      %10897 = vperm.xlu0 %10896, %v8866
      %v10898 = vpop.permute.xlu0 %10897
      %10899 = vset.pattern.permute.xlu0 0
      %10900 = vperm.xlu0 %10899, %v8915
      %v10901 = vpop.permute.xlu0 %10900
      %10902 = vset.pattern.permute.xlu0 0
      %10903 = vperm.xlu0 %10902, %v8964
      %v10904 = vpop.permute.xlu0 %10903
      %10905 = vset.pattern.permute.xlu0 0
      %10906 = vperm.xlu0 %10905, %v9013
      %v10907 = vpop.permute.xlu0 %10906
      %10908 = vset.pattern.permute.xlu0 0
      %10909 = vperm.xlu0 %10908, %v9062
      %v10910 = vpop.permute.xlu0 %10909
      %10911 = vset.pattern.permute.xlu0 0
      %10912 = vperm.xlu0 %10911, %v9111
      %v10913 = vpop.permute.xlu0 %10912
      %10914 = vset.pattern.permute.xlu0 0
      %10915 = vperm.xlu0 %10914, %v9160
      %v10916 = vpop.permute.xlu0 %10915
      %10917 = vset.pattern.permute.xlu0 0
      %10918 = vperm.xlu0 %10917, %v9209
      %v10919 = vpop.permute.xlu0 %10918
      %10920 = vset.pattern.permute.xlu0 0
      %10921 = vperm.xlu0 %10920, %v9258
      %v10922 = vpop.permute.xlu0 %10921
      %10923 = vset.pattern.permute.xlu0 0
      %10924 = vperm.xlu0 %10923, %v9307
      %v10925 = vpop.permute.xlu0 %10924
      %10926 = vset.pattern.permute.xlu0 0
      %10927 = vperm.xlu0 %10926, %v9356
      %v10928 = vpop.permute.xlu0 %10927
      %10929 = vset.pattern.permute.xlu0 0
      %10930 = vperm.xlu0 %10929, %v9405
      %v10931 = vpop.permute.xlu0 %10930
      %10932 = vset.pattern.permute.xlu0 0
      %10933 = vperm.xlu0 %10932, %v9454
      %v10934 = vpop.permute.xlu0 %10933
      %10935 = vset.pattern.permute.xlu0 0
      %10936 = vperm.xlu0 %10935, %v9503
      %v10937 = vpop.permute.xlu0 %10936
      %10938 = vset.pattern.permute.xlu0 0
      %10939 = vperm.xlu0 %10938, %v9552
      %v10940 = vpop.permute.xlu0 %10939
      %10941 = vset.pattern.permute.xlu0 0
      %10942 = vperm.xlu0 %10941, %v9601
      %v10943 = vpop.permute.xlu0 %10942
      %10944 = vset.pattern.permute.xlu0 0
      %10945 = vperm.xlu0 %10944, %v9650
      %v10946 = vpop.permute.xlu0 %10945
      %10947 = vset.pattern.permute.xlu0 0
      %10948 = vperm.xlu0 %10947, %v9699
      %v10949 = vpop.permute.xlu0 %10948
      %10950 = vset.pattern.permute.xlu0 0
      %10951 = vperm.xlu0 %10950, %v9748
      %v10952 = vpop.permute.xlu0 %10951
      %10953 = vset.pattern.permute.xlu0 0
      %10954 = vperm.xlu0 %10953, %v9797
      %v10955 = vpop.permute.xlu0 %10954
      %10956 = vset.pattern.permute.xlu0 0
      %10957 = vperm.xlu0 %10956, %v9846
      %v10958 = vpop.permute.xlu0 %10957
      %10959 = vset.pattern.permute.xlu0 0
      %10960 = vperm.xlu0 %10959, %v9895
      %v10961 = vpop.permute.xlu0 %10960
      %10962 = vset.pattern.permute.xlu0 0
      %10963 = vperm.xlu0 %10962, %v9944
      %v10964 = vpop.permute.xlu0 %10963
      %10965 = vset.pattern.permute.xlu0 0
      %10966 = vperm.xlu0 %10965, %v9993
      %v10967 = vpop.permute.xlu0 %10966
      %10968 = vset.pattern.permute.xlu0 0
      %10969 = vperm.xlu0 %10968, %v10042
      %v10970 = vpop.permute.xlu0 %10969
      %10971 = vset.pattern.permute.xlu0 0
      %10972 = vperm.xlu0 %10971, %v10091
      %v10973 = vpop.permute.xlu0 %10972
      %10974 = vset.pattern.permute.xlu0 0
      %10975 = vperm.xlu0 %10974, %v10140
      %v10976 = vpop.permute.xlu0 %10975
      %10977 = vset.pattern.permute.xlu0 0
      %10978 = vperm.xlu0 %10977, %v10189
      %v10979 = vpop.permute.xlu0 %10978
      %10980 = vset.pattern.permute.xlu0 0
      %10981 = vperm.xlu0 %10980, %v10238
      %v10982 = vpop.permute.xlu0 %10981
      %10983 = vset.pattern.permute.xlu0 0
      %10984 = vperm.xlu0 %10983, %v10287
      %v10985 = vpop.permute.xlu0 %10984
      %10986 = vset.pattern.permute.xlu0 0
      %10987 = vperm.xlu0 %10986, %v10336
      %v10988 = vpop.permute.xlu0 %10987
      %10989 = vset.pattern.permute.xlu0 0
      %10990 = vperm.xlu0 %10989, %v10385
      %v10991 = vpop.permute.xlu0 %10990
      %10992 = vset.pattern.permute.xlu0 0
      %10993 = vperm.xlu0 %10992, %v10434
      %v10994 = vpop.permute.xlu0 %10993
      %10995 = vset.pattern.permute.xlu0 0
      %10996 = vperm.xlu0 %10995, %v10483
      %v10997 = vpop.permute.xlu0 %10996
      %10998 = vset.pattern.permute.xlu0 0
      %10999 = vperm.xlu0 %10998, %v10532
      %v11000 = vpop.permute.xlu0 %10999
      %11001 = vset.pattern.permute.xlu0 0
      %11002 = vperm.xlu0 %11001, %v10581
      %v11003 = vpop.permute.xlu0 %11002
      %11004 = vset.pattern.permute.xlu0 0
      %11005 = vperm.xlu0 %11004, %v10630
      %v11006 = vpop.permute.xlu0 %11005
      %11007 = vset.pattern.permute.xlu0 0
      %11008 = vperm.xlu0 %11007, %v10679
      %v11009 = vpop.permute.xlu0 %11008
      %11010 = vset.pattern.permute.xlu0 0
      %11011 = vperm.xlu0 %11010, %v10728
      %v11012 = vpop.permute.xlu0 %11011
      %11013 = vset.pattern.permute.xlu0 0
      %11014 = vperm.xlu0 %11013, %v10777
      %v11015 = vpop.permute.xlu0 %11014
      %11016 = vset.pattern.permute.xlu0 0
      %11017 = vperm.xlu0 %11016, %v10826
      %v11018 = vpop.permute.xlu0 %11017
      %v11019 = vlaneseq
      %v11020 = vand.u32 %v11019, 127
      %v11021 = vlaneseq
      %v11022 = vshrl.u32 %v11021, 7
      %v11023 = vsub.s32 %v11020, %v11022
      %v11024 = vrot.slane %v10829, %v11023
      %v11025 = vadd.s32 %v11020, 4294967288
      %v11026 = vlaneseq
      %v11027 = vshrl.u32 %v11026, 7
      %v11028 = vsub.s32 %v11025, %v11027
      %v11029 = vrot.slane %v10832, %v11028
      %vm11030 = vcmask 130112
      %v11031 = vsel %vm11030, %v11029, %v11024
      %v11032 = vadd.s32 %v11020, 4294967280
      %v11033 = vlaneseq
      %v11034 = vshrl.u32 %v11033, 7
      %v11035 = vsub.s32 %v11032, %v11034
      %v11036 = vrot.slane %v10835, %v11035
      %vm11037 = vcmask 195712
      %v11038 = vsel %vm11037, %v11036, %v11031
      %v11039 = vadd.s32 %v11020, 4294967272
      %v11040 = vlaneseq
      %v11041 = vshrl.u32 %v11040, 7
      %v11042 = vsub.s32 %v11039, %v11041
      %v11043 = vrot.slane %v10838, %v11042
      %vm11044 = vcmask 261312
      %v11045 = vsel %vm11044, %v11043, %v11038
      %v11046 = vadd.s32 %v11020, 4294967264
      %v11047 = vlaneseq
      %v11048 = vshrl.u32 %v11047, 7
      %v11049 = vsub.s32 %v11046, %v11048
      %v11050 = vrot.slane %v10841, %v11049
      %vm11051 = vcmask 326912
      %v11052 = vsel %vm11051, %v11050, %v11045
      %v11053 = vadd.s32 %v11020, 4294967256
      %v11054 = vlaneseq
      %v11055 = vshrl.u32 %v11054, 7
      %v11056 = vsub.s32 %v11053, %v11055
      %v11057 = vrot.slane %v10844, %v11056
      %vm11058 = vcmask 392512
      %v11059 = vsel %vm11058, %v11057, %v11052
      %v11060 = vadd.s32 %v11020, 4294967248
      %v11061 = vlaneseq
      %v11062 = vshrl.u32 %v11061, 7
      %v11063 = vsub.s32 %v11060, %v11062
      %v11064 = vrot.slane %v10847, %v11063
      %vm11065 = vcmask 458112
      %v11066 = vsel %vm11065, %v11064, %v11059
      %v11067 = vadd.s32 %v11020, 4294967240
      %v11068 = vlaneseq
      %v11069 = vshrl.u32 %v11068, 7
      %v11070 = vsub.s32 %v11067, %v11069
      %v11071 = vrot.slane %v10850, %v11070
      %vm11072 = vcmask 523712
      %v11073 = vsel %vm11072, %v11071, %v11066
      %v11074 = vadd.s32 %v11020, 4294967232
      %v11075 = vlaneseq
      %v11076 = vshrl.u32 %v11075, 7
      %v11077 = vsub.s32 %v11074, %v11076
      %v11078 = vrot.slane %v10853, %v11077
      %vm11079 = vcmask 589312
      %v11080 = vsel %vm11079, %v11078, %v11073
      %v11081 = vadd.s32 %v11020, 4294967224
      %v11082 = vlaneseq
      %v11083 = vshrl.u32 %v11082, 7
      %v11084 = vsub.s32 %v11081, %v11083
      %v11085 = vrot.slane %v10856, %v11084
      %vm11086 = vcmask 654912
      %v11087 = vsel %vm11086, %v11085, %v11080
      %v11088 = vadd.s32 %v11020, 4294967216
      %v11089 = vlaneseq
      %v11090 = vshrl.u32 %v11089, 7
      %v11091 = vsub.s32 %v11088, %v11090
      %v11092 = vrot.slane %v10859, %v11091
      %vm11093 = vcmask 720512
      %v11094 = vsel %vm11093, %v11092, %v11087
      %v11095 = vadd.s32 %v11020, 4294967208
      %v11096 = vlaneseq
      %v11097 = vshrl.u32 %v11096, 7
      %v11098 = vsub.s32 %v11095, %v11097
      %v11099 = vrot.slane %v10862, %v11098
      %vm11100 = vcmask 786112
      %v11101 = vsel %vm11100, %v11099, %v11094
      %v11102 = vadd.s32 %v11020, 4294967200
      %v11103 = vlaneseq
      %v11104 = vshrl.u32 %v11103, 7
      %v11105 = vsub.s32 %v11102, %v11104
      %v11106 = vrot.slane %v10865, %v11105
      %vm11107 = vcmask 851712
      %v11108 = vsel %vm11107, %v11106, %v11101
      %v11109 = vadd.s32 %v11020, 4294967192
      %v11110 = vlaneseq
      %v11111 = vshrl.u32 %v11110, 7
      %v11112 = vsub.s32 %v11109, %v11111
      %v11113 = vrot.slane %v10868, %v11112
      %vm11114 = vcmask 917312
      %v11115 = vsel %vm11114, %v11113, %v11108
      %v11116 = vadd.s32 %v11020, 4294967184
      %v11117 = vlaneseq
      %v11118 = vshrl.u32 %v11117, 7
      %v11119 = vsub.s32 %v11116, %v11118
      %v11120 = vrot.slane %v10871, %v11119
      %vm11121 = vcmask 982912
      %v11122 = vsel %vm11121, %v11120, %v11115
      %v11123 = vadd.s32 %v11020, 4294967176
      %v11124 = vlaneseq
      %v11125 = vshrl.u32 %v11124, 7
      %v11126 = vsub.s32 %v11123, %v11125
      %v11127 = vrot.slane %v10874, %v11126
      %vm11128 = vcmask 1048512
      %v11129 = vsel %vm11128, %v11127, %v11122
      %v11130 = vlaneseq
      %v11131 = vshrl.u32 %v11130, 7
      %v11132 = vsub.s32 %v11020, %v11131
      %v11133 = vrot.slane %v10877, %v11132
      %v11134 = vlaneseq
      %v11135 = vshrl.u32 %v11134, 7
      %v11136 = vsub.s32 %v11025, %v11135
      %v11137 = vrot.slane %v10880, %v11136
      %v11138 = vsel %vm11030, %v11137, %v11133
      %v11139 = vlaneseq
      %v11140 = vshrl.u32 %v11139, 7
      %v11141 = vsub.s32 %v11032, %v11140
      %v11142 = vrot.slane %v10883, %v11141
      %v11143 = vsel %vm11037, %v11142, %v11138
      %v11144 = vlaneseq
      %v11145 = vshrl.u32 %v11144, 7
      %v11146 = vsub.s32 %v11039, %v11145
      %v11147 = vrot.slane %v10886, %v11146
      %v11148 = vsel %vm11044, %v11147, %v11143
      %v11149 = vlaneseq
      %v11150 = vshrl.u32 %v11149, 7
      %v11151 = vsub.s32 %v11046, %v11150
      %v11152 = vrot.slane %v10889, %v11151
      %v11153 = vsel %vm11051, %v11152, %v11148
      %v11154 = vlaneseq
      %v11155 = vshrl.u32 %v11154, 7
      %v11156 = vsub.s32 %v11053, %v11155
      %v11157 = vrot.slane %v10892, %v11156
      %v11158 = vsel %vm11058, %v11157, %v11153
      %v11159 = vlaneseq
      %v11160 = vshrl.u32 %v11159, 7
      %v11161 = vsub.s32 %v11060, %v11160
      %v11162 = vrot.slane %v10895, %v11161
      %v11163 = vsel %vm11065, %v11162, %v11158
      %v11164 = vlaneseq
      %v11165 = vshrl.u32 %v11164, 7
      %v11166 = vsub.s32 %v11067, %v11165
      %v11167 = vrot.slane %v10898, %v11166
      %v11168 = vsel %vm11072, %v11167, %v11163
      %v11169 = vlaneseq
      %v11170 = vshrl.u32 %v11169, 7
      %v11171 = vsub.s32 %v11074, %v11170
      %v11172 = vrot.slane %v10901, %v11171
      %v11173 = vsel %vm11079, %v11172, %v11168
      %v11174 = vlaneseq
      %v11175 = vshrl.u32 %v11174, 7
      %v11176 = vsub.s32 %v11081, %v11175
      %v11177 = vrot.slane %v10904, %v11176
      %v11178 = vsel %vm11086, %v11177, %v11173
      %v11179 = vlaneseq
      %v11180 = vshrl.u32 %v11179, 7
      %v11181 = vsub.s32 %v11088, %v11180
      %v11182 = vrot.slane %v10907, %v11181
      %v11183 = vsel %vm11093, %v11182, %v11178
      %v11184 = vlaneseq
      %v11185 = vshrl.u32 %v11184, 7
      %v11186 = vsub.s32 %v11095, %v11185
      %v11187 = vrot.slane %v10910, %v11186
      %v11188 = vsel %vm11100, %v11187, %v11183
      %v11189 = vlaneseq
      %v11190 = vshrl.u32 %v11189, 7
      %v11191 = vsub.s32 %v11102, %v11190
      %v11192 = vrot.slane %v10913, %v11191
      %v11193 = vsel %vm11107, %v11192, %v11188
      %v11194 = vlaneseq
      %v11195 = vshrl.u32 %v11194, 7
      %v11196 = vsub.s32 %v11109, %v11195
      %v11197 = vrot.slane %v10916, %v11196
      %v11198 = vsel %vm11114, %v11197, %v11193
      %v11199 = vlaneseq
      %v11200 = vshrl.u32 %v11199, 7
      %v11201 = vsub.s32 %v11116, %v11200
      %v11202 = vrot.slane %v10919, %v11201
      %v11203 = vsel %vm11121, %v11202, %v11198
      %v11204 = vlaneseq
      %v11205 = vshrl.u32 %v11204, 7
      %v11206 = vsub.s32 %v11123, %v11205
      %v11207 = vrot.slane %v10922, %v11206
      %v11208 = vsel %vm11128, %v11207, %v11203
      %v11209 = vlaneseq
      %v11210 = vshrl.u32 %v11209, 7
      %v11211 = vsub.s32 %v11020, %v11210
      %v11212 = vrot.slane %v10925, %v11211
      %v11213 = vlaneseq
      %v11214 = vshrl.u32 %v11213, 7
      %v11215 = vsub.s32 %v11025, %v11214
      %v11216 = vrot.slane %v10928, %v11215
      %v11217 = vsel %vm11030, %v11216, %v11212
      %v11218 = vlaneseq
      %v11219 = vshrl.u32 %v11218, 7
      %v11220 = vsub.s32 %v11032, %v11219
      %v11221 = vrot.slane %v10931, %v11220
      %v11222 = vsel %vm11037, %v11221, %v11217
      %v11223 = vlaneseq
      %v11224 = vshrl.u32 %v11223, 7
      %v11225 = vsub.s32 %v11039, %v11224
      %v11226 = vrot.slane %v10934, %v11225
      %v11227 = vsel %vm11044, %v11226, %v11222
      %v11228 = vlaneseq
      %v11229 = vshrl.u32 %v11228, 7
      %v11230 = vsub.s32 %v11046, %v11229
      %v11231 = vrot.slane %v10937, %v11230
      %v11232 = vsel %vm11051, %v11231, %v11227
      %v11233 = vlaneseq
      %v11234 = vshrl.u32 %v11233, 7
      %v11235 = vsub.s32 %v11053, %v11234
      %v11236 = vrot.slane %v10940, %v11235
      %v11237 = vsel %vm11058, %v11236, %v11232
      %v11238 = vlaneseq
      %v11239 = vshrl.u32 %v11238, 7
      %v11240 = vsub.s32 %v11060, %v11239
      %v11241 = vrot.slane %v10943, %v11240
      %v11242 = vsel %vm11065, %v11241, %v11237
      %v11243 = vlaneseq
      %v11244 = vshrl.u32 %v11243, 7
      %v11245 = vsub.s32 %v11067, %v11244
      %v11246 = vrot.slane %v10946, %v11245
      %v11247 = vsel %vm11072, %v11246, %v11242
      %v11248 = vlaneseq
      %v11249 = vshrl.u32 %v11248, 7
      %v11250 = vsub.s32 %v11074, %v11249
      %v11251 = vrot.slane %v10949, %v11250
      %v11252 = vsel %vm11079, %v11251, %v11247
      %v11253 = vlaneseq
      %v11254 = vshrl.u32 %v11253, 7
      %v11255 = vsub.s32 %v11081, %v11254
      %v11256 = vrot.slane %v10952, %v11255
      %v11257 = vsel %vm11086, %v11256, %v11252
      %v11258 = vlaneseq
      %v11259 = vshrl.u32 %v11258, 7
      %v11260 = vsub.s32 %v11088, %v11259
      %v11261 = vrot.slane %v10955, %v11260
      %v11262 = vsel %vm11093, %v11261, %v11257
      %v11263 = vlaneseq
      %v11264 = vshrl.u32 %v11263, 7
      %v11265 = vsub.s32 %v11095, %v11264
      %v11266 = vrot.slane %v10958, %v11265
      %v11267 = vsel %vm11100, %v11266, %v11262
      %v11268 = vlaneseq
      %v11269 = vshrl.u32 %v11268, 7
      %v11270 = vsub.s32 %v11102, %v11269
      %v11271 = vrot.slane %v10961, %v11270
      %v11272 = vsel %vm11107, %v11271, %v11267
      %v11273 = vlaneseq
      %v11274 = vshrl.u32 %v11273, 7
      %v11275 = vsub.s32 %v11109, %v11274
      %v11276 = vrot.slane %v10964, %v11275
      %v11277 = vsel %vm11114, %v11276, %v11272
      %v11278 = vlaneseq
      %v11279 = vshrl.u32 %v11278, 7
      %v11280 = vsub.s32 %v11116, %v11279
      %v11281 = vrot.slane %v10967, %v11280
      %v11282 = vsel %vm11121, %v11281, %v11277
      %v11283 = vlaneseq
      %v11284 = vshrl.u32 %v11283, 7
      %v11285 = vsub.s32 %v11123, %v11284
      %v11286 = vrot.slane %v10970, %v11285
      %v11287 = vsel %vm11128, %v11286, %v11282
      %v11288 = vlaneseq
      %v11289 = vshrl.u32 %v11288, 7
      %v11290 = vsub.s32 %v11020, %v11289
      %v11291 = vrot.slane %v10973, %v11290
      %v11292 = vlaneseq
      %v11293 = vshrl.u32 %v11292, 7
      %v11294 = vsub.s32 %v11025, %v11293
      %v11295 = vrot.slane %v10976, %v11294
      %v11296 = vsel %vm11030, %v11295, %v11291
      %v11297 = vlaneseq
      %v11298 = vshrl.u32 %v11297, 7
      %v11299 = vsub.s32 %v11032, %v11298
      %v11300 = vrot.slane %v10979, %v11299
      %v11301 = vsel %vm11037, %v11300, %v11296
      %v11302 = vlaneseq
      %v11303 = vshrl.u32 %v11302, 7
      %v11304 = vsub.s32 %v11039, %v11303
      %v11305 = vrot.slane %v10982, %v11304
      %v11306 = vsel %vm11044, %v11305, %v11301
      %v11307 = vlaneseq
      %v11308 = vshrl.u32 %v11307, 7
      %v11309 = vsub.s32 %v11046, %v11308
      %v11310 = vrot.slane %v10985, %v11309
      %v11311 = vsel %vm11051, %v11310, %v11306
      %v11312 = vlaneseq
      %v11313 = vshrl.u32 %v11312, 7
      %v11314 = vsub.s32 %v11053, %v11313
      %v11315 = vrot.slane %v10988, %v11314
      %v11316 = vsel %vm11058, %v11315, %v11311
      %v11317 = vlaneseq
      %v11318 = vshrl.u32 %v11317, 7
      %v11319 = vsub.s32 %v11060, %v11318
      %v11320 = vrot.slane %v10991, %v11319
      %v11321 = vsel %vm11065, %v11320, %v11316
      %v11322 = vlaneseq
      %v11323 = vshrl.u32 %v11322, 7
      %v11324 = vsub.s32 %v11067, %v11323
      %v11325 = vrot.slane %v10994, %v11324
      %v11326 = vsel %vm11072, %v11325, %v11321
      %v11327 = vlaneseq
      %v11328 = vshrl.u32 %v11327, 7
      %v11329 = vsub.s32 %v11074, %v11328
      %v11330 = vrot.slane %v10997, %v11329
      %v11331 = vsel %vm11079, %v11330, %v11326
      %v11332 = vlaneseq
      %v11333 = vshrl.u32 %v11332, 7
      %v11334 = vsub.s32 %v11081, %v11333
      %v11335 = vrot.slane %v11000, %v11334
      %v11336 = vsel %vm11086, %v11335, %v11331
      %v11337 = vlaneseq
      %v11338 = vshrl.u32 %v11337, 7
      %v11339 = vsub.s32 %v11088, %v11338
      %v11340 = vrot.slane %v11003, %v11339
      %v11341 = vsel %vm11093, %v11340, %v11336
      %v11342 = vlaneseq
      %v11343 = vshrl.u32 %v11342, 7
      %v11344 = vsub.s32 %v11095, %v11343
      %v11345 = vrot.slane %v11006, %v11344
      %v11346 = vsel %vm11100, %v11345, %v11341
      %v11347 = vlaneseq
      %v11348 = vshrl.u32 %v11347, 7
      %v11349 = vsub.s32 %v11102, %v11348
      %v11350 = vrot.slane %v11009, %v11349
      %v11351 = vsel %vm11107, %v11350, %v11346
      %v11352 = vlaneseq
      %v11353 = vshrl.u32 %v11352, 7
      %v11354 = vsub.s32 %v11109, %v11353
      %v11355 = vrot.slane %v11012, %v11354
      %v11356 = vsel %vm11114, %v11355, %v11351
      %v11357 = vlaneseq
      %v11358 = vshrl.u32 %v11357, 7
      %v11359 = vsub.s32 %v11116, %v11358
      %v11360 = vrot.slane %v11015, %v11359
      %v11361 = vsel %vm11121, %v11360, %v11356
      %v11362 = vlaneseq
      %v11363 = vshrl.u32 %v11362, 7
      %v11364 = vsub.s32 %v11123, %v11363
      %v11365 = vrot.slane %v11018, %v11364
      %v11366 = vsel %vm11128, %v11365, %v11361
      %v11367 = vcombine.low %v11129, %v11208
      %v11368 = vcombine.low %v11287, %v11366
      %v11370 = vunpack.c.l.s4 1966171168
      %v11371 = vunpack.c.0.s8 %v11370
      %v11372 = vlaneseq
      %v11373 = vshrl.u32 %v11372, 7
      %v11374 = vsub.s32 %v11371, %v11373
      %v11375 = vrot.slane %v11367, %v11374
      %v11377 = vunpack.c.l.s4 1966171168
      %v11378 = vunpack.c.0.s8 %v11377
      %v11379 = vlaneseq
      %v11380 = vshrl.u32 %v11379, 7
      %v11381 = vsub.s32 %v11378, %v11380
      %v11382 = vrot.slane %v11368, %v11381
      %v11383 = vcombine.low %v11375, %v11382
      %v11385 = vunpack.c.l.s4 1966171168
      %v11386 = vunpack.c.0.s8 %v11385
      %v11387 = vlaneseq
      %v11388 = vshrl.u32 %v11387, 7
      %v11389 = vsub.s32 %v11386, %v11388
      %v11390 = vrot.slane %v11383, %v11389
      %v11392 = vlaneseq
      %vm11393 = vcmp.ge.s32.totalorder %v11392, 0
      %vm11394 = vcmp.lt.s32.totalorder %v11392, 512
      %vm11395 = vmand %vm11393, %vm11394
      %11396 = vst.msk [vmem:[%s352] sm:$0xf] %vm11395, %v11390
      %p11397 = scmp.lt.s32.totalorder %s24, 1
      %s11398 = scalar_select %p11397, %s24, 1
      %p11399 = scmp.lt.s32.totalorder %s25, 0
      %s11400 = scalar_select %p11399, %s25, 0
      %s11401 = smul.addr %s11400, 4
      %s11402 = smul.addr %s11398, 4
      %s11403 = sadd.s32 %s11401, %s11402
      %s11404 = scalar_lea.vmem %s9, %s11403
      // Predicated region
      $region57: #{_lambda_.1} parent=55 // pred_check
        %p11405 = pneg %p246
      $region58: #{_lambda_.1} parent=55 // pred_check_branch
        %11407 = sbr.rel (%p11405) target = $region60
      $region59: #{_lambda_.1} parent=55 // pred_region
        _
      $region60: #{_lambda_.1} parent=55 // pred_fallthru
        _
    $region56: #{_lambda_.1} parent=5 // pred_fallthru
      _
    %p11408 = scmp.le.s32.totalorder 2, %s15
    // Predicated region
    $region61: #{_lambda_.1} parent=5 // pred_check
      %p11409 = pneg %p11408
    $region62: #{_lambda_.1} parent=5 // pred_check_branch
      %11411 = sbr.rel (%p11409) target = $region64
    $region63: #{_lambda_.1} parent=5 // pred_region
      %s11412 = ssub.s32 %s15, 2
      // Predicated region
      $region65: #{_lambda_.1} parent=63 // pred_check
        %p11413 = pneg %p252
      $region66: #{_lambda_.1} parent=63 // pred_check_branch
        %11415 = sbr.rel (%p11413) target = $region68
      $region67: #{_lambda_.1} parent=63 // pred_region
        %p11416 = scmp.lt.s32.totalorder %s26, 1
        %s11417 = scalar_select %p11416, %s26, 1
        %p11418 = scmp.lt.s32.totalorder %s27, 0
        %s11419 = scalar_select %p11418, %s27, 0
        %s11420 = smul.addr %s11419, 4
        %s11421 = smul.addr %s11417, 4
        %s11422 = sadd.s32 %s11420, %s11421
        %s11423 = scalar_lea.vmem %s9, %s11422
      $region68: #{_lambda_.1} parent=63 // pred_fallthru
        _
    $region64: #{_lambda_.1} parent=5 // pred_fallthru
      _
  $region6: #{_lambda_.1} parent=0 // loop_footer
    %s19 = sadd.s32 1, %s15
  $region7: #{_lambda_.1} parent=0 // loop_footer_branch
    %14 = sbr.rel target = $region3
  $region8: #{_lambda_.1} parent=0 // loop_exit
    _

</llo_original>
